<compile_context>
chip_gen: v5e
topology: v5e:2x2
jax: 0.10.0
libtpu: 0.0.40
codegen_flags: <defaults>
</compile_context>

<pallas_src>
import functools

import jax
import jax.numpy as jnp
from jax import lax
from jax.experimental import pallas as pl
from jax.experimental.pallas import tpu as pltpu

_VMEM_LIMIT = 48 * 1024 * 1024


def _leaky(x):
    # nn.LeakyReLU(negative_slope=0.1)
    return jnp.where(x >= 0, x, 0.1 * x)


def _pick_extent(n, cap, quantum=128):
    """Largest extent <= cap that is either == n or a divisor of n and a multiple of quantum."""
    if n <= cap:
        return n
    d = (cap // quantum) * quantum
    while d >= quantum:
        if n % d == 0:
            return d
        d -= quantum
    raise ValueError(f"no divisor of {n} <= {cap} that is a multiple of {quantum}")


def _full_spec(shape):
    return pl.BlockSpec(shape, lambda b, t: (0, 0))


# --------------------------------------------------------------------------------------
# Kernel 1: FusionAwareInterp (k=1) fused with the two SKFusion-2d align convs and the
#           SK global-average-pool partial sum.  Channels on sublanes, pixels on lanes.
# --------------------------------------------------------------------------------------
def _interp_align2d_kernel(
    uv_ref, f2d_ref, f3d_ref,
    ws1x_ref, ws1y_ref, ws1n_ref, bs1_ref,
    ws2_ref, bs2_ref, woc_ref, boc_ref,
    wa1_ref, ba1_ref, wa2_ref, ba2_ref,
    a1_ref, a2_ref, pool_ref,
    dmin_ref, nnid_ref, uvsel_ref, fsel_ref,
    *, width, m_chunk, use_bf16,
):
    t = pl.program_id(1)
    tile = a1_ref.shape[2]
    m_total = uv_ref.shape[2]
    n_chunks = m_total // m_chunk
    mxu_dt = jnp.bfloat16 if use_bf16 else jnp.float32
    contract = (((1,), (1,)), ((), ()))

    base = (t * tile).astype(jnp.float32)
    # pixel coordinates of this tile (row-major p = y*W + x), in both orientations.
    # NOTE: float pixel/point-index math is exact only while H*W and M < 2**24.
    p_row = jax.lax.broadcasted_iota(jnp.int32, (1, tile), 1).astype(jnp.float32) + base
    py_row = jnp.floor(p_row / width)
    px_row = p_row - py_row * width                          # [1, T]
    p_col = jax.lax.broadcasted_iota(jnp.int32, (tile, 1), 0).astype(jnp.float32) + base
    py_col = jnp.floor(p_col / width)
    px_col = p_col - py_col * width                          # [T, 1]

    # ---- pass 1: running nearest-neighbour (k = 1) over M chunks (never builds [M, T]) ----
    dmin_ref[...] = jnp.full(dmin_ref.shape, jnp.inf, dmin_ref.dtype)
    nnid_ref[...] = jnp.zeros_like(nnid_ref)

    @pl.loop(0, n_chunks)
    def _(c):
        off = pl.multiple_of(c * m_chunk, m_chunk)
        u_row = uv_ref[0, 0:1, pl.ds(off, m_chunk)]          # [1, Mc] (lane-major, no transpose)
        v_row = uv_ref[0, 1:2, pl.ds(off, m_chunk)]
        d2 = (px_col - u_row) ** 2 + (py_col - v_row) ** 2   # [T, Mc]
        cmin = jnp.min(d2, axis=1, keepdims=True)            # [T, 1]
        gidx = (jax.lax.broadcasted_iota(jnp.int32, (1, m_chunk), 1) + off).astype(jnp.float32)
        cand = jnp.where(d2 == cmin, gidx, jnp.float32(m_total))
        cidx = jnp.min(cand, axis=1, keepdims=True)          # first-index tie-break in chunk
        better = cmin < dmin_ref[...]                        # strict '<': keeps earliest chunk
        dmin_ref[...] = jnp.where(better, cmin, dmin_ref[...])
        nnid_ref[...] = jnp.where(better, cidx, nnid_ref[...])

    # ---- pass 2: gather the winner's uv / feature via per-chunk one-hot matmuls ----
    uvsel_ref[...] = jnp.zeros_like(uvsel_ref)
    fsel_ref[...] = jnp.zeros_like(fsel_ref)

    @pl.loop(0, n_chunks)
    def _(c):
        off = pl.multiple_of(c * m_chunk, m_chunk)
        gidx = (jax.lax.broadcasted_iota(jnp.int32, (1, m_chunk), 1) + off).astype(jnp.float32)
        onehot = (gidx == nnid_ref[...]).astype(jnp.float32)  # [T, Mc]; one 1 per row overall
        uv_chunk = uv_ref[0, :, pl.ds(off, m_chunk)]          # [2, Mc]
        f3d_chunk = f3d_ref[0, :, pl.ds(off, m_chunk)]        # [C3d, Mc]
        uvsel_ref[...] += lax.dot_general(
            uv_chunk, onehot, contract, preferred_element_type=jnp.float32)       # [2, T]
        fsel_ref[...] += lax.dot_general(
            f3d_chunk.astype(mxu_dt), onehot.astype(mxu_dt), contract,
            preferred_element_type=jnp.float32)                                    # [C3d, T]

    # score_net[0] (3 -> 16, 1x1 conv): 3 broadcast MACs on the VPU instead of a K=3 MXU push
    ox = uvsel_ref[0:1, :] - px_row
    oy = uvsel_ref[1:2, :] - py_row
    onorm = jnp.sqrt(ox * ox + oy * oy)
    h = _leaky(ws1x_ref[...] * ox + ws1y_ref[...] * oy + ws1n_ref[...] * onorm + bs1_ref[...])
    # score_net[1] (16 -> C3d, sigmoid)
    score = jax.nn.sigmoid(
        jnp.dot(ws2_ref[...], h, preferred_element_type=jnp.float32) + bs2_ref[...])
    interp = score * fsel_ref[...]
    # out_conv (C3d -> C3d, leaky)
    f3di = _leaky(jnp.dot(woc_ref[...], interp, preferred_element_type=jnp.float32) + boc_ref[...])

    # SKFusion-2d aligns
    f2d = f2d_ref[0]
    a1 = _leaky(jnp.dot(wa1_ref[...], f2d, preferred_element_type=jnp.float32) + ba1_ref[...])
    a2 = _leaky(jnp.dot(wa2_ref[...], f3di, preferred_element_type=jnp.float32) + ba2_ref[...])
    a1_ref[0] = a1
    a2_ref[0] = a2

    # fused SK global-average-pool partial sums (resident accumulator across the t axis)
    @pl.when(t == 0)
    def _():
        pool_ref[...] = jnp.zeros_like(pool_ref)

    pool_ref[0] += jnp.sum(a1 + a2, axis=-1, keepdims=True)


# --------------------------------------------------------------------------------------
# Kernel 2: bilinear grid_sample (align_corners=True, zeros padding) + mlps3d + SKFusion-3d
#           aligns + fused pool partial sum.  The HW contraction is chunked in-kernel.
# --------------------------------------------------------------------------------------
def _sample_mlp_align3d_kernel(
    uv_ref, f2d_ref, f3d_ref,
    wm_ref, bm_ref, wa1_ref, ba1_ref, wa2_ref, ba2_ref,
    a1_ref, a2_ref, pool_ref,
    samp_ref,
    *, width, hw_chunk, use_bf16,
):
    t = pl.program_id(1)
    hw_total = f2d_ref.shape[2]
    n_chunks = hw_total // hw_chunk
    mxu_dt = jnp.bfloat16 if use_bf16 else jnp.float32

    u = uv_ref[0, 0:1, :]                                     # [1, TM]
    v = uv_ref[0, 1:2, :]

    samp_ref[...] = jnp.zeros_like(samp_ref)

    @pl.loop(0, n_chunks)
    def _(c):
        off = pl.multiple_of(c * hw_chunk, hw_chunk)
        pcol = (jax.lax.broadcasted_iota(jnp.int32, (hw_chunk, 1), 0) + off).astype(jnp.float32)
        pyc = jnp.floor(pcol / width)
        pxc = pcol - pyc * width                              # [Hc, 1]
        wx = jnp.maximum(0.0, 1.0 - jnp.abs(pxc - u))         # [Hc, TM]
        wy = jnp.maximum(0.0, 1.0 - jnp.abs(pyc - v))
        tent = wx * wy                                        # exact bilinear weights, zeros padding
        f2d_chunk = f2d_ref[0, :, pl.ds(off, hw_chunk)]       # [C2d, Hc]
        samp_ref[...] += jnp.dot(f2d_chunk.astype(mxu_dt), tent.astype(mxu_dt),
                                 preferred_element_type=jnp.float32)

    mfeat = _leaky(jnp.dot(wm_ref[...], samp_ref[...], preferred_element_type=jnp.float32)
                   + bm_ref[...])
    a1 = _leaky(jnp.dot(wa1_ref[...], mfeat, preferred_element_type=jnp.float32) + ba1_ref[...])
    a2 = _leaky(jnp.dot(wa2_ref[...], f3d_ref[0], preferred_element_type=jnp.float32) + ba2_ref[...])
    a1_ref[0] = a1
    a2_ref[0] = a2

    @pl.when(t == 0)
    def _():
        pool_ref[...] = jnp.zeros_like(pool_ref)

    pool_ref[0] += jnp.sum(a1 + a2, axis=-1, keepdims=True)


# --------------------------------------------------------------------------------------
# Kernel 3 (shared): apply the SK gating weights:  out = a1 * w1 + a2 * w2
# --------------------------------------------------------------------------------------
def _gate_kernel(a1_ref, a2_ref, w1_ref, w2_ref, o_ref):
    o_ref[...] = a1_ref[...] * w1_ref[...] + a2_ref[...] * w2_ref[...]


def _sk_gate_weights(pooled, w_mid, w_out):
    """fc_mid(ReLU) -> fc_out(sigmoid) -> pairwise softmax. Returns (w1, w2), each [B, C, 1]."""
    z = jax.nn.relu(pooled @ w_mid)
    s = jax.nn.sigmoid(z @ w_out)                             # [B, 2*C]
    wgt = jax.nn.softmax(s.reshape(s.shape[0], -1, 2), axis=-1)
    return wgt[..., 0:1], wgt[..., 1:2]


def clfm_forward(uv, feat_2d, feat_3d, params, *,
                 max_tile=1024, max_m_chunk=256, max_hw_chunk=512, use_bf16_mxu=False):
    """uv: [B, 2, M] pixel coords, feat_2d: [B, C2d, H, W], feat_3d: [B, C3d, M]."""
    B, C2d, H, W = feat_2d.shape
    C3d, M = feat_3d.shape[1], feat_3d.shape[2]
    HW = H * W

    tile_hw = _pick_extent(HW, max_tile)
    tile_m = _pick_extent(M, max_tile)
    m_chunk = _pick_extent(M, max_m_chunk)
    hw_chunk = _pick_extent(HW, max_hw_chunk)

    f32 = jnp.float32
    f2d_flat = feat_2d.reshape(B, C2d, HW).astype(f32)
    feat_3d = feat_3d.astype(f32)
    uv = uv.astype(f32)                                       # [B, 2, M] lane-major (no [M,1] blocks)

    col = lambda b_: b_.reshape(-1, 1)
    ws1 = params["interp_ws1"]                                # [16, 3]
    ws1x, ws1y, ws1n = ws1[:, 0:1], ws1[:, 1:2], ws1[:, 2:3]
    nh = ws1.shape[0]

    cparams_main = pltpu.CompilerParams(
        dimension_semantics=("parallel", "arbitrary"),        # t carries the pool accumulator
        vmem_limit_bytes=_VMEM_LIMIT)
    cparams_gate = pltpu.CompilerParams(
        dimension_semantics=("parallel", "parallel"),         # no cross-t deps -> v7x can split t
        vmem_limit_bytes=_VMEM_LIMIT)

    # ---------------- pass 1: interp (k=1) + fuse2d aligns + pooled sum ----------------
    row2d = lambda c: pl.BlockSpec((1, c, tile_hw), lambda b, t: (b, 0, t))
    perb = lambda shape: pl.BlockSpec(shape, lambda b, t: (b, 0, 0))

    a1_2d, a2_2d, psum2d = pl.pallas_call(
        functools.partial(_interp_align2d_kernel, width=float(W),
                          m_chunk=m_chunk, use_bf16=use_bf16_mxu),
        grid=(B, HW // tile_hw),
        in_specs=[
            perb((1, 2, M)),                                   # uv, lane-major, whole slab per batch
            row2d(C2d),
            perb((1, C3d, M)),
            _full_spec((nh, 1)), _full_spec((nh, 1)), _full_spec((nh, 1)), _full_spec((nh, 1)),
            _full_spec((C3d, nh)), _full_spec((C3d, 1)),
            _full_spec((C3d, C3d)), _full_spec((C3d, 1)),
            _full_spec((C2d, C2d)), _full_spec((C2d, 1)),
            _full_spec((C2d, C3d)), _full_spec((C2d, 1)),
        ],
        out_specs=(row2d(C2d), row2d(C2d),
                   pl.BlockSpec((1, C2d, 1), lambda b, t: (b, 0, 0))),
        out_shape=(jax.ShapeDtypeStruct((B, C2d, HW), f32),
                   jax.ShapeDtypeStruct((B, C2d, HW), f32),
                   jax.ShapeDtypeStruct((B, C2d, 1), f32)),
        scratch_shapes=[
            pltpu.VMEM((tile_hw, 1), f32),                     # running min distance
            pltpu.VMEM((tile_hw, 1), f32),                     # running nn index (float)
            pltpu.VMEM((2, tile_hw), f32),                     # selected uv
            pltpu.VMEM((C3d, tile_hw), f32),                   # selected features
        ],
        compiler_params=cparams_main,
    )(
        uv, f2d_flat, feat_3d,
        ws1x, ws1y, ws1n, col(params["interp_bs1"]),
        params["interp_ws2"], col(params["interp_bs2"]),
        params["interp_woc"], col(params["interp_boc"]),
        params["f2_wa1"], col(params["f2_b1"]),
        params["f2_wa2"], col(params["f2_b2"]),
    )

    pooled2d = psum2d[:, :, 0] / HW                            # fused pool (no extra HBM pass)
    w1_2d, w2_2d = _sk_gate_weights(pooled2d, params["f2_wmid"], params["f2_wout"])

    def gate_specs(c, tile):
        return dict(
            in_specs=[
                pl.BlockSpec((1, c, tile), lambda b, t: (b, 0, t)),
                pl.BlockSpec((1, c, tile), lambda b, t: (b, 0, t)),
                pl.BlockSpec((1, c, 1), lambda b, t: (b, 0, 0)),
                pl.BlockSpec((1, c, 1), lambda b, t: (b, 0, 0)),
            ],
            out_specs=pl.BlockSpec((1, c, tile), lambda b, t: (b, 0, t)),
        )

    out2d_flat = pl.pallas_call(
        _gate_kernel,
        grid=(B, HW // tile_hw),
        out_shape=jax.ShapeDtypeStruct((B, C2d, HW), f32),
        compiler_params=cparams_gate,
        **gate_specs(C2d, tile_hw),
    )(a1_2d, a2_2d, w1_2d, w2_2d)
    out2d = out2d_flat.reshape(B, C2d, H, W)

    # ---------------- pass 2: grid_sample + mlps3d + fuse3d aligns + pooled sum ----------------
    rowm = lambda c: pl.BlockSpec((1, c, tile_m), lambda b, t: (b, 0, t))

    a1_3d, a2_3d, psum3d = pl.pallas_call(
        functools.partial(_sample_mlp_align3d_kernel, width=float(W),
                          hw_chunk=hw_chunk, use_bf16=use_bf16_mxu),
        grid=(B, M // tile_m),
        in_specs=[
            rowm(2),                                           # uv tile, lane-major
            pl.BlockSpec((1, C2d, HW), lambda b, t: (b, 0, 0)),  # whole image per batch
            rowm(C3d),
            _full_spec((C2d, C2d)), _full_spec((C2d, 1)),
            _full_spec((C3d, C2d)), _full_spec((C3d, 1)),
            _full_spec((C3d, C3d)), _full_spec((C3d, 1)),
        ],
        out_specs=(rowm(C3d), rowm(C3d),
                   pl.BlockSpec((1, C3d, 1), lambda b, t: (b, 0, 0))),
        out_shape=(jax.ShapeDtypeStruct((B, C3d, M), f32),
                   jax.ShapeDtypeStruct((B, C3d, M), f32),
                   jax.ShapeDtypeStruct((B, C3d, 1), f32)),
        scratch_shapes=[pltpu.VMEM((C2d, tile_m), f32)],       # sampled-feature accumulator
        compiler_params=cparams_main,
    )(
        uv, f2d_flat, feat_3d,
        params["mlp3d_w"], col(params["mlp3d_b"]),
        params["f3_wa1"], col(params["f3_b1"]),
        params["f3_wa2"], col(params["f3_b2"]),
    )

    pooled3d = psum3d[:, :, 0] / M
    w1_3d, w2_3d = _sk_gate_weights(pooled3d, params["f3_wmid"], params["f3_wout"])

    out3d = pl.pallas_call(
        _gate_kernel,
        grid=(B, M // tile_m),
        out_shape=jax.ShapeDtypeStruct((B, C3d, M), f32),
        compiler_params=cparams_gate,
        **gate_specs(C3d, tile_m),
    )(a1_3d, a2_3d, w1_3d, w2_3d)

    return out2d, out3d


# --------------------------------------------------------------------------------------
# Pure-JAX reference implementing the PyTorch CLFM forward (gather-based, for validation).
# --------------------------------------------------------------------------------------
def clfm_reference(uv, feat_2d, feat_3d, params):
    B, C2d, H, W = feat_2d.shape
    C3d, M = feat_3d.shape[1], feat_3d.shape[2]
    HW = H * W
    leaky = lambda x: jnp.where(x >= 0, x, 0.1 * x)
    conv = lambda w, b, x: jnp.einsum("oi,biN->boN", w, x) + b[None, :, None]

    p = jnp.arange(HW, dtype=jnp.float32)
    gy = jnp.floor(p / W)
    gx = p - gy * W
    grid = jnp.broadcast_to(jnp.stack([gx, gy], axis=0), (B, 2, HW))

    u = uv[:, 0, :]
    v = uv[:, 1, :]

    # FusionAwareInterp (k = 1)
    d2 = (grid[:, 0, :, None] - u[:, None, :]) ** 2 + (grid[:, 1, :, None] - v[:, None, :]) ** 2
    idx = jnp.argmin(d2, axis=-1)
    data = jnp.concatenate([uv, feat_3d], axis=1)
    gathered = jax.vmap(lambda d, i: d[:, i])(data, idx)
    knn_uv, knn_feat = gathered[:, :2, :], gathered[:, 2:, :]
    offset = knn_uv - grid
    onorm = jnp.linalg.norm(offset, axis=1, keepdims=True)
    score_in = jnp.concatenate([offset, onorm], axis=1)
    h = leaky(conv(params["interp_ws1"], params["interp_bs1"], score_in))
    score = jax.nn.sigmoid(conv(params["interp_ws2"], params["interp_bs2"], h))
    f3di = leaky(conv(params["interp_woc"], params["interp_boc"], score * knn_feat))

    # fuse2d (SKFusion, nchw)
    f2d_flat = feat_2d.reshape(B, C2d, HW)
    a1 = leaky(conv(params["f2_wa1"], params["f2_b1"], f2d_flat))
    a2 = leaky(conv(params["f2_wa2"], params["f2_b2"], f3di))
    pooled = jnp.mean(a1 + a2, axis=-1)
    s = jax.nn.sigmoid(jax.nn.relu(pooled @ params["f2_wmid"]) @ params["f2_wout"])
    wgt = jax.nn.softmax(s.reshape(B, C2d, 2), axis=-1)
    out2d = (a1 * wgt[..., 0][:, :, None] + a2 * wgt[..., 1][:, :, None]).reshape(B, C2d, H, W)

    # grid_sample (bilinear, align_corners=True, zeros padding)
    x0 = jnp.floor(u); x1 = x0 + 1.0
    y0 = jnp.floor(v); y1 = y0 + 1.0
    wx1 = u - x0; wx0 = 1.0 - wx1
    wy1 = v - y0; wy0 = 1.0 - wy1

    def corner(xc, yc, wc):
        valid = ((xc >= 0) & (xc <= W - 1) & (yc >= 0) & (yc <= H - 1)).astype(jnp.float32)
        xi = jnp.clip(xc, 0, W - 1).astype(jnp.int32)
        yi = jnp.clip(yc, 0, H - 1).astype(jnp.int32)
        pid = yi * W + xi
        g = jax.vmap(lambda f, i: f[:, i])(f2d_flat, pid)
        return g * (wc * valid)[:, None, :]

    sampled = (corner(x0, y0, wx0 * wy0) + corner(x1, y0, wx1 * wy0)
               + corner(x0, y1, wx0 * wy1) + corner(x1, y1, wx1 * wy1))

    # mlps3d + fuse3d (SKFusion, ncm)
    mfeat = leaky(conv(params["mlp3d_w"], params["mlp3d_b"], sampled))
    a1_3 = leaky(conv(params["f3_wa1"], params["f3_b1"], mfeat))
    a2_3 = leaky(conv(params["f3_wa2"], params["f3_b2"], feat_3d))
    pooled3 = jnp.mean(a1_3 + a2_3, axis=-1)
    s3 = jax.nn.sigmoid(jax.nn.relu(pooled3 @ params["f3_wmid"]) @ params["f3_wout"])
    wgt3 = jax.nn.softmax(s3.reshape(B, C3d, 2), axis=-1)
    out3d = a1_3 * wgt3[..., 0][:, :, None] + a2_3 * wgt3[..., 1][:, :, None]
    return out2d, out3d


def make_params(key, c2d, c3d, hidden=16):
    ks = jax.random.split(key, 20)
    r = lambda k, shape, s=0.25: s * jax.random.normal(k, shape, jnp.float32)
    return dict(
        interp_ws1=r(ks[0], (hidden, 3)), interp_bs1=r(ks[1], (hidden,)),
        interp_ws2=r(ks[2], (c3d, hidden)), interp_bs2=r(ks[3], (c3d,)),
        interp_woc=r(ks[4], (c3d, c3d)), interp_boc=r(ks[5], (c3d,)),
        mlp3d_w=r(ks[6], (c2d, c2d)), mlp3d_b=r(ks[7], (c2d,)),
        f2_wa1=r(ks[8], (c2d, c2d)), f2_b1=r(ks[9], (c2d,)),
        f2_wa2=r(ks[10], (c2d, c3d)), f2_b2=r(ks[11], (c2d,)),
        f2_wmid=r(ks[12], (c2d, c2d // 2)), f2_wout=r(ks[13], (c2d // 2, 2 * c2d)),
        f3_wa1=r(ks[14], (c3d, c2d)), f3_b1=r(ks[15], (c3d,)),
        f3_wa2=r(ks[16], (c3d, c3d)), f3_b2=r(ks[17], (c3d,)),
        f3_wmid=r(ks[18], (c3d, c3d // 2)), f3_wout=r(ks[19], (c3d // 2, 2 * c3d)),
    )


if __name__ == "__main__":
    # Small shapes, but chosen so multi-tile pooling (2-3 t steps) and multi-chunk M / HW
    # loops are all exercised with the caps below.
    B, C2d, C3d, H, W, M = 2, 16, 32, 16, 32, 384

    key = jax.random.PRNGKey(0)
    k_u, k_v, k_2d, k_3d, k_p = jax.random.split(key, 5)
    u = jax.random.uniform(k_u, (B, 1, M), jnp.float32, 0.0, W - 1.0)
    v = jax.random.uniform(k_v, (B, 1, M), jnp.float32, 0.0, H - 1.0)
    uv = jnp.concatenate([u, v], axis=1)                      # [B, 2, M] pixel coords of 3-D points
    feat_2d = jax.random.normal(k_2d, (B, C2d, H, W), jnp.float32)
    feat_3d = jax.random.normal(k_3d, (B, C3d, M), jnp.float32)
    params = make_params(k_p, C2d, C3d)

    fwd = jax.jit(functools.partial(clfm_forward,
                                    max_tile=256, max_m_chunk=128, max_hw_chunk=256,
                                    use_bf16_mxu=False))
    out2d, out3d = fwd(uv, feat_2d, feat_3d, params)
    jax.block_until_ready((out2d, out3d))

    ref2d, ref3d = clfm_reference(uv, feat_2d, feat_3d, params)
    assert out2d.shape == (B, C2d, H, W) and out3d.shape == (B, C3d, M)
    assert jnp.allclose(out2d, ref2d, atol=2e-3, rtol=2e-3), float(jnp.max(jnp.abs(out2d - ref2d)))
    assert jnp.allclose(out3d, ref3d, atol=2e-3, rtol=2e-3), float(jnp.max(jnp.abs(out3d - ref3d)))

    print("KERNEL_OK")
</pallas_src>

<mosaic_0001>
module attributes {stable_mosaic.version = 11 : i64} {
  func.func @_interp_align2d_kernel(%arg0: i32, %arg1: i32, %arg2: memref<1x2x384xf32, #tpu.memory_space<vmem>>, %arg3: memref<1x16x256xf32, #tpu.memory_space<vmem>>, %arg4: memref<1x32x384xf32, #tpu.memory_space<vmem>>, %arg5: memref<16x1xf32, #tpu.memory_space<vmem>>, %arg6: memref<16x1xf32, #tpu.memory_space<vmem>>, %arg7: memref<16x1xf32, #tpu.memory_space<vmem>>, %arg8: memref<16x1xf32, #tpu.memory_space<vmem>>, %arg9: memref<32x16xf32, #tpu.memory_space<vmem>>, %arg10: memref<32x1xf32, #tpu.memory_space<vmem>>, %arg11: memref<32x32xf32, #tpu.memory_space<vmem>>, %arg12: memref<32x1xf32, #tpu.memory_space<vmem>>, %arg13: memref<16x16xf32, #tpu.memory_space<vmem>>, %arg14: memref<16x1xf32, #tpu.memory_space<vmem>>, %arg15: memref<16x32xf32, #tpu.memory_space<vmem>>, %arg16: memref<16x1xf32, #tpu.memory_space<vmem>>, %arg17: memref<1x16x256xf32, #tpu.memory_space<vmem>>, %arg18: memref<1x16x256xf32, #tpu.memory_space<vmem>>, %arg19: memref<1x16x1xf32, #tpu.memory_space<vmem>>, %arg20: memref<256x1xf32, #tpu.memory_space<vmem>>, %arg21: memref<256x1xf32, #tpu.memory_space<vmem>>, %arg22: memref<2x256xf32, #tpu.memory_space<vmem>>, %arg23: memref<32x256xf32, #tpu.memory_space<vmem>>) attributes {dimension_semantics = [#tpu.dimension_semantics<parallel>, #tpu.dimension_semantics<arbitrary>], iteration_bounds = array<i64: 2, 2>, scalar_prefetch = 0 : i64, scratch_operands = 4 : i64, tpu.core_type = #tpu.core_type<tc>, window_params = [{transform_indices = @transform_0, window_bounds = array<i64: 1, 2, 384>}, {transform_indices = @transform_1, window_bounds = array<i64: 1, 16, 256>}, {transform_indices = @transform_2, window_bounds = array<i64: 1, 32, 384>}, {pipeline_mode = #tpu.pipeline_mode<synchronous>, transform_indices = @transform_3, window_bounds = array<i64: 16, 1>}, {pipeline_mode = #tpu.pipeline_mode<synchronous>, transform_indices = @transform_4, window_bounds = array<i64: 16, 1>}, {pipeline_mode = #tpu.pipeline_mode<synchronous>, transform_indices = @transform_5, window_bounds = array<i64: 16, 1>}, {pipeline_mode = #tpu.pipeline_mode<synchronous>, transform_indices = @transform_6, window_bounds = array<i64: 16, 1>}, {pipeline_mode = #tpu.pipeline_mode<synchronous>, transform_indices = @transform_7, window_bounds = array<i64: 32, 16>}, {pipeline_mode = #tpu.pipeline_mode<synchronous>, transform_indices = @transform_8, window_bounds = array<i64: 32, 1>}, {pipeline_mode = #tpu.pipeline_mode<synchronous>, transform_indices = @transform_9, window_bounds = array<i64: 32, 32>}, {pipeline_mode = #tpu.pipeline_mode<synchronous>, transform_indices = @transform_10, window_bounds = array<i64: 32, 1>}, {pipeline_mode = #tpu.pipeline_mode<synchronous>, transform_indices = @transform_11, window_bounds = array<i64: 16, 16>}, {pipeline_mode = #tpu.pipeline_mode<synchronous>, transform_indices = @transform_12, window_bounds = array<i64: 16, 1>}, {pipeline_mode = #tpu.pipeline_mode<synchronous>, transform_indices = @transform_13, window_bounds = array<i64: 16, 32>}, {pipeline_mode = #tpu.pipeline_mode<synchronous>, transform_indices = @transform_14, window_bounds = array<i64: 16, 1>}, {transform_indices = @transform_15, window_bounds = array<i64: 1, 16, 256>}, {transform_indices = @transform_16, window_bounds = array<i64: 1, 16, 256>}, {transform_indices = @transform_17, window_bounds = array<i64: 1, 16, 1>}]} {
    %c256_i32 = arith.constant 256 : i32
    %0 = arith.muli %arg1, %c256_i32 : i32
    %1 = arith.sitofp %0 : i32 to f32
    %2 = tpu.iota {dimensions = array<i32: 1>} : vector<1x256xi32>
    %3 = arith.sitofp %2 : vector<1x256xi32> to vector<1x256xf32>
    %4 = vector.broadcast %1 : f32 to vector<1x256xf32>
    %5 = arith.addf %3, %4 : vector<1x256xf32>
    %cst = arith.constant 3.200000e+01 : f32
    %6 = vector.broadcast %cst : f32 to vector<1x256xf32>
    %7 = arith.divf %5, %6 : vector<1x256xf32>
    %8 = math.floor %7 : vector<1x256xf32>
    %cst_0 = arith.constant 3.200000e+01 : f32
    %9 = vector.broadcast %cst_0 : f32 to vector<1x256xf32>
    %10 = arith.mulf %8, %9 : vector<1x256xf32>
    %11 = arith.subf %5, %10 : vector<1x256xf32>
    %12 = tpu.iota {dimensions = array<i32: 0>} : vector<256x1xi32>
    %13 = arith.sitofp %12 : vector<256x1xi32> to vector<256x1xf32>
    %14 = vector.broadcast %1 : f32 to vector<256x1xf32>
    %15 = arith.addf %13, %14 : vector<256x1xf32>
    %cst_1 = arith.constant 3.200000e+01 : f32
    %16 = vector.broadcast %cst_1 : f32 to vector<256x1xf32>
    %17 = arith.divf %15, %16 : vector<256x1xf32>
    %18 = math.floor %17 : vector<256x1xf32>
    %cst_2 = arith.constant 3.200000e+01 : f32
    %19 = vector.broadcast %cst_2 : f32 to vector<256x1xf32>
    %20 = arith.mulf %18, %19 : vector<256x1xf32>
    %21 = arith.subf %15, %20 : vector<256x1xf32>
    %cst_3 = arith.constant 0x7F800000 : f32
    %22 = vector.broadcast %cst_3 : f32 to vector<256x1xf32>
    %c0 = arith.constant 0 : index
    %c0_4 = arith.constant 0 : index
    %23 = vector.load %arg20[%c0, %c0_4] : memref<256x1xf32, #tpu.memory_space<vmem>>, vector<256x1xf32>
    tpu.vector_store %arg20[%c0, %c0_4], %22 {strides = array<i32>} : memref<256x1xf32, #tpu.memory_space<vmem>>, vector<256x1xf32>,
    %cst_5 = arith.constant 0.000000e+00 : f32
    %24 = vector.broadcast %cst_5 : f32 to vector<256x1xf32>
    %c0_6 = arith.constant 0 : index
    %c0_7 = arith.constant 0 : index
    %25 = vector.load %arg21[%c0_6, %c0_7] : memref<256x1xf32, #tpu.memory_space<vmem>>, vector<256x1xf32>
    tpu.vector_store %arg21[%c0_6, %c0_7], %24 {strides = array<i32>} : memref<256x1xf32, #tpu.memory_space<vmem>>, vector<256x1xf32>,
    %c0_i32 = arith.constant 0 : i32
    %c3_i32 = arith.constant 3 : i32
    %26 = arith.addi %c0_i32, %c3_i32 : i32
    %c1_i32 = arith.constant 1 : i32
    scf.for %arg24 = %c0_i32 to %26 step %c1_i32  : i32 {
      %c1_i32_79 = arith.constant 1 : i32
      %124 = arith.muli %arg24, %c1_i32_79 : i32
      %c0_i32_80 = arith.constant 0 : i32
      %125 = arith.addi %c0_i32_80, %124 : i32
      %c128_i32 = arith.constant 128 : i32
      %126 = arith.muli %125, %c128_i32 : i32
      %127 = tpu.assume_multiple %126, 128 : i32
      %c0_81 = arith.constant 0 : index
      %c0_82 = arith.constant 0 : index
      %128 = arith.index_cast %127 : i32 to index
      %129 = vector.load %arg2[%c0_81, %c0_82, %128] : memref<1x2x384xf32, #tpu.memory_space<vmem>>, vector<1x1x128xf32>
      %130 = vector.shape_cast %129 : vector<1x1x128xf32> to vector<1x128xf32>
      %c0_83 = arith.constant 0 : index
      %c1_84 = arith.constant 1 : index
      %131 = arith.index_cast %127 : i32 to index
      %132 = vector.load %arg2[%c0_83, %c1_84, %131] : memref<1x2x384xf32, #tpu.memory_space<vmem>>, vector<1x1x128xf32>
      %133 = vector.shape_cast %132 : vector<1x1x128xf32> to vector<1x128xf32>
      %134 = vector.broadcast %21 : vector<256x1xf32> to vector<256x128xf32>
      %135 = vector.broadcast %130 : vector<1x128xf32> to vector<256x128xf32>
      %136 = arith.subf %134, %135 : vector<256x128xf32>
      %137 = arith.mulf %136, %136 : vector<256x128xf32>
      %138 = vector.broadcast %18 : vector<256x1xf32> to vector<256x128xf32>
      %139 = vector.broadcast %133 : vector<1x128xf32> to vector<256x128xf32>
      %140 = arith.subf %138, %139 : vector<256x128xf32>
      %141 = arith.mulf %140, %140 : vector<256x128xf32>
      %142 = arith.addf %137, %141 : vector<256x128xf32>
      %cst_85 = arith.constant dense<0x7F800000> : vector<256xf32>
      %143 = vector.multi_reduction <minimumf>, %142, %cst_85 [1] : vector<256x128xf32> to vector<256xf32>
      %144 = vector.shape_cast %143 : vector<256xf32> to vector<256x1xf32>
      %145 = tpu.iota {dimensions = array<i32: 1>} : vector<1x128xi32>
      %146 = vector.broadcast %127 : i32 to vector<1x128xi32>
      %147 = arith.addi %145, %146 : vector<1x128xi32>
      %148 = arith.sitofp %147 : vector<1x128xi32> to vector<1x128xf32>
      %149 = vector.broadcast %144 : vector<256x1xf32> to vector<256x128xf32>
      %150 = arith.cmpf oeq, %142, %149 : vector<256x128xf32>
      %cst_86 = arith.constant 3.840000e+02 : f32
      %151 = vector.shape_cast %148 : vector<1x128xf32> to vector<1x128xf32>
      %152 = vector.broadcast %151 : vector<1x128xf32> to vector<256x128xf32>
      %153 = vector.broadcast %cst_86 : f32 to vector<256x128xf32>
      %154 = arith.select %150, %152, %153 : vector<256x128xi1>, vector<256x128xf32>
      %cst_87 = arith.constant dense<0x7F800000> : vector<256xf32>
      %155 = vector.multi_reduction <minimumf>, %154, %cst_87 [1] : vector<256x128xf32> to vector<256xf32>
      %156 = vector.shape_cast %155 : vector<256xf32> to vector<256x1xf32>
      %c0_88 = arith.constant 0 : index
      %c0_89 = arith.constant 0 : index
      %157 = vector.load %arg20[%c0_88, %c0_89] : memref<256x1xf32, #tpu.memory_space<vmem>>, vector<256x1xf32>
      %158 = arith.cmpf olt, %144, %157 : vector<256x1xf32>
      %c0_90 = arith.constant 0 : index
      %c0_91 = arith.constant 0 : index
      %159 = vector.load %arg20[%c0_90, %c0_91] : memref<256x1xf32, #tpu.memory_space<vmem>>, vector<256x1xf32>
      %160 = arith.select %158, %144, %159 : vector<256x1xi1>, vector<256x1xf32>
      %c0_92 = arith.constant 0 : index
      %c0_93 = arith.constant 0 : index
      %161 = vector.load %arg20[%c0_92, %c0_93] : memref<256x1xf32, #tpu.memory_space<vmem>>, vector<256x1xf32>
      tpu.vector_store %arg20[%c0_92, %c0_93], %160 {strides = array<i32>} : memref<256x1xf32, #tpu.memory_space<vmem>>, vector<256x1xf32>,
      %c0_94 = arith.constant 0 : index
      %c0_95 = arith.constant 0 : index
      %162 = vector.load %arg21[%c0_94, %c0_95] : memref<256x1xf32, #tpu.memory_space<vmem>>, vector<256x1xf32>
      %163 = arith.select %158, %156, %162 : vector<256x1xi1>, vector<256x1xf32>
      %c0_96 = arith.constant 0 : index
      %c0_97 = arith.constant 0 : index
      %164 = vector.load %arg21[%c0_96, %c0_97] : memref<256x1xf32, #tpu.memory_space<vmem>>, vector<256x1xf32>
      tpu.vector_store %arg21[%c0_96, %c0_97], %163 {strides = array<i32>} : memref<256x1xf32, #tpu.memory_space<vmem>>, vector<256x1xf32>,
    }
    %c3_i32_8 = arith.constant 3 : i32
    %cst_9 = arith.constant 0.000000e+00 : f32
    %27 = vector.broadcast %cst_9 : f32 to vector<2x256xf32>
    %c0_10 = arith.constant 0 : index
    %c0_11 = arith.constant 0 : index
    %28 = vector.load %arg22[%c0_10, %c0_11] : memref<2x256xf32, #tpu.memory_space<vmem>>, vector<2x256xf32>
    tpu.vector_store %arg22[%c0_10, %c0_11], %27 {strides = array<i32>} : memref<2x256xf32, #tpu.memory_space<vmem>>, vector<2x256xf32>,
    %cst_12 = arith.constant 0.000000e+00 : f32
    %29 = vector.broadcast %cst_12 : f32 to vector<32x256xf32>
    %c0_13 = arith.constant 0 : index
    %c0_14 = arith.constant 0 : index
    %30 = vector.load %arg23[%c0_13, %c0_14] : memref<32x256xf32, #tpu.memory_space<vmem>>, vector<32x256xf32>
    tpu.vector_store %arg23[%c0_13, %c0_14], %29 {strides = array<i32>} : memref<32x256xf32, #tpu.memory_space<vmem>>, vector<32x256xf32>,
    %c0_i32_15 = arith.constant 0 : i32
    %c3_i32_16 = arith.constant 3 : i32
    %31 = arith.addi %c0_i32_15, %c3_i32_16 : i32
    %c1_i32_17 = arith.constant 1 : i32
    scf.for %arg24 = %c0_i32_15 to %31 step %c1_i32_17  : i32 {
      %c1_i32_79 = arith.constant 1 : i32
      %124 = arith.muli %arg24, %c1_i32_79 : i32
      %c0_i32_80 = arith.constant 0 : i32
      %125 = arith.addi %c0_i32_80, %124 : i32
      %c128_i32 = arith.constant 128 : i32
      %126 = arith.muli %125, %c128_i32 : i32
      %127 = tpu.assume_multiple %126, 128 : i32
      %128 = tpu.iota {dimensions = array<i32: 1>} : vector<1x128xi32>
      %129 = vector.broadcast %127 : i32 to vector<1x128xi32>
      %130 = arith.addi %128, %129 : vector<1x128xi32>
      %131 = arith.sitofp %130 : vector<1x128xi32> to vector<1x128xf32>
      %c0_81 = arith.constant 0 : index
      %c0_82 = arith.constant 0 : index
      %132 = vector.load %arg21[%c0_81, %c0_82] : memref<256x1xf32, #tpu.memory_space<vmem>>, vector<256x1xf32>
      %133 = vector.broadcast %131 : vector<1x128xf32> to vector<256x128xf32>
      %134 = vector.broadcast %132 : vector<256x1xf32> to vector<256x128xf32>
      %135 = arith.cmpf oeq, %133, %134 : vector<256x128xf32>
      %136 = arith.extui %135 : vector<256x128xi1> to vector<256x128xi32>
      %137 = arith.sitofp %136 : vector<256x128xi32> to vector<256x128xf32>
      %c0_83 = arith.constant 0 : index
      %c0_84 = arith.constant 0 : index
      %138 = arith.index_cast %127 : i32 to index
      %139 = vector.load %arg2[%c0_83, %c0_84, %138] : memref<1x2x384xf32, #tpu.memory_space<vmem>>, vector<1x2x128xf32>
      %140 = vector.shape_cast %139 : vector<1x2x128xf32> to vector<2x128xf32>
      %c0_85 = arith.constant 0 : index
      %c0_86 = arith.constant 0 : index
      %141 = arith.index_cast %127 : i32 to index
      %142 = vector.load %arg4[%c0_85, %c0_86, %141] : memref<1x32x384xf32, #tpu.memory_space<vmem>>, vector<1x32x128xf32>
      %143 = vector.shape_cast %142 : vector<1x32x128xf32> to vector<32x128xf32>
      %c0_87 = arith.constant 0 : index
      %c0_88 = arith.constant 0 : index
      %144 = vector.load %arg22[%c0_87, %c0_88] : memref<2x256xf32, #tpu.memory_space<vmem>>, vector<2x256xf32>
      %cst_89 = arith.constant dense<0.000000e+00> : vector<2x256xf32>
      %145 = tpu.matmul %140, %137, %cst_89 {dimension_numbers = #tpu.dot_dimension_numbers<[1], [1], [0], [0], [0, 0, 1, 0], [], []>} : vector<2x128xf32>, vector<256x128xf32>, vector<2x256xf32> -> vector<2x256xf32>
      %146 = arith.addf %144, %145 : vector<2x256xf32>
      %c0_90 = arith.constant 0 : index
      %c0_91 = arith.constant 0 : index
      %147 = vector.load %arg22[%c0_90, %c0_91] : memref<2x256xf32, #tpu.memory_space<vmem>>, vector<2x256xf32>
      tpu.vector_store %arg22[%c0_90, %c0_91], %146 {strides = array<i32>} : memref<2x256xf32, #tpu.memory_space<vmem>>, vector<2x256xf32>,
      %c0_92 = arith.constant 0 : index
      %c0_93 = arith.constant 0 : index
      %148 = vector.load %arg23[%c0_92, %c0_93] : memref<32x256xf32, #tpu.memory_space<vmem>>, vector<32x256xf32>
      %cst_94 = arith.constant dense<0.000000e+00> : vector<32x256xf32>
      %149 = tpu.matmul %143, %137, %cst_94 {dimension_numbers = #tpu.dot_dimension_numbers<[1], [1], [0], [0], [0, 0, 1, 0], [], []>} : vector<32x128xf32>, vector<256x128xf32>, vector<32x256xf32> -> vector<32x256xf32>
      %150 = arith.addf %148, %149 : vector<32x256xf32>
      %c0_95 = arith.constant 0 : index
      %c0_96 = arith.constant 0 : index
      %151 = vector.load %arg23[%c0_95, %c0_96] : memref<32x256xf32, #tpu.memory_space<vmem>>, vector<32x256xf32>
      tpu.vector_store %arg23[%c0_95, %c0_96], %150 {strides = array<i32>} : memref<32x256xf32, #tpu.memory_space<vmem>>, vector<32x256xf32>,
    }
    %c3_i32_18 = arith.constant 3 : i32
    %c0_19 = arith.constant 0 : index
    %c0_20 = arith.constant 0 : index
    %32 = vector.load %arg22[%c0_19, %c0_20] : memref<2x256xf32, #tpu.memory_space<vmem>>, vector<1x256xf32>
    %33 = arith.subf %32, %11 : vector<1x256xf32>
    %c1 = arith.constant 1 : index
    %c0_21 = arith.constant 0 : index
    %34 = vector.load %arg22[%c1, %c0_21] : memref<2x256xf32, #tpu.memory_space<vmem>>, vector<1x256xf32>
    %35 = arith.subf %34, %8 : vector<1x256xf32>
    %36 = arith.mulf %33, %33 : vector<1x256xf32>
    %37 = arith.mulf %35, %35 : vector<1x256xf32>
    %38 = arith.addf %36, %37 : vector<1x256xf32>
    %39 = math.sqrt %38 : vector<1x256xf32>
    %c0_22 = arith.constant 0 : index
    %c0_23 = arith.constant 0 : index
    %40 = vector.load %arg5[%c0_22, %c0_23] : memref<16x1xf32, #tpu.memory_space<vmem>>, vector<16x1xf32>
    %41 = vector.broadcast %40 : vector<16x1xf32> to vector<16x256xf32>
    %42 = vector.broadcast %33 : vector<1x256xf32> to vector<16x256xf32>
    %43 = arith.mulf %41, %42 : vector<16x256xf32>
    %c0_24 = arith.constant 0 : index
    %c0_25 = arith.constant 0 : index
    %44 = vector.load %arg6[%c0_24, %c0_25] : memref<16x1xf32, #tpu.memory_space<vmem>>, vector<16x1xf32>
    %45 = vector.broadcast %44 : vector<16x1xf32> to vector<16x256xf32>
    %46 = vector.broadcast %35 : vector<1x256xf32> to vector<16x256xf32>
    %47 = arith.mulf %45, %46 : vector<16x256xf32>
    %48 = arith.addf %43, %47 : vector<16x256xf32>
    %c0_26 = arith.constant 0 : index
    %c0_27 = arith.constant 0 : index
    %49 = vector.load %arg7[%c0_26, %c0_27] : memref<16x1xf32, #tpu.memory_space<vmem>>, vector<16x1xf32>
    %50 = vector.broadcast %49 : vector<16x1xf32> to vector<16x256xf32>
    %51 = vector.broadcast %39 : vector<1x256xf32> to vector<16x256xf32>
    %52 = arith.mulf %50, %51 : vector<16x256xf32>
    %53 = arith.addf %48, %52 : vector<16x256xf32>
    %c0_28 = arith.constant 0 : index
    %c0_29 = arith.constant 0 : index
    %54 = vector.load %arg8[%c0_28, %c0_29] : memref<16x1xf32, #tpu.memory_space<vmem>>, vector<16x1xf32>
    %55 = vector.broadcast %54 : vector<16x1xf32> to vector<16x256xf32>
    %56 = arith.addf %53, %55 : vector<16x256xf32>
    %cst_30 = arith.constant 0.000000e+00 : f32
    %57 = vector.broadcast %cst_30 : f32 to vector<16x256xf32>
    %58 = arith.cmpf oge, %56, %57 : vector<16x256xf32>
    %cst_31 = arith.constant 1.000000e-01 : f32
    %59 = vector.broadcast %cst_31 : f32 to vector<16x256xf32>
    %60 = arith.mulf %59, %56 : vector<16x256xf32>
    %61 = arith.select %58, %56, %60 : vector<16x256xi1>, vector<16x256xf32>
    %c0_32 = arith.constant 0 : index
    %c0_33 = arith.constant 0 : index
    %62 = vector.load %arg9[%c0_32, %c0_33] : memref<32x16xf32, #tpu.memory_space<vmem>>, vector<32x16xf32>
    %cst_34 = arith.constant dense<0.000000e+00> : vector<32x256xf32>
    %63 = tpu.matmul %62, %61, %cst_34 {dimension_numbers = #tpu.dot_dimension_numbers<[1], [0], [0], [1], [0, 0, 1, 1], [], []>} : vector<32x16xf32>, vector<16x256xf32>, vector<32x256xf32> -> vector<32x256xf32>
    %c0_35 = arith.constant 0 : index
    %c0_36 = arith.constant 0 : index
    %64 = vector.load %arg10[%c0_35, %c0_36] : memref<32x1xf32, #tpu.memory_space<vmem>>, vector<32x1xf32>
    %65 = vector.broadcast %64 : vector<32x1xf32> to vector<32x256xf32>
    %66 = arith.addf %63, %65 : vector<32x256xf32>
    %67 = arith.negf %66 : vector<32x256xf32>
    %68 = math.exp %67 : vector<32x256xf32>
    %cst_37 = arith.constant 1.000000e+00 : f32
    %69 = vector.broadcast %cst_37 : f32 to vector<32x256xf32>
    %70 = arith.addf %69, %68 : vector<32x256xf32>
    %71 = arith.divf %69, %70 : vector<32x256xf32>
    %c0_38 = arith.constant 0 : index
    %c0_39 = arith.constant 0 : index
    %72 = vector.load %arg23[%c0_38, %c0_39] : memref<32x256xf32, #tpu.memory_space<vmem>>, vector<32x256xf32>
    %73 = arith.mulf %71, %72 : vector<32x256xf32>
    %c0_40 = arith.constant 0 : index
    %c0_41 = arith.constant 0 : index
    %74 = vector.load %arg11[%c0_40, %c0_41] : memref<32x32xf32, #tpu.memory_space<vmem>>, vector<32x32xf32>
    %cst_42 = arith.constant dense<0.000000e+00> : vector<32x256xf32>
    %75 = tpu.matmul %74, %73, %cst_42 {dimension_numbers = #tpu.dot_dimension_numbers<[1], [0], [0], [1], [0, 0, 1, 1], [], []>} : vector<32x32xf32>, vector<32x256xf32>, vector<32x256xf32> -> vector<32x256xf32>
    %c0_43 = arith.constant 0 : index
    %c0_44 = arith.constant 0 : index
    %76 = vector.load %arg12[%c0_43, %c0_44] : memref<32x1xf32, #tpu.memory_space<vmem>>, vector<32x1xf32>
    %77 = vector.broadcast %76 : vector<32x1xf32> to vector<32x256xf32>
    %78 = arith.addf %75, %77 : vector<32x256xf32>
    %cst_45 = arith.constant 0.000000e+00 : f32
    %79 = vector.broadcast %cst_45 : f32 to vector<32x256xf32>
    %80 = arith.cmpf oge, %78, %79 : vector<32x256xf32>
    %cst_46 = arith.constant 1.000000e-01 : f32
    %81 = vector.broadcast %cst_46 : f32 to vector<32x256xf32>
    %82 = arith.mulf %81, %78 : vector<32x256xf32>
    %83 = arith.select %80, %78, %82 : vector<32x256xi1>, vector<32x256xf32>
    %c0_47 = arith.constant 0 : index
    %c0_48 = arith.constant 0 : index
    %c0_49 = arith.constant 0 : index
    %84 = vector.load %arg3[%c0_47, %c0_48, %c0_49] : memref<1x16x256xf32, #tpu.memory_space<vmem>>, vector<1x16x256xf32>
    %85 = vector.shape_cast %84 : vector<1x16x256xf32> to vector<16x256xf32>
    %c0_50 = arith.constant 0 : index
    %c0_51 = arith.constant 0 : index
    %86 = vector.load %arg13[%c0_50, %c0_51] : memref<16x16xf32, #tpu.memory_space<vmem>>, vector<16x16xf32>
    %cst_52 = arith.constant dense<0.000000e+00> : vector<16x256xf32>
    %87 = tpu.matmul %86, %85, %cst_52 {dimension_numbers = #tpu.dot_dimension_numbers<[1], [0], [0], [1], [0, 0, 1, 1], [], []>} : vector<16x16xf32>, vector<16x256xf32>, vector<16x256xf32> -> vector<16x256xf32>
    %c0_53 = arith.constant 0 : index
    %c0_54 = arith.constant 0 : index
    %88 = vector.load %arg14[%c0_53, %c0_54] : memref<16x1xf32, #tpu.memory_space<vmem>>, vector<16x1xf32>
    %89 = vector.broadcast %88 : vector<16x1xf32> to vector<16x256xf32>
    %90 = arith.addf %87, %89 : vector<16x256xf32>
    %cst_55 = arith.constant 0.000000e+00 : f32
    %91 = vector.broadcast %cst_55 : f32 to vector<16x256xf32>
    %92 = arith.cmpf oge, %90, %91 : vector<16x256xf32>
    %cst_56 = arith.constant 1.000000e-01 : f32
    %93 = vector.broadcast %cst_56 : f32 to vector<16x256xf32>
    %94 = arith.mulf %93, %90 : vector<16x256xf32>
    %95 = arith.select %92, %90, %94 : vector<16x256xi1>, vector<16x256xf32>
    %c0_57 = arith.constant 0 : index
    %c0_58 = arith.constant 0 : index
    %96 = vector.load %arg15[%c0_57, %c0_58] : memref<16x32xf32, #tpu.memory_space<vmem>>, vector<16x32xf32>
    %cst_59 = arith.constant dense<0.000000e+00> : vector<16x256xf32>
    %97 = tpu.matmul %96, %83, %cst_59 {dimension_numbers = #tpu.dot_dimension_numbers<[1], [0], [0], [1], [0, 0, 1, 1], [], []>} : vector<16x32xf32>, vector<32x256xf32>, vector<16x256xf32> -> vector<16x256xf32>
    %c0_60 = arith.constant 0 : index
    %c0_61 = arith.constant 0 : index
    %98 = vector.load %arg16[%c0_60, %c0_61] : memref<16x1xf32, #tpu.memory_space<vmem>>, vector<16x1xf32>
    %99 = vector.broadcast %98 : vector<16x1xf32> to vector<16x256xf32>
    %100 = arith.addf %97, %99 : vector<16x256xf32>
    %cst_62 = arith.constant 0.000000e+00 : f32
    %101 = vector.broadcast %cst_62 : f32 to vector<16x256xf32>
    %102 = arith.cmpf oge, %100, %101 : vector<16x256xf32>
    %cst_63 = arith.constant 1.000000e-01 : f32
    %103 = vector.broadcast %cst_63 : f32 to vector<16x256xf32>
    %104 = arith.mulf %103, %100 : vector<16x256xf32>
    %105 = arith.select %102, %100, %104 : vector<16x256xi1>, vector<16x256xf32>
    %c0_64 = arith.constant 0 : index
    %c0_65 = arith.constant 0 : index
    %c0_66 = arith.constant 0 : index
    %106 = vector.load %arg17[%c0_64, %c0_65, %c0_66] : memref<1x16x256xf32, #tpu.memory_space<vmem>>, vector<1x16x256xf32>
    %107 = vector.shape_cast %106 : vector<1x16x256xf32> to vector<16x256xf32>
    %108 = vector.shape_cast %95 : vector<16x256xf32> to vector<1x16x256xf32>
    tpu.vector_store %arg17[%c0_64, %c0_65, %c0_66], %108 {strides = array<i32>} : memref<1x16x256xf32, #tpu.memory_space<vmem>>, vector<1x16x256xf32>,
    %c0_67 = arith.constant 0 : index
    %c0_68 = arith.constant 0 : index
    %c0_69 = arith.constant 0 : index
    %109 = vector.load %arg18[%c0_67, %c0_68, %c0_69] : memref<1x16x256xf32, #tpu.memory_space<vmem>>, vector<1x16x256xf32>
    %110 = vector.shape_cast %109 : vector<1x16x256xf32> to vector<16x256xf32>
    %111 = vector.shape_cast %105 : vector<16x256xf32> to vector<1x16x256xf32>
    tpu.vector_store %arg18[%c0_67, %c0_68, %c0_69], %111 {strides = array<i32>} : memref<1x16x256xf32, #tpu.memory_space<vmem>>, vector<1x16x256xf32>,
    %c0_i32_70 = arith.constant 0 : i32
    %112 = arith.cmpi eq, %arg1, %c0_i32_70 : i32
    %113 = arith.extui %112 : i1 to i32
    %c0_i32_71 = arith.constant 0 : i32
    %114 = arith.cmpi ne, %113, %c0_i32_71 : i32
    scf.if %114 {
      %cst_79 = arith.constant 0.000000e+00 : f32
      %124 = vector.broadcast %cst_79 : f32 to vector<1x16x1xf32>
      %c0_80 = arith.constant 0 : index
      %c0_81 = arith.constant 0 : index
      %c0_82 = arith.constant 0 : index
      %125 = vector.load %arg19[%c0_80, %c0_81, %c0_82] : memref<1x16x1xf32, #tpu.memory_space<vmem>>, vector<1x16x1xf32>
      tpu.vector_store %arg19[%c0_80, %c0_81, %c0_82], %124 {strides = array<i32>} : memref<1x16x1xf32, #tpu.memory_space<vmem>>, vector<1x16x1xf32>,
    } else {
    }
    %c0_72 = arith.constant 0 : index
    %c0_73 = arith.constant 0 : index
    %c0_74 = arith.constant 0 : index
    %115 = vector.load %arg19[%c0_72, %c0_73, %c0_74] : memref<1x16x1xf32, #tpu.memory_space<vmem>>, vector<1x16x1xf32>
    %116 = vector.shape_cast %115 : vector<1x16x1xf32> to vector<16x1xf32>
    %117 = arith.addf %95, %105 : vector<16x256xf32>
    %cst_75 = arith.constant dense<0.000000e+00> : vector<16xf32>
    %118 = vector.multi_reduction <add>, %117, %cst_75 [1] : vector<16x256xf32> to vector<16xf32>
    %119 = vector.shape_cast %118 : vector<16xf32> to vector<16x1xf32>
    %120 = arith.addf %116, %119 : vector<16x1xf32>
    %c0_76 = arith.constant 0 : index
    %c0_77 = arith.constant 0 : index
    %c0_78 = arith.constant 0 : index
    %121 = vector.load %arg19[%c0_76, %c0_77, %c0_78] : memref<1x16x1xf32, #tpu.memory_space<vmem>>, vector<1x16x1xf32>
    %122 = vector.shape_cast %121 : vector<1x16x1xf32> to vector<16x1xf32>
    %123 = vector.shape_cast %120 : vector<16x1xf32> to vector<1x16x1xf32>
    tpu.vector_store %arg19[%c0_76, %c0_77, %c0_78], %123 {strides = array<i32>} : memref<1x16x1xf32, #tpu.memory_space<vmem>>, vector<1x16x1xf32>,
    return
  }
  func.func @transform_0(%arg0: i32, %arg1: i32) -> (i32, i32, i32) {
    %c0_i32 = arith.constant 0 : i32
    %c0_i32_0 = arith.constant 0 : i32
    %c0_i32_1 = arith.constant 0 : i32
    return %arg0, %c0_i32, %c0_i32_0 : i32, i32, i32
  }
  func.func @transform_1(%arg0: i32, %arg1: i32) -> (i32, i32, i32) {
    %c0_i32 = arith.constant 0 : i32
    %c0_i32_0 = arith.constant 0 : i32
    return %arg0, %c0_i32, %arg1 : i32, i32, i32
  }
  func.func @transform_2(%arg0: i32, %arg1: i32) -> (i32, i32, i32) {
    %c0_i32 = arith.constant 0 : i32
    %c0_i32_0 = arith.constant 0 : i32
    %c0_i32_1 = arith.constant 0 : i32
    return %arg0, %c0_i32, %c0_i32_0 : i32, i32, i32
  }
  func.func @transform_3(%arg0: i32, %arg1: i32) -> (i32, i32) {
    %c0_i32 = arith.constant 0 : i32
    %c0_i32_0 = arith.constant 0 : i32
    %c0_i32_1 = arith.constant 0 : i32
    return %c0_i32, %c0_i32_0 : i32, i32
  }
  func.func @transform_4(%arg0: i32, %arg1: i32) -> (i32, i32) {
    %c0_i32 = arith.constant 0 : i32
    %c0_i32_0 = arith.constant 0 : i32
    %c0_i32_1 = arith.constant 0 : i32
    return %c0_i32, %c0_i32_0 : i32, i32
  }
  func.func @transform_5(%arg0: i32, %arg1: i32) -> (i32, i32) {
    %c0_i32 = arith.constant 0 : i32
    %c0_i32_0 = arith.constant 0 : i32
    %c0_i32_1 = arith.constant 0 : i32
    return %c0_i32, %c0_i32_0 : i32, i32
  }
  func.func @transform_6(%arg0: i32, %arg1: i32) -> (i32, i32) {
    %c0_i32 = arith.constant 0 : i32
    %c0_i32_0 = arith.constant 0 : i32
    %c0_i32_1 = arith.constant 0 : i32
    return %c0_i32, %c0_i32_0 : i32, i32
  }
  func.func @transform_7(%arg0: i32, %arg1: i32) -> (i32, i32) {
    %c0_i32 = arith.constant 0 : i32
    %c0_i32_0 = arith.constant 0 : i32
    %c0_i32_1 = arith.constant 0 : i32
    return %c0_i32, %c0_i32_0 : i32, i32
  }
  func.func @transform_8(%arg0: i32, %arg1: i32) -> (i32, i32) {
    %c0_i32 = arith.constant 0 : i32
    %c0_i32_0 = arith.constant 0 : i32
    %c0_i32_1 = arith.constant 0 : i32
    return %c0_i32, %c0_i32_0 : i32, i32
  }
  func.func @transform_9(%arg0: i32, %arg1: i32) -> (i32, i32) {
    %c0_i32 = arith.constant 0 : i32
    %c0_i32_0 = arith.constant 0 : i32
    %c0_i32_1 = arith.constant 0 : i32
    return %c0_i32, %c0_i32_0 : i32, i32
  }
  func.func @transform_10(%arg0: i32, %arg1: i32) -> (i32, i32) {
    %c0_i32 = arith.constant 0 : i32
    %c0_i32_0 = arith.constant 0 : i32
    %c0_i32_1 = arith.constant 0 : i32
    return %c0_i32, %c0_i32_0 : i32, i32
  }
  func.func @transform_11(%arg0: i32, %arg1: i32) -> (i32, i32) {
    %c0_i32 = arith.constant 0 : i32
    %c0_i32_0 = arith.constant 0 : i32
    %c0_i32_1 = arith.constant 0 : i32
    return %c0_i32, %c0_i32_0 : i32, i32
  }
  func.func @transform_12(%arg0: i32, %arg1: i32) -> (i32, i32) {
    %c0_i32 = arith.constant 0 : i32
    %c0_i32_0 = arith.constant 0 : i32
    %c0_i32_1 = arith.constant 0 : i32
    return %c0_i32, %c0_i32_0 : i32, i32
  }
  func.func @transform_13(%arg0: i32, %arg1: i32) -> (i32, i32) {
    %c0_i32 = arith.constant 0 : i32
    %c0_i32_0 = arith.constant 0 : i32
    %c0_i32_1 = arith.constant 0 : i32
    return %c0_i32, %c0_i32_0 : i32, i32
  }
  func.func @transform_14(%arg0: i32, %arg1: i32) -> (i32, i32) {
    %c0_i32 = arith.constant 0 : i32
    %c0_i32_0 = arith.constant 0 : i32
    %c0_i32_1 = arith.constant 0 : i32
    return %c0_i32, %c0_i32_0 : i32, i32
  }
  func.func @transform_15(%arg0: i32, %arg1: i32) -> (i32, i32, i32) {
    %c0_i32 = arith.constant 0 : i32
    %c0_i32_0 = arith.constant 0 : i32
    return %arg0, %c0_i32, %arg1 : i32, i32, i32
  }
  func.func @transform_16(%arg0: i32, %arg1: i32) -> (i32, i32, i32) {
    %c0_i32 = arith.constant 0 : i32
    %c0_i32_0 = arith.constant 0 : i32
    return %arg0, %c0_i32, %arg1 : i32, i32, i32
  }
  func.func @transform_17(%arg0: i32, %arg1: i32) -> (i32, i32, i32) {
    %c0_i32 = arith.constant 0 : i32
    %c0_i32_0 = arith.constant 0 : i32
    %c0_i32_1 = arith.constant 0 : i32
    return %arg0, %c0_i32, %c0_i32_0 : i32, i32, i32
  }
}

module attributes {stable_mosaic.version = 11 : i64} {
  func.func @_gate_kernel(%arg0: i32, %arg1: i32, %arg2: memref<1x16x256xf32, #tpu.memory_space<vmem>>, %arg3: memref<1x16x256xf32, #tpu.memory_space<vmem>>, %arg4: memref<1x16x1xf32, #tpu.memory_space<vmem>>, %arg5: memref<1x16x1xf32, #tpu.memory_space<vmem>>, %arg6: memref<1x16x256xf32, #tpu.memory_space<vmem>>) attributes {dimension_semantics = [#tpu.dimension_semantics<parallel>, #tpu.dimension_semantics<parallel>], iteration_bounds = array<i64: 2, 2>, scalar_prefetch = 0 : i64, scratch_operands = 0 : i64, tpu.core_type = #tpu.core_type<tc>, window_params = [{transform_indices = @transform_0, window_bounds = array<i64: 1, 16, 256>}, {transform_indices = @transform_1, window_bounds = array<i64: 1, 16, 256>}, {transform_indices = @transform_2, window_bounds = array<i64: 1, 16, 1>}, {transform_indices = @transform_3, window_bounds = array<i64: 1, 16, 1>}, {transform_indices = @transform_4, window_bounds = array<i64: 1, 16, 256>}]} {
    %c0 = arith.constant 0 : index
    %c0_0 = arith.constant 0 : index
    %c0_1 = arith.constant 0 : index
    %0 = vector.load %arg2[%c0, %c0_0, %c0_1] : memref<1x16x256xf32, #tpu.memory_space<vmem>>, vector<1x16x256xf32>
    %c0_2 = arith.constant 0 : index
    %c0_3 = arith.constant 0 : index
    %c0_4 = arith.constant 0 : index
    %1 = vector.load %arg4[%c0_2, %c0_3, %c0_4] : memref<1x16x1xf32, #tpu.memory_space<vmem>>, vector<1x16x1xf32>
    %2 = vector.broadcast %1 : vector<1x16x1xf32> to vector<1x16x256xf32>
    %3 = arith.mulf %0, %2 : vector<1x16x256xf32>
    %c0_5 = arith.constant 0 : index
    %c0_6 = arith.constant 0 : index
    %c0_7 = arith.constant 0 : index
    %4 = vector.load %arg3[%c0_5, %c0_6, %c0_7] : memref<1x16x256xf32, #tpu.memory_space<vmem>>, vector<1x16x256xf32>
    %c0_8 = arith.constant 0 : index
    %c0_9 = arith.constant 0 : index
    %c0_10 = arith.constant 0 : index
    %5 = vector.load %arg5[%c0_8, %c0_9, %c0_10] : memref<1x16x1xf32, #tpu.memory_space<vmem>>, vector<1x16x1xf32>
    %6 = vector.broadcast %5 : vector<1x16x1xf32> to vector<1x16x256xf32>
    %7 = arith.mulf %4, %6 : vector<1x16x256xf32>
    %8 = arith.addf %3, %7 : vector<1x16x256xf32>
    %c0_11 = arith.constant 0 : index
    %c0_12 = arith.constant 0 : index
    %c0_13 = arith.constant 0 : index
    %9 = vector.load %arg6[%c0_11, %c0_12, %c0_13] : memref<1x16x256xf32, #tpu.memory_space<vmem>>, vector<1x16x256xf32>
    tpu.vector_store %arg6[%c0_11, %c0_12, %c0_13], %8 {strides = array<i32>} : memref<1x16x256xf32, #tpu.memory_space<vmem>>, vector<1x16x256xf32>,
    return
  }
  func.func @transform_0(%arg0: i32, %arg1: i32) -> (i32, i32, i32) {
    %c0_i32 = arith.constant 0 : i32
    %c0_i32_0 = arith.constant 0 : i32
    return %arg0, %c0_i32, %arg1 : i32, i32, i32
  }
  func.func @transform_1(%arg0: i32, %arg1: i32) -> (i32, i32, i32) {
    %c0_i32 = arith.constant 0 : i32
    %c0_i32_0 = arith.constant 0 : i32
    return %arg0, %c0_i32, %arg1 : i32, i32, i32
  }
  func.func @transform_2(%arg0: i32, %arg1: i32) -> (i32, i32, i32) {
    %c0_i32 = arith.constant 0 : i32
    %c0_i32_0 = arith.constant 0 : i32
    %c0_i32_1 = arith.constant 0 : i32
    return %arg0, %c0_i32, %c0_i32_0 : i32, i32, i32
  }
  func.func @transform_3(%arg0: i32, %arg1: i32) -> (i32, i32, i32) {
    %c0_i32 = arith.constant 0 : i32
    %c0_i32_0 = arith.constant 0 : i32
    %c0_i32_1 = arith.constant 0 : i32
    return %arg0, %c0_i32, %c0_i32_0 : i32, i32, i32
  }
  func.func @transform_4(%arg0: i32, %arg1: i32) -> (i32, i32, i32) {
    %c0_i32 = arith.constant 0 : i32
    %c0_i32_0 = arith.constant 0 : i32
    return %arg0, %c0_i32, %arg1 : i32, i32, i32
  }
}

module attributes {stable_mosaic.version = 11 : i64} {
  func.func @_sample_mlp_align3d_kernel(%arg0: i32, %arg1: i32, %arg2: memref<1x2x128xf32, #tpu.memory_space<vmem>>, %arg3: memref<1x16x512xf32, #tpu.memory_space<vmem>>, %arg4: memref<1x32x128xf32, #tpu.memory_space<vmem>>, %arg5: memref<16x16xf32, #tpu.memory_space<vmem>>, %arg6: memref<16x1xf32, #tpu.memory_space<vmem>>, %arg7: memref<32x16xf32, #tpu.memory_space<vmem>>, %arg8: memref<32x1xf32, #tpu.memory_space<vmem>>, %arg9: memref<32x32xf32, #tpu.memory_space<vmem>>, %arg10: memref<32x1xf32, #tpu.memory_space<vmem>>, %arg11: memref<1x32x128xf32, #tpu.memory_space<vmem>>, %arg12: memref<1x32x128xf32, #tpu.memory_space<vmem>>, %arg13: memref<1x32x1xf32, #tpu.memory_space<vmem>>, %arg14: memref<16x128xf32, #tpu.memory_space<vmem>>) attributes {dimension_semantics = [#tpu.dimension_semantics<parallel>, #tpu.dimension_semantics<arbitrary>], iteration_bounds = array<i64: 2, 3>, scalar_prefetch = 0 : i64, scratch_operands = 1 : i64, tpu.core_type = #tpu.core_type<tc>, window_params = [{transform_indices = @transform_0, window_bounds = array<i64: 1, 2, 128>}, {transform_indices = @transform_1, window_bounds = array<i64: 1, 16, 512>}, {transform_indices = @transform_2, window_bounds = array<i64: 1, 32, 128>}, {pipeline_mode = #tpu.pipeline_mode<synchronous>, transform_indices = @transform_3, window_bounds = array<i64: 16, 16>}, {pipeline_mode = #tpu.pipeline_mode<synchronous>, transform_indices = @transform_4, window_bounds = array<i64: 16, 1>}, {pipeline_mode = #tpu.pipeline_mode<synchronous>, transform_indices = @transform_5, window_bounds = array<i64: 32, 16>}, {pipeline_mode = #tpu.pipeline_mode<synchronous>, transform_indices = @transform_6, window_bounds = array<i64: 32, 1>}, {pipeline_mode = #tpu.pipeline_mode<synchronous>, transform_indices = @transform_7, window_bounds = array<i64: 32, 32>}, {pipeline_mode = #tpu.pipeline_mode<synchronous>, transform_indices = @transform_8, window_bounds = array<i64: 32, 1>}, {transform_indices = @transform_9, window_bounds = array<i64: 1, 32, 128>}, {transform_indices = @transform_10, window_bounds = array<i64: 1, 32, 128>}, {transform_indices = @transform_11, window_bounds = array<i64: 1, 32, 1>}]} {
    %c0 = arith.constant 0 : index
    %c0_0 = arith.constant 0 : index
    %c0_1 = arith.constant 0 : index
    %0 = vector.load %arg2[%c0, %c0_0, %c0_1] : memref<1x2x128xf32, #tpu.memory_space<vmem>>, vector<1x1x128xf32>
    %1 = vector.shape_cast %0 : vector<1x1x128xf32> to vector<1x128xf32>
    %c0_2 = arith.constant 0 : index
    %c1 = arith.constant 1 : index
    %c0_3 = arith.constant 0 : index
    %2 = vector.load %arg2[%c0_2, %c1, %c0_3] : memref<1x2x128xf32, #tpu.memory_space<vmem>>, vector<1x1x128xf32>
    %3 = vector.shape_cast %2 : vector<1x1x128xf32> to vector<1x128xf32>
    %cst = arith.constant 0.000000e+00 : f32
    %4 = vector.broadcast %cst : f32 to vector<16x128xf32>
    %c0_4 = arith.constant 0 : index
    %c0_5 = arith.constant 0 : index
    %5 = vector.load %arg14[%c0_4, %c0_5] : memref<16x128xf32, #tpu.memory_space<vmem>>, vector<16x128xf32>
    tpu.vector_store %arg14[%c0_4, %c0_5], %4 {strides = array<i32>} : memref<16x128xf32, #tpu.memory_space<vmem>>, vector<16x128xf32>,
    %c0_i32 = arith.constant 0 : i32
    %c2_i32 = arith.constant 2 : i32
    %6 = arith.addi %c0_i32, %c2_i32 : i32
    %c1_i32 = arith.constant 1 : i32
    scf.for %arg15 = %c0_i32 to %6 step %c1_i32  : i32 {
      %c1_i32_48 = arith.constant 1 : i32
      %58 = arith.muli %arg15, %c1_i32_48 : i32
      %c0_i32_49 = arith.constant 0 : i32
      %59 = arith.addi %c0_i32_49, %58 : i32
      %c256_i32 = arith.constant 256 : i32
      %60 = arith.muli %59, %c256_i32 : i32
      %61 = tpu.assume_multiple %60, 256 : i32
      %62 = tpu.iota {dimensions = array<i32: 0>} : vector<256x1xi32>
      %63 = vector.broadcast %61 : i32 to vector<256x1xi32>
      %64 = arith.addi %62, %63 : vector<256x1xi32>
      %65 = arith.sitofp %64 : vector<256x1xi32> to vector<256x1xf32>
      %cst_50 = arith.constant 3.200000e+01 : f32
      %66 = vector.broadcast %cst_50 : f32 to vector<256x1xf32>
      %67 = arith.divf %65, %66 : vector<256x1xf32>
      %68 = math.floor %67 : vector<256x1xf32>
      %cst_51 = arith.constant 3.200000e+01 : f32
      %69 = vector.broadcast %cst_51 : f32 to vector<256x1xf32>
      %70 = arith.mulf %68, %69 : vector<256x1xf32>
      %71 = arith.subf %65, %70 : vector<256x1xf32>
      %72 = vector.broadcast %71 : vector<256x1xf32> to vector<256x128xf32>
      %73 = vector.broadcast %1 : vector<1x128xf32> to vector<256x128xf32>
      %74 = arith.subf %72, %73 : vector<256x128xf32>
      %75 = math.absf %74 : vector<256x128xf32>
      %cst_52 = arith.constant 1.000000e+00 : f32
      %76 = vector.broadcast %cst_52 : f32 to vector<256x128xf32>
      %77 = arith.subf %76, %75 : vector<256x128xf32>
      %cst_53 = arith.constant 0.000000e+00 : f32
      %78 = vector.broadcast %cst_53 : f32 to vector<256x128xf32>
      %79 = arith.maximumf %78, %77 : vector<256x128xf32>
      %80 = vector.broadcast %68 : vector<256x1xf32> to vector<256x128xf32>
      %81 = vector.broadcast %3 : vector<1x128xf32> to vector<256x128xf32>
      %82 = arith.subf %80, %81 : vector<256x128xf32>
      %83 = math.absf %82 : vector<256x128xf32>
      %cst_54 = arith.constant 1.000000e+00 : f32
      %84 = vector.broadcast %cst_54 : f32 to vector<256x128xf32>
      %85 = arith.subf %84, %83 : vector<256x128xf32>
      %cst_55 = arith.constant 0.000000e+00 : f32
      %86 = vector.broadcast %cst_55 : f32 to vector<256x128xf32>
      %87 = arith.maximumf %86, %85 : vector<256x128xf32>
      %88 = arith.mulf %79, %87 : vector<256x128xf32>
      %c0_56 = arith.constant 0 : index
      %c0_57 = arith.constant 0 : index
      %89 = arith.index_cast %61 : i32 to index
      %90 = vector.load %arg3[%c0_56, %c0_57, %89] : memref<1x16x512xf32, #tpu.memory_space<vmem>>, vector<1x16x256xf32>
      %91 = vector.shape_cast %90 : vector<1x16x256xf32> to vector<16x256xf32>
      %c0_58 = arith.constant 0 : index
      %c0_59 = arith.constant 0 : index
      %92 = vector.load %arg14[%c0_58, %c0_59] : memref<16x128xf32, #tpu.memory_space<vmem>>, vector<16x128xf32>
      %cst_60 = arith.constant dense<0.000000e+00> : vector<16x128xf32>
      %93 = tpu.matmul %91, %88, %cst_60 {dimension_numbers = #tpu.dot_dimension_numbers<[1], [0], [0], [1], [0, 0, 1, 1], [], []>} : vector<16x256xf32>, vector<256x128xf32>, vector<16x128xf32> -> vector<16x128xf32>
      %94 = arith.addf %92, %93 : vector<16x128xf32>
      %c0_61 = arith.constant 0 : index
      %c0_62 = arith.constant 0 : index
      %95 = vector.load %arg14[%c0_61, %c0_62] : memref<16x128xf32, #tpu.memory_space<vmem>>, vector<16x128xf32>
      tpu.vector_store %arg14[%c0_61, %c0_62], %94 {strides = array<i32>} : memref<16x128xf32, #tpu.memory_space<vmem>>, vector<16x128xf32>,
    }
    %c2_i32_6 = arith.constant 2 : i32
    %c0_7 = arith.constant 0 : index
    %c0_8 = arith.constant 0 : index
    %7 = vector.load %arg5[%c0_7, %c0_8] : memref<16x16xf32, #tpu.memory_space<vmem>>, vector<16x16xf32>
    %c0_9 = arith.constant 0 : index
    %c0_10 = arith.constant 0 : index
    %8 = vector.load %arg14[%c0_9, %c0_10] : memref<16x128xf32, #tpu.memory_space<vmem>>, vector<16x128xf32>
    %cst_11 = arith.constant dense<0.000000e+00> : vector<16x128xf32>
    %9 = tpu.matmul %7, %8, %cst_11 {dimension_numbers = #tpu.dot_dimension_numbers<[1], [0], [0], [1], [0, 0, 1, 1], [], []>} : vector<16x16xf32>, vector<16x128xf32>, vector<16x128xf32> -> vector<16x128xf32>
    %c0_12 = arith.constant 0 : index
    %c0_13 = arith.constant 0 : index
    %10 = vector.load %arg6[%c0_12, %c0_13] : memref<16x1xf32, #tpu.memory_space<vmem>>, vector<16x1xf32>
    %11 = vector.broadcast %10 : vector<16x1xf32> to vector<16x128xf32>
    %12 = arith.addf %9, %11 : vector<16x128xf32>
    %cst_14 = arith.constant 0.000000e+00 : f32
    %13 = vector.broadcast %cst_14 : f32 to vector<16x128xf32>
    %14 = arith.cmpf oge, %12, %13 : vector<16x128xf32>
    %cst_15 = arith.constant 1.000000e-01 : f32
    %15 = vector.broadcast %cst_15 : f32 to vector<16x128xf32>
    %16 = arith.mulf %15, %12 : vector<16x128xf32>
    %17 = arith.select %14, %12, %16 : vector<16x128xi1>, vector<16x128xf32>
    %c0_16 = arith.constant 0 : index
    %c0_17 = arith.constant 0 : index
    %18 = vector.load %arg7[%c0_16, %c0_17] : memref<32x16xf32, #tpu.memory_space<vmem>>, vector<32x16xf32>
    %cst_18 = arith.constant dense<0.000000e+00> : vector<32x128xf32>
    %19 = tpu.matmul %18, %17, %cst_18 {dimension_numbers = #tpu.dot_dimension_numbers<[1], [0], [0], [1], [0, 0, 1, 1], [], []>} : vector<32x16xf32>, vector<16x128xf32>, vector<32x128xf32> -> vector<32x128xf32>
    %c0_19 = arith.constant 0 : index
    %c0_20 = arith.constant 0 : index
    %20 = vector.load %arg8[%c0_19, %c0_20] : memref<32x1xf32, #tpu.memory_space<vmem>>, vector<32x1xf32>
    %21 = vector.broadcast %20 : vector<32x1xf32> to vector<32x128xf32>
    %22 = arith.addf %19, %21 : vector<32x128xf32>
    %cst_21 = arith.constant 0.000000e+00 : f32
    %23 = vector.broadcast %cst_21 : f32 to vector<32x128xf32>
    %24 = arith.cmpf oge, %22, %23 : vector<32x128xf32>
    %cst_22 = arith.constant 1.000000e-01 : f32
    %25 = vector.broadcast %cst_22 : f32 to vector<32x128xf32>
    %26 = arith.mulf %25, %22 : vector<32x128xf32>
    %27 = arith.select %24, %22, %26 : vector<32x128xi1>, vector<32x128xf32>
    %c0_23 = arith.constant 0 : index
    %c0_24 = arith.constant 0 : index
    %28 = vector.load %arg9[%c0_23, %c0_24] : memref<32x32xf32, #tpu.memory_space<vmem>>, vector<32x32xf32>
    %c0_25 = arith.constant 0 : index
    %c0_26 = arith.constant 0 : index
    %c0_27 = arith.constant 0 : index
    %29 = vector.load %arg4[%c0_25, %c0_26, %c0_27] : memref<1x32x128xf32, #tpu.memory_space<vmem>>, vector<1x32x128xf32>
    %30 = vector.shape_cast %29 : vector<1x32x128xf32> to vector<32x128xf32>
    %cst_28 = arith.constant dense<0.000000e+00> : vector<32x128xf32>
    %31 = tpu.matmul %28, %30, %cst_28 {dimension_numbers = #tpu.dot_dimension_numbers<[1], [0], [0], [1], [0, 0, 1, 1], [], []>} : vector<32x32xf32>, vector<32x128xf32>, vector<32x128xf32> -> vector<32x128xf32>
    %c0_29 = arith.constant 0 : index
    %c0_30 = arith.constant 0 : index
    %32 = vector.load %arg10[%c0_29, %c0_30] : memref<32x1xf32, #tpu.memory_space<vmem>>, vector<32x1xf32>
    %33 = vector.broadcast %32 : vector<32x1xf32> to vector<32x128xf32>
    %34 = arith.addf %31, %33 : vector<32x128xf32>
    %cst_31 = arith.constant 0.000000e+00 : f32
    %35 = vector.broadcast %cst_31 : f32 to vector<32x128xf32>
    %36 = arith.cmpf oge, %34, %35 : vector<32x128xf32>
    %cst_32 = arith.constant 1.000000e-01 : f32
    %37 = vector.broadcast %cst_32 : f32 to vector<32x128xf32>
    %38 = arith.mulf %37, %34 : vector<32x128xf32>
    %39 = arith.select %36, %34, %38 : vector<32x128xi1>, vector<32x128xf32>
    %c0_33 = arith.constant 0 : index
    %c0_34 = arith.constant 0 : index
    %c0_35 = arith.constant 0 : index
    %40 = vector.load %arg11[%c0_33, %c0_34, %c0_35] : memref<1x32x128xf32, #tpu.memory_space<vmem>>, vector<1x32x128xf32>
    %41 = vector.shape_cast %40 : vector<1x32x128xf32> to vector<32x128xf32>
    %42 = vector.shape_cast %27 : vector<32x128xf32> to vector<1x32x128xf32>
    tpu.vector_store %arg11[%c0_33, %c0_34, %c0_35], %42 {strides = array<i32>} : memref<1x32x128xf32, #tpu.memory_space<vmem>>, vector<1x32x128xf32>,
    %c0_36 = arith.constant 0 : index
    %c0_37 = arith.constant 0 : index
    %c0_38 = arith.constant 0 : index
    %43 = vector.load %arg12[%c0_36, %c0_37, %c0_38] : memref<1x32x128xf32, #tpu.memory_space<vmem>>, vector<1x32x128xf32>
    %44 = vector.shape_cast %43 : vector<1x32x128xf32> to vector<32x128xf32>
    %45 = vector.shape_cast %39 : vector<32x128xf32> to vector<1x32x128xf32>
    tpu.vector_store %arg12[%c0_36, %c0_37, %c0_38], %45 {strides = array<i32>} : memref<1x32x128xf32, #tpu.memory_space<vmem>>, vector<1x32x128xf32>,
    %c0_i32_39 = arith.constant 0 : i32
    %46 = arith.cmpi eq, %arg1, %c0_i32_39 : i32
    %47 = arith.extui %46 : i1 to i32
    %c0_i32_40 = arith.constant 0 : i32
    %48 = arith.cmpi ne, %47, %c0_i32_40 : i32
    scf.if %48 {
      %cst_48 = arith.constant 0.000000e+00 : f32
      %58 = vector.broadcast %cst_48 : f32 to vector<1x32x1xf32>
      %c0_49 = arith.constant 0 : index
      %c0_50 = arith.constant 0 : index
      %c0_51 = arith.constant 0 : index
      %59 = vector.load %arg13[%c0_49, %c0_50, %c0_51] : memref<1x32x1xf32, #tpu.memory_space<vmem>>, vector<1x32x1xf32>
      tpu.vector_store %arg13[%c0_49, %c0_50, %c0_51], %58 {strides = array<i32>} : memref<1x32x1xf32, #tpu.memory_space<vmem>>, vector<1x32x1xf32>,
    } else {
    }
    %c0_41 = arith.constant 0 : index
    %c0_42 = arith.constant 0 : index
    %c0_43 = arith.constant 0 : index
    %49 = vector.load %arg13[%c0_41, %c0_42, %c0_43] : memref<1x32x1xf32, #tpu.memory_space<vmem>>, vector<1x32x1xf32>
    %50 = vector.shape_cast %49 : vector<1x32x1xf32> to vector<32x1xf32>
    %51 = arith.addf %27, %39 : vector<32x128xf32>
    %cst_44 = arith.constant dense<0.000000e+00> : vector<32xf32>
    %52 = vector.multi_reduction <add>, %51, %cst_44 [1] : vector<32x128xf32> to vector<32xf32>
    %53 = vector.shape_cast %52 : vector<32xf32> to vector<32x1xf32>
    %54 = arith.addf %50, %53 : vector<32x1xf32>
    %c0_45 = arith.constant 0 : index
    %c0_46 = arith.constant 0 : index
    %c0_47 = arith.constant 0 : index
    %55 = vector.load %arg13[%c0_45, %c0_46, %c0_47] : memref<1x32x1xf32, #tpu.memory_space<vmem>>, vector<1x32x1xf32>
    %56 = vector.shape_cast %55 : vector<1x32x1xf32> to vector<32x1xf32>
    %57 = vector.shape_cast %54 : vector<32x1xf32> to vector<1x32x1xf32>
    tpu.vector_store %arg13[%c0_45, %c0_46, %c0_47], %57 {strides = array<i32>} : memref<1x32x1xf32, #tpu.memory_space<vmem>>, vector<1x32x1xf32>,
    return
  }
  func.func @transform_0(%arg0: i32, %arg1: i32) -> (i32, i32, i32) {
    %c0_i32 = arith.constant 0 : i32
    %c0_i32_0 = arith.constant 0 : i32
    return %arg0, %c0_i32, %arg1 : i32, i32, i32
  }
  func.func @transform_1(%arg0: i32, %arg1: i32) -> (i32, i32, i32) {
    %c0_i32 = arith.constant 0 : i32
    %c0_i32_0 = arith.constant 0 : i32
    %c0_i32_1 = arith.constant 0 : i32
    return %arg0, %c0_i32, %c0_i32_0 : i32, i32, i32
  }
  func.func @transform_2(%arg0: i32, %arg1: i32) -> (i32, i32, i32) {
    %c0_i32 = arith.constant 0 : i32
    %c0_i32_0 = arith.constant 0 : i32
    return %arg0, %c0_i32, %arg1 : i32, i32, i32
  }
  func.func @transform_3(%arg0: i32, %arg1: i32) -> (i32, i32) {
    %c0_i32 = arith.constant 0 : i32
    %c0_i32_0 = arith.constant 0 : i32
    %c0_i32_1 = arith.constant 0 : i32
    return %c0_i32, %c0_i32_0 : i32, i32
  }
  func.func @transform_4(%arg0: i32, %arg1: i32) -> (i32, i32) {
    %c0_i32 = arith.constant 0 : i32
    %c0_i32_0 = arith.constant 0 : i32
    %c0_i32_1 = arith.constant 0 : i32
    return %c0_i32, %c0_i32_0 : i32, i32
  }
  func.func @transform_5(%arg0: i32, %arg1: i32) -> (i32, i32) {
    %c0_i32 = arith.constant 0 : i32
    %c0_i32_0 = arith.constant 0 : i32
    %c0_i32_1 = arith.constant 0 : i32
    return %c0_i32, %c0_i32_0 : i32, i32
  }
  func.func @transform_6(%arg0: i32, %arg1: i32) -> (i32, i32) {
    %c0_i32 = arith.constant 0 : i32
    %c0_i32_0 = arith.constant 0 : i32
    %c0_i32_1 = arith.constant 0 : i32
    return %c0_i32, %c0_i32_0 : i32, i32
  }
  func.func @transform_7(%arg0: i32, %arg1: i32) -> (i32, i32) {
    %c0_i32 = arith.constant 0 : i32
    %c0_i32_0 = arith.constant 0 : i32
    %c0_i32_1 = arith.constant 0 : i32
    return %c0_i32, %c0_i32_0 : i32, i32
  }
  func.func @transform_8(%arg0: i32, %arg1: i32) -> (i32, i32) {
    %c0_i32 = arith.constant 0 : i32
    %c0_i32_0 = arith.constant 0 : i32
    %c0_i32_1 = arith.constant 0 : i32
    return %c0_i32, %c0_i32_0 : i32, i32
  }
  func.func @transform_9(%arg0: i32, %arg1: i32) -> (i32, i32, i32) {
    %c0_i32 = arith.constant 0 : i32
    %c0_i32_0 = arith.constant 0 : i32
    return %arg0, %c0_i32, %arg1 : i32, i32, i32
  }
  func.func @transform_10(%arg0: i32, %arg1: i32) -> (i32, i32, i32) {
    %c0_i32 = arith.constant 0 : i32
    %c0_i32_0 = arith.constant 0 : i32
    return %arg0, %c0_i32, %arg1 : i32, i32, i32
  }
  func.func @transform_11(%arg0: i32, %arg1: i32) -> (i32, i32, i32) {
    %c0_i32 = arith.constant 0 : i32
    %c0_i32_0 = arith.constant 0 : i32
    %c0_i32_1 = arith.constant 0 : i32
    return %arg0, %c0_i32, %c0_i32_0 : i32, i32, i32
  }
}

module attributes {stable_mosaic.version = 11 : i64} {
  func.func @_gate_kernel(%arg0: i32, %arg1: i32, %arg2: memref<1x32x128xf32, #tpu.memory_space<vmem>>, %arg3: memref<1x32x128xf32, #tpu.memory_space<vmem>>, %arg4: memref<1x32x1xf32, #tpu.memory_space<vmem>>, %arg5: memref<1x32x1xf32, #tpu.memory_space<vmem>>, %arg6: memref<1x32x128xf32, #tpu.memory_space<vmem>>) attributes {dimension_semantics = [#tpu.dimension_semantics<parallel>, #tpu.dimension_semantics<parallel>], iteration_bounds = array<i64: 2, 3>, scalar_prefetch = 0 : i64, scratch_operands = 0 : i64, tpu.core_type = #tpu.core_type<tc>, window_params = [{transform_indices = @transform_0, window_bounds = array<i64: 1, 32, 128>}, {transform_indices = @transform_1, window_bounds = array<i64: 1, 32, 128>}, {transform_indices = @transform_2, window_bounds = array<i64: 1, 32, 1>}, {transform_indices = @transform_3, window_bounds = array<i64: 1, 32, 1>}, {transform_indices = @transform_4, window_bounds = array<i64: 1, 32, 128>}]} {
    %c0 = arith.constant 0 : index
    %c0_0 = arith.constant 0 : index
    %c0_1 = arith.constant 0 : index
    %0 = vector.load %arg2[%c0, %c0_0, %c0_1] : memref<1x32x128xf32, #tpu.memory_space<vmem>>, vector<1x32x128xf32>
    %c0_2 = arith.constant 0 : index
    %c0_3 = arith.constant 0 : index
    %c0_4 = arith.constant 0 : index
    %1 = vector.load %arg4[%c0_2, %c0_3, %c0_4] : memref<1x32x1xf32, #tpu.memory_space<vmem>>, vector<1x32x1xf32>
    %2 = vector.broadcast %1 : vector<1x32x1xf32> to vector<1x32x128xf32>
    %3 = arith.mulf %0, %2 : vector<1x32x128xf32>
    %c0_5 = arith.constant 0 : index
    %c0_6 = arith.constant 0 : index
    %c0_7 = arith.constant 0 : index
    %4 = vector.load %arg3[%c0_5, %c0_6, %c0_7] : memref<1x32x128xf32, #tpu.memory_space<vmem>>, vector<1x32x128xf32>
    %c0_8 = arith.constant 0 : index
    %c0_9 = arith.constant 0 : index
    %c0_10 = arith.constant 0 : index
    %5 = vector.load %arg5[%c0_8, %c0_9, %c0_10] : memref<1x32x1xf32, #tpu.memory_space<vmem>>, vector<1x32x1xf32>
    %6 = vector.broadcast %5 : vector<1x32x1xf32> to vector<1x32x128xf32>
    %7 = arith.mulf %4, %6 : vector<1x32x128xf32>
    %8 = arith.addf %3, %7 : vector<1x32x128xf32>
    %c0_11 = arith.constant 0 : index
    %c0_12 = arith.constant 0 : index
    %c0_13 = arith.constant 0 : index
    %9 = vector.load %arg6[%c0_11, %c0_12, %c0_13] : memref<1x32x128xf32, #tpu.memory_space<vmem>>, vector<1x32x128xf32>
    tpu.vector_store %arg6[%c0_11, %c0_12, %c0_13], %8 {strides = array<i32>} : memref<1x32x128xf32, #tpu.memory_space<vmem>>, vector<1x32x128xf32>,
    return
  }
  func.func @transform_0(%arg0: i32, %arg1: i32) -> (i32, i32, i32) {
    %c0_i32 = arith.constant 0 : i32
    %c0_i32_0 = arith.constant 0 : i32
    return %arg0, %c0_i32, %arg1 : i32, i32, i32
  }
  func.func @transform_1(%arg0: i32, %arg1: i32) -> (i32, i32, i32) {
    %c0_i32 = arith.constant 0 : i32
    %c0_i32_0 = arith.constant 0 : i32
    return %arg0, %c0_i32, %arg1 : i32, i32, i32
  }
  func.func @transform_2(%arg0: i32, %arg1: i32) -> (i32, i32, i32) {
    %c0_i32 = arith.constant 0 : i32
    %c0_i32_0 = arith.constant 0 : i32
    %c0_i32_1 = arith.constant 0 : i32
    return %arg0, %c0_i32, %c0_i32_0 : i32, i32, i32
  }
  func.func @transform_3(%arg0: i32, %arg1: i32) -> (i32, i32, i32) {
    %c0_i32 = arith.constant 0 : i32
    %c0_i32_0 = arith.constant 0 : i32
    %c0_i32_1 = arith.constant 0 : i32
    return %arg0, %c0_i32, %c0_i32_0 : i32, i32, i32
  }
  func.func @transform_4(%arg0: i32, %arg1: i32) -> (i32, i32, i32) {
    %c0_i32 = arith.constant 0 : i32
    %c0_i32_0 = arith.constant 0 : i32
    return %arg0, %c0_i32, %arg1 : i32, i32, i32
  }
}

</mosaic_0001>

<llo_original>
// kernel: clfm_forward.5
$region0: #{clfm_forward.5}
  #allocation0 [shape = 'u32[]', space=smem, size = 0x4, offset = 0x4, fixed_abs, tag = 'smem constant byte address 0x4 - core index']
  #allocation1 [shape = 'u32[72,128]{1,0:T(1,128)}', space=vmem, size = 0x9000, scoped, tag = 'internal scratch']
  %s0 = inlined_call_operand.vmem [shape: f32[2,16,512], index: 0, kind: input, shape index: {}]
  %s1 = inlined_call_operand.vmem [shape: f32[2,16,512], index: 1, kind: input, shape index: {}]
  %s2 = inlined_call_operand.vmem [shape: f32[2,16,1], index: 2, kind: input, shape index: {}]
  %s3 = inlined_call_operand.vmem [shape: f32[2,16,1], index: 3, kind: input, shape index: {}]
  %s4 = inlined_call_operand.vmem [shape: f32[2,16,512], index: 4, kind: output, shape index: {}]
  %s5 = sld [smem:[#allocation0]]
  $region114: #{clfm_forward.5} parent=0
    _
  %s7 = ssub.s32 1, %s5
  %s8 = scalar_select 0, %s7, %s5
  $region1: #{clfm_forward.5} parent=0
    #allocation2 [shape = 'u8[32768]{0}', space=vmem, size = 0x8000, scoped, tag = 'input window, operand 0']
    #allocation3 [shape = 'u8[32768]{0}', space=vmem, size = 0x8000, scoped, tag = 'input window, operand 1']
    #allocation4 [shape = 'u8[32768]{0}', space=vmem, size = 0x8000, scoped, tag = 'output window, operand 0']
    loop: start=0, step=1, limit=6
    $region2: #{clfm_forward.5} parent=1 // loop_pre_header
      _
    $region3: #{clfm_forward.5} parent=1 // loop_header
      %s10 = sphi 0, %s14
      %p11 = scmp.ge.s32.totalorder %s10, 6
      %s17 = sphi 0, %s29
      %s18 = sphi 0, %s25
      %s19 = sphi 0, %s17
      %s20 = sphi 0, %s18
      %s21 = sphi 0, %s19
      %s22 = sphi 0, %s20
      %s34 = sphi 0, %s36
      %s37 = sphi 0, %s34
      %s38 = sphi 0, %s37
      %s54 = sphi 0, %s38
      %s62 = sphi 0, %s64
      %s65 = sphi 0, %s62
      %s66 = sphi 0, %s65
      %s82 = sphi 0, %s66
      %s88 = sphi 0, %s90
      %s91 = sphi 0, %s88
      %s92 = sphi 0, %s91
      %s108 = sphi 0, %s92
      %s114 = sphi 0, %s116
      %s117 = sphi 0, %s114
      %s118 = sphi 0, %s117
      %s134 = sphi 0, %s118
      %s142 = sphi 0, %s144
      %s145 = sphi 0, %s142
      %s146 = sphi 0, %s145
      %s162 = sphi 0, %s146
    $region4: #{clfm_forward.5} parent=1 // loop_header_branch
      %13 = sbr.rel (%p11) target = $region8
    $region5: #{clfm_forward.5} parent=1 // loop_body
      %s15 = ssub.s32 %s10, 1
      %s16 = ssub.s32 %s10, 2
      %s23 = sadd.s32 1, %s18
      %p24 = scmp.ge.s32.totalorder %s23, 2
      %s25 = scalar_select %p24, 0, %s23
      %s26 = sadd.s32 1, %s17
      %s27 = scalar_select %p24, %s26, %s17
      %p28 = scmp.ge.s32.totalorder %s27, 2
      %s29 = scalar_select %p28, 0, %s27
      %s30 = ssub.s32 %s17, %s29
      %s31 = ssub.s32 %s18, %s25
      %s32 = sor.u32 %s30, %s31
      %p33 = scmp.eq.s32.totalorder %s32, 0
      %s35 = sadd.s32 %s34, 1
      %s36 = scalar_select %p33, %s34, %s35
      %p39 = pneg %p33
      %p40 = scmp.eq.s32.totalorder %s10, 3
      %p41 = por %p39, %p40
      %p42 = scmp.ne.s32.totalorder %s34, %s37
      %p43 = scmp.eq.s32.totalorder %s10, 0
      %p44 = por %p42, %p43
      %p45 = scmp.ne.s32.totalorder %s34, %s37
      %p46 = scmp.eq.s32.totalorder %s15, 3
      %p47 = por %p45, %p46
      %p48 = scmp.ne.s32.totalorder %s37, %s38
      %p49 = scmp.eq.s32.totalorder %s15, 0
      %p50 = por %p48, %p49
      %p51 = scmp.ne.s32.totalorder %s37, %s38
      %p52 = scmp.eq.s32.totalorder %s16, 3
      %p53 = por %p51, %p52
      %p55 = scmp.ne.s32.totalorder %s38, %s54
      %p56 = scmp.eq.s32.totalorder %s16, 0
      %p57 = por %p55, %p56
      %s58 = ssub.s32 %s17, %s29
      %s59 = ssub.s32 %s18, %s25
      %s60 = sor.u32 %s58, %s59
      %p61 = scmp.eq.s32.totalorder %s60, 0
      %s63 = sadd.s32 %s62, 1
      %s64 = scalar_select %p61, %s62, %s63
      %p67 = pneg %p61
      %p68 = scmp.eq.s32.totalorder %s10, 3
      %p69 = por %p67, %p68
      %p70 = scmp.ne.s32.totalorder %s62, %s65
      %p71 = scmp.eq.s32.totalorder %s10, 0
      %p72 = por %p70, %p71
      %p73 = scmp.ne.s32.totalorder %s62, %s65
      %p74 = scmp.eq.s32.totalorder %s15, 3
      %p75 = por %p73, %p74
      %p76 = scmp.ne.s32.totalorder %s65, %s66
      %p77 = scmp.eq.s32.totalorder %s15, 0
      %p78 = por %p76, %p77
      %p79 = scmp.ne.s32.totalorder %s65, %s66
      %p80 = scmp.eq.s32.totalorder %s16, 3
      %p81 = por %p79, %p80
      %p83 = scmp.ne.s32.totalorder %s66, %s82
      %p84 = scmp.eq.s32.totalorder %s16, 0
      %p85 = por %p83, %p84
      %s86 = ssub.s32 %s17, %s29
      %p87 = scmp.eq.s32.totalorder %s86, 0
      %s89 = sadd.s32 %s88, 1
      %s90 = scalar_select %p87, %s88, %s89
      %p93 = pneg %p87
      %p94 = scmp.eq.s32.totalorder %s10, 3
      %p95 = por %p93, %p94
      %p96 = scmp.ne.s32.totalorder %s88, %s91
      %p97 = scmp.eq.s32.totalorder %s10, 0
      %p98 = por %p96, %p97
      %p99 = scmp.ne.s32.totalorder %s88, %s91
      %p100 = scmp.eq.s32.totalorder %s15, 3
      %p101 = por %p99, %p100
      %p102 = scmp.ne.s32.totalorder %s91, %s92
      %p103 = scmp.eq.s32.totalorder %s15, 0
      %p104 = por %p102, %p103
      %p105 = scmp.ne.s32.totalorder %s91, %s92
      %p106 = scmp.eq.s32.totalorder %s16, 3
      %p107 = por %p105, %p106
      %p109 = scmp.ne.s32.totalorder %s92, %s108
      %p110 = scmp.eq.s32.totalorder %s16, 0
      %p111 = por %p109, %p110
      %s112 = ssub.s32 %s17, %s29
      %p113 = scmp.eq.s32.totalorder %s112, 0
      %s115 = sadd.s32 %s114, 1
      %s116 = scalar_select %p113, %s114, %s115
      %p119 = pneg %p113
      %p120 = scmp.eq.s32.totalorder %s10, 3
      %p121 = por %p119, %p120
      %p122 = scmp.ne.s32.totalorder %s114, %s117
      %p123 = scmp.eq.s32.totalorder %s10, 0
      %p124 = por %p122, %p123
      %p125 = scmp.ne.s32.totalorder %s114, %s117
      %p126 = scmp.eq.s32.totalorder %s15, 3
      %p127 = por %p125, %p126
      %p128 = scmp.ne.s32.totalorder %s117, %s118
      %p129 = scmp.eq.s32.totalorder %s15, 0
      %p130 = por %p128, %p129
      %p131 = scmp.ne.s32.totalorder %s117, %s118
      %p132 = scmp.eq.s32.totalorder %s16, 3
      %p133 = por %p131, %p132
      %p135 = scmp.ne.s32.totalorder %s118, %s134
      %p136 = scmp.eq.s32.totalorder %s16, 0
      %p137 = por %p135, %p136
      %s138 = ssub.s32 %s17, %s29
      %s139 = ssub.s32 %s18, %s25
      %s140 = sor.u32 %s138, %s139
      %p141 = scmp.eq.s32.totalorder %s140, 0
      %s143 = sadd.s32 %s142, 1
      %s144 = scalar_select %p141, %s142, %s143
      %p147 = pneg %p141
      %p148 = scmp.eq.s32.totalorder %s10, 3
      %p149 = por %p147, %p148
      %p150 = scmp.ne.s32.totalorder %s142, %s145
      %p151 = scmp.eq.s32.totalorder %s10, 0
      %p152 = por %p150, %p151
      %p153 = scmp.ne.s32.totalorder %s142, %s145
      %p154 = scmp.eq.s32.totalorder %s15, 3
      %p155 = por %p153, %p154
      %p156 = scmp.ne.s32.totalorder %s145, %s146
      %p157 = scmp.eq.s32.totalorder %s15, 0
      %p158 = por %p156, %p157
      %p159 = scmp.ne.s32.totalorder %s145, %s146
      %p160 = scmp.eq.s32.totalorder %s16, 3
      %p161 = por %p159, %p160
      %p163 = scmp.ne.s32.totalorder %s146, %s162
      %p164 = scmp.eq.s32.totalorder %s16, 0
      %p165 = por %p163, %p164
      %p166 = scmp.le.s32.totalorder 1, %s10
      %p167 = scmp.lt.s32.totalorder %s10, 5
      %p168 = pnand %p166, %p167
      %p169 = pneg %p168
      // Predicated region
      $region9: #{clfm_forward.5} parent=5 // pred_check
        _
      $region10: #{clfm_forward.5} parent=5 // pred_check_branch
        %171 = sbr.rel (%p168) target = $region12
      $region11: #{clfm_forward.5} parent=5 // pred_region
        %s172 = ssub.s32 %s10, 1
      $region12: #{clfm_forward.5} parent=5 // pred_fallthru
        _
      %p173 = scmp.lt.s32.totalorder %s10, 4
      // Predicated region
      $region13: #{clfm_forward.5} parent=5 // pred_check
        %p174 = pneg %p173
      $region14: #{clfm_forward.5} parent=5 // pred_check_branch
        %176 = sbr.rel (%p174) target = $region16
      $region15: #{clfm_forward.5} parent=5 // pred_region
        // Predicated region
        $region17: #{clfm_forward.5} parent=15 // pred_check
          %p177 = pneg %p44
        $region18: #{clfm_forward.5} parent=15 // pred_check_branch
          %179 = sbr.rel (%p177) target = $region20
        $region19: #{clfm_forward.5} parent=15 // pred_region
          %s180 = sand.u32 %s34, 1
          %s181 = sand.u32 %s34, 1
          %s182 = smul.addr %s181, 32
          %s183 = scalar_lea.vmem [#allocation2], %s182
          %s184 = smul.u32 2, %s18
          %s185 = smul.addr %s17, 8
          %s186 = sadd.s32 %s184, %s185
          %s187 = smul.addr %s186, 8
          %s188 = scalar_lea.vmem %s0, %s187
          // Predicated region
          $region21: #{clfm_forward.5} parent=19 // pred_check
            _
          $region22: #{clfm_forward.5} parent=19 // pred_check_branch
            %190 = sbr.rel (0) target = $region24
          $region23: #{clfm_forward.5} parent=19 // pred_region
            // Predicated region
            $region25: #{clfm_forward.5} parent=23 // pred_check
              _
            $region26: #{clfm_forward.5} parent=23 // pred_check_branch
              %192 = sbr.rel (0) target = $region28
            $region27: #{clfm_forward.5} parent=23 // pred_region
              loop: start=0, step=1, limit=1
              $region29: #{clfm_forward.5} parent=27 // loop_pre_header
                _
              $region30: #{clfm_forward.5} parent=27 // loop_header
                %s194 = sphi 0, %s198
                %p195 = scmp.ge.s32.totalorder %s194, 1
                %s199 = sphi %s188, %s188
                %s200 = sphi %s183, %s183
              $region31: #{clfm_forward.5} parent=27 // loop_header_branch
                %197 = sbr.rel (%p195) target = $region35
              $region32: #{clfm_forward.5} parent=27 // loop_body
                %v201 = vld [vmem:[%s199] sm:$0xff]
                %202 = vst [vmem:[%s200] sm:$0xff] %v201
                %v203 = vld [vmem:[%s199 + $0x8] sm:$0xff]
                %204 = vst [vmem:[%s200 + $0x8] sm:$0xff] %v203
                %v205 = vld [vmem:[%s199 + $0x20] sm:$0xff]
                %206 = vst [vmem:[%s200 + $0x10] sm:$0xff] %v205
                %v207 = vld [vmem:[%s199 + $0x28] sm:$0xff]
                %208 = vst [vmem:[%s200 + $0x18] sm:$0xff] %v207
              $region33: #{clfm_forward.5} parent=27 // loop_footer
                %s198 = sadd.s32 1, %s194
              $region34: #{clfm_forward.5} parent=27 // loop_footer_branch
                %193 = sbr.rel target = $region30
              $region35: #{clfm_forward.5} parent=27 // loop_exit
                _
            $region28: #{clfm_forward.5} parent=23 // pred_fallthru
              _
            // Predicated region
            $region36: #{clfm_forward.5} parent=23 // pred_check
              _
            $region37: #{clfm_forward.5} parent=23 // pred_check_branch
              %210 = sbr.rel target = $region39
            $region38: #{clfm_forward.5} parent=23 // pred_region
              _
            $region39: #{clfm_forward.5} parent=23 // pred_fallthru
              _
          $region24: #{clfm_forward.5} parent=19 // pred_fallthru
            _
          %211 = vnop
        $region20: #{clfm_forward.5} parent=15 // pred_fallthru
          _
        // Predicated region
        $region40: #{clfm_forward.5} parent=15 // pred_check
          %p212 = pneg %p72
        $region41: #{clfm_forward.5} parent=15 // pred_check_branch
          %214 = sbr.rel (%p212) target = $region43
        $region42: #{clfm_forward.5} parent=15 // pred_region
          %s215 = sand.u32 %s62, 1
          %s216 = sand.u32 %s62, 1
          %s217 = smul.addr %s216, 32
          %s218 = scalar_lea.vmem [#allocation3], %s217
          %s219 = smul.u32 2, %s18
          %s220 = smul.addr %s17, 8
          %s221 = sadd.s32 %s219, %s220
          %s222 = smul.addr %s221, 8
          %s223 = scalar_lea.vmem %s1, %s222
          // Predicated region
          $region44: #{clfm_forward.5} parent=42 // pred_check
            _
          $region45: #{clfm_forward.5} parent=42 // pred_check_branch
            %225 = sbr.rel (0) target = $region47
          $region46: #{clfm_forward.5} parent=42 // pred_region
            // Predicated region
            $region48: #{clfm_forward.5} parent=46 // pred_check
              _
            $region49: #{clfm_forward.5} parent=46 // pred_check_branch
              %227 = sbr.rel (0) target = $region51
            $region50: #{clfm_forward.5} parent=46 // pred_region
              loop: start=0, step=1, limit=1
              $region52: #{clfm_forward.5} parent=50 // loop_pre_header
                _
              $region53: #{clfm_forward.5} parent=50 // loop_header
                %s229 = sphi 0, %s233
                %p230 = scmp.ge.s32.totalorder %s229, 1
                %s234 = sphi %s223, %s223
                %s235 = sphi %s218, %s218
              $region54: #{clfm_forward.5} parent=50 // loop_header_branch
                %232 = sbr.rel (%p230) target = $region58
              $region55: #{clfm_forward.5} parent=50 // loop_body
                %v236 = vld [vmem:[%s234] sm:$0xff]
                %237 = vst [vmem:[%s235] sm:$0xff] %v236
                %v238 = vld [vmem:[%s234 + $0x8] sm:$0xff]
                %239 = vst [vmem:[%s235 + $0x8] sm:$0xff] %v238
                %v240 = vld [vmem:[%s234 + $0x20] sm:$0xff]
                %241 = vst [vmem:[%s235 + $0x10] sm:$0xff] %v240
                %v242 = vld [vmem:[%s234 + $0x28] sm:$0xff]
                %243 = vst [vmem:[%s235 + $0x18] sm:$0xff] %v242
              $region56: #{clfm_forward.5} parent=50 // loop_footer
                %s233 = sadd.s32 1, %s229
              $region57: #{clfm_forward.5} parent=50 // loop_footer_branch
                %228 = sbr.rel target = $region53
              $region58: #{clfm_forward.5} parent=50 // loop_exit
                _
            $region51: #{clfm_forward.5} parent=46 // pred_fallthru
              _
            // Predicated region
            $region59: #{clfm_forward.5} parent=46 // pred_check
              _
            $region60: #{clfm_forward.5} parent=46 // pred_check_branch
              %245 = sbr.rel target = $region62
            $region61: #{clfm_forward.5} parent=46 // pred_region
              _
            $region62: #{clfm_forward.5} parent=46 // pred_fallthru
              _
          $region47: #{clfm_forward.5} parent=42 // pred_fallthru
            _
          %246 = vnop
        $region43: #{clfm_forward.5} parent=15 // pred_fallthru
          _
        // Predicated region
        $region63: #{clfm_forward.5} parent=15 // pred_check
          %p247 = pneg %p98
        $region64: #{clfm_forward.5} parent=15 // pred_check_branch
          %249 = sbr.rel (%p247) target = $region66
        $region65: #{clfm_forward.5} parent=15 // pred_region
          %p250 = scmp.lt.s32.totalorder %s17, 1
          %s251 = scalar_select %p250, %s17, 1
          %s252 = smul.addr %s251, 2
          %s253 = smul.addr %s252, 8
          %s254 = scalar_lea.vmem %s2, %s253
        $region66: #{clfm_forward.5} parent=15 // pred_fallthru
          _
        // Predicated region
        $region67: #{clfm_forward.5} parent=15 // pred_check
          %p255 = pneg %p124
        $region68: #{clfm_forward.5} parent=15 // pred_check_branch
          %257 = sbr.rel (%p255) target = $region70
        $region69: #{clfm_forward.5} parent=15 // pred_region
          %p258 = scmp.lt.s32.totalorder %s17, 1
          %s259 = scalar_select %p258, %s17, 1
          %s260 = smul.addr %s259, 2
          %s261 = smul.addr %s260, 8
          %s262 = scalar_lea.vmem %s3, %s261
        $region70: #{clfm_forward.5} parent=15 // pred_fallthru
          _
      $region16: #{clfm_forward.5} parent=5 // pred_fallthru
        _
      %p263 = scmp.le.s32.totalorder 1, %s10
      %p264 = scmp.lt.s32.totalorder %s10, 5
      %p265 = pnand %p263, %p264
      %p266 = pneg %p265
      // Predicated region
      $region71: #{clfm_forward.5} parent=5 // pred_check
        _
      $region72: #{clfm_forward.5} parent=5 // pred_check_branch
        %268 = sbr.rel (%p265) target = $region74
      $region73: #{clfm_forward.5} parent=5 // pred_region
        %s269 = ssub.s32 %s10, 1
        %s270 = sand.u32 %s37, 1
        %s271 = sand.u32 %s37, 1
        %s272 = smul.addr %s271, 32
        %s273 = scalar_lea.vmem [#allocation2], %s272
        // Predicated region
        $region75: #{clfm_forward.5} parent=73 // pred_check
          %p274 = pneg %p50
        $region76: #{clfm_forward.5} parent=73 // pred_check_branch
          %276 = sbr.rel (%p274) target = $region78
        $region77: #{clfm_forward.5} parent=73 // pred_region
          _
        $region78: #{clfm_forward.5} parent=73 // pred_fallthru
          _
        %s277 = sand.u32 %s65, 1
        %s278 = sand.u32 %s65, 1
        %s279 = smul.addr %s278, 32
        %s280 = scalar_lea.vmem [#allocation3], %s279
        // Predicated region
        $region79: #{clfm_forward.5} parent=73 // pred_check
          %p281 = pneg %p78
        $region80: #{clfm_forward.5} parent=73 // pred_check_branch
          %283 = sbr.rel (%p281) target = $region82
        $region81: #{clfm_forward.5} parent=73 // pred_region
          _
        $region82: #{clfm_forward.5} parent=73 // pred_fallthru
          _
        %s284 = sand.u32 %s37, 1
        %s285 = sand.u32 %s37, 1
        %s286 = smul.addr %s285, 32
        %s287 = scalar_lea.vmem [#allocation2], %s286
        %p288 = pneg %p50
        %p289 = pneg %p47
        %s290 = sand.u32 %s65, 1
        %s291 = sand.u32 %s65, 1
        %s292 = smul.addr %s291, 32
        %s293 = scalar_lea.vmem [#allocation3], %s292
        %p294 = pneg %p78
        %p295 = pneg %p75
        %p296 = scmp.lt.s32.totalorder %s19, 1
        %s297 = scalar_select %p296, %s19, 1
        %s298 = smul.addr %s297, 2
        %s299 = smul.addr %s298, 8
        %s300 = scalar_lea.vmem %s2, %s299
        %p301 = pneg %p104
        %p302 = pneg %p101
        %p303 = scmp.lt.s32.totalorder %s19, 1
        %s304 = scalar_select %p303, %s19, 1
        %s305 = smul.addr %s304, 2
        %s306 = smul.addr %s305, 8
        %s307 = scalar_lea.vmem %s3, %s306
        %p308 = pneg %p130
        %p309 = pneg %p127
        %p310 = pneg %p158
        %p311 = pneg %p155
        %s312 = sand.u32 %s145, 1
        %s313 = sand.u32 %s145, 1
        %s314 = smul.addr %s313, 32
        %s315 = scalar_lea.vmem [#allocation4], %s314
        %s316 = smul.u32 2, %s20
        %s317 = smul.u32 2, %s20
        %p318 = scmp.lt.s32.totalorder %s19, 1
        %s319 = scalar_select %p318, %s19, 1
        %s320 = smul.addr %s319, 2
        %s321 = smul.addr %s320, 8
        %s322 = scalar_lea.vmem %s2, %s321
        %p323 = scmp.lt.s32.totalorder %s19, 1
        %s324 = scalar_select %p323, %s19, 1
        %s325 = smul.addr %s324, 2
        %s326 = smul.addr %s325, 8
        %s327 = scalar_lea.vmem %s3, %s326
        %s328 = smul.u32 2, %s20
        %v329 = vld [vmem:[%s273] sm:$0xff]
        %v330 = vld [vmem:[%s273 + $0x8] sm:$0xff]
        %v331 = vld [vmem:[%s273 + $0x10] sm:$0xff]
        %v332 = vld [vmem:[%s273 + $0x18] sm:$0xff]
        %v333 = vld [vmem:[%s322] sm:$0xff]
        %v334 = vld [vmem:[%s322 + $0x8] sm:$0xff]
        %336 = vset.pattern.permute.xlu0 0
        %337 = vperm.xlu0 %336, %v333
        %v338 = vpop.permute.xlu0 %337
        %341 = vset.pattern.permute.xlu0 0
        %342 = vperm.xlu0 %341, %v334
        %v343 = vpop.permute.xlu0 %342
        %v345 = vmul.f32 %v329, %v338
        %v346 = vmul.f32 %v330, %v338
        %v347 = vmul.f32 %v331, %v343
        %v348 = vmul.f32 %v332, %v343
        %v349 = vld [vmem:[%s280] sm:$0xff]
        %v350 = vld [vmem:[%s280 + $0x8] sm:$0xff]
        %v351 = vld [vmem:[%s280 + $0x10] sm:$0xff]
        %v352 = vld [vmem:[%s280 + $0x18] sm:$0xff]
        %v353 = vld [vmem:[%s327] sm:$0xff]
        %v354 = vld [vmem:[%s327 + $0x8] sm:$0xff]
        %356 = vset.pattern.permute.xlu0 0
        %357 = vperm.xlu0 %356, %v353
        %v358 = vpop.permute.xlu0 %357
        %361 = vset.pattern.permute.xlu0 0
        %362 = vperm.xlu0 %361, %v354
        %v363 = vpop.permute.xlu0 %362
        %v365 = vmul.f32 %v349, %v358
        %v366 = vmul.f32 %v350, %v358
        %v367 = vmul.f32 %v351, %v363
        %v368 = vmul.f32 %v352, %v363
        %v369 = vadd.f32 %v345, %v365
        %v370 = vadd.f32 %v346, %v366
        %v371 = vadd.f32 %v347, %v367
        %v372 = vadd.f32 %v348, %v368
        %373 = vst [vmem:[%s315] sm:$0xff] %v369
        %374 = vst [vmem:[%s315 + $0x8] sm:$0xff] %v370
        %375 = vst [vmem:[%s315 + $0x10] sm:$0xff] %v371
        %376 = vst [vmem:[%s315 + $0x18] sm:$0xff] %v372
        %s377 = sand.u32 %s145, 1
        %s378 = sand.u32 %s145, 1
        %s379 = smul.addr %s378, 32
        %s380 = scalar_lea.vmem [#allocation4], %s379
        // Predicated region
        $region83: #{clfm_forward.5} parent=73 // pred_check
          %p381 = pneg %p155
        $region84: #{clfm_forward.5} parent=73 // pred_check_branch
          %383 = sbr.rel (%p381) target = $region86
        $region85: #{clfm_forward.5} parent=73 // pred_region
          %s384 = smul.u32 2, %s20
          %s385 = smul.addr %s19, 8
          %s386 = sadd.s32 %s384, %s385
          %s387 = smul.addr %s386, 8
          %s388 = scalar_lea.vmem %s4, %s387
          // Predicated region
          $region87: #{clfm_forward.5} parent=85 // pred_check
            _
          $region88: #{clfm_forward.5} parent=85 // pred_check_branch
            %390 = sbr.rel (0) target = $region90
          $region89: #{clfm_forward.5} parent=85 // pred_region
            // Predicated region
            $region91: #{clfm_forward.5} parent=89 // pred_check
              _
            $region92: #{clfm_forward.5} parent=89 // pred_check_branch
              %392 = sbr.rel (0) target = $region94
            $region93: #{clfm_forward.5} parent=89 // pred_region
              loop: start=0, step=1, limit=1
              $region95: #{clfm_forward.5} parent=93 // loop_pre_header
                _
              $region96: #{clfm_forward.5} parent=93 // loop_header
                %s394 = sphi 0, %s398
                %p395 = scmp.ge.s32.totalorder %s394, 1
                %s399 = sphi %s380, %s380
                %s400 = sphi %s388, %s388
              $region97: #{clfm_forward.5} parent=93 // loop_header_branch
                %397 = sbr.rel (%p395) target = $region101
              $region98: #{clfm_forward.5} parent=93 // loop_body
                %v401 = vld [vmem:[%s399] sm:$0xff]
                %402 = vst [vmem:[%s400] sm:$0xff] %v401
                %v403 = vld [vmem:[%s399 + $0x8] sm:$0xff]
                %404 = vst [vmem:[%s400 + $0x8] sm:$0xff] %v403
                %v405 = vld [vmem:[%s399 + $0x10] sm:$0xff]
                %406 = vst [vmem:[%s400 + $0x20] sm:$0xff] %v405
                %v407 = vld [vmem:[%s399 + $0x18] sm:$0xff]
                %408 = vst [vmem:[%s400 + $0x28] sm:$0xff] %v407
              $region99: #{clfm_forward.5} parent=93 // loop_footer
                %s398 = sadd.s32 1, %s394
              $region100: #{clfm_forward.5} parent=93 // loop_footer_branch
                %393 = sbr.rel target = $region96
              $region101: #{clfm_forward.5} parent=93 // loop_exit
                _
            $region94: #{clfm_forward.5} parent=89 // pred_fallthru
              _
            // Predicated region
            $region102: #{clfm_forward.5} parent=89 // pred_check
              _
            $region103: #{clfm_forward.5} parent=89 // pred_check_branch
              %410 = sbr.rel target = $region105
            $region104: #{clfm_forward.5} parent=89 // pred_region
              _
            $region105: #{clfm_forward.5} parent=89 // pred_fallthru
              _
          $region90: #{clfm_forward.5} parent=85 // pred_fallthru
            _
          %411 = vnop
        $region86: #{clfm_forward.5} parent=73 // pred_fallthru
          _
      $region74: #{clfm_forward.5} parent=5 // pred_fallthru
        _
      %p412 = scmp.le.s32.totalorder 2, %s10
      // Predicated region
      $region106: #{clfm_forward.5} parent=5 // pred_check
        %p413 = pneg %p412
      $region107: #{clfm_forward.5} parent=5 // pred_check_branch
        %415 = sbr.rel (%p413) target = $region109
      $region108: #{clfm_forward.5} parent=5 // pred_region
        %s416 = ssub.s32 %s10, 2
        // Predicated region
        $region110: #{clfm_forward.5} parent=108 // pred_check
          %p417 = pneg %p161
        $region111: #{clfm_forward.5} parent=108 // pred_check_branch
          %419 = sbr.rel (%p417) target = $region113
        $region112: #{clfm_forward.5} parent=108 // pred_region
          %s420 = sand.u32 %s146, 1
          %s421 = sand.u32 %s146, 1
          %s422 = smul.addr %s421, 32
          %s423 = scalar_lea.vmem [#allocation4], %s422
        $region113: #{clfm_forward.5} parent=108 // pred_fallthru
          _
      $region109: #{clfm_forward.5} parent=5 // pred_fallthru
        _
    $region6: #{clfm_forward.5} parent=1 // loop_footer
      %s14 = sadd.s32 1, %s10
    $region7: #{clfm_forward.5} parent=1 // loop_footer_branch
      %9 = sbr.rel target = $region3
    $region8: #{clfm_forward.5} parent=1 // loop_exit
      _

// kernel: clfm_forward.6
$region0: #{clfm_forward.6}
  #allocation0 [shape = 'u32[]', space=smem, size = 0x4, offset = 0x4, fixed_abs, tag = 'smem constant byte address 0x4 - core index']
  #allocation1 [shape = 'u32[72,128]{1,0:T(1,128)}', space=vmem, size = 0x9000, scoped, tag = 'internal scratch']
  #allocation2 [shape = 'f32[16,128]{1,0:T(8,128)}', space=vmem, size = 0x2000, scoped, tag = 'scratch operand']
  %s0 = inlined_call_operand.vmem [shape: f32[2,2,384], index: 0, kind: input, shape index: {}]
  %s1 = inlined_call_operand.vmem [shape: f32[2,16,512], index: 1, kind: input, shape index: {}]
  %s2 = inlined_call_operand.vmem [shape: f32[2,32,384], index: 2, kind: input, shape index: {}]
  %s3 = inlined_call_operand.vmem [shape: f32[16,16], index: 3, kind: input, shape index: {}]
  %s4 = inlined_call_operand.vmem [shape: f32[16,1], index: 4, kind: input, shape index: {}]
  %s5 = inlined_call_operand.vmem [shape: f32[32,16], index: 5, kind: input, shape index: {}]
  %s6 = inlined_call_operand.vmem [shape: f32[32,1], index: 6, kind: input, shape index: {}]
  %s7 = inlined_call_operand.vmem [shape: f32[32,32], index: 7, kind: input, shape index: {}]
  %s8 = inlined_call_operand.vmem [shape: f32[32,1], index: 8, kind: input, shape index: {}]
  %s9 = inlined_call_operand.vmem [shape: f32[2,32,384], index: 9, kind: output, shape index: {0}]
  %s10 = inlined_call_operand.vmem [shape: f32[2,32,384], index: 10, kind: output, shape index: {1}]
  %s11 = inlined_call_operand.vmem [shape: f32[2,32,1], index: 11, kind: output, shape index: {2}]
  %12 = xla_tuple %s9, %s10, %s11
  %s13 = sld [smem:[#allocation0]]
  $region202: #{clfm_forward.6} parent=0
    _
  %s15 = ssub.s32 1, %s13
  %s16 = scalar_select 0, %s15, %s13
  $region1: #{clfm_forward.6} parent=0
    #allocation3 [shape = 'u8[32768]{0}', space=vmem, size = 0x8000, scoped, tag = 'input window, operand 2']
    #allocation4 [shape = 'u8[32768]{0}', space=vmem, size = 0x8000, scoped, tag = 'output window, operand 0']
    #allocation5 [shape = 'u8[32768]{0}', space=vmem, size = 0x8000, scoped, tag = 'output window, operand 1']
    loop: start=0, step=1, limit=8
    $region2: #{clfm_forward.6} parent=1 // loop_pre_header
      _
    $region3: #{clfm_forward.6} parent=1 // loop_header
      %s18 = sphi 0, %s22
      %p19 = scmp.ge.s32.totalorder %s18, 8
      %s25 = sphi 0, %s37
      %s26 = sphi 0, %s33
      %s27 = sphi 0, %s25
      %s28 = sphi 0, %s26
      %s29 = sphi 0, %s27
      %s30 = sphi 0, %s28
      %s42 = sphi 0, %s44
      %s45 = sphi 0, %s42
      %s46 = sphi 0, %s45
      %s62 = sphi 0, %s46
      %s68 = sphi 0, %s70
      %s71 = sphi 0, %s68
      %s72 = sphi 0, %s71
      %s88 = sphi 0, %s72
      %s96 = sphi 0, %s98
      %s99 = sphi 0, %s96
      %s100 = sphi 0, %s99
      %s116 = sphi 0, %s100
      %s120 = sphi 0, %s120
      %s122 = sphi 0, %s120
      %s123 = sphi 0, %s122
      %s137 = sphi 0, %s123
      %s141 = sphi 0, %s141
      %s143 = sphi 0, %s141
      %s144 = sphi 0, %s143
      %s158 = sphi 0, %s144
      %s162 = sphi 0, %s162
      %s164 = sphi 0, %s162
      %s165 = sphi 0, %s164
      %s179 = sphi 0, %s165
      %s183 = sphi 0, %s183
      %s185 = sphi 0, %s183
      %s186 = sphi 0, %s185
      %s200 = sphi 0, %s186
      %s204 = sphi 0, %s204
      %s206 = sphi 0, %s204
      %s207 = sphi 0, %s206
      %s221 = sphi 0, %s207
      %s225 = sphi 0, %s225
      %s227 = sphi 0, %s225
      %s228 = sphi 0, %s227
      %s242 = sphi 0, %s228
      %s250 = sphi 0, %s252
      %s253 = sphi 0, %s250
      %s254 = sphi 0, %s253
      %s270 = sphi 0, %s254
      %s278 = sphi 0, %s280
      %s281 = sphi 0, %s278
      %s282 = sphi 0, %s281
      %s298 = sphi 0, %s282
      %s304 = sphi 0, %s306
      %s307 = sphi 0, %s304
      %s308 = sphi 0, %s307
      %s324 = sphi 0, %s308
    $region4: #{clfm_forward.6} parent=1 // loop_header_branch
      %21 = sbr.rel (%p19) target = $region8
    $region5: #{clfm_forward.6} parent=1 // loop_body
      %s23 = ssub.s32 %s18, 1
      %s24 = ssub.s32 %s18, 2
      %s31 = sadd.s32 1, %s26
      %p32 = scmp.ge.s32.totalorder %s31, 3
      %s33 = scalar_select %p32, 0, %s31
      %s34 = sadd.s32 1, %s25
      %s35 = scalar_select %p32, %s34, %s25
      %p36 = scmp.ge.s32.totalorder %s35, 2
      %s37 = scalar_select %p36, 0, %s35
      %s38 = ssub.s32 %s25, %s37
      %s39 = ssub.s32 %s26, %s33
      %s40 = sor.u32 %s38, %s39
      %p41 = scmp.eq.s32.totalorder %s40, 0
      %s43 = sadd.s32 %s42, 1
      %s44 = scalar_select %p41, %s42, %s43
      %p47 = pneg %p41
      %p48 = scmp.eq.s32.totalorder %s18, 5
      %p49 = por %p47, %p48
      %p50 = scmp.ne.s32.totalorder %s42, %s45
      %p51 = scmp.eq.s32.totalorder %s18, 0
      %p52 = por %p50, %p51
      %p53 = scmp.ne.s32.totalorder %s42, %s45
      %p54 = scmp.eq.s32.totalorder %s23, 5
      %p55 = por %p53, %p54
      %p56 = scmp.ne.s32.totalorder %s45, %s46
      %p57 = scmp.eq.s32.totalorder %s23, 0
      %p58 = por %p56, %p57
      %p59 = scmp.ne.s32.totalorder %s45, %s46
      %p60 = scmp.eq.s32.totalorder %s24, 5
      %p61 = por %p59, %p60
      %p63 = scmp.ne.s32.totalorder %s46, %s62
      %p64 = scmp.eq.s32.totalorder %s24, 0
      %p65 = por %p63, %p64
      %s66 = ssub.s32 %s25, %s37
      %p67 = scmp.eq.s32.totalorder %s66, 0
      %s69 = sadd.s32 %s68, 1
      %s70 = scalar_select %p67, %s68, %s69
      %p73 = pneg %p67
      %p74 = scmp.eq.s32.totalorder %s18, 5
      %p75 = por %p73, %p74
      %p76 = scmp.ne.s32.totalorder %s68, %s71
      %p77 = scmp.eq.s32.totalorder %s18, 0
      %p78 = por %p76, %p77
      %p79 = scmp.ne.s32.totalorder %s68, %s71
      %p80 = scmp.eq.s32.totalorder %s23, 5
      %p81 = por %p79, %p80
      %p82 = scmp.ne.s32.totalorder %s71, %s72
      %p83 = scmp.eq.s32.totalorder %s23, 0
      %p84 = por %p82, %p83
      %p85 = scmp.ne.s32.totalorder %s71, %s72
      %p86 = scmp.eq.s32.totalorder %s24, 5
      %p87 = por %p85, %p86
      %p89 = scmp.ne.s32.totalorder %s72, %s88
      %p90 = scmp.eq.s32.totalorder %s24, 0
      %p91 = por %p89, %p90
      %s92 = ssub.s32 %s25, %s37
      %s93 = ssub.s32 %s26, %s33
      %s94 = sor.u32 %s92, %s93
      %p95 = scmp.eq.s32.totalorder %s94, 0
      %s97 = sadd.s32 %s96, 1
      %s98 = scalar_select %p95, %s96, %s97
      %p101 = pneg %p95
      %p102 = scmp.eq.s32.totalorder %s18, 5
      %p103 = por %p101, %p102
      %p104 = scmp.ne.s32.totalorder %s96, %s99
      %p105 = scmp.eq.s32.totalorder %s18, 0
      %p106 = por %p104, %p105
      %p107 = scmp.ne.s32.totalorder %s96, %s99
      %p108 = scmp.eq.s32.totalorder %s23, 5
      %p109 = por %p107, %p108
      %p110 = scmp.ne.s32.totalorder %s99, %s100
      %p111 = scmp.eq.s32.totalorder %s23, 0
      %p112 = por %p110, %p111
      %p113 = scmp.ne.s32.totalorder %s99, %s100
      %p114 = scmp.eq.s32.totalorder %s24, 5
      %p115 = por %p113, %p114
      %p117 = scmp.ne.s32.totalorder %s100, %s116
      %p118 = scmp.eq.s32.totalorder %s24, 0
      %p119 = por %p117, %p118
      %s121 = sadd.s32 %s120, 1
      %p124 = scmp.eq.s32.totalorder %s18, 5
      %p125 = scmp.ne.s32.totalorder %s120, %s122
      %p126 = scmp.eq.s32.totalorder %s18, 0
      %p127 = por %p125, %p126
      %p128 = scmp.ne.s32.totalorder %s120, %s122
      %p129 = scmp.eq.s32.totalorder %s23, 5
      %p130 = por %p128, %p129
      %p131 = scmp.ne.s32.totalorder %s122, %s123
      %p132 = scmp.eq.s32.totalorder %s23, 0
      %p133 = por %p131, %p132
      %p134 = scmp.ne.s32.totalorder %s122, %s123
      %p135 = scmp.eq.s32.totalorder %s24, 5
      %p136 = por %p134, %p135
      %p138 = scmp.ne.s32.totalorder %s123, %s137
      %p139 = scmp.eq.s32.totalorder %s24, 0
      %p140 = por %p138, %p139
      %s142 = sadd.s32 %s141, 1
      %p145 = scmp.eq.s32.totalorder %s18, 5
      %p146 = scmp.ne.s32.totalorder %s141, %s143
      %p147 = scmp.eq.s32.totalorder %s18, 0
      %p148 = por %p146, %p147
      %p149 = scmp.ne.s32.totalorder %s141, %s143
      %p150 = scmp.eq.s32.totalorder %s23, 5
      %p151 = por %p149, %p150
      %p152 = scmp.ne.s32.totalorder %s143, %s144
      %p153 = scmp.eq.s32.totalorder %s23, 0
      %p154 = por %p152, %p153
      %p155 = scmp.ne.s32.totalorder %s143, %s144
      %p156 = scmp.eq.s32.totalorder %s24, 5
      %p157 = por %p155, %p156
      %p159 = scmp.ne.s32.totalorder %s144, %s158
      %p160 = scmp.eq.s32.totalorder %s24, 0
      %p161 = por %p159, %p160
      %s163 = sadd.s32 %s162, 1
      %p166 = scmp.eq.s32.totalorder %s18, 5
      %p167 = scmp.ne.s32.totalorder %s162, %s164
      %p168 = scmp.eq.s32.totalorder %s18, 0
      %p169 = por %p167, %p168
      %p170 = scmp.ne.s32.totalorder %s162, %s164
      %p171 = scmp.eq.s32.totalorder %s23, 5
      %p172 = por %p170, %p171
      %p173 = scmp.ne.s32.totalorder %s164, %s165
      %p174 = scmp.eq.s32.totalorder %s23, 0
      %p175 = por %p173, %p174
      %p176 = scmp.ne.s32.totalorder %s164, %s165
      %p177 = scmp.eq.s32.totalorder %s24, 5
      %p178 = por %p176, %p177
      %p180 = scmp.ne.s32.totalorder %s165, %s179
      %p181 = scmp.eq.s32.totalorder %s24, 0
      %p182 = por %p180, %p181
      %s184 = sadd.s32 %s183, 1
      %p187 = scmp.eq.s32.totalorder %s18, 5
      %p188 = scmp.ne.s32.totalorder %s183, %s185
      %p189 = scmp.eq.s32.totalorder %s18, 0
      %p190 = por %p188, %p189
      %p191 = scmp.ne.s32.totalorder %s183, %s185
      %p192 = scmp.eq.s32.totalorder %s23, 5
      %p193 = por %p191, %p192
      %p194 = scmp.ne.s32.totalorder %s185, %s186
      %p195 = scmp.eq.s32.totalorder %s23, 0
      %p196 = por %p194, %p195
      %p197 = scmp.ne.s32.totalorder %s185, %s186
      %p198 = scmp.eq.s32.totalorder %s24, 5
      %p199 = por %p197, %p198
      %p201 = scmp.ne.s32.totalorder %s186, %s200
      %p202 = scmp.eq.s32.totalorder %s24, 0
      %p203 = por %p201, %p202
      %s205 = sadd.s32 %s204, 1
      %p208 = scmp.eq.s32.totalorder %s18, 5
      %p209 = scmp.ne.s32.totalorder %s204, %s206
      %p210 = scmp.eq.s32.totalorder %s18, 0
      %p211 = por %p209, %p210
      %p212 = scmp.ne.s32.totalorder %s204, %s206
      %p213 = scmp.eq.s32.totalorder %s23, 5
      %p214 = por %p212, %p213
      %p215 = scmp.ne.s32.totalorder %s206, %s207
      %p216 = scmp.eq.s32.totalorder %s23, 0
      %p217 = por %p215, %p216
      %p218 = scmp.ne.s32.totalorder %s206, %s207
      %p219 = scmp.eq.s32.totalorder %s24, 5
      %p220 = por %p218, %p219
      %p222 = scmp.ne.s32.totalorder %s207, %s221
      %p223 = scmp.eq.s32.totalorder %s24, 0
      %p224 = por %p222, %p223
      %s226 = sadd.s32 %s225, 1
      %p229 = scmp.eq.s32.totalorder %s18, 5
      %p230 = scmp.ne.s32.totalorder %s225, %s227
      %p231 = scmp.eq.s32.totalorder %s18, 0
      %p232 = por %p230, %p231
      %p233 = scmp.ne.s32.totalorder %s225, %s227
      %p234 = scmp.eq.s32.totalorder %s23, 5
      %p235 = por %p233, %p234
      %p236 = scmp.ne.s32.totalorder %s227, %s228
      %p237 = scmp.eq.s32.totalorder %s23, 0
      %p238 = por %p236, %p237
      %p239 = scmp.ne.s32.totalorder %s227, %s228
      %p240 = scmp.eq.s32.totalorder %s24, 5
      %p241 = por %p239, %p240
      %p243 = scmp.ne.s32.totalorder %s228, %s242
      %p244 = scmp.eq.s32.totalorder %s24, 0
      %p245 = por %p243, %p244
      %s246 = ssub.s32 %s25, %s37
      %s247 = ssub.s32 %s26, %s33
      %s248 = sor.u32 %s246, %s247
      %p249 = scmp.eq.s32.totalorder %s248, 0
      %s251 = sadd.s32 %s250, 1
      %s252 = scalar_select %p249, %s250, %s251
      %p255 = pneg %p249
      %p256 = scmp.eq.s32.totalorder %s18, 5
      %p257 = por %p255, %p256
      %p258 = scmp.ne.s32.totalorder %s250, %s253
      %p259 = scmp.eq.s32.totalorder %s18, 0
      %p260 = por %p258, %p259
      %p261 = scmp.ne.s32.totalorder %s250, %s253
      %p262 = scmp.eq.s32.totalorder %s23, 5
      %p263 = por %p261, %p262
      %p264 = scmp.ne.s32.totalorder %s253, %s254
      %p265 = scmp.eq.s32.totalorder %s23, 0
      %p266 = por %p264, %p265
      %p267 = scmp.ne.s32.totalorder %s253, %s254
      %p268 = scmp.eq.s32.totalorder %s24, 5
      %p269 = por %p267, %p268
      %p271 = scmp.ne.s32.totalorder %s254, %s270
      %p272 = scmp.eq.s32.totalorder %s24, 0
      %p273 = por %p271, %p272
      %s274 = ssub.s32 %s25, %s37
      %s275 = ssub.s32 %s26, %s33
      %s276 = sor.u32 %s274, %s275
      %p277 = scmp.eq.s32.totalorder %s276, 0
      %s279 = sadd.s32 %s278, 1
      %s280 = scalar_select %p277, %s278, %s279
      %p283 = pneg %p277
      %p284 = scmp.eq.s32.totalorder %s18, 5
      %p285 = por %p283, %p284
      %p286 = scmp.ne.s32.totalorder %s278, %s281
      %p287 = scmp.eq.s32.totalorder %s18, 0
      %p288 = por %p286, %p287
      %p289 = scmp.ne.s32.totalorder %s278, %s281
      %p290 = scmp.eq.s32.totalorder %s23, 5
      %p291 = por %p289, %p290
      %p292 = scmp.ne.s32.totalorder %s281, %s282
      %p293 = scmp.eq.s32.totalorder %s23, 0
      %p294 = por %p292, %p293
      %p295 = scmp.ne.s32.totalorder %s281, %s282
      %p296 = scmp.eq.s32.totalorder %s24, 5
      %p297 = por %p295, %p296
      %p299 = scmp.ne.s32.totalorder %s282, %s298
      %p300 = scmp.eq.s32.totalorder %s24, 0
      %p301 = por %p299, %p300
      %s302 = ssub.s32 %s25, %s37
      %p303 = scmp.eq.s32.totalorder %s302, 0
      %s305 = sadd.s32 %s304, 1
      %s306 = scalar_select %p303, %s304, %s305
      %p309 = pneg %p303
      %p310 = scmp.eq.s32.totalorder %s18, 5
      %p311 = por %p309, %p310
      %p312 = scmp.ne.s32.totalorder %s304, %s307
      %p313 = scmp.eq.s32.totalorder %s18, 0
      %p314 = por %p312, %p313
      %p315 = scmp.ne.s32.totalorder %s304, %s307
      %p316 = scmp.eq.s32.totalorder %s23, 5
      %p317 = por %p315, %p316
      %p318 = scmp.ne.s32.totalorder %s307, %s308
      %p319 = scmp.eq.s32.totalorder %s23, 0
      %p320 = por %p318, %p319
      %p321 = scmp.ne.s32.totalorder %s307, %s308
      %p322 = scmp.eq.s32.totalorder %s24, 5
      %p323 = por %p321, %p322
      %p325 = scmp.ne.s32.totalorder %s308, %s324
      %p326 = scmp.eq.s32.totalorder %s24, 0
      %p327 = por %p325, %p326
      %p328 = scmp.le.s32.totalorder 1, %s18
      %p329 = scmp.lt.s32.totalorder %s18, 7
      %p330 = pnand %p328, %p329
      %p331 = pneg %p330
      // Predicated region
      $region9: #{clfm_forward.6} parent=5 // pred_check
        _
      $region10: #{clfm_forward.6} parent=5 // pred_check_branch
        %333 = sbr.rel (%p330) target = $region12
      $region11: #{clfm_forward.6} parent=5 // pred_region
        %s334 = ssub.s32 %s18, 1
        // Predicated region
        $region13: #{clfm_forward.6} parent=11 // pred_check
          %p335 = pneg %p133
        $region14: #{clfm_forward.6} parent=11 // pred_check_branch
          %337 = sbr.rel (%p335) target = $region16
        $region15: #{clfm_forward.6} parent=11 // pred_region
          _
        $region16: #{clfm_forward.6} parent=11 // pred_fallthru
          _
        // Predicated region
        $region17: #{clfm_forward.6} parent=11 // pred_check
          %p338 = pneg %p154
        $region18: #{clfm_forward.6} parent=11 // pred_check_branch
          %340 = sbr.rel (%p338) target = $region20
        $region19: #{clfm_forward.6} parent=11 // pred_region
          _
        $region20: #{clfm_forward.6} parent=11 // pred_fallthru
          _
        // Predicated region
        $region21: #{clfm_forward.6} parent=11 // pred_check
          %p341 = pneg %p175
        $region22: #{clfm_forward.6} parent=11 // pred_check_branch
          %343 = sbr.rel (%p341) target = $region24
        $region23: #{clfm_forward.6} parent=11 // pred_region
          _
        $region24: #{clfm_forward.6} parent=11 // pred_fallthru
          _
        // Predicated region
        $region25: #{clfm_forward.6} parent=11 // pred_check
          %p344 = pneg %p196
        $region26: #{clfm_forward.6} parent=11 // pred_check_branch
          %346 = sbr.rel (%p344) target = $region28
        $region27: #{clfm_forward.6} parent=11 // pred_region
          _
        $region28: #{clfm_forward.6} parent=11 // pred_fallthru
          _
        // Predicated region
        $region29: #{clfm_forward.6} parent=11 // pred_check
          %p347 = pneg %p217
        $region30: #{clfm_forward.6} parent=11 // pred_check_branch
          %349 = sbr.rel (%p347) target = $region32
        $region31: #{clfm_forward.6} parent=11 // pred_region
          _
        $region32: #{clfm_forward.6} parent=11 // pred_fallthru
          _
        // Predicated region
        $region33: #{clfm_forward.6} parent=11 // pred_check
          %p350 = pneg %p238
        $region34: #{clfm_forward.6} parent=11 // pred_check_branch
          %352 = sbr.rel (%p350) target = $region36
        $region35: #{clfm_forward.6} parent=11 // pred_region
          _
        $region36: #{clfm_forward.6} parent=11 // pred_fallthru
          _
      $region12: #{clfm_forward.6} parent=5 // pred_fallthru
        _
      %p353 = scmp.lt.s32.totalorder %s18, 6
      // Predicated region
      $region37: #{clfm_forward.6} parent=5 // pred_check
        %p354 = pneg %p353
      $region38: #{clfm_forward.6} parent=5 // pred_check_branch
        %356 = sbr.rel (%p354) target = $region40
      $region39: #{clfm_forward.6} parent=5 // pred_region
        // Predicated region
        $region41: #{clfm_forward.6} parent=39 // pred_check
          %p357 = pneg %p52
        $region42: #{clfm_forward.6} parent=39 // pred_check_branch
          %359 = sbr.rel (%p357) target = $region44
        $region43: #{clfm_forward.6} parent=39 // pred_region
          %p360 = scmp.lt.s32.totalorder %s25, 1
          %s361 = scalar_select %p360, %s25, 1
          %p362 = scmp.lt.s32.totalorder %s26, 2
          %s363 = scalar_select %p362, %s26, 2
          %s364 = smul.addr %s361, 3
          %s365 = sadd.s32 %s363, %s364
          %s366 = smul.addr %s365, 2
          %s367 = scalar_lea.vmem %s0, %s366
        $region44: #{clfm_forward.6} parent=39 // pred_fallthru
          _
        // Predicated region
        $region45: #{clfm_forward.6} parent=39 // pred_check
          %p368 = pneg %p78
        $region46: #{clfm_forward.6} parent=39 // pred_check_branch
          %370 = sbr.rel (%p368) target = $region48
        $region47: #{clfm_forward.6} parent=39 // pred_region
          %p371 = scmp.lt.s32.totalorder %s25, 1
          %s372 = scalar_select %p371, %s25, 1
          %s373 = smul.addr %s372, 8
          %s374 = smul.addr %s373, 8
          %s375 = scalar_lea.vmem %s1, %s374
        $region48: #{clfm_forward.6} parent=39 // pred_fallthru
          _
        // Predicated region
        $region49: #{clfm_forward.6} parent=39 // pred_check
          %p376 = pneg %p106
        $region50: #{clfm_forward.6} parent=39 // pred_check_branch
          %378 = sbr.rel (%p376) target = $region52
        $region51: #{clfm_forward.6} parent=39 // pred_region
          %s379 = sand.u32 %s96, 1
          %s380 = sand.u32 %s96, 1
          %s381 = smul.addr %s380, 32
          %s382 = scalar_lea.vmem [#allocation3], %s381
          %s383 = smul.addr %s25, 12
          %s384 = sadd.s32 %s26, %s383
          %s385 = smul.addr %s384, 8
          %s386 = scalar_lea.vmem %s2, %s385
          // Predicated region
          $region53: #{clfm_forward.6} parent=51 // pred_check
            _
          $region54: #{clfm_forward.6} parent=51 // pred_check_branch
            %388 = sbr.rel (0) target = $region56
          $region55: #{clfm_forward.6} parent=51 // pred_region
            // Predicated region
            $region57: #{clfm_forward.6} parent=55 // pred_check
              _
            $region58: #{clfm_forward.6} parent=55 // pred_check_branch
              %390 = sbr.rel (0) target = $region60
            $region59: #{clfm_forward.6} parent=55 // pred_region
              // Predicated region
              $region72: #{clfm_forward.6} parent=59 // pred_check
                _
              $region73: #{clfm_forward.6} parent=59 // pred_check_branch
                %412 = sbr.rel (0) target = $region75
              $region74: #{clfm_forward.6} parent=59 // pred_region
                loop: start=0, step=1, limit=1
                $region76: #{clfm_forward.6} parent=74 // loop_pre_header
                  _
                $region77: #{clfm_forward.6} parent=74 // loop_header
                  %s414 = sphi 0, %s418
                  %p415 = scmp.ge.s32.totalorder %s414, 1
                  %s419 = sphi %s386, %s386
                  %s420 = sphi %s382, %s382
                $region78: #{clfm_forward.6} parent=74 // loop_header_branch
                  %417 = sbr.rel (%p415) target = $region82
                $region79: #{clfm_forward.6} parent=74 // loop_body
                  %v421 = vld [vmem:[%s419] sm:$0xff]
                  %422 = vst [vmem:[%s420] sm:$0xff] %v421
                  %v423 = vld [vmem:[%s419 + $0x18] sm:$0xff]
                  %424 = vst [vmem:[%s420 + $0x8] sm:$0xff] %v423
                  %v425 = vld [vmem:[%s419 + $0x30] sm:$0xff]
                  %426 = vst [vmem:[%s420 + $0x10] sm:$0xff] %v425
                  %v427 = vld [vmem:[%s419 + $0x48] sm:$0xff]
                  %428 = vst [vmem:[%s420 + $0x18] sm:$0xff] %v427
                $region80: #{clfm_forward.6} parent=74 // loop_footer
                  %s418 = sadd.s32 1, %s414
                $region81: #{clfm_forward.6} parent=74 // loop_footer_branch
                  %413 = sbr.rel target = $region77
                $region82: #{clfm_forward.6} parent=74 // loop_exit
                  _
              $region75: #{clfm_forward.6} parent=59 // pred_fallthru
                _
              // Predicated region
              $region83: #{clfm_forward.6} parent=59 // pred_check
                _
              $region84: #{clfm_forward.6} parent=59 // pred_check_branch
                %430 = sbr.rel target = $region86
              $region85: #{clfm_forward.6} parent=59 // pred_region
                _
              $region86: #{clfm_forward.6} parent=59 // pred_fallthru
                _
            $region60: #{clfm_forward.6} parent=55 // pred_fallthru
              _
            // Predicated region
            $region61: #{clfm_forward.6} parent=55 // pred_check
              _
            $region62: #{clfm_forward.6} parent=55 // pred_check_branch
              %392 = sbr.rel target = $region64
            $region63: #{clfm_forward.6} parent=55 // pred_region
              %s394 = ssub.s32 256, 1
              loop: start=0, step=1, limit=1
              $region65: #{clfm_forward.6} parent=63 // loop_pre_header
                _
              $region66: #{clfm_forward.6} parent=63 // loop_header
                %s396 = sphi 0, %s400
                %p397 = scmp.ge.s32.totalorder %s396, 1
                %s401 = sphi %s386, %s386
                %s402 = sphi %s382, %s382
              $region67: #{clfm_forward.6} parent=63 // loop_header_branch
                %399 = sbr.rel (%p397) target = $region71
              $region68: #{clfm_forward.6} parent=63 // loop_body
                %v403 = vld [vmem:[%s401] sm:%s394]
                %404 = vst [vmem:[%s402] sm:%s394] %v403
                %v405 = vld [vmem:[%s401 + $0x18] sm:%s394]
                %406 = vst [vmem:[%s402 + $0x8] sm:%s394] %v405
                %v407 = vld [vmem:[%s401 + $0x30] sm:%s394]
                %408 = vst [vmem:[%s402 + $0x10] sm:%s394] %v407
                %v409 = vld [vmem:[%s401 + $0x48] sm:%s394]
                %410 = vst [vmem:[%s402 + $0x18] sm:%s394] %v409
              $region69: #{clfm_forward.6} parent=63 // loop_footer
                %s400 = sadd.s32 1, %s396
              $region70: #{clfm_forward.6} parent=63 // loop_footer_branch
                %395 = sbr.rel target = $region66
              $region71: #{clfm_forward.6} parent=63 // loop_exit
                _
            $region64: #{clfm_forward.6} parent=55 // pred_fallthru
              _
          $region56: #{clfm_forward.6} parent=51 // pred_fallthru
            _
          %431 = vnop
        $region52: #{clfm_forward.6} parent=39 // pred_fallthru
          _
      $region40: #{clfm_forward.6} parent=5 // pred_fallthru
        _
      %p432 = scmp.le.s32.totalorder 1, %s18
      %p433 = scmp.lt.s32.totalorder %s18, 7
      %p434 = pnand %p432, %p433
      %p435 = pneg %p434
      // Predicated region
      $region87: #{clfm_forward.6} parent=5 // pred_check
        _
      $region88: #{clfm_forward.6} parent=5 // pred_check_branch
        %437 = sbr.rel (%p434) target = $region90
      $region89: #{clfm_forward.6} parent=5 // pred_region
        %s438 = ssub.s32 %s18, 1
        %s439 = sand.u32 %s99, 1
        %s440 = sand.u32 %s99, 1
        %s441 = smul.addr %s440, 32
        %s442 = scalar_lea.vmem [#allocation3], %s441
        // Predicated region
        $region91: #{clfm_forward.6} parent=89 // pred_check
          %p443 = pneg %p112
        $region92: #{clfm_forward.6} parent=89 // pred_check_branch
          %445 = sbr.rel (%p443) target = $region94
        $region93: #{clfm_forward.6} parent=89 // pred_region
          _
        $region94: #{clfm_forward.6} parent=89 // pred_fallthru
          _
        %p446 = scmp.lt.s32.totalorder %s27, 1
        %s447 = scalar_select %p446, %s27, 1
        %p448 = scmp.lt.s32.totalorder %s28, 2
        %s449 = scalar_select %p448, %s28, 2
        %s450 = smul.addr %s447, 3
        %s451 = sadd.s32 %s449, %s450
        %s452 = smul.addr %s451, 2
        %s453 = scalar_lea.vmem %s0, %s452
        %p454 = pneg %p58
        %p455 = pneg %p55
        %p456 = scmp.lt.s32.totalorder %s27, 1
        %s457 = scalar_select %p456, %s27, 1
        %s458 = smul.addr %s457, 8
        %s459 = smul.addr %s458, 8
        %s460 = scalar_lea.vmem %s1, %s459
        %p461 = pneg %p84
        %p462 = pneg %p81
        %s463 = sand.u32 %s99, 1
        %s464 = sand.u32 %s99, 1
        %s465 = smul.addr %s464, 32
        %s466 = scalar_lea.vmem [#allocation3], %s465
        %p467 = pneg %p112
        %p468 = pneg %p109
        %p469 = pneg %p133
        %p470 = pneg %p130
        %p471 = pneg %p154
        %p472 = pneg %p151
        %p473 = pneg %p175
        %p474 = pneg %p172
        %p475 = pneg %p196
        %p476 = pneg %p193
        %p477 = pneg %p217
        %p478 = pneg %p214
        %p479 = pneg %p238
        %p480 = pneg %p235
        %p481 = pneg %p266
        %p482 = pneg %p263
        %s483 = sand.u32 %s253, 1
        %s484 = sand.u32 %s253, 1
        %s485 = smul.addr %s484, 32
        %s486 = scalar_lea.vmem [#allocation4], %s485
        %p487 = pneg %p294
        %p488 = pneg %p291
        %s489 = sand.u32 %s281, 1
        %s490 = sand.u32 %s281, 1
        %s491 = smul.addr %s490, 32
        %s492 = scalar_lea.vmem [#allocation5], %s491
        %p493 = pneg %p320
        %p494 = pneg %p317
        %p495 = scmp.lt.s32.totalorder %s27, 1
        %s496 = scalar_select %p495, %s27, 1
        %s497 = smul.addr %s496, 4
        %s498 = smul.addr %s497, 8
        %s499 = scalar_lea.vmem %s11, %s498
        %p500 = scmp.lt.s32.totalorder %s27, 1
        %s501 = scalar_select %p500, %s27, 1
        %p502 = scmp.lt.s32.totalorder %s28, 2
        %s503 = scalar_select %p502, %s28, 2
        %s504 = smul.addr %s501, 3
        %s505 = sadd.s32 %s503, %s504
        %s506 = smul.addr %s505, 2
        %s507 = scalar_lea.vmem %s0, %s506
        %p508 = scmp.lt.s32.totalorder %s27, 1
        %s509 = scalar_select %p508, %s27, 1
        %s510 = smul.addr %s509, 8
        %s511 = smul.addr %s510, 8
        %s512 = scalar_lea.vmem %s1, %s511
        %p513 = scmp.lt.s32.totalorder %s27, 1
        %s514 = scalar_select %p513, %s27, 1
        %s515 = smul.addr %s514, 4
        %s516 = smul.addr %s515, 8
        %s517 = scalar_lea.vmem %s11, %s516
        %v518 = vld [vmem:[%s507] sm:$0x1]
        %v519 = vld [vmem:[%s507 + $0x1] sm:$0x1]
        %520 = vst [vmem:[#allocation2] sm:$0xff] 0.0
        %521 = vst [vmem:[#allocation2 + $0x8] sm:$0xff] 0.0
        loop: start=0, step=1, limit=2
        $region95: #{clfm_forward.6} parent=89 // loop_pre_header
          _
        $region96: #{clfm_forward.6} parent=89 // loop_header
          %s523 = sphi 0, %s527
          %p524 = scmp.ge.s32.totalorder %s523, 2
        $region97: #{clfm_forward.6} parent=89 // loop_header_branch
          %526 = sbr.rel (%p524) target = $region101
        $region98: #{clfm_forward.6} parent=89 // loop_body
          %s528 = smul.u32 %s523, 256
          %v529 = vlaneseq
          %v530 = vshrl.u32 %v529, 7
          %v531 = vadd.s32 %v530, 8
          %v532 = vadd.s32 %v530, 16
          %v533 = vadd.s32 %v530, 24
          %v534 = vadd.s32 %v530, 32
          %v535 = vadd.s32 %v530, 40
          %v536 = vadd.s32 %v530, 48
          %v537 = vadd.s32 %v530, 56
          %v538 = vadd.s32 %v530, 64
          %v539 = vadd.s32 %v530, 72
          %v540 = vadd.s32 %v530, 80
          %v541 = vadd.s32 %v530, 88
          %v542 = vadd.s32 %v530, 96
          %v543 = vadd.s32 %v530, 104
          %v544 = vadd.s32 %v530, 112
          %v545 = vadd.s32 %v530, 120
          %v546 = vadd.s32 %v530, 128
          %v547 = vadd.s32 %v530, 136
          %v548 = vadd.s32 %v530, 144
          %v549 = vadd.s32 %v530, 152
          %v550 = vadd.s32 %v530, 160
          %v551 = vadd.s32 %v530, 168
          %v552 = vadd.s32 %v530, 176
          %v553 = vadd.s32 %v530, 184
          %v554 = vadd.s32 %v530, 192
          %v555 = vadd.s32 %v530, 200
          %v556 = vadd.s32 %v530, 208
          %v557 = vadd.s32 %v530, 216
          %v558 = vadd.s32 %v530, 224
          %v559 = vadd.s32 %v530, 232
          %v560 = vadd.s32 %v530, 240
          %v561 = vadd.s32 %v530, 248
          %v562 = vstv %s528
          %v563 = vadd.s32 %v530, %v562
          %v564 = vadd.s32 %v531, %v562
          %v565 = vadd.s32 %v532, %v562
          %v566 = vadd.s32 %v533, %v562
          %v567 = vadd.s32 %v534, %v562
          %v568 = vadd.s32 %v535, %v562
          %v569 = vadd.s32 %v536, %v562
          %v570 = vadd.s32 %v537, %v562
          %v571 = vadd.s32 %v538, %v562
          %v572 = vadd.s32 %v539, %v562
          %v573 = vadd.s32 %v540, %v562
          %v574 = vadd.s32 %v541, %v562
          %v575 = vadd.s32 %v542, %v562
          %v576 = vadd.s32 %v543, %v562
          %v577 = vadd.s32 %v544, %v562
          %v578 = vadd.s32 %v545, %v562
          %v579 = vadd.s32 %v546, %v562
          %v580 = vadd.s32 %v547, %v562
          %v581 = vadd.s32 %v548, %v562
          %v582 = vadd.s32 %v549, %v562
          %v583 = vadd.s32 %v550, %v562
          %v584 = vadd.s32 %v551, %v562
          %v585 = vadd.s32 %v552, %v562
          %v586 = vadd.s32 %v553, %v562
          %v587 = vadd.s32 %v554, %v562
          %v588 = vadd.s32 %v555, %v562
          %v589 = vadd.s32 %v556, %v562
          %v590 = vadd.s32 %v557, %v562
          %v591 = vadd.s32 %v558, %v562
          %v592 = vadd.s32 %v559, %v562
          %v593 = vadd.s32 %v560, %v562
          %v594 = vadd.s32 %v561, %v562
          %v595 = vcvt.s32.f32 %v563
          %v596 = vcvt.s32.f32 %v564
          %v597 = vcvt.s32.f32 %v565
          %v598 = vcvt.s32.f32 %v566
          %v599 = vcvt.s32.f32 %v567
          %v600 = vcvt.s32.f32 %v568
          %v601 = vcvt.s32.f32 %v569
          %v602 = vcvt.s32.f32 %v570
          %v603 = vcvt.s32.f32 %v571
          %v604 = vcvt.s32.f32 %v572
          %v605 = vcvt.s32.f32 %v573
          %v606 = vcvt.s32.f32 %v574
          %v607 = vcvt.s32.f32 %v575
          %v608 = vcvt.s32.f32 %v576
          %v609 = vcvt.s32.f32 %v577
          %v610 = vcvt.s32.f32 %v578
          %v611 = vcvt.s32.f32 %v579
          %v612 = vcvt.s32.f32 %v580
          %v613 = vcvt.s32.f32 %v581
          %v614 = vcvt.s32.f32 %v582
          %v615 = vcvt.s32.f32 %v583
          %v616 = vcvt.s32.f32 %v584
          %v617 = vcvt.s32.f32 %v585
          %v618 = vcvt.s32.f32 %v586
          %v619 = vcvt.s32.f32 %v587
          %v620 = vcvt.s32.f32 %v588
          %v621 = vcvt.s32.f32 %v589
          %v622 = vcvt.s32.f32 %v590
          %v623 = vcvt.s32.f32 %v591
          %v624 = vcvt.s32.f32 %v592
          %v625 = vcvt.s32.f32 %v593
          %v626 = vcvt.s32.f32 %v594
          %v627 = vrcp.pop 32.0
          %v628 = vmul.f32 32.0, %v627
          %v629 = vsub.f32 1.0, %v628
          %v630 = vmul.f32 %v627, %v629
          %v631 = vadd.f32 %v627, %v630
          %vm632 = vweird.f32 %v627
          %v633 = vsel %vm632, %v627, %v631
          %v634 = vmul.f32 %v595, %v633
          %v635 = vmul.f32 %v596, %v633
          %v636 = vmul.f32 %v597, %v633
          %v637 = vmul.f32 %v598, %v633
          %v638 = vmul.f32 %v599, %v633
          %v639 = vmul.f32 %v600, %v633
          %v640 = vmul.f32 %v601, %v633
          %v641 = vmul.f32 %v602, %v633
          %v642 = vmul.f32 %v603, %v633
          %v643 = vmul.f32 %v604, %v633
          %v644 = vmul.f32 %v605, %v633
          %v645 = vmul.f32 %v606, %v633
          %v646 = vmul.f32 %v607, %v633
          %v647 = vmul.f32 %v608, %v633
          %v648 = vmul.f32 %v609, %v633
          %v649 = vmul.f32 %v610, %v633
          %v650 = vmul.f32 %v611, %v633
          %v651 = vmul.f32 %v612, %v633
          %v652 = vmul.f32 %v613, %v633
          %v653 = vmul.f32 %v614, %v633
          %v654 = vmul.f32 %v615, %v633
          %v655 = vmul.f32 %v616, %v633
          %v656 = vmul.f32 %v617, %v633
          %v657 = vmul.f32 %v618, %v633
          %v658 = vmul.f32 %v619, %v633
          %v659 = vmul.f32 %v620, %v633
          %v660 = vmul.f32 %v621, %v633
          %v661 = vmul.f32 %v622, %v633
          %v662 = vmul.f32 %v623, %v633
          %v663 = vmul.f32 %v624, %v633
          %v664 = vmul.f32 %v625, %v633
          %v665 = vmul.f32 %v626, %v633
          %v666 = vfloor.f32 %v634
          %v667 = vfloor.f32 %v635
          %v668 = vfloor.f32 %v636
          %v669 = vfloor.f32 %v637
          %v670 = vfloor.f32 %v638
          %v671 = vfloor.f32 %v639
          %v672 = vfloor.f32 %v640
          %v673 = vfloor.f32 %v641
          %v674 = vfloor.f32 %v642
          %v675 = vfloor.f32 %v643
          %v676 = vfloor.f32 %v644
          %v677 = vfloor.f32 %v645
          %v678 = vfloor.f32 %v646
          %v679 = vfloor.f32 %v647
          %v680 = vfloor.f32 %v648
          %v681 = vfloor.f32 %v649
          %v682 = vfloor.f32 %v650
          %v683 = vfloor.f32 %v651
          %v684 = vfloor.f32 %v652
          %v685 = vfloor.f32 %v653
          %v686 = vfloor.f32 %v654
          %v687 = vfloor.f32 %v655
          %v688 = vfloor.f32 %v656
          %v689 = vfloor.f32 %v657
          %v690 = vfloor.f32 %v658
          %v691 = vfloor.f32 %v659
          %v692 = vfloor.f32 %v660
          %v693 = vfloor.f32 %v661
          %v694 = vfloor.f32 %v662
          %v695 = vfloor.f32 %v663
          %v696 = vfloor.f32 %v664
          %v697 = vfloor.f32 %v665
          %v698 = vmul.f32 %v666, 32.0
          %v699 = vmul.f32 %v667, 32.0
          %v700 = vmul.f32 %v668, 32.0
          %v701 = vmul.f32 %v669, 32.0
          %v702 = vmul.f32 %v670, 32.0
          %v703 = vmul.f32 %v671, 32.0
          %v704 = vmul.f32 %v672, 32.0
          %v705 = vmul.f32 %v673, 32.0
          %v706 = vmul.f32 %v674, 32.0
          %v707 = vmul.f32 %v675, 32.0
          %v708 = vmul.f32 %v676, 32.0
          %v709 = vmul.f32 %v677, 32.0
          %v710 = vmul.f32 %v678, 32.0
          %v711 = vmul.f32 %v679, 32.0
          %v712 = vmul.f32 %v680, 32.0
          %v713 = vmul.f32 %v681, 32.0
          %v714 = vmul.f32 %v682, 32.0
          %v715 = vmul.f32 %v683, 32.0
          %v716 = vmul.f32 %v684, 32.0
          %v717 = vmul.f32 %v685, 32.0
          %v718 = vmul.f32 %v686, 32.0
          %v719 = vmul.f32 %v687, 32.0
          %v720 = vmul.f32 %v688, 32.0
          %v721 = vmul.f32 %v689, 32.0
          %v722 = vmul.f32 %v690, 32.0
          %v723 = vmul.f32 %v691, 32.0
          %v724 = vmul.f32 %v692, 32.0
          %v725 = vmul.f32 %v693, 32.0
          %v726 = vmul.f32 %v694, 32.0
          %v727 = vmul.f32 %v695, 32.0
          %v728 = vmul.f32 %v696, 32.0
          %v729 = vmul.f32 %v697, 32.0
          %v730 = vsub.f32 %v595, %v698
          %v731 = vsub.f32 %v596, %v699
          %v732 = vsub.f32 %v597, %v700
          %v733 = vsub.f32 %v598, %v701
          %v734 = vsub.f32 %v599, %v702
          %v735 = vsub.f32 %v600, %v703
          %v736 = vsub.f32 %v601, %v704
          %v737 = vsub.f32 %v602, %v705
          %v738 = vsub.f32 %v603, %v706
          %v739 = vsub.f32 %v604, %v707
          %v740 = vsub.f32 %v605, %v708
          %v741 = vsub.f32 %v606, %v709
          %v742 = vsub.f32 %v607, %v710
          %v743 = vsub.f32 %v608, %v711
          %v744 = vsub.f32 %v609, %v712
          %v745 = vsub.f32 %v610, %v713
          %v746 = vsub.f32 %v611, %v714
          %v747 = vsub.f32 %v612, %v715
          %v748 = vsub.f32 %v613, %v716
          %v749 = vsub.f32 %v614, %v717
          %v750 = vsub.f32 %v615, %v718
          %v751 = vsub.f32 %v616, %v719
          %v752 = vsub.f32 %v617, %v720
          %v753 = vsub.f32 %v618, %v721
          %v754 = vsub.f32 %v619, %v722
          %v755 = vsub.f32 %v620, %v723
          %v756 = vsub.f32 %v621, %v724
          %v757 = vsub.f32 %v622, %v725
          %v758 = vsub.f32 %v623, %v726
          %v759 = vsub.f32 %v624, %v727
          %v760 = vsub.f32 %v625, %v728
          %v761 = vsub.f32 %v626, %v729
          %v762 = vperm.slane %v518, 0
          %v763 = vsub.f32 %v730, %v762
          %v764 = vsub.f32 %v731, %v762
          %v765 = vsub.f32 %v732, %v762
          %v766 = vsub.f32 %v733, %v762
          %v767 = vsub.f32 %v734, %v762
          %v768 = vsub.f32 %v735, %v762
          %v769 = vsub.f32 %v736, %v762
          %v770 = vsub.f32 %v737, %v762
          %v771 = vsub.f32 %v738, %v762
          %v772 = vsub.f32 %v739, %v762
          %v773 = vsub.f32 %v740, %v762
          %v774 = vsub.f32 %v741, %v762
          %v775 = vsub.f32 %v742, %v762
          %v776 = vsub.f32 %v743, %v762
          %v777 = vsub.f32 %v744, %v762
          %v778 = vsub.f32 %v745, %v762
          %v779 = vsub.f32 %v746, %v762
          %v780 = vsub.f32 %v747, %v762
          %v781 = vsub.f32 %v748, %v762
          %v782 = vsub.f32 %v749, %v762
          %v783 = vsub.f32 %v750, %v762
          %v784 = vsub.f32 %v751, %v762
          %v785 = vsub.f32 %v752, %v762
          %v786 = vsub.f32 %v753, %v762
          %v787 = vsub.f32 %v754, %v762
          %v788 = vsub.f32 %v755, %v762
          %v789 = vsub.f32 %v756, %v762
          %v790 = vsub.f32 %v757, %v762
          %v791 = vsub.f32 %v758, %v762
          %v792 = vsub.f32 %v759, %v762
          %v793 = vsub.f32 %v760, %v762
          %v794 = vsub.f32 %v761, %v762
          %v795 = vand.u32 2147483647, %v763
          %v796 = vand.u32 2147483647, %v764
          %v797 = vand.u32 2147483647, %v765
          %v798 = vand.u32 2147483647, %v766
          %v799 = vand.u32 2147483647, %v767
          %v800 = vand.u32 2147483647, %v768
          %v801 = vand.u32 2147483647, %v769
          %v802 = vand.u32 2147483647, %v770
          %v803 = vand.u32 2147483647, %v771
          %v804 = vand.u32 2147483647, %v772
          %v805 = vand.u32 2147483647, %v773
          %v806 = vand.u32 2147483647, %v774
          %v807 = vand.u32 2147483647, %v775
          %v808 = vand.u32 2147483647, %v776
          %v809 = vand.u32 2147483647, %v777
          %v810 = vand.u32 2147483647, %v778
          %v811 = vand.u32 2147483647, %v779
          %v812 = vand.u32 2147483647, %v780
          %v813 = vand.u32 2147483647, %v781
          %v814 = vand.u32 2147483647, %v782
          %v815 = vand.u32 2147483647, %v783
          %v816 = vand.u32 2147483647, %v784
          %v817 = vand.u32 2147483647, %v785
          %v818 = vand.u32 2147483647, %v786
          %v819 = vand.u32 2147483647, %v787
          %v820 = vand.u32 2147483647, %v788
          %v821 = vand.u32 2147483647, %v789
          %v822 = vand.u32 2147483647, %v790
          %v823 = vand.u32 2147483647, %v791
          %v824 = vand.u32 2147483647, %v792
          %v825 = vand.u32 2147483647, %v793
          %v826 = vand.u32 2147483647, %v794
          %v827 = vsub.f32 1.0, %v795
          %v828 = vsub.f32 1.0, %v796
          %v829 = vsub.f32 1.0, %v797
          %v830 = vsub.f32 1.0, %v798
          %v831 = vsub.f32 1.0, %v799
          %v832 = vsub.f32 1.0, %v800
          %v833 = vsub.f32 1.0, %v801
          %v834 = vsub.f32 1.0, %v802
          %v835 = vsub.f32 1.0, %v803
          %v836 = vsub.f32 1.0, %v804
          %v837 = vsub.f32 1.0, %v805
          %v838 = vsub.f32 1.0, %v806
          %v839 = vsub.f32 1.0, %v807
          %v840 = vsub.f32 1.0, %v808
          %v841 = vsub.f32 1.0, %v809
          %v842 = vsub.f32 1.0, %v810
          %v843 = vsub.f32 1.0, %v811
          %v844 = vsub.f32 1.0, %v812
          %v845 = vsub.f32 1.0, %v813
          %v846 = vsub.f32 1.0, %v814
          %v847 = vsub.f32 1.0, %v815
          %v848 = vsub.f32 1.0, %v816
          %v849 = vsub.f32 1.0, %v817
          %v850 = vsub.f32 1.0, %v818
          %v851 = vsub.f32 1.0, %v819
          %v852 = vsub.f32 1.0, %v820
          %v853 = vsub.f32 1.0, %v821
          %v854 = vsub.f32 1.0, %v822
          %v855 = vsub.f32 1.0, %v823
          %v856 = vsub.f32 1.0, %v824
          %v857 = vsub.f32 1.0, %v825
          %v858 = vsub.f32 1.0, %v826
          %v859 = vmax.f32 %v827, 0.0
          %v860 = vmax.f32 %v828, 0.0
          %v861 = vmax.f32 %v829, 0.0
          %v862 = vmax.f32 %v830, 0.0
          %v863 = vmax.f32 %v831, 0.0
          %v864 = vmax.f32 %v832, 0.0
          %v865 = vmax.f32 %v833, 0.0
          %v866 = vmax.f32 %v834, 0.0
          %v867 = vmax.f32 %v835, 0.0
          %v868 = vmax.f32 %v836, 0.0
          %v869 = vmax.f32 %v837, 0.0
          %v870 = vmax.f32 %v838, 0.0
          %v871 = vmax.f32 %v839, 0.0
          %v872 = vmax.f32 %v840, 0.0
          %v873 = vmax.f32 %v841, 0.0
          %v874 = vmax.f32 %v842, 0.0
          %v875 = vmax.f32 %v843, 0.0
          %v876 = vmax.f32 %v844, 0.0
          %v877 = vmax.f32 %v845, 0.0
          %v878 = vmax.f32 %v846, 0.0
          %v879 = vmax.f32 %v847, 0.0
          %v880 = vmax.f32 %v848, 0.0
          %v881 = vmax.f32 %v849, 0.0
          %v882 = vmax.f32 %v850, 0.0
          %v883 = vmax.f32 %v851, 0.0
          %v884 = vmax.f32 %v852, 0.0
          %v885 = vmax.f32 %v853, 0.0
          %v886 = vmax.f32 %v854, 0.0
          %v887 = vmax.f32 %v855, 0.0
          %v888 = vmax.f32 %v856, 0.0
          %v889 = vmax.f32 %v857, 0.0
          %v890 = vmax.f32 %v858, 0.0
          %v891 = vperm.slane %v519, 0
          %v892 = vsub.f32 %v666, %v891
          %v893 = vsub.f32 %v667, %v891
          %v894 = vsub.f32 %v668, %v891
          %v895 = vsub.f32 %v669, %v891
          %v896 = vsub.f32 %v670, %v891
          %v897 = vsub.f32 %v671, %v891
          %v898 = vsub.f32 %v672, %v891
          %v899 = vsub.f32 %v673, %v891
          %v900 = vsub.f32 %v674, %v891
          %v901 = vsub.f32 %v675, %v891
          %v902 = vsub.f32 %v676, %v891
          %v903 = vsub.f32 %v677, %v891
          %v904 = vsub.f32 %v678, %v891
          %v905 = vsub.f32 %v679, %v891
          %v906 = vsub.f32 %v680, %v891
          %v907 = vsub.f32 %v681, %v891
          %v908 = vsub.f32 %v682, %v891
          %v909 = vsub.f32 %v683, %v891
          %v910 = vsub.f32 %v684, %v891
          %v911 = vsub.f32 %v685, %v891
          %v912 = vsub.f32 %v686, %v891
          %v913 = vsub.f32 %v687, %v891
          %v914 = vsub.f32 %v688, %v891
          %v915 = vsub.f32 %v689, %v891
          %v916 = vsub.f32 %v690, %v891
          %v917 = vsub.f32 %v691, %v891
          %v918 = vsub.f32 %v692, %v891
          %v919 = vsub.f32 %v693, %v891
          %v920 = vsub.f32 %v694, %v891
          %v921 = vsub.f32 %v695, %v891
          %v922 = vsub.f32 %v696, %v891
          %v923 = vsub.f32 %v697, %v891
          %v924 = vand.u32 2147483647, %v892
          %v925 = vand.u32 2147483647, %v893
          %v926 = vand.u32 2147483647, %v894
          %v927 = vand.u32 2147483647, %v895
          %v928 = vand.u32 2147483647, %v896
          %v929 = vand.u32 2147483647, %v897
          %v930 = vand.u32 2147483647, %v898
          %v931 = vand.u32 2147483647, %v899
          %v932 = vand.u32 2147483647, %v900
          %v933 = vand.u32 2147483647, %v901
          %v934 = vand.u32 2147483647, %v902
          %v935 = vand.u32 2147483647, %v903
          %v936 = vand.u32 2147483647, %v904
          %v937 = vand.u32 2147483647, %v905
          %v938 = vand.u32 2147483647, %v906
          %v939 = vand.u32 2147483647, %v907
          %v940 = vand.u32 2147483647, %v908
          %v941 = vand.u32 2147483647, %v909
          %v942 = vand.u32 2147483647, %v910
          %v943 = vand.u32 2147483647, %v911
          %v944 = vand.u32 2147483647, %v912
          %v945 = vand.u32 2147483647, %v913
          %v946 = vand.u32 2147483647, %v914
          %v947 = vand.u32 2147483647, %v915
          %v948 = vand.u32 2147483647, %v916
          %v949 = vand.u32 2147483647, %v917
          %v950 = vand.u32 2147483647, %v918
          %v951 = vand.u32 2147483647, %v919
          %v952 = vand.u32 2147483647, %v920
          %v953 = vand.u32 2147483647, %v921
          %v954 = vand.u32 2147483647, %v922
          %v955 = vand.u32 2147483647, %v923
          %v956 = vsub.f32 1.0, %v924
          %v957 = vsub.f32 1.0, %v925
          %v958 = vsub.f32 1.0, %v926
          %v959 = vsub.f32 1.0, %v927
          %v960 = vsub.f32 1.0, %v928
          %v961 = vsub.f32 1.0, %v929
          %v962 = vsub.f32 1.0, %v930
          %v963 = vsub.f32 1.0, %v931
          %v964 = vsub.f32 1.0, %v932
          %v965 = vsub.f32 1.0, %v933
          %v966 = vsub.f32 1.0, %v934
          %v967 = vsub.f32 1.0, %v935
          %v968 = vsub.f32 1.0, %v936
          %v969 = vsub.f32 1.0, %v937
          %v970 = vsub.f32 1.0, %v938
          %v971 = vsub.f32 1.0, %v939
          %v972 = vsub.f32 1.0, %v940
          %v973 = vsub.f32 1.0, %v941
          %v974 = vsub.f32 1.0, %v942
          %v975 = vsub.f32 1.0, %v943
          %v976 = vsub.f32 1.0, %v944
          %v977 = vsub.f32 1.0, %v945
          %v978 = vsub.f32 1.0, %v946
          %v979 = vsub.f32 1.0, %v947
          %v980 = vsub.f32 1.0, %v948
          %v981 = vsub.f32 1.0, %v949
          %v982 = vsub.f32 1.0, %v950
          %v983 = vsub.f32 1.0, %v951
          %v984 = vsub.f32 1.0, %v952
          %v985 = vsub.f32 1.0, %v953
          %v986 = vsub.f32 1.0, %v954
          %v987 = vsub.f32 1.0, %v955
          %v988 = vmax.f32 %v956, 0.0
          %v989 = vmax.f32 %v957, 0.0
          %v990 = vmax.f32 %v958, 0.0
          %v991 = vmax.f32 %v959, 0.0
          %v992 = vmax.f32 %v960, 0.0
          %v993 = vmax.f32 %v961, 0.0
          %v994 = vmax.f32 %v962, 0.0
          %v995 = vmax.f32 %v963, 0.0
          %v996 = vmax.f32 %v964, 0.0
          %v997 = vmax.f32 %v965, 0.0
          %v998 = vmax.f32 %v966, 0.0
          %v999 = vmax.f32 %v967, 0.0
          %v1000 = vmax.f32 %v968, 0.0
          %v1001 = vmax.f32 %v969, 0.0
          %v1002 = vmax.f32 %v970, 0.0
          %v1003 = vmax.f32 %v971, 0.0
          %v1004 = vmax.f32 %v972, 0.0
          %v1005 = vmax.f32 %v973, 0.0
          %v1006 = vmax.f32 %v974, 0.0
          %v1007 = vmax.f32 %v975, 0.0
          %v1008 = vmax.f32 %v976, 0.0
          %v1009 = vmax.f32 %v977, 0.0
          %v1010 = vmax.f32 %v978, 0.0
          %v1011 = vmax.f32 %v979, 0.0
          %v1012 = vmax.f32 %v980, 0.0
          %v1013 = vmax.f32 %v981, 0.0
          %v1014 = vmax.f32 %v982, 0.0
          %v1015 = vmax.f32 %v983, 0.0
          %v1016 = vmax.f32 %v984, 0.0
          %v1017 = vmax.f32 %v985, 0.0
          %v1018 = vmax.f32 %v986, 0.0
          %v1019 = vmax.f32 %v987, 0.0
          %v1020 = vmul.f32 %v859, %v988
          %v1021 = vmul.f32 %v860, %v989
          %v1022 = vmul.f32 %v861, %v990
          %v1023 = vmul.f32 %v862, %v991
          %v1024 = vmul.f32 %v863, %v992
          %v1025 = vmul.f32 %v864, %v993
          %v1026 = vmul.f32 %v865, %v994
          %v1027 = vmul.f32 %v866, %v995
          %v1028 = vmul.f32 %v867, %v996
          %v1029 = vmul.f32 %v868, %v997
          %v1030 = vmul.f32 %v869, %v998
          %v1031 = vmul.f32 %v870, %v999
          %v1032 = vmul.f32 %v871, %v1000
          %v1033 = vmul.f32 %v872, %v1001
          %v1034 = vmul.f32 %v873, %v1002
          %v1035 = vmul.f32 %v874, %v1003
          %v1036 = vmul.f32 %v875, %v1004
          %v1037 = vmul.f32 %v876, %v1005
          %v1038 = vmul.f32 %v877, %v1006
          %v1039 = vmul.f32 %v878, %v1007
          %v1040 = vmul.f32 %v879, %v1008
          %v1041 = vmul.f32 %v880, %v1009
          %v1042 = vmul.f32 %v881, %v1010
          %v1043 = vmul.f32 %v882, %v1011
          %v1044 = vmul.f32 %v883, %v1012
          %v1045 = vmul.f32 %v884, %v1013
          %v1046 = vmul.f32 %v885, %v1014
          %v1047 = vmul.f32 %v886, %v1015
          %v1048 = vmul.f32 %v887, %v1016
          %v1049 = vmul.f32 %v888, %v1017
          %v1050 = vmul.f32 %v889, %v1018
          %v1051 = vmul.f32 %v890, %v1019
          %s1052 = sshra.s32 %s528, 7
          %s1053 = sand.u32 %s528, 127
          %s1054 = smul.addr %s1052, 8
          %s1055 = scalar_lea.vmem %s512, %s1054
          %v1056 = vld [vmem:[%s1055] sm:$0xff]
          %v1057 = vld [vmem:[%s1055 + $0x8] sm:$0xff]
          %v1058 = vld [vmem:[%s1055 + $0x20] sm:$0xff]
          %v1059 = vld [vmem:[%s1055 + $0x28] sm:$0xff]
          %v1060 = vld [vmem:[#allocation2] sm:$0xff]
          %v1061 = vld [vmem:[#allocation2 + $0x8] sm:$0xff]
          %1062 = vmatpush.msra.mxu0 %v1035
          %1063 = vmatpush.msra.mxu0 %v1034
          %1064 = vmatpush.msra.mxu0 %v1033
          %1065 = vmatpush.msra.mxu0 %v1032
          %1066 = vmatpush.msra.mxu0 %v1031
          %1067 = vmatpush.msra.mxu0 %v1030
          %1068 = vmatpush.msra.mxu0 %v1029
          %1069 = vmatpush.msra.mxu0 %v1028
          %1070 = vmatpush.msra.mxu0 %v1027
          %1071 = vmatpush.msra.mxu0 %v1026
          %1072 = vmatpush.msra.mxu0 %v1025
          %1073 = vmatpush.msra.mxu0 %v1024
          %1074 = vmatpush.msra.mxu0 %v1023
          %1075 = vmatpush.msra.mxu0 %v1022
          %1076 = vmatpush.msra.mxu0 %v1021
          %1077 = vmatpush.msra.mxu0 %v1020
          %1078 = vmatmul.f32.gmra.mxu0 %v1056
          %v1079 = vpop.f32.mrf.mxu0
          %v1080 = vadd.f32 0.0, %v1079
          %1081 = vmatmul.f32.gmra.mxu0 %v1058
          %v1082 = vpop.f32.mrf.mxu0
          %v1083 = vadd.f32 0.0, %v1082
          %1084 = vdwg.mxu0
          %1085 = vmatpush.msra.mxu0 %v1051
          %1086 = vmatpush.msra.mxu0 %v1050
          %1087 = vmatpush.msra.mxu0 %v1049
          %1088 = vmatpush.msra.mxu0 %v1048
          %1089 = vmatpush.msra.mxu0 %v1047
          %1090 = vmatpush.msra.mxu0 %v1046
          %1091 = vmatpush.msra.mxu0 %v1045
          %1092 = vmatpush.msra.mxu0 %v1044
          %1093 = vmatpush.msra.mxu0 %v1043
          %1094 = vmatpush.msra.mxu0 %v1042
          %1095 = vmatpush.msra.mxu0 %v1041
          %1096 = vmatpush.msra.mxu0 %v1040
          %1097 = vmatpush.msra.mxu0 %v1039
          %1098 = vmatpush.msra.mxu0 %v1038
          %1099 = vmatpush.msra.mxu0 %v1037
          %1100 = vmatpush.msra.mxu0 %v1036
          %1101 = vmatmul.f32.gmra.mxu0 %v1057
          %v1102 = vpop.f32.mrf.mxu0
          %v1103 = vadd.f32 %v1080, %v1102
          %1104 = vmatmul.f32.gmra.mxu0 %v1059
          %v1105 = vpop.f32.mrf.mxu0
          %v1106 = vadd.f32 %v1083, %v1105
          %1107 = vdwg.mxu0
          %v1108 = vadd.f32 %v1060, %v1103
          %v1109 = vadd.f32 %v1061, %v1106
          %1110 = vst [vmem:[#allocation2] sm:$0xff] %v1108
          %1111 = vst [vmem:[#allocation2 + $0x8] sm:$0xff] %v1109
        $region99: #{clfm_forward.6} parent=89 // loop_footer
          %s527 = sadd.s32 1, %s523
        $region100: #{clfm_forward.6} parent=89 // loop_footer_branch
          %522 = sbr.rel target = $region96
        $region101: #{clfm_forward.6} parent=89 // loop_exit
          _
        %v1112 = vld [vmem:[%s3] sm:$0xff]
        %v1113 = vld [vmem:[%s3 + $0x8] sm:$0xff]
        %v1114 = vld [vmem:[#allocation2] sm:$0xff]
        %v1115 = vld [vmem:[#allocation2 + $0x8] sm:$0xff]
        %v1116 = vld [vmem:[%s4] sm:$0xff]
        %v1117 = vld [vmem:[%s4 + $0x8] sm:$0xff]
        %1119 = vset.pattern.permute.xlu0 0
        %1120 = vperm.xlu0 %1119, %v1116
        %v1121 = vpop.permute.xlu0 %1120
        %1124 = vset.pattern.permute.xlu0 0
        %1125 = vperm.xlu0 %1124, %v1117
        %v1126 = vpop.permute.xlu0 %1125
        %vm1128 = vcmask 130048
        %v1130 = vsel %vm1128, %v1112, 0
        %v1133 = vsel %vm1128, %v1113, 0
        %1135 = vmatpush.msra.mxu0 0.0
        %1136 = vmatpush.msra.mxu0 0.0
        %1137 = vmatpush.msra.mxu0 0.0
        %1138 = vmatpush.msra.mxu0 0.0
        %1139 = vmatpush.msra.mxu0 0.0
        %1140 = vmatpush.msra.mxu0 0.0
        %1141 = vmatpush.msra.mxu0 0.0
        %1142 = vmatpush.msra.mxu0 0.0
        %1143 = vmatpush.msra.mxu0 0.0
        %1144 = vmatpush.msra.mxu0 0.0
        %1145 = vmatpush.msra.mxu0 0.0
        %1146 = vmatpush.msra.mxu0 0.0
        %1147 = vmatpush.msra.mxu0 0.0
        %1148 = vmatpush.msra.mxu0 0.0
        %1149 = vmatpush.msra.mxu0 %v1115
        %1150 = vmatpush.msra.mxu0 %v1114
        %1151 = vmatmul.f32.gmra.mxu0 %v1130
        %v1152 = vpop.f32.mrf.mxu0
        %v1153 = vadd.f32 %v1121, %v1152
        %1154 = vmatmul.f32.gmra.mxu0 %v1133
        %v1155 = vpop.f32.mrf.mxu0
        %v1156 = vadd.f32 %v1126, %v1155
        %1157 = vdwg.mxu0
        %vm1158 = vcmp.ge.f32.partialorder %v1153, 0.0
        %vm1159 = vcmp.ge.f32.partialorder %v1156, 0.0
        %v1160 = vmul.f32 %v1153, 0.1
        %v1161 = vmul.f32 %v1156, 0.1
        %v1162 = vsel %vm1158, %v1153, %v1160
        %v1163 = vsel %vm1159, %v1156, %v1161
        %v1164 = vld [vmem:[%s5] sm:$0xff]
        %v1165 = vld [vmem:[%s5 + $0x8] sm:$0xff]
        %v1166 = vld [vmem:[%s5 + $0x10] sm:$0xff]
        %v1167 = vld [vmem:[%s5 + $0x18] sm:$0xff]
        %v1168 = vld [vmem:[%s6] sm:$0xff]
        %v1169 = vld [vmem:[%s6 + $0x8] sm:$0xff]
        %v1170 = vld [vmem:[%s6 + $0x10] sm:$0xff]
        %v1171 = vld [vmem:[%s6 + $0x18] sm:$0xff]
        %1173 = vset.pattern.permute.xlu0 0
        %1174 = vperm.xlu0 %1173, %v1168
        %v1175 = vpop.permute.xlu0 %1174
        %1178 = vset.pattern.permute.xlu0 0
        %1179 = vperm.xlu0 %1178, %v1169
        %v1180 = vpop.permute.xlu0 %1179
        %1183 = vset.pattern.permute.xlu0 0
        %1184 = vperm.xlu0 %1183, %v1170
        %v1185 = vpop.permute.xlu0 %1184
        %1188 = vset.pattern.permute.xlu0 0
        %1189 = vperm.xlu0 %1188, %v1171
        %v1190 = vpop.permute.xlu0 %1189
        %v1193 = vsel %vm1128, %v1164, 0
        %v1196 = vsel %vm1128, %v1165, 0
        %v1199 = vsel %vm1128, %v1166, 0
        %v1202 = vsel %vm1128, %v1167, 0
        %1204 = vmatpush.msra.mxu0 0.0
        %1205 = vmatpush.msra.mxu0 0.0
        %1206 = vmatpush.msra.mxu0 0.0
        %1207 = vmatpush.msra.mxu0 0.0
        %1208 = vmatpush.msra.mxu0 0.0
        %1209 = vmatpush.msra.mxu0 0.0
        %1210 = vmatpush.msra.mxu0 0.0
        %1211 = vmatpush.msra.mxu0 0.0
        %1212 = vmatpush.msra.mxu0 0.0
        %1213 = vmatpush.msra.mxu0 0.0
        %1214 = vmatpush.msra.mxu0 0.0
        %1215 = vmatpush.msra.mxu0 0.0
        %1216 = vmatpush.msra.mxu0 0.0
        %1217 = vmatpush.msra.mxu0 0.0
        %1218 = vmatpush.msra.mxu0 %v1163
        %1219 = vmatpush.msra.mxu0 %v1162
        %1220 = vmatmul.f32.gmra.mxu0 %v1193
        %v1221 = vpop.f32.mrf.mxu0
        %v1222 = vadd.f32 %v1175, %v1221
        %1223 = vmatmul.f32.gmra.mxu0 %v1196
        %v1224 = vpop.f32.mrf.mxu0
        %v1225 = vadd.f32 %v1180, %v1224
        %1226 = vmatmul.f32.gmra.mxu0 %v1199
        %v1227 = vpop.f32.mrf.mxu0
        %v1228 = vadd.f32 %v1185, %v1227
        %1229 = vmatmul.f32.gmra.mxu0 %v1202
        %v1230 = vpop.f32.mrf.mxu0
        %v1231 = vadd.f32 %v1190, %v1230
        %1232 = vdwg.mxu0
        %vm1233 = vcmp.ge.f32.partialorder %v1222, 0.0
        %vm1234 = vcmp.ge.f32.partialorder %v1225, 0.0
        %vm1235 = vcmp.ge.f32.partialorder %v1228, 0.0
        %vm1236 = vcmp.ge.f32.partialorder %v1231, 0.0
        %v1237 = vmul.f32 %v1222, 0.1
        %v1238 = vmul.f32 %v1225, 0.1
        %v1239 = vmul.f32 %v1228, 0.1
        %v1240 = vmul.f32 %v1231, 0.1
        %v1241 = vsel %vm1233, %v1222, %v1237
        %v1242 = vsel %vm1234, %v1225, %v1238
        %v1243 = vsel %vm1235, %v1228, %v1239
        %v1244 = vsel %vm1236, %v1231, %v1240
        %v1245 = vld [vmem:[%s7] sm:$0xff]
        %v1246 = vld [vmem:[%s7 + $0x8] sm:$0xff]
        %v1247 = vld [vmem:[%s7 + $0x10] sm:$0xff]
        %v1248 = vld [vmem:[%s7 + $0x18] sm:$0xff]
        %v1249 = vld [vmem:[%s442] sm:$0xff]
        %v1250 = vld [vmem:[%s442 + $0x8] sm:$0xff]
        %v1251 = vld [vmem:[%s442 + $0x10] sm:$0xff]
        %v1252 = vld [vmem:[%s442 + $0x18] sm:$0xff]
        %v1253 = vld [vmem:[%s8] sm:$0xff]
        %v1254 = vld [vmem:[%s8 + $0x8] sm:$0xff]
        %v1255 = vld [vmem:[%s8 + $0x10] sm:$0xff]
        %v1256 = vld [vmem:[%s8 + $0x18] sm:$0xff]
        %1258 = vset.pattern.permute.xlu0 0
        %1259 = vperm.xlu0 %1258, %v1253
        %v1260 = vpop.permute.xlu0 %1259
        %1263 = vset.pattern.permute.xlu0 0
        %1264 = vperm.xlu0 %1263, %v1254
        %v1265 = vpop.permute.xlu0 %1264
        %1268 = vset.pattern.permute.xlu0 0
        %1269 = vperm.xlu0 %1268, %v1255
        %v1270 = vpop.permute.xlu0 %1269
        %1273 = vset.pattern.permute.xlu0 0
        %1274 = vperm.xlu0 %1273, %v1256
        %v1275 = vpop.permute.xlu0 %1274
        %vm1277 = vcmask 261120
        %v1279 = vsel %vm1277, %v1245, 0
        %v1282 = vsel %vm1277, %v1246, 0
        %v1285 = vsel %vm1277, %v1247, 0
        %v1288 = vsel %vm1277, %v1248, 0
        %1290 = vmatpush.msra.mxu0 0.0
        %1291 = vmatpush.msra.mxu0 0.0
        %1292 = vmatpush.msra.mxu0 0.0
        %1293 = vmatpush.msra.mxu0 0.0
        %1294 = vmatpush.msra.mxu0 0.0
        %1295 = vmatpush.msra.mxu0 0.0
        %1296 = vmatpush.msra.mxu0 0.0
        %1297 = vmatpush.msra.mxu0 0.0
        %1298 = vmatpush.msra.mxu0 0.0
        %1299 = vmatpush.msra.mxu0 0.0
        %1300 = vmatpush.msra.mxu0 0.0
        %1301 = vmatpush.msra.mxu0 0.0
        %1302 = vmatpush.msra.mxu0 %v1252
        %1303 = vmatpush.msra.mxu0 %v1251
        %1304 = vmatpush.msra.mxu0 %v1250
        %1305 = vmatpush.msra.mxu0 %v1249
        %1306 = vmatmul.f32.gmra.mxu0 %v1279
        %v1307 = vpop.f32.mrf.mxu0
        %v1308 = vadd.f32 %v1260, %v1307
        %1309 = vmatmul.f32.gmra.mxu0 %v1282
        %v1310 = vpop.f32.mrf.mxu0
        %v1311 = vadd.f32 %v1265, %v1310
        %1312 = vmatmul.f32.gmra.mxu0 %v1285
        %v1313 = vpop.f32.mrf.mxu0
        %v1314 = vadd.f32 %v1270, %v1313
        %1315 = vmatmul.f32.gmra.mxu0 %v1288
        %v1316 = vpop.f32.mrf.mxu0
        %v1317 = vadd.f32 %v1275, %v1316
        %1318 = vdwg.mxu0
        %vm1319 = vcmp.ge.f32.partialorder %v1308, 0.0
        %vm1320 = vcmp.ge.f32.partialorder %v1311, 0.0
        %vm1321 = vcmp.ge.f32.partialorder %v1314, 0.0
        %vm1322 = vcmp.ge.f32.partialorder %v1317, 0.0
        %v1323 = vmul.f32 %v1308, 0.1
        %v1324 = vmul.f32 %v1311, 0.1
        %v1325 = vmul.f32 %v1314, 0.1
        %v1326 = vmul.f32 %v1317, 0.1
        %v1327 = vsel %vm1319, %v1308, %v1323
        %v1328 = vsel %vm1320, %v1311, %v1324
        %v1329 = vsel %vm1321, %v1314, %v1325
        %v1330 = vsel %vm1322, %v1317, %v1326
        %1331 = vst [vmem:[%s486] sm:$0xff] %v1241
        %1332 = vst [vmem:[%s486 + $0x8] sm:$0xff] %v1242
        %1333 = vst [vmem:[%s486 + $0x10] sm:$0xff] %v1243
        %1334 = vst [vmem:[%s486 + $0x18] sm:$0xff] %v1244
        %1335 = vst [vmem:[%s492] sm:$0xff] %v1327
        %1336 = vst [vmem:[%s492 + $0x8] sm:$0xff] %v1328
        %1337 = vst [vmem:[%s492 + $0x10] sm:$0xff] %v1329
        %1338 = vst [vmem:[%s492 + $0x18] sm:$0xff] %v1330
        %p1339 = scmp.eq.s32.totalorder %s28, 0
        // Predicated region
        $region102: #{clfm_forward.6} parent=89 // pred_check
          %p1340 = pneg %p1339
        $region103: #{clfm_forward.6} parent=89 // pred_check_branch
          %1342 = sbr.rel (%p1340) target = $region105
        $region104: #{clfm_forward.6} parent=89 // pred_region
          %vm1343 = vcmask 7168
          %1344 = vst.msk [vmem:[%s517] sm:$0xff] %vm1343, 0.0
          %1345 = vst.msk [vmem:[%s517 + $0x8] sm:$0xff] %vm1343, 0.0
          %1346 = vst.msk [vmem:[%s517 + $0x10] sm:$0xff] %vm1343, 0.0
          %1347 = vst.msk [vmem:[%s517 + $0x18] sm:$0xff] %vm1343, 0.0
        $region105: #{clfm_forward.6} parent=89 // pred_fallthru
          _
        %v1348 = vld [vmem:[%s517] sm:$0xff]
        %v1349 = vld [vmem:[%s517 + $0x8] sm:$0xff]
        %v1350 = vld [vmem:[%s517 + $0x10] sm:$0xff]
        %v1351 = vld [vmem:[%s517 + $0x18] sm:$0xff]
        %v1352 = vadd.f32 %v1241, %v1327
        %v1353 = vadd.f32 %v1242, %v1328
        %v1354 = vadd.f32 %v1243, %v1329
        %v1355 = vadd.f32 %v1244, %v1330
        %1356 = vadd.xlane.f32.xlu0 %v1352
        %v1357 = vpop.xlane.xlu0 %1356
        %1358 = vadd.xlane.f32.xlu0 %v1353
        %v1359 = vpop.xlane.xlu0 %1358
        %1360 = vadd.xlane.f32.xlu0 %v1354
        %v1361 = vpop.xlane.xlu0 %1360
        %1362 = vadd.xlane.f32.xlu0 %v1355
        %v1363 = vpop.xlane.xlu0 %1362
        %v1364 = vadd.f32 %v1348, %v1357
        %v1365 = vadd.f32 %v1349, %v1359
        %v1366 = vadd.f32 %v1350, %v1361
        %v1367 = vadd.f32 %v1351, %v1363
        %vm1368 = vcmask 7168
        %1369 = vst.msk [vmem:[%s517] sm:$0xff] %vm1368, %v1364
        %1370 = vst.msk [vmem:[%s517 + $0x8] sm:$0xff] %vm1368, %v1365
        %1371 = vst.msk [vmem:[%s517 + $0x10] sm:$0xff] %vm1368, %v1366
        %1372 = vst.msk [vmem:[%s517 + $0x18] sm:$0xff] %vm1368, %v1367
        %s1373 = sand.u32 %s253, 1
        %s1374 = sand.u32 %s253, 1
        %s1375 = smul.addr %s1374, 32
        %s1376 = scalar_lea.vmem [#allocation4], %s1375
        %s1377 = sand.u32 %s281, 1
        %s1378 = sand.u32 %s281, 1
        %s1379 = smul.addr %s1378, 32
        %s1380 = scalar_lea.vmem [#allocation5], %s1379
        %p1381 = scmp.lt.s32.totalorder %s27, 1
        %s1382 = scalar_select %p1381, %s27, 1
        %s1383 = smul.addr %s1382, 4
        %s1384 = smul.addr %s1383, 8
        %s1385 = scalar_lea.vmem %s11, %s1384
        // Predicated region
        $region106: #{clfm_forward.6} parent=89 // pred_check
          %p1386 = pneg %p263
        $region107: #{clfm_forward.6} parent=89 // pred_check_branch
          %1388 = sbr.rel (%p1386) target = $region109
        $region108: #{clfm_forward.6} parent=89 // pred_region
          %s1389 = smul.addr %s27, 12
          %s1390 = sadd.s32 %s28, %s1389
          %s1391 = smul.addr %s1390, 8
          %s1392 = scalar_lea.vmem %s9, %s1391
          // Predicated region
          $region110: #{clfm_forward.6} parent=108 // pred_check
            _
          $region111: #{clfm_forward.6} parent=108 // pred_check_branch
            %1394 = sbr.rel (0) target = $region113
          $region112: #{clfm_forward.6} parent=108 // pred_region
            // Predicated region
            $region114: #{clfm_forward.6} parent=112 // pred_check
              _
            $region115: #{clfm_forward.6} parent=112 // pred_check_branch
              %1396 = sbr.rel (0) target = $region117
            $region116: #{clfm_forward.6} parent=112 // pred_region
              // Predicated region
              $region129: #{clfm_forward.6} parent=116 // pred_check
                _
              $region130: #{clfm_forward.6} parent=116 // pred_check_branch
                %1418 = sbr.rel (0) target = $region132
              $region131: #{clfm_forward.6} parent=116 // pred_region
                loop: start=0, step=1, limit=1
                $region133: #{clfm_forward.6} parent=131 // loop_pre_header
                  _
                $region134: #{clfm_forward.6} parent=131 // loop_header
                  %s1420 = sphi 0, %s1424
                  %p1421 = scmp.ge.s32.totalorder %s1420, 1
                  %s1425 = sphi %s1376, %s1376
                  %s1426 = sphi %s1392, %s1392
                $region135: #{clfm_forward.6} parent=131 // loop_header_branch
                  %1423 = sbr.rel (%p1421) target = $region139
                $region136: #{clfm_forward.6} parent=131 // loop_body
                  %v1427 = vld [vmem:[%s1425] sm:$0xff]
                  %1428 = vst [vmem:[%s1426] sm:$0xff] %v1427
                  %v1429 = vld [vmem:[%s1425 + $0x8] sm:$0xff]
                  %1430 = vst [vmem:[%s1426 + $0x18] sm:$0xff] %v1429
                  %v1431 = vld [vmem:[%s1425 + $0x10] sm:$0xff]
                  %1432 = vst [vmem:[%s1426 + $0x30] sm:$0xff] %v1431
                  %v1433 = vld [vmem:[%s1425 + $0x18] sm:$0xff]
                  %1434 = vst [vmem:[%s1426 + $0x48] sm:$0xff] %v1433
                $region137: #{clfm_forward.6} parent=131 // loop_footer
                  %s1424 = sadd.s32 1, %s1420
                $region138: #{clfm_forward.6} parent=131 // loop_footer_branch
                  %1419 = sbr.rel target = $region134
                $region139: #{clfm_forward.6} parent=131 // loop_exit
                  _
              $region132: #{clfm_forward.6} parent=116 // pred_fallthru
                _
              // Predicated region
              $region140: #{clfm_forward.6} parent=116 // pred_check
                _
              $region141: #{clfm_forward.6} parent=116 // pred_check_branch
                %1436 = sbr.rel target = $region143
              $region142: #{clfm_forward.6} parent=116 // pred_region
                _
              $region143: #{clfm_forward.6} parent=116 // pred_fallthru
                _
            $region117: #{clfm_forward.6} parent=112 // pred_fallthru
              _
            // Predicated region
            $region118: #{clfm_forward.6} parent=112 // pred_check
              _
            $region119: #{clfm_forward.6} parent=112 // pred_check_branch
              %1398 = sbr.rel target = $region121
            $region120: #{clfm_forward.6} parent=112 // pred_region
              %s1400 = ssub.s32 256, 1
              loop: start=0, step=1, limit=1
              $region122: #{clfm_forward.6} parent=120 // loop_pre_header
                _
              $region123: #{clfm_forward.6} parent=120 // loop_header
                %s1402 = sphi 0, %s1406
                %p1403 = scmp.ge.s32.totalorder %s1402, 1
                %s1407 = sphi %s1376, %s1376
                %s1408 = sphi %s1392, %s1392
              $region124: #{clfm_forward.6} parent=120 // loop_header_branch
                %1405 = sbr.rel (%p1403) target = $region128
              $region125: #{clfm_forward.6} parent=120 // loop_body
                %v1409 = vld [vmem:[%s1407] sm:%s1400]
                %1410 = vst [vmem:[%s1408] sm:%s1400] %v1409
                %v1411 = vld [vmem:[%s1407 + $0x8] sm:%s1400]
                %1412 = vst [vmem:[%s1408 + $0x18] sm:%s1400] %v1411
                %v1413 = vld [vmem:[%s1407 + $0x10] sm:%s1400]
                %1414 = vst [vmem:[%s1408 + $0x30] sm:%s1400] %v1413
                %v1415 = vld [vmem:[%s1407 + $0x18] sm:%s1400]
                %1416 = vst [vmem:[%s1408 + $0x48] sm:%s1400] %v1415
              $region126: #{clfm_forward.6} parent=120 // loop_footer
                %s1406 = sadd.s32 1, %s1402
              $region127: #{clfm_forward.6} parent=120 // loop_footer_branch
                %1401 = sbr.rel target = $region123
              $region128: #{clfm_forward.6} parent=120 // loop_exit
                _
            $region121: #{clfm_forward.6} parent=112 // pred_fallthru
              _
          $region113: #{clfm_forward.6} parent=108 // pred_fallthru
            _
          %1437 = vnop
        $region109: #{clfm_forward.6} parent=89 // pred_fallthru
          _
        // Predicated region
        $region144: #{clfm_forward.6} parent=89 // pred_check
          %p1438 = pneg %p291
        $region145: #{clfm_forward.6} parent=89 // pred_check_branch
          %1440 = sbr.rel (%p1438) target = $region147
        $region146: #{clfm_forward.6} parent=89 // pred_region
          %s1441 = smul.addr %s27, 12
          %s1442 = sadd.s32 %s28, %s1441
          %s1443 = smul.addr %s1442, 8
          %s1444 = scalar_lea.vmem %s10, %s1443
          // Predicated region
          $region148: #{clfm_forward.6} parent=146 // pred_check
            _
          $region149: #{clfm_forward.6} parent=146 // pred_check_branch
            %1446 = sbr.rel (0) target = $region151
          $region150: #{clfm_forward.6} parent=146 // pred_region
            // Predicated region
            $region152: #{clfm_forward.6} parent=150 // pred_check
              _
            $region153: #{clfm_forward.6} parent=150 // pred_check_branch
              %1448 = sbr.rel (0) target = $region155
            $region154: #{clfm_forward.6} parent=150 // pred_region
              // Predicated region
              $region167: #{clfm_forward.6} parent=154 // pred_check
                _
              $region168: #{clfm_forward.6} parent=154 // pred_check_branch
                %1470 = sbr.rel (0) target = $region170
              $region169: #{clfm_forward.6} parent=154 // pred_region
                loop: start=0, step=1, limit=1
                $region171: #{clfm_forward.6} parent=169 // loop_pre_header
                  _
                $region172: #{clfm_forward.6} parent=169 // loop_header
                  %s1472 = sphi 0, %s1476
                  %p1473 = scmp.ge.s32.totalorder %s1472, 1
                  %s1477 = sphi %s1380, %s1380
                  %s1478 = sphi %s1444, %s1444
                $region173: #{clfm_forward.6} parent=169 // loop_header_branch
                  %1475 = sbr.rel (%p1473) target = $region177
                $region174: #{clfm_forward.6} parent=169 // loop_body
                  %v1479 = vld [vmem:[%s1477] sm:$0xff]
                  %1480 = vst [vmem:[%s1478] sm:$0xff] %v1479
                  %v1481 = vld [vmem:[%s1477 + $0x8] sm:$0xff]
                  %1482 = vst [vmem:[%s1478 + $0x18] sm:$0xff] %v1481
                  %v1483 = vld [vmem:[%s1477 + $0x10] sm:$0xff]
                  %1484 = vst [vmem:[%s1478 + $0x30] sm:$0xff] %v1483
                  %v1485 = vld [vmem:[%s1477 + $0x18] sm:$0xff]
                  %1486 = vst [vmem:[%s1478 + $0x48] sm:$0xff] %v1485
                $region175: #{clfm_forward.6} parent=169 // loop_footer
                  %s1476 = sadd.s32 1, %s1472
                $region176: #{clfm_forward.6} parent=169 // loop_footer_branch
                  %1471 = sbr.rel target = $region172
                $region177: #{clfm_forward.6} parent=169 // loop_exit
                  _
              $region170: #{clfm_forward.6} parent=154 // pred_fallthru
                _
              // Predicated region
              $region178: #{clfm_forward.6} parent=154 // pred_check
                _
              $region179: #{clfm_forward.6} parent=154 // pred_check_branch
                %1488 = sbr.rel target = $region181
              $region180: #{clfm_forward.6} parent=154 // pred_region
                _
              $region181: #{clfm_forward.6} parent=154 // pred_fallthru
                _
            $region155: #{clfm_forward.6} parent=150 // pred_fallthru
              _
            // Predicated region
            $region156: #{clfm_forward.6} parent=150 // pred_check
              _
            $region157: #{clfm_forward.6} parent=150 // pred_check_branch
              %1450 = sbr.rel target = $region159
            $region158: #{clfm_forward.6} parent=150 // pred_region
              %s1452 = ssub.s32 256, 1
              loop: start=0, step=1, limit=1
              $region160: #{clfm_forward.6} parent=158 // loop_pre_header
                _
              $region161: #{clfm_forward.6} parent=158 // loop_header
                %s1454 = sphi 0, %s1458
                %p1455 = scmp.ge.s32.totalorder %s1454, 1
                %s1459 = sphi %s1380, %s1380
                %s1460 = sphi %s1444, %s1444
              $region162: #{clfm_forward.6} parent=158 // loop_header_branch
                %1457 = sbr.rel (%p1455) target = $region166
              $region163: #{clfm_forward.6} parent=158 // loop_body
                %v1461 = vld [vmem:[%s1459] sm:%s1452]
                %1462 = vst [vmem:[%s1460] sm:%s1452] %v1461
                %v1463 = vld [vmem:[%s1459 + $0x8] sm:%s1452]
                %1464 = vst [vmem:[%s1460 + $0x18] sm:%s1452] %v1463
                %v1465 = vld [vmem:[%s1459 + $0x10] sm:%s1452]
                %1466 = vst [vmem:[%s1460 + $0x30] sm:%s1452] %v1465
                %v1467 = vld [vmem:[%s1459 + $0x18] sm:%s1452]
                %1468 = vst [vmem:[%s1460 + $0x48] sm:%s1452] %v1467
              $region164: #{clfm_forward.6} parent=158 // loop_footer
                %s1458 = sadd.s32 1, %s1454
              $region165: #{clfm_forward.6} parent=158 // loop_footer_branch
                %1453 = sbr.rel target = $region161
              $region166: #{clfm_forward.6} parent=158 // loop_exit
                _
            $region159: #{clfm_forward.6} parent=150 // pred_fallthru
              _
          $region151: #{clfm_forward.6} parent=146 // pred_fallthru
            _
          %1489 = vnop
        $region147: #{clfm_forward.6} parent=89 // pred_fallthru
          _
        // Predicated region
        $region182: #{clfm_forward.6} parent=89 // pred_check
          %p1490 = pneg %p317
        $region183: #{clfm_forward.6} parent=89 // pred_check_branch
          %1492 = sbr.rel (%p1490) target = $region185
        $region184: #{clfm_forward.6} parent=89 // pred_region
          _
        $region185: #{clfm_forward.6} parent=89 // pred_fallthru
          _
      $region90: #{clfm_forward.6} parent=5 // pred_fallthru
        _
      %p1493 = scmp.le.s32.totalorder 2, %s18
      // Predicated region
      $region186: #{clfm_forward.6} parent=5 // pred_check
        %p1494 = pneg %p1493
      $region187: #{clfm_forward.6} parent=5 // pred_check_branch
        %1496 = sbr.rel (%p1494) target = $region189
      $region188: #{clfm_forward.6} parent=5 // pred_region
        %s1497 = ssub.s32 %s18, 2
        // Predicated region
        $region190: #{clfm_forward.6} parent=188 // pred_check
          %p1498 = pneg %p269
        $region191: #{clfm_forward.6} parent=188 // pred_check_branch
          %1500 = sbr.rel (%p1498) target = $region193
        $region192: #{clfm_forward.6} parent=188 // pred_region
          %s1501 = sand.u32 %s254, 1
          %s1502 = sand.u32 %s254, 1
          %s1503 = smul.addr %s1502, 32
          %s1504 = scalar_lea.vmem [#allocation4], %s1503
        $region193: #{clfm_forward.6} parent=188 // pred_fallthru
          _
        // Predicated region
        $region194: #{clfm_forward.6} parent=188 // pred_check
          %p1505 = pneg %p297
        $region195: #{clfm_forward.6} parent=188 // pred_check_branch
          %1507 = sbr.rel (%p1505) target = $region197
        $region196: #{clfm_forward.6} parent=188 // pred_region
          %s1508 = sand.u32 %s282, 1
          %s1509 = sand.u32 %s282, 1
          %s1510 = smul.addr %s1509, 32
          %s1511 = scalar_lea.vmem [#allocation5], %s1510
        $region197: #{clfm_forward.6} parent=188 // pred_fallthru
          _
        // Predicated region
        $region198: #{clfm_forward.6} parent=188 // pred_check
          %p1512 = pneg %p323
        $region199: #{clfm_forward.6} parent=188 // pred_check_branch
          %1514 = sbr.rel (%p1512) target = $region201
        $region200: #{clfm_forward.6} parent=188 // pred_region
          %p1515 = scmp.lt.s32.totalorder %s29, 1
          %s1516 = scalar_select %p1515, %s29, 1
          %s1517 = smul.addr %s1516, 4
          %s1518 = smul.addr %s1517, 8
          %s1519 = scalar_lea.vmem %s11, %s1518
        $region201: #{clfm_forward.6} parent=188 // pred_fallthru
          _
      $region189: #{clfm_forward.6} parent=5 // pred_fallthru
        _
    $region6: #{clfm_forward.6} parent=1 // loop_footer
      %s22 = sadd.s32 1, %s18
    $region7: #{clfm_forward.6} parent=1 // loop_footer_branch
      %17 = sbr.rel target = $region3
    $region8: #{clfm_forward.6} parent=1 // loop_exit
      _

// kernel: clfm_forward.7
$region0: #{clfm_forward.7}
  #allocation0 [shape = 'u32[]', space=smem, size = 0x4, offset = 0x4, fixed_abs, tag = 'smem constant byte address 0x4 - core index']
  #allocation1 [shape = 'u32[72,128]{1,0:T(1,128)}', space=vmem, size = 0x9000, scoped, tag = 'internal scratch']
  %s0 = inlined_call_operand.vmem [shape: f32[2,32,384], index: 0, kind: input, shape index: {}]
  %s1 = inlined_call_operand.vmem [shape: f32[2,32,384], index: 1, kind: input, shape index: {}]
  %s2 = inlined_call_operand.vmem [shape: f32[2,32,1], index: 2, kind: input, shape index: {}]
  %s3 = inlined_call_operand.vmem [shape: f32[2,32,1], index: 3, kind: input, shape index: {}]
  %s4 = inlined_call_operand.hbm [shape: f32[2,32,384], index: 4, kind: output, shape index: {}]
  %s5 = sld [smem:[#allocation0]]
  $region125: #{clfm_forward.7} parent=0
    _
  %s7 = ssub.s32 1, %s5
  %s8 = scalar_select 0, %s7, %s5
  $region1: #{clfm_forward.7} parent=0
    #allocation2 [shape = 'u8[32768]{0}', space=vmem, size = 0x8000, scoped, tag = 'input window, operand 0']
    #allocation3 [shape = 'u8[32768]{0}', space=vmem, size = 0x8000, scoped, tag = 'input window, operand 1']
    #allocation4 [shape = 'u8[32768]{0}', space=vmem, size = 0x8000, scoped, tag = 'output window, operand 0']
    #allocation5 [shape = 's32[2]{0}', space=sflag, size = 0x8, scoped, tag = 'scoped memory for clfm_forward.7']
    %9 = vsyncpa [#allocation5], 0
    %s10 = scalar_lea.sflag [#allocation5], 1
    %11 = vsyncpa %s10, 0
    loop: start=0, step=1, limit=8
    $region2: #{clfm_forward.7} parent=1 // loop_pre_header
      _
    $region3: #{clfm_forward.7} parent=1 // loop_header
      %s13 = sphi 0, %s17
      %p14 = scmp.ge.s32.totalorder %s13, 8
      %s20 = sphi 0, %s32
      %s21 = sphi 0, %s28
      %s22 = sphi 0, %s20
      %s23 = sphi 0, %s21
      %s24 = sphi 0, %s22
      %s25 = sphi 0, %s23
      %s37 = sphi 0, %s39
      %s40 = sphi 0, %s37
      %s41 = sphi 0, %s40
      %s57 = sphi 0, %s41
      %s65 = sphi 0, %s67
      %s68 = sphi 0, %s65
      %s69 = sphi 0, %s68
      %s85 = sphi 0, %s69
      %s91 = sphi 0, %s93
      %s94 = sphi 0, %s91
      %s95 = sphi 0, %s94
      %s111 = sphi 0, %s95
      %s117 = sphi 0, %s119
      %s120 = sphi 0, %s117
      %s121 = sphi 0, %s120
      %s137 = sphi 0, %s121
      %s145 = sphi 0, %s147
      %s148 = sphi 0, %s145
      %s149 = sphi 0, %s148
      %s165 = sphi 0, %s149
    $region4: #{clfm_forward.7} parent=1 // loop_header_branch
      %16 = sbr.rel (%p14) target = $region8
    $region5: #{clfm_forward.7} parent=1 // loop_body
      %s18 = ssub.s32 %s13, 1
      %s19 = ssub.s32 %s13, 2
      %s26 = sadd.s32 1, %s21
      %p27 = scmp.ge.s32.totalorder %s26, 3
      %s28 = scalar_select %p27, 0, %s26
      %s29 = sadd.s32 1, %s20
      %s30 = scalar_select %p27, %s29, %s20
      %p31 = scmp.ge.s32.totalorder %s30, 2
      %s32 = scalar_select %p31, 0, %s30
      %s33 = ssub.s32 %s20, %s32
      %s34 = ssub.s32 %s21, %s28
      %s35 = sor.u32 %s33, %s34
      %p36 = scmp.eq.s32.totalorder %s35, 0
      %s38 = sadd.s32 %s37, 1
      %s39 = scalar_select %p36, %s37, %s38
      %p42 = pneg %p36
      %p43 = scmp.eq.s32.totalorder %s13, 5
      %p44 = por %p42, %p43
      %p45 = scmp.ne.s32.totalorder %s37, %s40
      %p46 = scmp.eq.s32.totalorder %s13, 0
      %p47 = por %p45, %p46
      %p48 = scmp.ne.s32.totalorder %s37, %s40
      %p49 = scmp.eq.s32.totalorder %s18, 5
      %p50 = por %p48, %p49
      %p51 = scmp.ne.s32.totalorder %s40, %s41
      %p52 = scmp.eq.s32.totalorder %s18, 0
      %p53 = por %p51, %p52
      %p54 = scmp.ne.s32.totalorder %s40, %s41
      %p55 = scmp.eq.s32.totalorder %s19, 5
      %p56 = por %p54, %p55
      %p58 = scmp.ne.s32.totalorder %s41, %s57
      %p59 = scmp.eq.s32.totalorder %s19, 0
      %p60 = por %p58, %p59
      %s61 = ssub.s32 %s20, %s32
      %s62 = ssub.s32 %s21, %s28
      %s63 = sor.u32 %s61, %s62
      %p64 = scmp.eq.s32.totalorder %s63, 0
      %s66 = sadd.s32 %s65, 1
      %s67 = scalar_select %p64, %s65, %s66
      %p70 = pneg %p64
      %p71 = scmp.eq.s32.totalorder %s13, 5
      %p72 = por %p70, %p71
      %p73 = scmp.ne.s32.totalorder %s65, %s68
      %p74 = scmp.eq.s32.totalorder %s13, 0
      %p75 = por %p73, %p74
      %p76 = scmp.ne.s32.totalorder %s65, %s68
      %p77 = scmp.eq.s32.totalorder %s18, 5
      %p78 = por %p76, %p77
      %p79 = scmp.ne.s32.totalorder %s68, %s69
      %p80 = scmp.eq.s32.totalorder %s18, 0
      %p81 = por %p79, %p80
      %p82 = scmp.ne.s32.totalorder %s68, %s69
      %p83 = scmp.eq.s32.totalorder %s19, 5
      %p84 = por %p82, %p83
      %p86 = scmp.ne.s32.totalorder %s69, %s85
      %p87 = scmp.eq.s32.totalorder %s19, 0
      %p88 = por %p86, %p87
      %s89 = ssub.s32 %s20, %s32
      %p90 = scmp.eq.s32.totalorder %s89, 0
      %s92 = sadd.s32 %s91, 1
      %s93 = scalar_select %p90, %s91, %s92
      %p96 = pneg %p90
      %p97 = scmp.eq.s32.totalorder %s13, 5
      %p98 = por %p96, %p97
      %p99 = scmp.ne.s32.totalorder %s91, %s94
      %p100 = scmp.eq.s32.totalorder %s13, 0
      %p101 = por %p99, %p100
      %p102 = scmp.ne.s32.totalorder %s91, %s94
      %p103 = scmp.eq.s32.totalorder %s18, 5
      %p104 = por %p102, %p103
      %p105 = scmp.ne.s32.totalorder %s94, %s95
      %p106 = scmp.eq.s32.totalorder %s18, 0
      %p107 = por %p105, %p106
      %p108 = scmp.ne.s32.totalorder %s94, %s95
      %p109 = scmp.eq.s32.totalorder %s19, 5
      %p110 = por %p108, %p109
      %p112 = scmp.ne.s32.totalorder %s95, %s111
      %p113 = scmp.eq.s32.totalorder %s19, 0
      %p114 = por %p112, %p113
      %s115 = ssub.s32 %s20, %s32
      %p116 = scmp.eq.s32.totalorder %s115, 0
      %s118 = sadd.s32 %s117, 1
      %s119 = scalar_select %p116, %s117, %s118
      %p122 = pneg %p116
      %p123 = scmp.eq.s32.totalorder %s13, 5
      %p124 = por %p122, %p123
      %p125 = scmp.ne.s32.totalorder %s117, %s120
      %p126 = scmp.eq.s32.totalorder %s13, 0
      %p127 = por %p125, %p126
      %p128 = scmp.ne.s32.totalorder %s117, %s120
      %p129 = scmp.eq.s32.totalorder %s18, 5
      %p130 = por %p128, %p129
      %p131 = scmp.ne.s32.totalorder %s120, %s121
      %p132 = scmp.eq.s32.totalorder %s18, 0
      %p133 = por %p131, %p132
      %p134 = scmp.ne.s32.totalorder %s120, %s121
      %p135 = scmp.eq.s32.totalorder %s19, 5
      %p136 = por %p134, %p135
      %p138 = scmp.ne.s32.totalorder %s121, %s137
      %p139 = scmp.eq.s32.totalorder %s19, 0
      %p140 = por %p138, %p139
      %s141 = ssub.s32 %s20, %s32
      %s142 = ssub.s32 %s21, %s28
      %s143 = sor.u32 %s141, %s142
      %p144 = scmp.eq.s32.totalorder %s143, 0
      %s146 = sadd.s32 %s145, 1
      %s147 = scalar_select %p144, %s145, %s146
      %p150 = pneg %p144
      %p151 = scmp.eq.s32.totalorder %s13, 5
      %p152 = por %p150, %p151
      %p153 = scmp.ne.s32.totalorder %s145, %s148
      %p154 = scmp.eq.s32.totalorder %s13, 0
      %p155 = por %p153, %p154
      %p156 = scmp.ne.s32.totalorder %s145, %s148
      %p157 = scmp.eq.s32.totalorder %s18, 5
      %p158 = por %p156, %p157
      %p159 = scmp.ne.s32.totalorder %s148, %s149
      %p160 = scmp.eq.s32.totalorder %s18, 0
      %p161 = por %p159, %p160
      %p162 = scmp.ne.s32.totalorder %s148, %s149
      %p163 = scmp.eq.s32.totalorder %s19, 5
      %p164 = por %p162, %p163
      %p166 = scmp.ne.s32.totalorder %s149, %s165
      %p167 = scmp.eq.s32.totalorder %s19, 0
      %p168 = por %p166, %p167
      %p169 = scmp.le.s32.totalorder 1, %s13
      %p170 = scmp.lt.s32.totalorder %s13, 7
      %p171 = pnand %p169, %p170
      %p172 = pneg %p171
      // Predicated region
      $region9: #{clfm_forward.7} parent=5 // pred_check
        _
      $region10: #{clfm_forward.7} parent=5 // pred_check_branch
        %174 = sbr.rel (%p171) target = $region12
      $region11: #{clfm_forward.7} parent=5 // pred_region
        %s175 = ssub.s32 %s13, 1
      $region12: #{clfm_forward.7} parent=5 // pred_fallthru
        _
      %p176 = scmp.lt.s32.totalorder %s13, 6
      // Predicated region
      $region13: #{clfm_forward.7} parent=5 // pred_check
        %p177 = pneg %p176
      $region14: #{clfm_forward.7} parent=5 // pred_check_branch
        %179 = sbr.rel (%p177) target = $region16
      $region15: #{clfm_forward.7} parent=5 // pred_region
        // Predicated region
        $region17: #{clfm_forward.7} parent=15 // pred_check
          %p180 = pneg %p47
        $region18: #{clfm_forward.7} parent=15 // pred_check_branch
          %182 = sbr.rel (%p180) target = $region20
        $region19: #{clfm_forward.7} parent=15 // pred_region
          %s183 = sand.u32 %s37, 1
          %s184 = sand.u32 %s37, 1
          %s185 = smul.addr %s184, 32
          %s186 = scalar_lea.vmem [#allocation2], %s185
          %s187 = smul.addr %s20, 12
          %s188 = sadd.s32 %s21, %s187
          %s189 = smul.addr %s188, 8
          %s190 = scalar_lea.vmem %s0, %s189
          // Predicated region
          $region21: #{clfm_forward.7} parent=19 // pred_check
            _
          $region22: #{clfm_forward.7} parent=19 // pred_check_branch
            %192 = sbr.rel (0) target = $region24
          $region23: #{clfm_forward.7} parent=19 // pred_region
            // Predicated region
            $region25: #{clfm_forward.7} parent=23 // pred_check
              _
            $region26: #{clfm_forward.7} parent=23 // pred_check_branch
              %194 = sbr.rel (0) target = $region28
            $region27: #{clfm_forward.7} parent=23 // pred_region
              // Predicated region
              $region40: #{clfm_forward.7} parent=27 // pred_check
                _
              $region41: #{clfm_forward.7} parent=27 // pred_check_branch
                %216 = sbr.rel (0) target = $region43
              $region42: #{clfm_forward.7} parent=27 // pred_region
                loop: start=0, step=1, limit=1
                $region44: #{clfm_forward.7} parent=42 // loop_pre_header
                  _
                $region45: #{clfm_forward.7} parent=42 // loop_header
                  %s218 = sphi 0, %s222
                  %p219 = scmp.ge.s32.totalorder %s218, 1
                  %s223 = sphi %s190, %s190
                  %s224 = sphi %s186, %s186
                $region46: #{clfm_forward.7} parent=42 // loop_header_branch
                  %221 = sbr.rel (%p219) target = $region50
                $region47: #{clfm_forward.7} parent=42 // loop_body
                  %v225 = vld [vmem:[%s223] sm:$0xff]
                  %226 = vst [vmem:[%s224] sm:$0xff] %v225
                  %v227 = vld [vmem:[%s223 + $0x18] sm:$0xff]
                  %228 = vst [vmem:[%s224 + $0x8] sm:$0xff] %v227
                  %v229 = vld [vmem:[%s223 + $0x30] sm:$0xff]
                  %230 = vst [vmem:[%s224 + $0x10] sm:$0xff] %v229
                  %v231 = vld [vmem:[%s223 + $0x48] sm:$0xff]
                  %232 = vst [vmem:[%s224 + $0x18] sm:$0xff] %v231
                $region48: #{clfm_forward.7} parent=42 // loop_footer
                  %s222 = sadd.s32 1, %s218
                $region49: #{clfm_forward.7} parent=42 // loop_footer_branch
                  %217 = sbr.rel target = $region45
                $region50: #{clfm_forward.7} parent=42 // loop_exit
                  _
              $region43: #{clfm_forward.7} parent=27 // pred_fallthru
                _
              // Predicated region
              $region51: #{clfm_forward.7} parent=27 // pred_check
                _
              $region52: #{clfm_forward.7} parent=27 // pred_check_branch
                %234 = sbr.rel target = $region54
              $region53: #{clfm_forward.7} parent=27 // pred_region
                _
              $region54: #{clfm_forward.7} parent=27 // pred_fallthru
                _
            $region28: #{clfm_forward.7} parent=23 // pred_fallthru
              _
            // Predicated region
            $region29: #{clfm_forward.7} parent=23 // pred_check
              _
            $region30: #{clfm_forward.7} parent=23 // pred_check_branch
              %196 = sbr.rel target = $region32
            $region31: #{clfm_forward.7} parent=23 // pred_region
              %s198 = ssub.s32 256, 1
              loop: start=0, step=1, limit=1
              $region33: #{clfm_forward.7} parent=31 // loop_pre_header
                _
              $region34: #{clfm_forward.7} parent=31 // loop_header
                %s200 = sphi 0, %s204
                %p201 = scmp.ge.s32.totalorder %s200, 1
                %s205 = sphi %s190, %s190
                %s206 = sphi %s186, %s186
              $region35: #{clfm_forward.7} parent=31 // loop_header_branch
                %203 = sbr.rel (%p201) target = $region39
              $region36: #{clfm_forward.7} parent=31 // loop_body
                %v207 = vld [vmem:[%s205] sm:%s198]
                %208 = vst [vmem:[%s206] sm:%s198] %v207
                %v209 = vld [vmem:[%s205 + $0x18] sm:%s198]
                %210 = vst [vmem:[%s206 + $0x8] sm:%s198] %v209
                %v211 = vld [vmem:[%s205 + $0x30] sm:%s198]
                %212 = vst [vmem:[%s206 + $0x10] sm:%s198] %v211
                %v213 = vld [vmem:[%s205 + $0x48] sm:%s198]
                %214 = vst [vmem:[%s206 + $0x18] sm:%s198] %v213
              $region37: #{clfm_forward.7} parent=31 // loop_footer
                %s204 = sadd.s32 1, %s200
              $region38: #{clfm_forward.7} parent=31 // loop_footer_branch
                %199 = sbr.rel target = $region34
              $region39: #{clfm_forward.7} parent=31 // loop_exit
                _
            $region32: #{clfm_forward.7} parent=23 // pred_fallthru
              _
          $region24: #{clfm_forward.7} parent=19 // pred_fallthru
            _
          %235 = vnop
        $region20: #{clfm_forward.7} parent=15 // pred_fallthru
          _
        // Predicated region
        $region55: #{clfm_forward.7} parent=15 // pred_check
          %p236 = pneg %p75
        $region56: #{clfm_forward.7} parent=15 // pred_check_branch
          %238 = sbr.rel (%p236) target = $region58
        $region57: #{clfm_forward.7} parent=15 // pred_region
          %s239 = sand.u32 %s65, 1
          %s240 = sand.u32 %s65, 1
          %s241 = smul.addr %s240, 32
          %s242 = scalar_lea.vmem [#allocation3], %s241
          %s243 = smul.addr %s20, 12
          %s244 = sadd.s32 %s21, %s243
          %s245 = smul.addr %s244, 8
          %s246 = scalar_lea.vmem %s1, %s245
          // Predicated region
          $region59: #{clfm_forward.7} parent=57 // pred_check
            _
          $region60: #{clfm_forward.7} parent=57 // pred_check_branch
            %248 = sbr.rel (0) target = $region62
          $region61: #{clfm_forward.7} parent=57 // pred_region
            // Predicated region
            $region63: #{clfm_forward.7} parent=61 // pred_check
              _
            $region64: #{clfm_forward.7} parent=61 // pred_check_branch
              %250 = sbr.rel (0) target = $region66
            $region65: #{clfm_forward.7} parent=61 // pred_region
              // Predicated region
              $region78: #{clfm_forward.7} parent=65 // pred_check
                _
              $region79: #{clfm_forward.7} parent=65 // pred_check_branch
                %272 = sbr.rel (0) target = $region81
              $region80: #{clfm_forward.7} parent=65 // pred_region
                loop: start=0, step=1, limit=1
                $region82: #{clfm_forward.7} parent=80 // loop_pre_header
                  _
                $region83: #{clfm_forward.7} parent=80 // loop_header
                  %s274 = sphi 0, %s278
                  %p275 = scmp.ge.s32.totalorder %s274, 1
                  %s279 = sphi %s246, %s246
                  %s280 = sphi %s242, %s242
                $region84: #{clfm_forward.7} parent=80 // loop_header_branch
                  %277 = sbr.rel (%p275) target = $region88
                $region85: #{clfm_forward.7} parent=80 // loop_body
                  %v281 = vld [vmem:[%s279] sm:$0xff]
                  %282 = vst [vmem:[%s280] sm:$0xff] %v281
                  %v283 = vld [vmem:[%s279 + $0x18] sm:$0xff]
                  %284 = vst [vmem:[%s280 + $0x8] sm:$0xff] %v283
                  %v285 = vld [vmem:[%s279 + $0x30] sm:$0xff]
                  %286 = vst [vmem:[%s280 + $0x10] sm:$0xff] %v285
                  %v287 = vld [vmem:[%s279 + $0x48] sm:$0xff]
                  %288 = vst [vmem:[%s280 + $0x18] sm:$0xff] %v287
                $region86: #{clfm_forward.7} parent=80 // loop_footer
                  %s278 = sadd.s32 1, %s274
                $region87: #{clfm_forward.7} parent=80 // loop_footer_branch
                  %273 = sbr.rel target = $region83
                $region88: #{clfm_forward.7} parent=80 // loop_exit
                  _
              $region81: #{clfm_forward.7} parent=65 // pred_fallthru
                _
              // Predicated region
              $region89: #{clfm_forward.7} parent=65 // pred_check
                _
              $region90: #{clfm_forward.7} parent=65 // pred_check_branch
                %290 = sbr.rel target = $region92
              $region91: #{clfm_forward.7} parent=65 // pred_region
                _
              $region92: #{clfm_forward.7} parent=65 // pred_fallthru
                _
            $region66: #{clfm_forward.7} parent=61 // pred_fallthru
              _
            // Predicated region
            $region67: #{clfm_forward.7} parent=61 // pred_check
              _
            $region68: #{clfm_forward.7} parent=61 // pred_check_branch
              %252 = sbr.rel target = $region70
            $region69: #{clfm_forward.7} parent=61 // pred_region
              %s254 = ssub.s32 256, 1
              loop: start=0, step=1, limit=1
              $region71: #{clfm_forward.7} parent=69 // loop_pre_header
                _
              $region72: #{clfm_forward.7} parent=69 // loop_header
                %s256 = sphi 0, %s260
                %p257 = scmp.ge.s32.totalorder %s256, 1
                %s261 = sphi %s246, %s246
                %s262 = sphi %s242, %s242
              $region73: #{clfm_forward.7} parent=69 // loop_header_branch
                %259 = sbr.rel (%p257) target = $region77
              $region74: #{clfm_forward.7} parent=69 // loop_body
                %v263 = vld [vmem:[%s261] sm:%s254]
                %264 = vst [vmem:[%s262] sm:%s254] %v263
                %v265 = vld [vmem:[%s261 + $0x18] sm:%s254]
                %266 = vst [vmem:[%s262 + $0x8] sm:%s254] %v265
                %v267 = vld [vmem:[%s261 + $0x30] sm:%s254]
                %268 = vst [vmem:[%s262 + $0x10] sm:%s254] %v267
                %v269 = vld [vmem:[%s261 + $0x48] sm:%s254]
                %270 = vst [vmem:[%s262 + $0x18] sm:%s254] %v269
              $region75: #{clfm_forward.7} parent=69 // loop_footer
                %s260 = sadd.s32 1, %s256
              $region76: #{clfm_forward.7} parent=69 // loop_footer_branch
                %255 = sbr.rel target = $region72
              $region77: #{clfm_forward.7} parent=69 // loop_exit
                _
            $region70: #{clfm_forward.7} parent=61 // pred_fallthru
              _
          $region62: #{clfm_forward.7} parent=57 // pred_fallthru
            _
          %291 = vnop
        $region58: #{clfm_forward.7} parent=15 // pred_fallthru
          _
        // Predicated region
        $region93: #{clfm_forward.7} parent=15 // pred_check
          %p292 = pneg %p101
        $region94: #{clfm_forward.7} parent=15 // pred_check_branch
          %294 = sbr.rel (%p292) target = $region96
        $region95: #{clfm_forward.7} parent=15 // pred_region
          %p295 = scmp.lt.s32.totalorder %s20, 1
          %s296 = scalar_select %p295, %s20, 1
          %s297 = smul.addr %s296, 4
          %s298 = smul.addr %s297, 8
          %s299 = scalar_lea.vmem %s2, %s298
        $region96: #{clfm_forward.7} parent=15 // pred_fallthru
          _
        // Predicated region
        $region97: #{clfm_forward.7} parent=15 // pred_check
          %p300 = pneg %p127
        $region98: #{clfm_forward.7} parent=15 // pred_check_branch
          %302 = sbr.rel (%p300) target = $region100
        $region99: #{clfm_forward.7} parent=15 // pred_region
          %p303 = scmp.lt.s32.totalorder %s20, 1
          %s304 = scalar_select %p303, %s20, 1
          %s305 = smul.addr %s304, 4
          %s306 = smul.addr %s305, 8
          %s307 = scalar_lea.vmem %s3, %s306
        $region100: #{clfm_forward.7} parent=15 // pred_fallthru
          _
      $region16: #{clfm_forward.7} parent=5 // pred_fallthru
        _
      %p308 = scmp.le.s32.totalorder 1, %s13
      %p309 = scmp.lt.s32.totalorder %s13, 7
      %p310 = pnand %p308, %p309
      %p311 = pneg %p310
      // Predicated region
      $region101: #{clfm_forward.7} parent=5 // pred_check
        _
      $region102: #{clfm_forward.7} parent=5 // pred_check_branch
        %313 = sbr.rel (%p310) target = $region104
      $region103: #{clfm_forward.7} parent=5 // pred_region
        %s314 = ssub.s32 %s13, 1
        %s315 = sand.u32 %s40, 1
        %s316 = sand.u32 %s40, 1
        %s317 = smul.addr %s316, 32
        %s318 = scalar_lea.vmem [#allocation2], %s317
        // Predicated region
        $region105: #{clfm_forward.7} parent=103 // pred_check
          %p319 = pneg %p53
        $region106: #{clfm_forward.7} parent=103 // pred_check_branch
          %321 = sbr.rel (%p319) target = $region108
        $region107: #{clfm_forward.7} parent=103 // pred_region
          _
        $region108: #{clfm_forward.7} parent=103 // pred_fallthru
          _
        %s322 = sand.u32 %s68, 1
        %s323 = sand.u32 %s68, 1
        %s324 = smul.addr %s323, 32
        %s325 = scalar_lea.vmem [#allocation3], %s324
        // Predicated region
        $region109: #{clfm_forward.7} parent=103 // pred_check
          %p326 = pneg %p81
        $region110: #{clfm_forward.7} parent=103 // pred_check_branch
          %328 = sbr.rel (%p326) target = $region112
        $region111: #{clfm_forward.7} parent=103 // pred_region
          _
        $region112: #{clfm_forward.7} parent=103 // pred_fallthru
          _
        %s329 = sand.u32 %s40, 1
        %s330 = sand.u32 %s40, 1
        %s331 = smul.addr %s330, 32
        %s332 = scalar_lea.vmem [#allocation2], %s331
        %p333 = pneg %p53
        %p334 = pneg %p50
        %s335 = sand.u32 %s68, 1
        %s336 = sand.u32 %s68, 1
        %s337 = smul.addr %s336, 32
        %s338 = scalar_lea.vmem [#allocation3], %s337
        %p339 = pneg %p81
        %p340 = pneg %p78
        %p341 = scmp.lt.s32.totalorder %s22, 1
        %s342 = scalar_select %p341, %s22, 1
        %s343 = smul.addr %s342, 4
        %s344 = smul.addr %s343, 8
        %s345 = scalar_lea.vmem %s2, %s344
        %p346 = pneg %p107
        %p347 = pneg %p104
        %p348 = scmp.lt.s32.totalorder %s22, 1
        %s349 = scalar_select %p348, %s22, 1
        %s350 = smul.addr %s349, 4
        %s351 = smul.addr %s350, 8
        %s352 = scalar_lea.vmem %s3, %s351
        %p353 = pneg %p133
        %p354 = pneg %p130
        %p355 = pneg %p161
        %p356 = pneg %p158
        %s357 = sand.u32 %s148, 1
        %s358 = scalar_lea.sflag [#allocation5], %s357
        %s359 = sand.u32 %s148, 1
        %s360 = smul.addr %s359, 32
        %s361 = scalar_lea.vmem [#allocation4], %s360
        %p362 = scmp.lt.s32.totalorder %s22, 1
        %s363 = scalar_select %p362, %s22, 1
        %s364 = smul.addr %s363, 4
        %s365 = smul.addr %s364, 8
        %s366 = scalar_lea.vmem %s2, %s365
        %p367 = scmp.lt.s32.totalorder %s22, 1
        %s368 = scalar_select %p367, %s22, 1
        %s369 = smul.addr %s368, 4
        %s370 = smul.addr %s369, 8
        %s371 = scalar_lea.vmem %s3, %s370
        %v372 = vld [vmem:[%s318] sm:$0xff]
        %v373 = vld [vmem:[%s318 + $0x8] sm:$0xff]
        %v374 = vld [vmem:[%s318 + $0x10] sm:$0xff]
        %v375 = vld [vmem:[%s318 + $0x18] sm:$0xff]
        %v376 = vld [vmem:[%s366] sm:$0xff]
        %v377 = vld [vmem:[%s366 + $0x8] sm:$0xff]
        %v378 = vld [vmem:[%s366 + $0x10] sm:$0xff]
        %v379 = vld [vmem:[%s366 + $0x18] sm:$0xff]
        %381 = vset.pattern.permute.xlu0 0
        %382 = vperm.xlu0 %381, %v376
        %v383 = vpop.permute.xlu0 %382
        %386 = vset.pattern.permute.xlu0 0
        %387 = vperm.xlu0 %386, %v377
        %v388 = vpop.permute.xlu0 %387
        %391 = vset.pattern.permute.xlu0 0
        %392 = vperm.xlu0 %391, %v378
        %v393 = vpop.permute.xlu0 %392
        %396 = vset.pattern.permute.xlu0 0
        %397 = vperm.xlu0 %396, %v379
        %v398 = vpop.permute.xlu0 %397
        %v400 = vmul.f32 %v372, %v383
        %v401 = vmul.f32 %v373, %v388
        %v402 = vmul.f32 %v374, %v393
        %v403 = vmul.f32 %v375, %v398
        %v404 = vld [vmem:[%s325] sm:$0xff]
        %v405 = vld [vmem:[%s325 + $0x8] sm:$0xff]
        %v406 = vld [vmem:[%s325 + $0x10] sm:$0xff]
        %v407 = vld [vmem:[%s325 + $0x18] sm:$0xff]
        %v408 = vld [vmem:[%s371] sm:$0xff]
        %v409 = vld [vmem:[%s371 + $0x8] sm:$0xff]
        %v410 = vld [vmem:[%s371 + $0x10] sm:$0xff]
        %v411 = vld [vmem:[%s371 + $0x18] sm:$0xff]
        %413 = vset.pattern.permute.xlu0 0
        %414 = vperm.xlu0 %413, %v408
        %v415 = vpop.permute.xlu0 %414
        %418 = vset.pattern.permute.xlu0 0
        %419 = vperm.xlu0 %418, %v409
        %v420 = vpop.permute.xlu0 %419
        %423 = vset.pattern.permute.xlu0 0
        %424 = vperm.xlu0 %423, %v410
        %v425 = vpop.permute.xlu0 %424
        %428 = vset.pattern.permute.xlu0 0
        %429 = vperm.xlu0 %428, %v411
        %v430 = vpop.permute.xlu0 %429
        %v432 = vmul.f32 %v404, %v415
        %v433 = vmul.f32 %v405, %v420
        %v434 = vmul.f32 %v406, %v425
        %v435 = vmul.f32 %v407, %v430
        %v436 = vadd.f32 %v400, %v432
        %v437 = vadd.f32 %v401, %v433
        %v438 = vadd.f32 %v402, %v434
        %v439 = vadd.f32 %v403, %v435
        %440 = vst [vmem:[%s361] sm:$0xff] %v436
        %441 = vst [vmem:[%s361 + $0x8] sm:$0xff] %v437
        %442 = vst [vmem:[%s361 + $0x10] sm:$0xff] %v438
        %443 = vst [vmem:[%s361 + $0x18] sm:$0xff] %v439
        %s444 = sand.u32 %s148, 1
        %s445 = scalar_lea.sflag [#allocation5], %s444
        %s446 = sand.u32 %s148, 1
        %s447 = smul.addr %s446, 32
        %s448 = scalar_lea.vmem [#allocation4], %s447
        // Predicated region
        $region113: #{clfm_forward.7} parent=103 // pred_check
          %p449 = pneg %p158
        $region114: #{clfm_forward.7} parent=103 // pred_check_branch
          %451 = sbr.rel (%p449) target = $region116
        $region115: #{clfm_forward.7} parent=103 // pred_region
          %453 = vsyncadd %s445, 0
          %s454 = smul.addr %s22, 12
          %s455 = sadd.s32 %s23, %s454
          %s456 = smul.addr %s455, 8
          %s457 = scalar_lea.hbm %s4, %s456
          %s458 = sshll.u32 %s448, 4
          %s459 = int_to_ptr.vmem [resolvable:$true] %s458
          %s460 = sshll.u32 %s457, 4
          %s461 = int_to_ptr.hbm [resolvable:$true] %s460
          %466 = dma.vmem_to_hbm [thread:$0]  %s459, 512, %s461, %s445, 128, 384, 8
        $region116: #{clfm_forward.7} parent=103 // pred_fallthru
          _
      $region104: #{clfm_forward.7} parent=5 // pred_fallthru
        _
      %p467 = scmp.le.s32.totalorder 2, %s13
      // Predicated region
      $region117: #{clfm_forward.7} parent=5 // pred_check
        %p468 = pneg %p467
      $region118: #{clfm_forward.7} parent=5 // pred_check_branch
        %470 = sbr.rel (%p468) target = $region120
      $region119: #{clfm_forward.7} parent=5 // pred_region
        %s471 = ssub.s32 %s13, 2
        // Predicated region
        $region121: #{clfm_forward.7} parent=119 // pred_check
          %p472 = pneg %p164
        $region122: #{clfm_forward.7} parent=119 // pred_check_branch
          %474 = sbr.rel (%p472) target = $region124
        $region123: #{clfm_forward.7} parent=119 // pred_region
          %s475 = sand.u32 %s149, 1
          %s476 = scalar_lea.sflag [#allocation5], %s475
          %s477 = sand.u32 %s149, 1
          %s478 = smul.addr %s477, 32
          %s479 = scalar_lea.vmem [#allocation4], %s478
          %481 = dma.done %s476, 512
        $region124: #{clfm_forward.7} parent=119 // pred_fallthru
          _
      $region120: #{clfm_forward.7} parent=5 // pred_fallthru
        _
    $region6: #{clfm_forward.7} parent=1 // loop_footer
      %s17 = sadd.s32 1, %s13
    $region7: #{clfm_forward.7} parent=1 // loop_footer_branch
      %12 = sbr.rel target = $region3
    $region8: #{clfm_forward.7} parent=1 // loop_exit
      _
    %482 = vsyncpa [#allocation5], 1
    %s483 = scalar_lea.sflag [#allocation5], 1
    %484 = vsyncpa %s483, 1

// kernel: clfm_forward.4
$region0: #{clfm_forward.4}
  #allocation0 [shape = 'u32[]', space=smem, size = 0x4, offset = 0x4, fixed_abs, tag = 'smem constant byte address 0x4 - core index']
  #allocation1 [shape = 'u32[72,128]{1,0:T(1,128)}', space=vmem, size = 0x9000, scoped, tag = 'internal scratch']
  #allocation2 [shape = 'f32[256,1]{1,0:T(8,128)}', space=vmem, size = 0x20000, scoped, tag = 'scratch operand']
  #allocation3 [shape = 'f32[256,1]{1,0:T(8,128)}', space=vmem, size = 0x20000, scoped, tag = 'scratch operand']
  #allocation4 [shape = 'f32[2,256]{1,0:T(2,128)}', space=vmem, size = 0x800, scoped, tag = 'scratch operand']
  #allocation5 [shape = 'f32[32,256]{1,0:T(8,128)}', space=vmem, size = 0x8000, scoped, tag = 'scratch operand']
  %s0 = inlined_call_operand.vmem [shape: f32[2,2,384], index: 0, kind: input, shape index: {}]
  %s1 = inlined_call_operand.vmem [shape: f32[2,16,512], index: 1, kind: input, shape index: {}]
  %s2 = inlined_call_operand.vmem [shape: f32[2,32,384], index: 2, kind: input, shape index: {}]
  %s3 = inlined_call_operand.vmem [shape: f32[16,1], index: 3, kind: input, shape index: {}]
  %s4 = inlined_call_operand.vmem [shape: f32[16,1], index: 4, kind: input, shape index: {}]
  %s5 = inlined_call_operand.vmem [shape: f32[16,1], index: 5, kind: input, shape index: {}]
  %s6 = inlined_call_operand.vmem [shape: f32[16,1], index: 6, kind: input, shape index: {}]
  %s7 = inlined_call_operand.vmem [shape: f32[32,16], index: 7, kind: input, shape index: {}]
  %s8 = inlined_call_operand.vmem [shape: f32[32,1], index: 8, kind: input, shape index: {}]
  %s9 = inlined_call_operand.vmem [shape: f32[32,32], index: 9, kind: input, shape index: {}]
  %s10 = inlined_call_operand.vmem [shape: f32[32,1], index: 10, kind: input, shape index: {}]
  %s11 = inlined_call_operand.vmem [shape: f32[16,16], index: 11, kind: input, shape index: {}]
  %s12 = inlined_call_operand.vmem [shape: f32[16,1], index: 12, kind: input, shape index: {}]
  %s13 = inlined_call_operand.vmem [shape: f32[16,32], index: 13, kind: input, shape index: {}]
  %s14 = inlined_call_operand.vmem [shape: f32[16,1], index: 14, kind: input, shape index: {}]
  %s15 = inlined_call_operand.vmem [shape: f32[2,16,512], index: 15, kind: output, shape index: {0}]
  %s16 = inlined_call_operand.vmem [shape: f32[2,16,512], index: 16, kind: output, shape index: {1}]
  %s17 = inlined_call_operand.vmem [shape: f32[2,16,1], index: 17, kind: output, shape index: {2}]
  %18 = xla_tuple %s15, %s16, %s17
  %s19 = sld [smem:[#allocation0]]
  $region188: #{clfm_forward.4} parent=0
    _
  %s21 = ssub.s32 1, %s19
  %s22 = scalar_select 0, %s21, %s19
  $region1: #{clfm_forward.4} parent=0
    #allocation6 [shape = 'u8[32768]{0}', space=vmem, size = 0x8000, scoped, tag = 'input window, operand 1']
    #allocation7 [shape = 'u8[32768]{0}', space=vmem, size = 0x8000, scoped, tag = 'output window, operand 0']
    #allocation8 [shape = 'u8[32768]{0}', space=vmem, size = 0x8000, scoped, tag = 'output window, operand 1']
    loop: start=0, step=1, limit=6
    $region2: #{clfm_forward.4} parent=1 // loop_pre_header
      _
    $region3: #{clfm_forward.4} parent=1 // loop_header
      %s24 = sphi 0, %s28
      %p25 = scmp.ge.s32.totalorder %s24, 6
      %s31 = sphi 0, %s43
      %s32 = sphi 0, %s39
      %s33 = sphi 0, %s31
      %s34 = sphi 0, %s32
      %s35 = sphi 0, %s33
      %s36 = sphi 0, %s34
      %s46 = sphi 0, %s48
      %s49 = sphi 0, %s46
      %s50 = sphi 0, %s49
      %s66 = sphi 0, %s50
      %s74 = sphi 0, %s76
      %s77 = sphi 0, %s74
      %s78 = sphi 0, %s77
      %s94 = sphi 0, %s78
      %s100 = sphi 0, %s102
      %s103 = sphi 0, %s100
      %s104 = sphi 0, %s103
      %s120 = sphi 0, %s104
      %s124 = sphi 0, %s124
      %s126 = sphi 0, %s124
      %s127 = sphi 0, %s126
      %s141 = sphi 0, %s127
      %s145 = sphi 0, %s145
      %s147 = sphi 0, %s145
      %s148 = sphi 0, %s147
      %s162 = sphi 0, %s148
      %s166 = sphi 0, %s166
      %s168 = sphi 0, %s166
      %s169 = sphi 0, %s168
      %s183 = sphi 0, %s169
      %s187 = sphi 0, %s187
      %s189 = sphi 0, %s187
      %s190 = sphi 0, %s189
      %s204 = sphi 0, %s190
      %s208 = sphi 0, %s208
      %s210 = sphi 0, %s208
      %s211 = sphi 0, %s210
      %s225 = sphi 0, %s211
      %s229 = sphi 0, %s229
      %s231 = sphi 0, %s229
      %s232 = sphi 0, %s231
      %s246 = sphi 0, %s232
      %s250 = sphi 0, %s250
      %s252 = sphi 0, %s250
      %s253 = sphi 0, %s252
      %s267 = sphi 0, %s253
      %s271 = sphi 0, %s271
      %s273 = sphi 0, %s271
      %s274 = sphi 0, %s273
      %s288 = sphi 0, %s274
      %s292 = sphi 0, %s292
      %s294 = sphi 0, %s292
      %s295 = sphi 0, %s294
      %s309 = sphi 0, %s295
      %s313 = sphi 0, %s313
      %s315 = sphi 0, %s313
      %s316 = sphi 0, %s315
      %s330 = sphi 0, %s316
      %s334 = sphi 0, %s334
      %s336 = sphi 0, %s334
      %s337 = sphi 0, %s336
      %s351 = sphi 0, %s337
      %s355 = sphi 0, %s355
      %s357 = sphi 0, %s355
      %s358 = sphi 0, %s357
      %s372 = sphi 0, %s358
      %s380 = sphi 0, %s382
      %s383 = sphi 0, %s380
      %s384 = sphi 0, %s383
      %s400 = sphi 0, %s384
      %s408 = sphi 0, %s410
      %s411 = sphi 0, %s408
      %s412 = sphi 0, %s411
      %s428 = sphi 0, %s412
      %s434 = sphi 0, %s436
      %s437 = sphi 0, %s434
      %s438 = sphi 0, %s437
      %s454 = sphi 0, %s438
    $region4: #{clfm_forward.4} parent=1 // loop_header_branch
      %27 = sbr.rel (%p25) target = $region8
    $region5: #{clfm_forward.4} parent=1 // loop_body
      %s29 = ssub.s32 %s24, 1
      %s30 = ssub.s32 %s24, 2
      %s37 = sadd.s32 1, %s32
      %p38 = scmp.ge.s32.totalorder %s37, 2
      %s39 = scalar_select %p38, 0, %s37
      %s40 = sadd.s32 1, %s31
      %s41 = scalar_select %p38, %s40, %s31
      %p42 = scmp.ge.s32.totalorder %s41, 2
      %s43 = scalar_select %p42, 0, %s41
      %s44 = ssub.s32 %s31, %s43
      %p45 = scmp.eq.s32.totalorder %s44, 0
      %s47 = sadd.s32 %s46, 1
      %s48 = scalar_select %p45, %s46, %s47
      %p51 = pneg %p45
      %p52 = scmp.eq.s32.totalorder %s24, 3
      %p53 = por %p51, %p52
      %p54 = scmp.ne.s32.totalorder %s46, %s49
      %p55 = scmp.eq.s32.totalorder %s24, 0
      %p56 = por %p54, %p55
      %p57 = scmp.ne.s32.totalorder %s46, %s49
      %p58 = scmp.eq.s32.totalorder %s29, 3
      %p59 = por %p57, %p58
      %p60 = scmp.ne.s32.totalorder %s49, %s50
      %p61 = scmp.eq.s32.totalorder %s29, 0
      %p62 = por %p60, %p61
      %p63 = scmp.ne.s32.totalorder %s49, %s50
      %p64 = scmp.eq.s32.totalorder %s30, 3
      %p65 = por %p63, %p64
      %p67 = scmp.ne.s32.totalorder %s50, %s66
      %p68 = scmp.eq.s32.totalorder %s30, 0
      %p69 = por %p67, %p68
      %s70 = ssub.s32 %s31, %s43
      %s71 = ssub.s32 %s32, %s39
      %s72 = sor.u32 %s70, %s71
      %p73 = scmp.eq.s32.totalorder %s72, 0
      %s75 = sadd.s32 %s74, 1
      %s76 = scalar_select %p73, %s74, %s75
      %p79 = pneg %p73
      %p80 = scmp.eq.s32.totalorder %s24, 3
      %p81 = por %p79, %p80
      %p82 = scmp.ne.s32.totalorder %s74, %s77
      %p83 = scmp.eq.s32.totalorder %s24, 0
      %p84 = por %p82, %p83
      %p85 = scmp.ne.s32.totalorder %s74, %s77
      %p86 = scmp.eq.s32.totalorder %s29, 3
      %p87 = por %p85, %p86
      %p88 = scmp.ne.s32.totalorder %s77, %s78
      %p89 = scmp.eq.s32.totalorder %s29, 0
      %p90 = por %p88, %p89
      %p91 = scmp.ne.s32.totalorder %s77, %s78
      %p92 = scmp.eq.s32.totalorder %s30, 3
      %p93 = por %p91, %p92
      %p95 = scmp.ne.s32.totalorder %s78, %s94
      %p96 = scmp.eq.s32.totalorder %s30, 0
      %p97 = por %p95, %p96
      %s98 = ssub.s32 %s31, %s43
      %p99 = scmp.eq.s32.totalorder %s98, 0
      %s101 = sadd.s32 %s100, 1
      %s102 = scalar_select %p99, %s100, %s101
      %p105 = pneg %p99
      %p106 = scmp.eq.s32.totalorder %s24, 3
      %p107 = por %p105, %p106
      %p108 = scmp.ne.s32.totalorder %s100, %s103
      %p109 = scmp.eq.s32.totalorder %s24, 0
      %p110 = por %p108, %p109
      %p111 = scmp.ne.s32.totalorder %s100, %s103
      %p112 = scmp.eq.s32.totalorder %s29, 3
      %p113 = por %p111, %p112
      %p114 = scmp.ne.s32.totalorder %s103, %s104
      %p115 = scmp.eq.s32.totalorder %s29, 0
      %p116 = por %p114, %p115
      %p117 = scmp.ne.s32.totalorder %s103, %s104
      %p118 = scmp.eq.s32.totalorder %s30, 3
      %p119 = por %p117, %p118
      %p121 = scmp.ne.s32.totalorder %s104, %s120
      %p122 = scmp.eq.s32.totalorder %s30, 0
      %p123 = por %p121, %p122
      %s125 = sadd.s32 %s124, 1
      %p128 = scmp.eq.s32.totalorder %s24, 3
      %p129 = scmp.ne.s32.totalorder %s124, %s126
      %p130 = scmp.eq.s32.totalorder %s24, 0
      %p131 = por %p129, %p130
      %p132 = scmp.ne.s32.totalorder %s124, %s126
      %p133 = scmp.eq.s32.totalorder %s29, 3
      %p134 = por %p132, %p133
      %p135 = scmp.ne.s32.totalorder %s126, %s127
      %p136 = scmp.eq.s32.totalorder %s29, 0
      %p137 = por %p135, %p136
      %p138 = scmp.ne.s32.totalorder %s126, %s127
      %p139 = scmp.eq.s32.totalorder %s30, 3
      %p140 = por %p138, %p139
      %p142 = scmp.ne.s32.totalorder %s127, %s141
      %p143 = scmp.eq.s32.totalorder %s30, 0
      %p144 = por %p142, %p143
      %s146 = sadd.s32 %s145, 1
      %p149 = scmp.eq.s32.totalorder %s24, 3
      %p150 = scmp.ne.s32.totalorder %s145, %s147
      %p151 = scmp.eq.s32.totalorder %s24, 0
      %p152 = por %p150, %p151
      %p153 = scmp.ne.s32.totalorder %s145, %s147
      %p154 = scmp.eq.s32.totalorder %s29, 3
      %p155 = por %p153, %p154
      %p156 = scmp.ne.s32.totalorder %s147, %s148
      %p157 = scmp.eq.s32.totalorder %s29, 0
      %p158 = por %p156, %p157
      %p159 = scmp.ne.s32.totalorder %s147, %s148
      %p160 = scmp.eq.s32.totalorder %s30, 3
      %p161 = por %p159, %p160
      %p163 = scmp.ne.s32.totalorder %s148, %s162
      %p164 = scmp.eq.s32.totalorder %s30, 0
      %p165 = por %p163, %p164
      %s167 = sadd.s32 %s166, 1
      %p170 = scmp.eq.s32.totalorder %s24, 3
      %p171 = scmp.ne.s32.totalorder %s166, %s168
      %p172 = scmp.eq.s32.totalorder %s24, 0
      %p173 = por %p171, %p172
      %p174 = scmp.ne.s32.totalorder %s166, %s168
      %p175 = scmp.eq.s32.totalorder %s29, 3
      %p176 = por %p174, %p175
      %p177 = scmp.ne.s32.totalorder %s168, %s169
      %p178 = scmp.eq.s32.totalorder %s29, 0
      %p179 = por %p177, %p178
      %p180 = scmp.ne.s32.totalorder %s168, %s169
      %p181 = scmp.eq.s32.totalorder %s30, 3
      %p182 = por %p180, %p181
      %p184 = scmp.ne.s32.totalorder %s169, %s183
      %p185 = scmp.eq.s32.totalorder %s30, 0
      %p186 = por %p184, %p185
      %s188 = sadd.s32 %s187, 1
      %p191 = scmp.eq.s32.totalorder %s24, 3
      %p192 = scmp.ne.s32.totalorder %s187, %s189
      %p193 = scmp.eq.s32.totalorder %s24, 0
      %p194 = por %p192, %p193
      %p195 = scmp.ne.s32.totalorder %s187, %s189
      %p196 = scmp.eq.s32.totalorder %s29, 3
      %p197 = por %p195, %p196
      %p198 = scmp.ne.s32.totalorder %s189, %s190
      %p199 = scmp.eq.s32.totalorder %s29, 0
      %p200 = por %p198, %p199
      %p201 = scmp.ne.s32.totalorder %s189, %s190
      %p202 = scmp.eq.s32.totalorder %s30, 3
      %p203 = por %p201, %p202
      %p205 = scmp.ne.s32.totalorder %s190, %s204
      %p206 = scmp.eq.s32.totalorder %s30, 0
      %p207 = por %p205, %p206
      %s209 = sadd.s32 %s208, 1
      %p212 = scmp.eq.s32.totalorder %s24, 3
      %p213 = scmp.ne.s32.totalorder %s208, %s210
      %p214 = scmp.eq.s32.totalorder %s24, 0
      %p215 = por %p213, %p214
      %p216 = scmp.ne.s32.totalorder %s208, %s210
      %p217 = scmp.eq.s32.totalorder %s29, 3
      %p218 = por %p216, %p217
      %p219 = scmp.ne.s32.totalorder %s210, %s211
      %p220 = scmp.eq.s32.totalorder %s29, 0
      %p221 = por %p219, %p220
      %p222 = scmp.ne.s32.totalorder %s210, %s211
      %p223 = scmp.eq.s32.totalorder %s30, 3
      %p224 = por %p222, %p223
      %p226 = scmp.ne.s32.totalorder %s211, %s225
      %p227 = scmp.eq.s32.totalorder %s30, 0
      %p228 = por %p226, %p227
      %s230 = sadd.s32 %s229, 1
      %p233 = scmp.eq.s32.totalorder %s24, 3
      %p234 = scmp.ne.s32.totalorder %s229, %s231
      %p235 = scmp.eq.s32.totalorder %s24, 0
      %p236 = por %p234, %p235
      %p237 = scmp.ne.s32.totalorder %s229, %s231
      %p238 = scmp.eq.s32.totalorder %s29, 3
      %p239 = por %p237, %p238
      %p240 = scmp.ne.s32.totalorder %s231, %s232
      %p241 = scmp.eq.s32.totalorder %s29, 0
      %p242 = por %p240, %p241
      %p243 = scmp.ne.s32.totalorder %s231, %s232
      %p244 = scmp.eq.s32.totalorder %s30, 3
      %p245 = por %p243, %p244
      %p247 = scmp.ne.s32.totalorder %s232, %s246
      %p248 = scmp.eq.s32.totalorder %s30, 0
      %p249 = por %p247, %p248
      %s251 = sadd.s32 %s250, 1
      %p254 = scmp.eq.s32.totalorder %s24, 3
      %p255 = scmp.ne.s32.totalorder %s250, %s252
      %p256 = scmp.eq.s32.totalorder %s24, 0
      %p257 = por %p255, %p256
      %p258 = scmp.ne.s32.totalorder %s250, %s252
      %p259 = scmp.eq.s32.totalorder %s29, 3
      %p260 = por %p258, %p259
      %p261 = scmp.ne.s32.totalorder %s252, %s253
      %p262 = scmp.eq.s32.totalorder %s29, 0
      %p263 = por %p261, %p262
      %p264 = scmp.ne.s32.totalorder %s252, %s253
      %p265 = scmp.eq.s32.totalorder %s30, 3
      %p266 = por %p264, %p265
      %p268 = scmp.ne.s32.totalorder %s253, %s267
      %p269 = scmp.eq.s32.totalorder %s30, 0
      %p270 = por %p268, %p269
      %s272 = sadd.s32 %s271, 1
      %p275 = scmp.eq.s32.totalorder %s24, 3
      %p276 = scmp.ne.s32.totalorder %s271, %s273
      %p277 = scmp.eq.s32.totalorder %s24, 0
      %p278 = por %p276, %p277
      %p279 = scmp.ne.s32.totalorder %s271, %s273
      %p280 = scmp.eq.s32.totalorder %s29, 3
      %p281 = por %p279, %p280
      %p282 = scmp.ne.s32.totalorder %s273, %s274
      %p283 = scmp.eq.s32.totalorder %s29, 0
      %p284 = por %p282, %p283
      %p285 = scmp.ne.s32.totalorder %s273, %s274
      %p286 = scmp.eq.s32.totalorder %s30, 3
      %p287 = por %p285, %p286
      %p289 = scmp.ne.s32.totalorder %s274, %s288
      %p290 = scmp.eq.s32.totalorder %s30, 0
      %p291 = por %p289, %p290
      %s293 = sadd.s32 %s292, 1
      %p296 = scmp.eq.s32.totalorder %s24, 3
      %p297 = scmp.ne.s32.totalorder %s292, %s294
      %p298 = scmp.eq.s32.totalorder %s24, 0
      %p299 = por %p297, %p298
      %p300 = scmp.ne.s32.totalorder %s292, %s294
      %p301 = scmp.eq.s32.totalorder %s29, 3
      %p302 = por %p300, %p301
      %p303 = scmp.ne.s32.totalorder %s294, %s295
      %p304 = scmp.eq.s32.totalorder %s29, 0
      %p305 = por %p303, %p304
      %p306 = scmp.ne.s32.totalorder %s294, %s295
      %p307 = scmp.eq.s32.totalorder %s30, 3
      %p308 = por %p306, %p307
      %p310 = scmp.ne.s32.totalorder %s295, %s309
      %p311 = scmp.eq.s32.totalorder %s30, 0
      %p312 = por %p310, %p311
      %s314 = sadd.s32 %s313, 1
      %p317 = scmp.eq.s32.totalorder %s24, 3
      %p318 = scmp.ne.s32.totalorder %s313, %s315
      %p319 = scmp.eq.s32.totalorder %s24, 0
      %p320 = por %p318, %p319
      %p321 = scmp.ne.s32.totalorder %s313, %s315
      %p322 = scmp.eq.s32.totalorder %s29, 3
      %p323 = por %p321, %p322
      %p324 = scmp.ne.s32.totalorder %s315, %s316
      %p325 = scmp.eq.s32.totalorder %s29, 0
      %p326 = por %p324, %p325
      %p327 = scmp.ne.s32.totalorder %s315, %s316
      %p328 = scmp.eq.s32.totalorder %s30, 3
      %p329 = por %p327, %p328
      %p331 = scmp.ne.s32.totalorder %s316, %s330
      %p332 = scmp.eq.s32.totalorder %s30, 0
      %p333 = por %p331, %p332
      %s335 = sadd.s32 %s334, 1
      %p338 = scmp.eq.s32.totalorder %s24, 3
      %p339 = scmp.ne.s32.totalorder %s334, %s336
      %p340 = scmp.eq.s32.totalorder %s24, 0
      %p341 = por %p339, %p340
      %p342 = scmp.ne.s32.totalorder %s334, %s336
      %p343 = scmp.eq.s32.totalorder %s29, 3
      %p344 = por %p342, %p343
      %p345 = scmp.ne.s32.totalorder %s336, %s337
      %p346 = scmp.eq.s32.totalorder %s29, 0
      %p347 = por %p345, %p346
      %p348 = scmp.ne.s32.totalorder %s336, %s337
      %p349 = scmp.eq.s32.totalorder %s30, 3
      %p350 = por %p348, %p349
      %p352 = scmp.ne.s32.totalorder %s337, %s351
      %p353 = scmp.eq.s32.totalorder %s30, 0
      %p354 = por %p352, %p353
      %s356 = sadd.s32 %s355, 1
      %p359 = scmp.eq.s32.totalorder %s24, 3
      %p360 = scmp.ne.s32.totalorder %s355, %s357
      %p361 = scmp.eq.s32.totalorder %s24, 0
      %p362 = por %p360, %p361
      %p363 = scmp.ne.s32.totalorder %s355, %s357
      %p364 = scmp.eq.s32.totalorder %s29, 3
      %p365 = por %p363, %p364
      %p366 = scmp.ne.s32.totalorder %s357, %s358
      %p367 = scmp.eq.s32.totalorder %s29, 0
      %p368 = por %p366, %p367
      %p369 = scmp.ne.s32.totalorder %s357, %s358
      %p370 = scmp.eq.s32.totalorder %s30, 3
      %p371 = por %p369, %p370
      %p373 = scmp.ne.s32.totalorder %s358, %s372
      %p374 = scmp.eq.s32.totalorder %s30, 0
      %p375 = por %p373, %p374
      %s376 = ssub.s32 %s31, %s43
      %s377 = ssub.s32 %s32, %s39
      %s378 = sor.u32 %s376, %s377
      %p379 = scmp.eq.s32.totalorder %s378, 0
      %s381 = sadd.s32 %s380, 1
      %s382 = scalar_select %p379, %s380, %s381
      %p385 = pneg %p379
      %p386 = scmp.eq.s32.totalorder %s24, 3
      %p387 = por %p385, %p386
      %p388 = scmp.ne.s32.totalorder %s380, %s383
      %p389 = scmp.eq.s32.totalorder %s24, 0
      %p390 = por %p388, %p389
      %p391 = scmp.ne.s32.totalorder %s380, %s383
      %p392 = scmp.eq.s32.totalorder %s29, 3
      %p393 = por %p391, %p392
      %p394 = scmp.ne.s32.totalorder %s383, %s384
      %p395 = scmp.eq.s32.totalorder %s29, 0
      %p396 = por %p394, %p395
      %p397 = scmp.ne.s32.totalorder %s383, %s384
      %p398 = scmp.eq.s32.totalorder %s30, 3
      %p399 = por %p397, %p398
      %p401 = scmp.ne.s32.totalorder %s384, %s400
      %p402 = scmp.eq.s32.totalorder %s30, 0
      %p403 = por %p401, %p402
      %s404 = ssub.s32 %s31, %s43
      %s405 = ssub.s32 %s32, %s39
      %s406 = sor.u32 %s404, %s405
      %p407 = scmp.eq.s32.totalorder %s406, 0
      %s409 = sadd.s32 %s408, 1
      %s410 = scalar_select %p407, %s408, %s409
      %p413 = pneg %p407
      %p414 = scmp.eq.s32.totalorder %s24, 3
      %p415 = por %p413, %p414
      %p416 = scmp.ne.s32.totalorder %s408, %s411
      %p417 = scmp.eq.s32.totalorder %s24, 0
      %p418 = por %p416, %p417
      %p419 = scmp.ne.s32.totalorder %s408, %s411
      %p420 = scmp.eq.s32.totalorder %s29, 3
      %p421 = por %p419, %p420
      %p422 = scmp.ne.s32.totalorder %s411, %s412
      %p423 = scmp.eq.s32.totalorder %s29, 0
      %p424 = por %p422, %p423
      %p425 = scmp.ne.s32.totalorder %s411, %s412
      %p426 = scmp.eq.s32.totalorder %s30, 3
      %p427 = por %p425, %p426
      %p429 = scmp.ne.s32.totalorder %s412, %s428
      %p430 = scmp.eq.s32.totalorder %s30, 0
      %p431 = por %p429, %p430
      %s432 = ssub.s32 %s31, %s43
      %p433 = scmp.eq.s32.totalorder %s432, 0
      %s435 = sadd.s32 %s434, 1
      %s436 = scalar_select %p433, %s434, %s435
      %p439 = pneg %p433
      %p440 = scmp.eq.s32.totalorder %s24, 3
      %p441 = por %p439, %p440
      %p442 = scmp.ne.s32.totalorder %s434, %s437
      %p443 = scmp.eq.s32.totalorder %s24, 0
      %p444 = por %p442, %p443
      %p445 = scmp.ne.s32.totalorder %s434, %s437
      %p446 = scmp.eq.s32.totalorder %s29, 3
      %p447 = por %p445, %p446
      %p448 = scmp.ne.s32.totalorder %s437, %s438
      %p449 = scmp.eq.s32.totalorder %s29, 0
      %p450 = por %p448, %p449
      %p451 = scmp.ne.s32.totalorder %s437, %s438
      %p452 = scmp.eq.s32.totalorder %s30, 3
      %p453 = por %p451, %p452
      %p455 = scmp.ne.s32.totalorder %s438, %s454
      %p456 = scmp.eq.s32.totalorder %s30, 0
      %p457 = por %p455, %p456
      %p458 = scmp.le.s32.totalorder 1, %s24
      %p459 = scmp.lt.s32.totalorder %s24, 5
      %p460 = pnand %p458, %p459
      %p461 = pneg %p460
      // Predicated region
      $region9: #{clfm_forward.4} parent=5 // pred_check
        _
      $region10: #{clfm_forward.4} parent=5 // pred_check_branch
        %463 = sbr.rel (%p460) target = $region12
      $region11: #{clfm_forward.4} parent=5 // pred_region
        %s464 = ssub.s32 %s24, 1
        // Predicated region
        $region13: #{clfm_forward.4} parent=11 // pred_check
          %p465 = pneg %p137
        $region14: #{clfm_forward.4} parent=11 // pred_check_branch
          %467 = sbr.rel (%p465) target = $region16
        $region15: #{clfm_forward.4} parent=11 // pred_region
          _
        $region16: #{clfm_forward.4} parent=11 // pred_fallthru
          _
        // Predicated region
        $region17: #{clfm_forward.4} parent=11 // pred_check
          %p468 = pneg %p158
        $region18: #{clfm_forward.4} parent=11 // pred_check_branch
          %470 = sbr.rel (%p468) target = $region20
        $region19: #{clfm_forward.4} parent=11 // pred_region
          _
        $region20: #{clfm_forward.4} parent=11 // pred_fallthru
          _
        // Predicated region
        $region21: #{clfm_forward.4} parent=11 // pred_check
          %p471 = pneg %p179
        $region22: #{clfm_forward.4} parent=11 // pred_check_branch
          %473 = sbr.rel (%p471) target = $region24
        $region23: #{clfm_forward.4} parent=11 // pred_region
          _
        $region24: #{clfm_forward.4} parent=11 // pred_fallthru
          _
        // Predicated region
        $region25: #{clfm_forward.4} parent=11 // pred_check
          %p474 = pneg %p200
        $region26: #{clfm_forward.4} parent=11 // pred_check_branch
          %476 = sbr.rel (%p474) target = $region28
        $region27: #{clfm_forward.4} parent=11 // pred_region
          _
        $region28: #{clfm_forward.4} parent=11 // pred_fallthru
          _
        // Predicated region
        $region29: #{clfm_forward.4} parent=11 // pred_check
          %p477 = pneg %p221
        $region30: #{clfm_forward.4} parent=11 // pred_check_branch
          %479 = sbr.rel (%p477) target = $region32
        $region31: #{clfm_forward.4} parent=11 // pred_region
          _
        $region32: #{clfm_forward.4} parent=11 // pred_fallthru
          _
        // Predicated region
        $region33: #{clfm_forward.4} parent=11 // pred_check
          %p480 = pneg %p242
        $region34: #{clfm_forward.4} parent=11 // pred_check_branch
          %482 = sbr.rel (%p480) target = $region36
        $region35: #{clfm_forward.4} parent=11 // pred_region
          _
        $region36: #{clfm_forward.4} parent=11 // pred_fallthru
          _
        // Predicated region
        $region37: #{clfm_forward.4} parent=11 // pred_check
          %p483 = pneg %p263
        $region38: #{clfm_forward.4} parent=11 // pred_check_branch
          %485 = sbr.rel (%p483) target = $region40
        $region39: #{clfm_forward.4} parent=11 // pred_region
          _
        $region40: #{clfm_forward.4} parent=11 // pred_fallthru
          _
        // Predicated region
        $region41: #{clfm_forward.4} parent=11 // pred_check
          %p486 = pneg %p284
        $region42: #{clfm_forward.4} parent=11 // pred_check_branch
          %488 = sbr.rel (%p486) target = $region44
        $region43: #{clfm_forward.4} parent=11 // pred_region
          _
        $region44: #{clfm_forward.4} parent=11 // pred_fallthru
          _
        // Predicated region
        $region45: #{clfm_forward.4} parent=11 // pred_check
          %p489 = pneg %p305
        $region46: #{clfm_forward.4} parent=11 // pred_check_branch
          %491 = sbr.rel (%p489) target = $region48
        $region47: #{clfm_forward.4} parent=11 // pred_region
          _
        $region48: #{clfm_forward.4} parent=11 // pred_fallthru
          _
        // Predicated region
        $region49: #{clfm_forward.4} parent=11 // pred_check
          %p492 = pneg %p326
        $region50: #{clfm_forward.4} parent=11 // pred_check_branch
          %494 = sbr.rel (%p492) target = $region52
        $region51: #{clfm_forward.4} parent=11 // pred_region
          _
        $region52: #{clfm_forward.4} parent=11 // pred_fallthru
          _
        // Predicated region
        $region53: #{clfm_forward.4} parent=11 // pred_check
          %p495 = pneg %p347
        $region54: #{clfm_forward.4} parent=11 // pred_check_branch
          %497 = sbr.rel (%p495) target = $region56
        $region55: #{clfm_forward.4} parent=11 // pred_region
          _
        $region56: #{clfm_forward.4} parent=11 // pred_fallthru
          _
        // Predicated region
        $region57: #{clfm_forward.4} parent=11 // pred_check
          %p498 = pneg %p368
        $region58: #{clfm_forward.4} parent=11 // pred_check_branch
          %500 = sbr.rel (%p498) target = $region60
        $region59: #{clfm_forward.4} parent=11 // pred_region
          _
        $region60: #{clfm_forward.4} parent=11 // pred_fallthru
          _
      $region12: #{clfm_forward.4} parent=5 // pred_fallthru
        _
      %p501 = scmp.lt.s32.totalorder %s24, 4
      // Predicated region
      $region61: #{clfm_forward.4} parent=5 // pred_check
        %p502 = pneg %p501
      $region62: #{clfm_forward.4} parent=5 // pred_check_branch
        %504 = sbr.rel (%p502) target = $region64
      $region63: #{clfm_forward.4} parent=5 // pred_region
        // Predicated region
        $region65: #{clfm_forward.4} parent=63 // pred_check
          %p505 = pneg %p56
        $region66: #{clfm_forward.4} parent=63 // pred_check_branch
          %507 = sbr.rel (%p505) target = $region68
        $region67: #{clfm_forward.4} parent=63 // pred_region
          %p508 = scmp.lt.s32.totalorder %s31, 1
          %s509 = scalar_select %p508, %s31, 1
          %s510 = smul.addr %s509, 3
          %s511 = smul.addr %s510, 2
          %s512 = scalar_lea.vmem %s0, %s511
        $region68: #{clfm_forward.4} parent=63 // pred_fallthru
          _
        // Predicated region
        $region69: #{clfm_forward.4} parent=63 // pred_check
          %p513 = pneg %p84
        $region70: #{clfm_forward.4} parent=63 // pred_check_branch
          %515 = sbr.rel (%p513) target = $region72
        $region71: #{clfm_forward.4} parent=63 // pred_region
          %s516 = sand.u32 %s74, 1
          %s517 = sand.u32 %s74, 1
          %s518 = smul.addr %s517, 32
          %s519 = scalar_lea.vmem [#allocation6], %s518
          %s520 = smul.u32 2, %s32
          %s521 = smul.addr %s31, 8
          %s522 = sadd.s32 %s520, %s521
          %s523 = smul.addr %s522, 8
          %s524 = scalar_lea.vmem %s1, %s523
          // Predicated region
          $region73: #{clfm_forward.4} parent=71 // pred_check
            _
          $region74: #{clfm_forward.4} parent=71 // pred_check_branch
            %526 = sbr.rel (0) target = $region76
          $region75: #{clfm_forward.4} parent=71 // pred_region
            // Predicated region
            $region77: #{clfm_forward.4} parent=75 // pred_check
              _
            $region78: #{clfm_forward.4} parent=75 // pred_check_branch
              %528 = sbr.rel (0) target = $region80
            $region79: #{clfm_forward.4} parent=75 // pred_region
              loop: start=0, step=1, limit=1
              $region81: #{clfm_forward.4} parent=79 // loop_pre_header
                _
              $region82: #{clfm_forward.4} parent=79 // loop_header
                %s530 = sphi 0, %s534
                %p531 = scmp.ge.s32.totalorder %s530, 1
                %s535 = sphi %s524, %s524
                %s536 = sphi %s519, %s519
              $region83: #{clfm_forward.4} parent=79 // loop_header_branch
                %533 = sbr.rel (%p531) target = $region87
              $region84: #{clfm_forward.4} parent=79 // loop_body
                %v537 = vld [vmem:[%s535] sm:$0xff]
                %538 = vst [vmem:[%s536] sm:$0xff] %v537
                %v539 = vld [vmem:[%s535 + $0x8] sm:$0xff]
                %540 = vst [vmem:[%s536 + $0x8] sm:$0xff] %v539
                %v541 = vld [vmem:[%s535 + $0x20] sm:$0xff]
                %542 = vst [vmem:[%s536 + $0x10] sm:$0xff] %v541
                %v543 = vld [vmem:[%s535 + $0x28] sm:$0xff]
                %544 = vst [vmem:[%s536 + $0x18] sm:$0xff] %v543
              $region85: #{clfm_forward.4} parent=79 // loop_footer
                %s534 = sadd.s32 1, %s530
              $region86: #{clfm_forward.4} parent=79 // loop_footer_branch
                %529 = sbr.rel target = $region82
              $region87: #{clfm_forward.4} parent=79 // loop_exit
                _
            $region80: #{clfm_forward.4} parent=75 // pred_fallthru
              _
            // Predicated region
            $region88: #{clfm_forward.4} parent=75 // pred_check
              _
            $region89: #{clfm_forward.4} parent=75 // pred_check_branch
              %546 = sbr.rel target = $region91
            $region90: #{clfm_forward.4} parent=75 // pred_region
              _
            $region91: #{clfm_forward.4} parent=75 // pred_fallthru
              _
          $region76: #{clfm_forward.4} parent=71 // pred_fallthru
            _
          %547 = vnop
        $region72: #{clfm_forward.4} parent=63 // pred_fallthru
          _
        // Predicated region
        $region92: #{clfm_forward.4} parent=63 // pred_check
          %p548 = pneg %p110
        $region93: #{clfm_forward.4} parent=63 // pred_check_branch
          %550 = sbr.rel (%p548) target = $region95
        $region94: #{clfm_forward.4} parent=63 // pred_region
          %p551 = scmp.lt.s32.totalorder %s31, 1
          %s552 = scalar_select %p551, %s31, 1
          %s553 = smul.addr %s552, 12
          %s554 = smul.addr %s553, 8
          %s555 = scalar_lea.vmem %s2, %s554
        $region95: #{clfm_forward.4} parent=63 // pred_fallthru
          _
      $region64: #{clfm_forward.4} parent=5 // pred_fallthru
        _
      %p556 = scmp.le.s32.totalorder 1, %s24
      %p557 = scmp.lt.s32.totalorder %s24, 5
      %p558 = pnand %p556, %p557
      %p559 = pneg %p558
      // Predicated region
      $region96: #{clfm_forward.4} parent=5 // pred_check
        _
      $region97: #{clfm_forward.4} parent=5 // pred_check_branch
        %561 = sbr.rel (%p558) target = $region99
      $region98: #{clfm_forward.4} parent=5 // pred_region
        %s562 = ssub.s32 %s24, 1
        %s563 = sand.u32 %s77, 1
        %s564 = sand.u32 %s77, 1
        %s565 = smul.addr %s564, 32
        %s566 = scalar_lea.vmem [#allocation6], %s565
        // Predicated region
        $region100: #{clfm_forward.4} parent=98 // pred_check
          %p567 = pneg %p90
        $region101: #{clfm_forward.4} parent=98 // pred_check_branch
          %569 = sbr.rel (%p567) target = $region103
        $region102: #{clfm_forward.4} parent=98 // pred_region
          _
        $region103: #{clfm_forward.4} parent=98 // pred_fallthru
          _
        %p570 = scmp.lt.s32.totalorder %s33, 1
        %s571 = scalar_select %p570, %s33, 1
        %s572 = smul.addr %s571, 3
        %s573 = smul.addr %s572, 2
        %s574 = scalar_lea.vmem %s0, %s573
        %p575 = pneg %p62
        %p576 = pneg %p59
        %s577 = sand.u32 %s77, 1
        %s578 = sand.u32 %s77, 1
        %s579 = smul.addr %s578, 32
        %s580 = scalar_lea.vmem [#allocation6], %s579
        %p581 = pneg %p90
        %p582 = pneg %p87
        %p583 = scmp.lt.s32.totalorder %s33, 1
        %s584 = scalar_select %p583, %s33, 1
        %s585 = smul.addr %s584, 12
        %s586 = smul.addr %s585, 8
        %s587 = scalar_lea.vmem %s2, %s586
        %p588 = pneg %p116
        %p589 = pneg %p113
        %p590 = pneg %p137
        %p591 = pneg %p134
        %p592 = pneg %p158
        %p593 = pneg %p155
        %p594 = pneg %p179
        %p595 = pneg %p176
        %p596 = pneg %p200
        %p597 = pneg %p197
        %p598 = pneg %p221
        %p599 = pneg %p218
        %p600 = pneg %p242
        %p601 = pneg %p239
        %p602 = pneg %p263
        %p603 = pneg %p260
        %p604 = pneg %p284
        %p605 = pneg %p281
        %p606 = pneg %p305
        %p607 = pneg %p302
        %p608 = pneg %p326
        %p609 = pneg %p323
        %p610 = pneg %p347
        %p611 = pneg %p344
        %p612 = pneg %p368
        %p613 = pneg %p365
        %p614 = pneg %p396
        %p615 = pneg %p393
        %s616 = sand.u32 %s383, 1
        %s617 = sand.u32 %s383, 1
        %s618 = smul.addr %s617, 32
        %s619 = scalar_lea.vmem [#allocation7], %s618
        %p620 = pneg %p424
        %p621 = pneg %p421
        %s622 = sand.u32 %s411, 1
        %s623 = sand.u32 %s411, 1
        %s624 = smul.addr %s623, 32
        %s625 = scalar_lea.vmem [#allocation8], %s624
        %p626 = pneg %p450
        %p627 = pneg %p447
        %p628 = scmp.lt.s32.totalorder %s33, 1
        %s629 = scalar_select %p628, %s33, 1
        %s630 = smul.addr %s629, 2
        %s631 = smul.addr %s630, 8
        %s632 = scalar_lea.vmem %s17, %s631
        %p633 = scmp.lt.s32.totalorder %s33, 1
        %s634 = scalar_select %p633, %s33, 1
        %s635 = smul.addr %s634, 3
        %s636 = smul.addr %s635, 2
        %s637 = scalar_lea.vmem %s0, %s636
        %s638 = smul.u32 2, %s34
        %p639 = scmp.lt.s32.totalorder %s33, 1
        %s640 = scalar_select %p639, %s33, 1
        %s641 = smul.addr %s640, 12
        %s642 = smul.addr %s641, 8
        %s643 = scalar_lea.vmem %s2, %s642
        %s644 = smul.u32 2, %s34
        %s645 = smul.u32 2, %s34
        %p646 = scmp.lt.s32.totalorder %s33, 1
        %s647 = scalar_select %p646, %s33, 1
        %s648 = smul.addr %s647, 2
        %s649 = smul.addr %s648, 8
        %s650 = scalar_lea.vmem %s17, %s649
        %s651 = smul.u32 %s34, 256
        %s652 = scvt.s32.f32 %s651
        %v653 = vlaneseq
        %v654 = vand.u32 %v653, 127
        %v655 = vadd.s32 %v654, 128
        %v656 = vcvt.s32.f32 %v654
        %v657 = vcvt.s32.f32 %v655
        %v658 = vstv %s652
        %v659 = vadd.f32 %v656, %v658
        %v660 = vadd.f32 %v657, %v658
        %v661 = vrcp.pop 32.0
        %v662 = vmul.f32 32.0, %v661
        %v663 = vsub.f32 1.0, %v662
        %v664 = vmul.f32 %v661, %v663
        %v665 = vadd.f32 %v661, %v664
        %vm666 = vweird.f32 %v661
        %v667 = vsel %vm666, %v661, %v665
        %v668 = vmul.f32 %v659, %v667
        %v669 = vmul.f32 %v660, %v667
        %v670 = vfloor.f32 %v668
        %v671 = vfloor.f32 %v669
        %v672 = vmul.f32 %v670, 32.0
        %v673 = vmul.f32 %v671, 32.0
        %v674 = vsub.f32 %v659, %v672
        %v675 = vsub.f32 %v660, %v673
        %v676 = vlaneseq
        %v677 = vshrl.u32 %v676, 7
        %v678 = vadd.s32 %v677, 8
        %v679 = vadd.s32 %v677, 16
        %v680 = vadd.s32 %v677, 24
        %v681 = vadd.s32 %v677, 32
        %v682 = vadd.s32 %v677, 40
        %v683 = vadd.s32 %v677, 48
        %v684 = vadd.s32 %v677, 56
        %v685 = vadd.s32 %v677, 64
        %v686 = vadd.s32 %v677, 72
        %v687 = vadd.s32 %v677, 80
        %v688 = vadd.s32 %v677, 88
        %v689 = vadd.s32 %v677, 96
        %v690 = vadd.s32 %v677, 104
        %v691 = vadd.s32 %v677, 112
        %v692 = vadd.s32 %v677, 120
        %v693 = vadd.s32 %v677, 128
        %v694 = vadd.s32 %v677, 136
        %v695 = vadd.s32 %v677, 144
        %v696 = vadd.s32 %v677, 152
        %v697 = vadd.s32 %v677, 160
        %v698 = vadd.s32 %v677, 168
        %v699 = vadd.s32 %v677, 176
        %v700 = vadd.s32 %v677, 184
        %v701 = vadd.s32 %v677, 192
        %v702 = vadd.s32 %v677, 200
        %v703 = vadd.s32 %v677, 208
        %v704 = vadd.s32 %v677, 216
        %v705 = vadd.s32 %v677, 224
        %v706 = vadd.s32 %v677, 232
        %v707 = vadd.s32 %v677, 240
        %v708 = vadd.s32 %v677, 248
        %v709 = vcvt.s32.f32 %v677
        %v710 = vcvt.s32.f32 %v678
        %v711 = vcvt.s32.f32 %v679
        %v712 = vcvt.s32.f32 %v680
        %v713 = vcvt.s32.f32 %v681
        %v714 = vcvt.s32.f32 %v682
        %v715 = vcvt.s32.f32 %v683
        %v716 = vcvt.s32.f32 %v684
        %v717 = vcvt.s32.f32 %v685
        %v718 = vcvt.s32.f32 %v686
        %v719 = vcvt.s32.f32 %v687
        %v720 = vcvt.s32.f32 %v688
        %v721 = vcvt.s32.f32 %v689
        %v722 = vcvt.s32.f32 %v690
        %v723 = vcvt.s32.f32 %v691
        %v724 = vcvt.s32.f32 %v692
        %v725 = vcvt.s32.f32 %v693
        %v726 = vcvt.s32.f32 %v694
        %v727 = vcvt.s32.f32 %v695
        %v728 = vcvt.s32.f32 %v696
        %v729 = vcvt.s32.f32 %v697
        %v730 = vcvt.s32.f32 %v698
        %v731 = vcvt.s32.f32 %v699
        %v732 = vcvt.s32.f32 %v700
        %v733 = vcvt.s32.f32 %v701
        %v734 = vcvt.s32.f32 %v702
        %v735 = vcvt.s32.f32 %v703
        %v736 = vcvt.s32.f32 %v704
        %v737 = vcvt.s32.f32 %v705
        %v738 = vcvt.s32.f32 %v706
        %v739 = vcvt.s32.f32 %v707
        %v740 = vcvt.s32.f32 %v708
        %v741 = vadd.f32 %v709, %v658
        %v742 = vadd.f32 %v710, %v658
        %v743 = vadd.f32 %v711, %v658
        %v744 = vadd.f32 %v712, %v658
        %v745 = vadd.f32 %v713, %v658
        %v746 = vadd.f32 %v714, %v658
        %v747 = vadd.f32 %v715, %v658
        %v748 = vadd.f32 %v716, %v658
        %v749 = vadd.f32 %v717, %v658
        %v750 = vadd.f32 %v718, %v658
        %v751 = vadd.f32 %v719, %v658
        %v752 = vadd.f32 %v720, %v658
        %v753 = vadd.f32 %v721, %v658
        %v754 = vadd.f32 %v722, %v658
        %v755 = vadd.f32 %v723, %v658
        %v756 = vadd.f32 %v724, %v658
        %v757 = vadd.f32 %v725, %v658
        %v758 = vadd.f32 %v726, %v658
        %v759 = vadd.f32 %v727, %v658
        %v760 = vadd.f32 %v728, %v658
        %v761 = vadd.f32 %v729, %v658
        %v762 = vadd.f32 %v730, %v658
        %v763 = vadd.f32 %v731, %v658
        %v764 = vadd.f32 %v732, %v658
        %v765 = vadd.f32 %v733, %v658
        %v766 = vadd.f32 %v734, %v658
        %v767 = vadd.f32 %v735, %v658
        %v768 = vadd.f32 %v736, %v658
        %v769 = vadd.f32 %v737, %v658
        %v770 = vadd.f32 %v738, %v658
        %v771 = vadd.f32 %v739, %v658
        %v772 = vadd.f32 %v740, %v658
        %v773 = vmul.f32 %v741, %v667
        %v774 = vmul.f32 %v742, %v667
        %v775 = vmul.f32 %v743, %v667
        %v776 = vmul.f32 %v744, %v667
        %v777 = vmul.f32 %v745, %v667
        %v778 = vmul.f32 %v746, %v667
        %v779 = vmul.f32 %v747, %v667
        %v780 = vmul.f32 %v748, %v667
        %v781 = vmul.f32 %v749, %v667
        %v782 = vmul.f32 %v750, %v667
        %v783 = vmul.f32 %v751, %v667
        %v784 = vmul.f32 %v752, %v667
        %v785 = vmul.f32 %v753, %v667
        %v786 = vmul.f32 %v754, %v667
        %v787 = vmul.f32 %v755, %v667
        %v788 = vmul.f32 %v756, %v667
        %v789 = vmul.f32 %v757, %v667
        %v790 = vmul.f32 %v758, %v667
        %v791 = vmul.f32 %v759, %v667
        %v792 = vmul.f32 %v760, %v667
        %v793 = vmul.f32 %v761, %v667
        %v794 = vmul.f32 %v762, %v667
        %v795 = vmul.f32 %v763, %v667
        %v796 = vmul.f32 %v764, %v667
        %v797 = vmul.f32 %v765, %v667
        %v798 = vmul.f32 %v766, %v667
        %v799 = vmul.f32 %v767, %v667
        %v800 = vmul.f32 %v768, %v667
        %v801 = vmul.f32 %v769, %v667
        %v802 = vmul.f32 %v770, %v667
        %v803 = vmul.f32 %v771, %v667
        %v804 = vmul.f32 %v772, %v667
        %v805 = vfloor.f32 %v773
        %v806 = vfloor.f32 %v774
        %v807 = vfloor.f32 %v775
        %v808 = vfloor.f32 %v776
        %v809 = vfloor.f32 %v777
        %v810 = vfloor.f32 %v778
        %v811 = vfloor.f32 %v779
        %v812 = vfloor.f32 %v780
        %v813 = vfloor.f32 %v781
        %v814 = vfloor.f32 %v782
        %v815 = vfloor.f32 %v783
        %v816 = vfloor.f32 %v784
        %v817 = vfloor.f32 %v785
        %v818 = vfloor.f32 %v786
        %v819 = vfloor.f32 %v787
        %v820 = vfloor.f32 %v788
        %v821 = vfloor.f32 %v789
        %v822 = vfloor.f32 %v790
        %v823 = vfloor.f32 %v791
        %v824 = vfloor.f32 %v792
        %v825 = vfloor.f32 %v793
        %v826 = vfloor.f32 %v794
        %v827 = vfloor.f32 %v795
        %v828 = vfloor.f32 %v796
        %v829 = vfloor.f32 %v797
        %v830 = vfloor.f32 %v798
        %v831 = vfloor.f32 %v799
        %v832 = vfloor.f32 %v800
        %v833 = vfloor.f32 %v801
        %v834 = vfloor.f32 %v802
        %v835 = vfloor.f32 %v803
        %v836 = vfloor.f32 %v804
        %v837 = vmul.f32 %v805, 32.0
        %v838 = vmul.f32 %v806, 32.0
        %v839 = vmul.f32 %v807, 32.0
        %v840 = vmul.f32 %v808, 32.0
        %v841 = vmul.f32 %v809, 32.0
        %v842 = vmul.f32 %v810, 32.0
        %v843 = vmul.f32 %v811, 32.0
        %v844 = vmul.f32 %v812, 32.0
        %v845 = vmul.f32 %v813, 32.0
        %v846 = vmul.f32 %v814, 32.0
        %v847 = vmul.f32 %v815, 32.0
        %v848 = vmul.f32 %v816, 32.0
        %v849 = vmul.f32 %v817, 32.0
        %v850 = vmul.f32 %v818, 32.0
        %v851 = vmul.f32 %v819, 32.0
        %v852 = vmul.f32 %v820, 32.0
        %v853 = vmul.f32 %v821, 32.0
        %v854 = vmul.f32 %v822, 32.0
        %v855 = vmul.f32 %v823, 32.0
        %v856 = vmul.f32 %v824, 32.0
        %v857 = vmul.f32 %v825, 32.0
        %v858 = vmul.f32 %v826, 32.0
        %v859 = vmul.f32 %v827, 32.0
        %v860 = vmul.f32 %v828, 32.0
        %v861 = vmul.f32 %v829, 32.0
        %v862 = vmul.f32 %v830, 32.0
        %v863 = vmul.f32 %v831, 32.0
        %v864 = vmul.f32 %v832, 32.0
        %v865 = vmul.f32 %v833, 32.0
        %v866 = vmul.f32 %v834, 32.0
        %v867 = vmul.f32 %v835, 32.0
        %v868 = vmul.f32 %v836, 32.0
        %v869 = vsub.f32 %v741, %v837
        %v870 = vsub.f32 %v742, %v838
        %v871 = vsub.f32 %v743, %v839
        %v872 = vsub.f32 %v744, %v840
        %v873 = vsub.f32 %v745, %v841
        %v874 = vsub.f32 %v746, %v842
        %v875 = vsub.f32 %v747, %v843
        %v876 = vsub.f32 %v748, %v844
        %v877 = vsub.f32 %v749, %v845
        %v878 = vsub.f32 %v750, %v846
        %v879 = vsub.f32 %v751, %v847
        %v880 = vsub.f32 %v752, %v848
        %v881 = vsub.f32 %v753, %v849
        %v882 = vsub.f32 %v754, %v850
        %v883 = vsub.f32 %v755, %v851
        %v884 = vsub.f32 %v756, %v852
        %v885 = vsub.f32 %v757, %v853
        %v886 = vsub.f32 %v758, %v854
        %v887 = vsub.f32 %v759, %v855
        %v888 = vsub.f32 %v760, %v856
        %v889 = vsub.f32 %v761, %v857
        %v890 = vsub.f32 %v762, %v858
        %v891 = vsub.f32 %v763, %v859
        %v892 = vsub.f32 %v764, %v860
        %v893 = vsub.f32 %v765, %v861
        %v894 = vsub.f32 %v766, %v862
        %v895 = vsub.f32 %v767, %v863
        %v896 = vsub.f32 %v768, %v864
        %v897 = vsub.f32 %v769, %v865
        %v898 = vsub.f32 %v770, %v866
        %v899 = vsub.f32 %v771, %v867
        %v900 = vsub.f32 %v772, %v868
        %vm901 = vcmask 7168
        %902 = vst.msk [vmem:[#allocation2] sm:$0xff] %vm901, inf
        %903 = vst.msk [vmem:[#allocation2 + $0x8] sm:$0xff] %vm901, inf
        %904 = vst.msk [vmem:[#allocation2 + $0x10] sm:$0xff] %vm901, inf
        %905 = vst.msk [vmem:[#allocation2 + $0x18] sm:$0xff] %vm901, inf
        %906 = vst.msk [vmem:[#allocation2 + $0x20] sm:$0xff] %vm901, inf
        %907 = vst.msk [vmem:[#allocation2 + $0x28] sm:$0xff] %vm901, inf
        %908 = vst.msk [vmem:[#allocation2 + $0x30] sm:$0xff] %vm901, inf
        %909 = vst.msk [vmem:[#allocation2 + $0x38] sm:$0xff] %vm901, inf
        %910 = vst.msk [vmem:[#allocation2 + $0x40] sm:$0xff] %vm901, inf
        %911 = vst.msk [vmem:[#allocation2 + $0x48] sm:$0xff] %vm901, inf
        %912 = vst.msk [vmem:[#allocation2 + $0x50] sm:$0xff] %vm901, inf
        %913 = vst.msk [vmem:[#allocation2 + $0x58] sm:$0xff] %vm901, inf
        %914 = vst.msk [vmem:[#allocation2 + $0x60] sm:$0xff] %vm901, inf
        %915 = vst.msk [vmem:[#allocation2 + $0x68] sm:$0xff] %vm901, inf
        %916 = vst.msk [vmem:[#allocation2 + $0x70] sm:$0xff] %vm901, inf
        %917 = vst.msk [vmem:[#allocation2 + $0x78] sm:$0xff] %vm901, inf
        %918 = vst.msk [vmem:[#allocation2 + $0x80] sm:$0xff] %vm901, inf
        %919 = vst.msk [vmem:[#allocation2 + $0x88] sm:$0xff] %vm901, inf
        %920 = vst.msk [vmem:[#allocation2 + $0x90] sm:$0xff] %vm901, inf
        %921 = vst.msk [vmem:[#allocation2 + $0x98] sm:$0xff] %vm901, inf
        %922 = vst.msk [vmem:[#allocation2 + $0xa0] sm:$0xff] %vm901, inf
        %923 = vst.msk [vmem:[#allocation2 + $0xa8] sm:$0xff] %vm901, inf
        %924 = vst.msk [vmem:[#allocation2 + $0xb0] sm:$0xff] %vm901, inf
        %925 = vst.msk [vmem:[#allocation2 + $0xb8] sm:$0xff] %vm901, inf
        %926 = vst.msk [vmem:[#allocation2 + $0xc0] sm:$0xff] %vm901, inf
        %927 = vst.msk [vmem:[#allocation2 + $0xc8] sm:$0xff] %vm901, inf
        %928 = vst.msk [vmem:[#allocation2 + $0xd0] sm:$0xff] %vm901, inf
        %929 = vst.msk [vmem:[#allocation2 + $0xd8] sm:$0xff] %vm901, inf
        %930 = vst.msk [vmem:[#allocation2 + $0xe0] sm:$0xff] %vm901, inf
        %931 = vst.msk [vmem:[#allocation2 + $0xe8] sm:$0xff] %vm901, inf
        %932 = vst.msk [vmem:[#allocation2 + $0xf0] sm:$0xff] %vm901, inf
        %933 = vst.msk [vmem:[#allocation2 + $0xf8] sm:$0xff] %vm901, inf
        %934 = vst.msk [vmem:[#allocation3] sm:$0xff] %vm901, 0.0
        %935 = vst.msk [vmem:[#allocation3 + $0x8] sm:$0xff] %vm901, 0.0
        %936 = vst.msk [vmem:[#allocation3 + $0x10] sm:$0xff] %vm901, 0.0
        %937 = vst.msk [vmem:[#allocation3 + $0x18] sm:$0xff] %vm901, 0.0
        %938 = vst.msk [vmem:[#allocation3 + $0x20] sm:$0xff] %vm901, 0.0
        %939 = vst.msk [vmem:[#allocation3 + $0x28] sm:$0xff] %vm901, 0.0
        %940 = vst.msk [vmem:[#allocation3 + $0x30] sm:$0xff] %vm901, 0.0
        %941 = vst.msk [vmem:[#allocation3 + $0x38] sm:$0xff] %vm901, 0.0
        %942 = vst.msk [vmem:[#allocation3 + $0x40] sm:$0xff] %vm901, 0.0
        %943 = vst.msk [vmem:[#allocation3 + $0x48] sm:$0xff] %vm901, 0.0
        %944 = vst.msk [vmem:[#allocation3 + $0x50] sm:$0xff] %vm901, 0.0
        %945 = vst.msk [vmem:[#allocation3 + $0x58] sm:$0xff] %vm901, 0.0
        %946 = vst.msk [vmem:[#allocation3 + $0x60] sm:$0xff] %vm901, 0.0
        %947 = vst.msk [vmem:[#allocation3 + $0x68] sm:$0xff] %vm901, 0.0
        %948 = vst.msk [vmem:[#allocation3 + $0x70] sm:$0xff] %vm901, 0.0
        %949 = vst.msk [vmem:[#allocation3 + $0x78] sm:$0xff] %vm901, 0.0
        %950 = vst.msk [vmem:[#allocation3 + $0x80] sm:$0xff] %vm901, 0.0
        %951 = vst.msk [vmem:[#allocation3 + $0x88] sm:$0xff] %vm901, 0.0
        %952 = vst.msk [vmem:[#allocation3 + $0x90] sm:$0xff] %vm901, 0.0
        %953 = vst.msk [vmem:[#allocation3 + $0x98] sm:$0xff] %vm901, 0.0
        %954 = vst.msk [vmem:[#allocation3 + $0xa0] sm:$0xff] %vm901, 0.0
        %955 = vst.msk [vmem:[#allocation3 + $0xa8] sm:$0xff] %vm901, 0.0
        %956 = vst.msk [vmem:[#allocation3 + $0xb0] sm:$0xff] %vm901, 0.0
        %957 = vst.msk [vmem:[#allocation3 + $0xb8] sm:$0xff] %vm901, 0.0
        %958 = vst.msk [vmem:[#allocation3 + $0xc0] sm:$0xff] %vm901, 0.0
        %959 = vst.msk [vmem:[#allocation3 + $0xc8] sm:$0xff] %vm901, 0.0
        %960 = vst.msk [vmem:[#allocation3 + $0xd0] sm:$0xff] %vm901, 0.0
        %961 = vst.msk [vmem:[#allocation3 + $0xd8] sm:$0xff] %vm901, 0.0
        %962 = vst.msk [vmem:[#allocation3 + $0xe0] sm:$0xff] %vm901, 0.0
        %963 = vst.msk [vmem:[#allocation3 + $0xe8] sm:$0xff] %vm901, 0.0
        %964 = vst.msk [vmem:[#allocation3 + $0xf0] sm:$0xff] %vm901, 0.0
        %965 = vst.msk [vmem:[#allocation3 + $0xf8] sm:$0xff] %vm901, 0.0
        loop: start=0, step=1, limit=3
        $region104: #{clfm_forward.4} parent=98 // loop_pre_header
          _
        $region105: #{clfm_forward.4} parent=98 // loop_header
          %s967 = sphi 0, %s971
          %p968 = scmp.ge.s32.totalorder %s967, 3
        $region106: #{clfm_forward.4} parent=98 // loop_header_branch
          %970 = sbr.rel (%p968) target = $region110
        $region107: #{clfm_forward.4} parent=98 // loop_body
          %s972 = smul.u32 %s967, 128
          %s973 = sshra.s32 %s972, 7
          %s974 = sand.u32 %s972, 127
          %s975 = smul.addr %s973, 2
          %s976 = scalar_lea.vmem %s637, %s975
          %v977 = vld [vmem:[%s976] sm:$0x1]
          %v978 = vld [vmem:[%s976 + $0x1] sm:$0x1]
          %v979 = vperm.slane %v977, 0
          %v980 = vsub.f32 %v869, %v979
          %v981 = vsub.f32 %v870, %v979
          %v982 = vsub.f32 %v871, %v979
          %v983 = vsub.f32 %v872, %v979
          %v984 = vsub.f32 %v873, %v979
          %v985 = vsub.f32 %v874, %v979
          %v986 = vsub.f32 %v875, %v979
          %v987 = vsub.f32 %v876, %v979
          %v988 = vsub.f32 %v877, %v979
          %v989 = vsub.f32 %v878, %v979
          %v990 = vsub.f32 %v879, %v979
          %v991 = vsub.f32 %v880, %v979
          %v992 = vsub.f32 %v881, %v979
          %v993 = vsub.f32 %v882, %v979
          %v994 = vsub.f32 %v883, %v979
          %v995 = vsub.f32 %v884, %v979
          %v996 = vsub.f32 %v885, %v979
          %v997 = vsub.f32 %v886, %v979
          %v998 = vsub.f32 %v887, %v979
          %v999 = vsub.f32 %v888, %v979
          %v1000 = vsub.f32 %v889, %v979
          %v1001 = vsub.f32 %v890, %v979
          %v1002 = vsub.f32 %v891, %v979
          %v1003 = vsub.f32 %v892, %v979
          %v1004 = vsub.f32 %v893, %v979
          %v1005 = vsub.f32 %v894, %v979
          %v1006 = vsub.f32 %v895, %v979
          %v1007 = vsub.f32 %v896, %v979
          %v1008 = vsub.f32 %v897, %v979
          %v1009 = vsub.f32 %v898, %v979
          %v1010 = vsub.f32 %v899, %v979
          %v1011 = vsub.f32 %v900, %v979
          %v1012 = vmul.f32 %v980, %v980
          %v1013 = vmul.f32 %v981, %v981
          %v1014 = vmul.f32 %v982, %v982
          %v1015 = vmul.f32 %v983, %v983
          %v1016 = vmul.f32 %v984, %v984
          %v1017 = vmul.f32 %v985, %v985
          %v1018 = vmul.f32 %v986, %v986
          %v1019 = vmul.f32 %v987, %v987
          %v1020 = vmul.f32 %v988, %v988
          %v1021 = vmul.f32 %v989, %v989
          %v1022 = vmul.f32 %v990, %v990
          %v1023 = vmul.f32 %v991, %v991
          %v1024 = vmul.f32 %v992, %v992
          %v1025 = vmul.f32 %v993, %v993
          %v1026 = vmul.f32 %v994, %v994
          %v1027 = vmul.f32 %v995, %v995
          %v1028 = vmul.f32 %v996, %v996
          %v1029 = vmul.f32 %v997, %v997
          %v1030 = vmul.f32 %v998, %v998
          %v1031 = vmul.f32 %v999, %v999
          %v1032 = vmul.f32 %v1000, %v1000
          %v1033 = vmul.f32 %v1001, %v1001
          %v1034 = vmul.f32 %v1002, %v1002
          %v1035 = vmul.f32 %v1003, %v1003
          %v1036 = vmul.f32 %v1004, %v1004
          %v1037 = vmul.f32 %v1005, %v1005
          %v1038 = vmul.f32 %v1006, %v1006
          %v1039 = vmul.f32 %v1007, %v1007
          %v1040 = vmul.f32 %v1008, %v1008
          %v1041 = vmul.f32 %v1009, %v1009
          %v1042 = vmul.f32 %v1010, %v1010
          %v1043 = vmul.f32 %v1011, %v1011
          %v1044 = vperm.slane %v978, 0
          %v1045 = vsub.f32 %v805, %v1044
          %v1046 = vsub.f32 %v806, %v1044
          %v1047 = vsub.f32 %v807, %v1044
          %v1048 = vsub.f32 %v808, %v1044
          %v1049 = vsub.f32 %v809, %v1044
          %v1050 = vsub.f32 %v810, %v1044
          %v1051 = vsub.f32 %v811, %v1044
          %v1052 = vsub.f32 %v812, %v1044
          %v1053 = vsub.f32 %v813, %v1044
          %v1054 = vsub.f32 %v814, %v1044
          %v1055 = vsub.f32 %v815, %v1044
          %v1056 = vsub.f32 %v816, %v1044
          %v1057 = vsub.f32 %v817, %v1044
          %v1058 = vsub.f32 %v818, %v1044
          %v1059 = vsub.f32 %v819, %v1044
          %v1060 = vsub.f32 %v820, %v1044
          %v1061 = vsub.f32 %v821, %v1044
          %v1062 = vsub.f32 %v822, %v1044
          %v1063 = vsub.f32 %v823, %v1044
          %v1064 = vsub.f32 %v824, %v1044
          %v1065 = vsub.f32 %v825, %v1044
          %v1066 = vsub.f32 %v826, %v1044
          %v1067 = vsub.f32 %v827, %v1044
          %v1068 = vsub.f32 %v828, %v1044
          %v1069 = vsub.f32 %v829, %v1044
          %v1070 = vsub.f32 %v830, %v1044
          %v1071 = vsub.f32 %v831, %v1044
          %v1072 = vsub.f32 %v832, %v1044
          %v1073 = vsub.f32 %v833, %v1044
          %v1074 = vsub.f32 %v834, %v1044
          %v1075 = vsub.f32 %v835, %v1044
          %v1076 = vsub.f32 %v836, %v1044
          %v1077 = vmul.f32 %v1045, %v1045
          %v1078 = vmul.f32 %v1046, %v1046
          %v1079 = vmul.f32 %v1047, %v1047
          %v1080 = vmul.f32 %v1048, %v1048
          %v1081 = vmul.f32 %v1049, %v1049
          %v1082 = vmul.f32 %v1050, %v1050
          %v1083 = vmul.f32 %v1051, %v1051
          %v1084 = vmul.f32 %v1052, %v1052
          %v1085 = vmul.f32 %v1053, %v1053
          %v1086 = vmul.f32 %v1054, %v1054
          %v1087 = vmul.f32 %v1055, %v1055
          %v1088 = vmul.f32 %v1056, %v1056
          %v1089 = vmul.f32 %v1057, %v1057
          %v1090 = vmul.f32 %v1058, %v1058
          %v1091 = vmul.f32 %v1059, %v1059
          %v1092 = vmul.f32 %v1060, %v1060
          %v1093 = vmul.f32 %v1061, %v1061
          %v1094 = vmul.f32 %v1062, %v1062
          %v1095 = vmul.f32 %v1063, %v1063
          %v1096 = vmul.f32 %v1064, %v1064
          %v1097 = vmul.f32 %v1065, %v1065
          %v1098 = vmul.f32 %v1066, %v1066
          %v1099 = vmul.f32 %v1067, %v1067
          %v1100 = vmul.f32 %v1068, %v1068
          %v1101 = vmul.f32 %v1069, %v1069
          %v1102 = vmul.f32 %v1070, %v1070
          %v1103 = vmul.f32 %v1071, %v1071
          %v1104 = vmul.f32 %v1072, %v1072
          %v1105 = vmul.f32 %v1073, %v1073
          %v1106 = vmul.f32 %v1074, %v1074
          %v1107 = vmul.f32 %v1075, %v1075
          %v1108 = vmul.f32 %v1076, %v1076
          %v1109 = vadd.f32 %v1012, %v1077
          %v1110 = vadd.f32 %v1013, %v1078
          %v1111 = vadd.f32 %v1014, %v1079
          %v1112 = vadd.f32 %v1015, %v1080
          %v1113 = vadd.f32 %v1016, %v1081
          %v1114 = vadd.f32 %v1017, %v1082
          %v1115 = vadd.f32 %v1018, %v1083
          %v1116 = vadd.f32 %v1019, %v1084
          %v1117 = vadd.f32 %v1020, %v1085
          %v1118 = vadd.f32 %v1021, %v1086
          %v1119 = vadd.f32 %v1022, %v1087
          %v1120 = vadd.f32 %v1023, %v1088
          %v1121 = vadd.f32 %v1024, %v1089
          %v1122 = vadd.f32 %v1025, %v1090
          %v1123 = vadd.f32 %v1026, %v1091
          %v1124 = vadd.f32 %v1027, %v1092
          %v1125 = vadd.f32 %v1028, %v1093
          %v1126 = vadd.f32 %v1029, %v1094
          %v1127 = vadd.f32 %v1030, %v1095
          %v1128 = vadd.f32 %v1031, %v1096
          %v1129 = vadd.f32 %v1032, %v1097
          %v1130 = vadd.f32 %v1033, %v1098
          %v1131 = vadd.f32 %v1034, %v1099
          %v1132 = vadd.f32 %v1035, %v1100
          %v1133 = vadd.f32 %v1036, %v1101
          %v1134 = vadd.f32 %v1037, %v1102
          %v1135 = vadd.f32 %v1038, %v1103
          %v1136 = vadd.f32 %v1039, %v1104
          %v1137 = vadd.f32 %v1040, %v1105
          %v1138 = vadd.f32 %v1041, %v1106
          %v1139 = vadd.f32 %v1042, %v1107
          %v1140 = vadd.f32 %v1043, %v1108
          %1141 = vmin.xlane.f32.xlu0 %v1109
          %v1142 = vpop.xlane.xlu0 %1141
          %1143 = vmin.xlane.f32.xlu0 %v1110
          %v1144 = vpop.xlane.xlu0 %1143
          %1145 = vmin.xlane.f32.xlu0 %v1111
          %v1146 = vpop.xlane.xlu0 %1145
          %1147 = vmin.xlane.f32.xlu0 %v1112
          %v1148 = vpop.xlane.xlu0 %1147
          %1149 = vmin.xlane.f32.xlu0 %v1113
          %v1150 = vpop.xlane.xlu0 %1149
          %1151 = vmin.xlane.f32.xlu0 %v1114
          %v1152 = vpop.xlane.xlu0 %1151
          %1153 = vmin.xlane.f32.xlu0 %v1115
          %v1154 = vpop.xlane.xlu0 %1153
          %1155 = vmin.xlane.f32.xlu0 %v1116
          %v1156 = vpop.xlane.xlu0 %1155
          %1157 = vmin.xlane.f32.xlu0 %v1117
          %v1158 = vpop.xlane.xlu0 %1157
          %1159 = vmin.xlane.f32.xlu0 %v1118
          %v1160 = vpop.xlane.xlu0 %1159
          %1161 = vmin.xlane.f32.xlu0 %v1119
          %v1162 = vpop.xlane.xlu0 %1161
          %1163 = vmin.xlane.f32.xlu0 %v1120
          %v1164 = vpop.xlane.xlu0 %1163
          %1165 = vmin.xlane.f32.xlu0 %v1121
          %v1166 = vpop.xlane.xlu0 %1165
          %1167 = vmin.xlane.f32.xlu0 %v1122
          %v1168 = vpop.xlane.xlu0 %1167
          %1169 = vmin.xlane.f32.xlu0 %v1123
          %v1170 = vpop.xlane.xlu0 %1169
          %1171 = vmin.xlane.f32.xlu0 %v1124
          %v1172 = vpop.xlane.xlu0 %1171
          %1173 = vmin.xlane.f32.xlu0 %v1125
          %v1174 = vpop.xlane.xlu0 %1173
          %1175 = vmin.xlane.f32.xlu0 %v1126
          %v1176 = vpop.xlane.xlu0 %1175
          %1177 = vmin.xlane.f32.xlu0 %v1127
          %v1178 = vpop.xlane.xlu0 %1177
          %1179 = vmin.xlane.f32.xlu0 %v1128
          %v1180 = vpop.xlane.xlu0 %1179
          %1181 = vmin.xlane.f32.xlu0 %v1129
          %v1182 = vpop.xlane.xlu0 %1181
          %1183 = vmin.xlane.f32.xlu0 %v1130
          %v1184 = vpop.xlane.xlu0 %1183
          %1185 = vmin.xlane.f32.xlu0 %v1131
          %v1186 = vpop.xlane.xlu0 %1185
          %1187 = vmin.xlane.f32.xlu0 %v1132
          %v1188 = vpop.xlane.xlu0 %1187
          %1189 = vmin.xlane.f32.xlu0 %v1133
          %v1190 = vpop.xlane.xlu0 %1189
          %1191 = vmin.xlane.f32.xlu0 %v1134
          %v1192 = vpop.xlane.xlu0 %1191
          %1193 = vmin.xlane.f32.xlu0 %v1135
          %v1194 = vpop.xlane.xlu0 %1193
          %1195 = vmin.xlane.f32.xlu0 %v1136
          %v1196 = vpop.xlane.xlu0 %1195
          %1197 = vmin.xlane.f32.xlu0 %v1137
          %v1198 = vpop.xlane.xlu0 %1197
          %1199 = vmin.xlane.f32.xlu0 %v1138
          %v1200 = vpop.xlane.xlu0 %1199
          %1201 = vmin.xlane.f32.xlu0 %v1139
          %v1202 = vpop.xlane.xlu0 %1201
          %1203 = vmin.xlane.f32.xlu0 %v1140
          %v1204 = vpop.xlane.xlu0 %1203
          %v1205 = vstv %s972
          %v1206 = vadd.s32 %v654, %v1205
          %v1207 = vcvt.s32.f32 %v1206
          %vm1208 = vcmp.eq.f32.partialorder %v1109, %v1142
          %vm1209 = vcmp.eq.f32.partialorder %v1110, %v1144
          %vm1210 = vcmp.eq.f32.partialorder %v1111, %v1146
          %vm1211 = vcmp.eq.f32.partialorder %v1112, %v1148
          %vm1212 = vcmp.eq.f32.partialorder %v1113, %v1150
          %vm1213 = vcmp.eq.f32.partialorder %v1114, %v1152
          %vm1214 = vcmp.eq.f32.partialorder %v1115, %v1154
          %vm1215 = vcmp.eq.f32.partialorder %v1116, %v1156
          %vm1216 = vcmp.eq.f32.partialorder %v1117, %v1158
          %vm1217 = vcmp.eq.f32.partialorder %v1118, %v1160
          %vm1218 = vcmp.eq.f32.partialorder %v1119, %v1162
          %vm1219 = vcmp.eq.f32.partialorder %v1120, %v1164
          %vm1220 = vcmp.eq.f32.partialorder %v1121, %v1166
          %vm1221 = vcmp.eq.f32.partialorder %v1122, %v1168
          %vm1222 = vcmp.eq.f32.partialorder %v1123, %v1170
          %vm1223 = vcmp.eq.f32.partialorder %v1124, %v1172
          %vm1224 = vcmp.eq.f32.partialorder %v1125, %v1174
          %vm1225 = vcmp.eq.f32.partialorder %v1126, %v1176
          %vm1226 = vcmp.eq.f32.partialorder %v1127, %v1178
          %vm1227 = vcmp.eq.f32.partialorder %v1128, %v1180
          %vm1228 = vcmp.eq.f32.partialorder %v1129, %v1182
          %vm1229 = vcmp.eq.f32.partialorder %v1130, %v1184
          %vm1230 = vcmp.eq.f32.partialorder %v1131, %v1186
          %vm1231 = vcmp.eq.f32.partialorder %v1132, %v1188
          %vm1232 = vcmp.eq.f32.partialorder %v1133, %v1190
          %vm1233 = vcmp.eq.f32.partialorder %v1134, %v1192
          %vm1234 = vcmp.eq.f32.partialorder %v1135, %v1194
          %vm1235 = vcmp.eq.f32.partialorder %v1136, %v1196
          %vm1236 = vcmp.eq.f32.partialorder %v1137, %v1198
          %vm1237 = vcmp.eq.f32.partialorder %v1138, %v1200
          %vm1238 = vcmp.eq.f32.partialorder %v1139, %v1202
          %vm1239 = vcmp.eq.f32.partialorder %v1140, %v1204
          %v1240 = vsel %vm1208, %v1207, 384.0
          %v1241 = vsel %vm1209, %v1207, 384.0
          %v1242 = vsel %vm1210, %v1207, 384.0
          %v1243 = vsel %vm1211, %v1207, 384.0
          %v1244 = vsel %vm1212, %v1207, 384.0
          %v1245 = vsel %vm1213, %v1207, 384.0
          %v1246 = vsel %vm1214, %v1207, 384.0
          %v1247 = vsel %vm1215, %v1207, 384.0
          %v1248 = vsel %vm1216, %v1207, 384.0
          %v1249 = vsel %vm1217, %v1207, 384.0
          %v1250 = vsel %vm1218, %v1207, 384.0
          %v1251 = vsel %vm1219, %v1207, 384.0
          %v1252 = vsel %vm1220, %v1207, 384.0
          %v1253 = vsel %vm1221, %v1207, 384.0
          %v1254 = vsel %vm1222, %v1207, 384.0
          %v1255 = vsel %vm1223, %v1207, 384.0
          %v1256 = vsel %vm1224, %v1207, 384.0
          %v1257 = vsel %vm1225, %v1207, 384.0
          %v1258 = vsel %vm1226, %v1207, 384.0
          %v1259 = vsel %vm1227, %v1207, 384.0
          %v1260 = vsel %vm1228, %v1207, 384.0
          %v1261 = vsel %vm1229, %v1207, 384.0
          %v1262 = vsel %vm1230, %v1207, 384.0
          %v1263 = vsel %vm1231, %v1207, 384.0
          %v1264 = vsel %vm1232, %v1207, 384.0
          %v1265 = vsel %vm1233, %v1207, 384.0
          %v1266 = vsel %vm1234, %v1207, 384.0
          %v1267 = vsel %vm1235, %v1207, 384.0
          %v1268 = vsel %vm1236, %v1207, 384.0
          %v1269 = vsel %vm1237, %v1207, 384.0
          %v1270 = vsel %vm1238, %v1207, 384.0
          %v1271 = vsel %vm1239, %v1207, 384.0
          %1272 = vmin.xlane.f32.xlu0 %v1240
          %v1273 = vpop.xlane.xlu0 %1272
          %1274 = vmin.xlane.f32.xlu0 %v1241
          %v1275 = vpop.xlane.xlu0 %1274
          %1276 = vmin.xlane.f32.xlu0 %v1242
          %v1277 = vpop.xlane.xlu0 %1276
          %1278 = vmin.xlane.f32.xlu0 %v1243
          %v1279 = vpop.xlane.xlu0 %1278
          %1280 = vmin.xlane.f32.xlu0 %v1244
          %v1281 = vpop.xlane.xlu0 %1280
          %1282 = vmin.xlane.f32.xlu0 %v1245
          %v1283 = vpop.xlane.xlu0 %1282
          %1284 = vmin.xlane.f32.xlu0 %v1246
          %v1285 = vpop.xlane.xlu0 %1284
          %1286 = vmin.xlane.f32.xlu0 %v1247
          %v1287 = vpop.xlane.xlu0 %1286
          %1288 = vmin.xlane.f32.xlu0 %v1248
          %v1289 = vpop.xlane.xlu0 %1288
          %1290 = vmin.xlane.f32.xlu0 %v1249
          %v1291 = vpop.xlane.xlu0 %1290
          %1292 = vmin.xlane.f32.xlu0 %v1250
          %v1293 = vpop.xlane.xlu0 %1292
          %1294 = vmin.xlane.f32.xlu0 %v1251
          %v1295 = vpop.xlane.xlu0 %1294
          %1296 = vmin.xlane.f32.xlu0 %v1252
          %v1297 = vpop.xlane.xlu0 %1296
          %1298 = vmin.xlane.f32.xlu0 %v1253
          %v1299 = vpop.xlane.xlu0 %1298
          %1300 = vmin.xlane.f32.xlu0 %v1254
          %v1301 = vpop.xlane.xlu0 %1300
          %1302 = vmin.xlane.f32.xlu0 %v1255
          %v1303 = vpop.xlane.xlu0 %1302
          %1304 = vmin.xlane.f32.xlu0 %v1256
          %v1305 = vpop.xlane.xlu0 %1304
          %1306 = vmin.xlane.f32.xlu0 %v1257
          %v1307 = vpop.xlane.xlu0 %1306
          %1308 = vmin.xlane.f32.xlu0 %v1258
          %v1309 = vpop.xlane.xlu0 %1308
          %1310 = vmin.xlane.f32.xlu0 %v1259
          %v1311 = vpop.xlane.xlu0 %1310
          %1312 = vmin.xlane.f32.xlu0 %v1260
          %v1313 = vpop.xlane.xlu0 %1312
          %1314 = vmin.xlane.f32.xlu0 %v1261
          %v1315 = vpop.xlane.xlu0 %1314
          %1316 = vmin.xlane.f32.xlu0 %v1262
          %v1317 = vpop.xlane.xlu0 %1316
          %1318 = vmin.xlane.f32.xlu0 %v1263
          %v1319 = vpop.xlane.xlu0 %1318
          %1320 = vmin.xlane.f32.xlu0 %v1264
          %v1321 = vpop.xlane.xlu0 %1320
          %1322 = vmin.xlane.f32.xlu0 %v1265
          %v1323 = vpop.xlane.xlu0 %1322
          %1324 = vmin.xlane.f32.xlu0 %v1266
          %v1325 = vpop.xlane.xlu0 %1324
          %1326 = vmin.xlane.f32.xlu0 %v1267
          %v1327 = vpop.xlane.xlu0 %1326
          %1328 = vmin.xlane.f32.xlu0 %v1268
          %v1329 = vpop.xlane.xlu0 %1328
          %1330 = vmin.xlane.f32.xlu0 %v1269
          %v1331 = vpop.xlane.xlu0 %1330
          %1332 = vmin.xlane.f32.xlu0 %v1270
          %v1333 = vpop.xlane.xlu0 %1332
          %1334 = vmin.xlane.f32.xlu0 %v1271
          %v1335 = vpop.xlane.xlu0 %1334
          %v1336 = vld [vmem:[#allocation2] sm:$0xff]
          %v1337 = vld [vmem:[#allocation2 + $0x8] sm:$0xff]
          %v1338 = vld [vmem:[#allocation2 + $0x10] sm:$0xff]
          %v1339 = vld [vmem:[#allocation2 + $0x18] sm:$0xff]
          %v1340 = vld [vmem:[#allocation2 + $0x20] sm:$0xff]
          %v1341 = vld [vmem:[#allocation2 + $0x28] sm:$0xff]
          %v1342 = vld [vmem:[#allocation2 + $0x30] sm:$0xff]
          %v1343 = vld [vmem:[#allocation2 + $0x38] sm:$0xff]
          %v1344 = vld [vmem:[#allocation2 + $0x40] sm:$0xff]
          %v1345 = vld [vmem:[#allocation2 + $0x48] sm:$0xff]
          %v1346 = vld [vmem:[#allocation2 + $0x50] sm:$0xff]
          %v1347 = vld [vmem:[#allocation2 + $0x58] sm:$0xff]
          %v1348 = vld [vmem:[#allocation2 + $0x60] sm:$0xff]
          %v1349 = vld [vmem:[#allocation2 + $0x68] sm:$0xff]
          %v1350 = vld [vmem:[#allocation2 + $0x70] sm:$0xff]
          %v1351 = vld [vmem:[#allocation2 + $0x78] sm:$0xff]
          %v1352 = vld [vmem:[#allocation2 + $0x80] sm:$0xff]
          %v1353 = vld [vmem:[#allocation2 + $0x88] sm:$0xff]
          %v1354 = vld [vmem:[#allocation2 + $0x90] sm:$0xff]
          %v1355 = vld [vmem:[#allocation2 + $0x98] sm:$0xff]
          %v1356 = vld [vmem:[#allocation2 + $0xa0] sm:$0xff]
          %v1357 = vld [vmem:[#allocation2 + $0xa8] sm:$0xff]
          %v1358 = vld [vmem:[#allocation2 + $0xb0] sm:$0xff]
          %v1359 = vld [vmem:[#allocation2 + $0xb8] sm:$0xff]
          %v1360 = vld [vmem:[#allocation2 + $0xc0] sm:$0xff]
          %v1361 = vld [vmem:[#allocation2 + $0xc8] sm:$0xff]
          %v1362 = vld [vmem:[#allocation2 + $0xd0] sm:$0xff]
          %v1363 = vld [vmem:[#allocation2 + $0xd8] sm:$0xff]
          %v1364 = vld [vmem:[#allocation2 + $0xe0] sm:$0xff]
          %v1365 = vld [vmem:[#allocation2 + $0xe8] sm:$0xff]
          %v1366 = vld [vmem:[#allocation2 + $0xf0] sm:$0xff]
          %v1367 = vld [vmem:[#allocation2 + $0xf8] sm:$0xff]
          %vm1368 = vcmp.lt.f32.partialorder %v1142, %v1336
          %vm1369 = vcmp.lt.f32.partialorder %v1144, %v1337
          %vm1370 = vcmp.lt.f32.partialorder %v1146, %v1338
          %vm1371 = vcmp.lt.f32.partialorder %v1148, %v1339
          %vm1372 = vcmp.lt.f32.partialorder %v1150, %v1340
          %vm1373 = vcmp.lt.f32.partialorder %v1152, %v1341
          %vm1374 = vcmp.lt.f32.partialorder %v1154, %v1342
          %vm1375 = vcmp.lt.f32.partialorder %v1156, %v1343
          %vm1376 = vcmp.lt.f32.partialorder %v1158, %v1344
          %vm1377 = vcmp.lt.f32.partialorder %v1160, %v1345
          %vm1378 = vcmp.lt.f32.partialorder %v1162, %v1346
          %vm1379 = vcmp.lt.f32.partialorder %v1164, %v1347
          %vm1380 = vcmp.lt.f32.partialorder %v1166, %v1348
          %vm1381 = vcmp.lt.f32.partialorder %v1168, %v1349
          %vm1382 = vcmp.lt.f32.partialorder %v1170, %v1350
          %vm1383 = vcmp.lt.f32.partialorder %v1172, %v1351
          %vm1384 = vcmp.lt.f32.partialorder %v1174, %v1352
          %vm1385 = vcmp.lt.f32.partialorder %v1176, %v1353
          %vm1386 = vcmp.lt.f32.partialorder %v1178, %v1354
          %vm1387 = vcmp.lt.f32.partialorder %v1180, %v1355
          %vm1388 = vcmp.lt.f32.partialorder %v1182, %v1356
          %vm1389 = vcmp.lt.f32.partialorder %v1184, %v1357
          %vm1390 = vcmp.lt.f32.partialorder %v1186, %v1358
          %vm1391 = vcmp.lt.f32.partialorder %v1188, %v1359
          %vm1392 = vcmp.lt.f32.partialorder %v1190, %v1360
          %vm1393 = vcmp.lt.f32.partialorder %v1192, %v1361
          %vm1394 = vcmp.lt.f32.partialorder %v1194, %v1362
          %vm1395 = vcmp.lt.f32.partialorder %v1196, %v1363
          %vm1396 = vcmp.lt.f32.partialorder %v1198, %v1364
          %vm1397 = vcmp.lt.f32.partialorder %v1200, %v1365
          %vm1398 = vcmp.lt.f32.partialorder %v1202, %v1366
          %vm1399 = vcmp.lt.f32.partialorder %v1204, %v1367
          %v1400 = vsel %vm1368, %v1142, %v1336
          %v1401 = vsel %vm1369, %v1144, %v1337
          %v1402 = vsel %vm1370, %v1146, %v1338
          %v1403 = vsel %vm1371, %v1148, %v1339
          %v1404 = vsel %vm1372, %v1150, %v1340
          %v1405 = vsel %vm1373, %v1152, %v1341
          %v1406 = vsel %vm1374, %v1154, %v1342
          %v1407 = vsel %vm1375, %v1156, %v1343
          %v1408 = vsel %vm1376, %v1158, %v1344
          %v1409 = vsel %vm1377, %v1160, %v1345
          %v1410 = vsel %vm1378, %v1162, %v1346
          %v1411 = vsel %vm1379, %v1164, %v1347
          %v1412 = vsel %vm1380, %v1166, %v1348
          %v1413 = vsel %vm1381, %v1168, %v1349
          %v1414 = vsel %vm1382, %v1170, %v1350
          %v1415 = vsel %vm1383, %v1172, %v1351
          %v1416 = vsel %vm1384, %v1174, %v1352
          %v1417 = vsel %vm1385, %v1176, %v1353
          %v1418 = vsel %vm1386, %v1178, %v1354
          %v1419 = vsel %vm1387, %v1180, %v1355
          %v1420 = vsel %vm1388, %v1182, %v1356
          %v1421 = vsel %vm1389, %v1184, %v1357
          %v1422 = vsel %vm1390, %v1186, %v1358
          %v1423 = vsel %vm1391, %v1188, %v1359
          %v1424 = vsel %vm1392, %v1190, %v1360
          %v1425 = vsel %vm1393, %v1192, %v1361
          %v1426 = vsel %vm1394, %v1194, %v1362
          %v1427 = vsel %vm1395, %v1196, %v1363
          %v1428 = vsel %vm1396, %v1198, %v1364
          %v1429 = vsel %vm1397, %v1200, %v1365
          %v1430 = vsel %vm1398, %v1202, %v1366
          %v1431 = vsel %vm1399, %v1204, %v1367
          %1432 = vst.msk [vmem:[#allocation2] sm:$0xff] %vm901, %v1400
          %1433 = vst.msk [vmem:[#allocation2 + $0x8] sm:$0xff] %vm901, %v1401
          %1434 = vst.msk [vmem:[#allocation2 + $0x10] sm:$0xff] %vm901, %v1402
          %1435 = vst.msk [vmem:[#allocation2 + $0x18] sm:$0xff] %vm901, %v1403
          %1436 = vst.msk [vmem:[#allocation2 + $0x20] sm:$0xff] %vm901, %v1404
          %1437 = vst.msk [vmem:[#allocation2 + $0x28] sm:$0xff] %vm901, %v1405
          %1438 = vst.msk [vmem:[#allocation2 + $0x30] sm:$0xff] %vm901, %v1406
          %1439 = vst.msk [vmem:[#allocation2 + $0x38] sm:$0xff] %vm901, %v1407
          %1440 = vst.msk [vmem:[#allocation2 + $0x40] sm:$0xff] %vm901, %v1408
          %1441 = vst.msk [vmem:[#allocation2 + $0x48] sm:$0xff] %vm901, %v1409
          %1442 = vst.msk [vmem:[#allocation2 + $0x50] sm:$0xff] %vm901, %v1410
          %1443 = vst.msk [vmem:[#allocation2 + $0x58] sm:$0xff] %vm901, %v1411
          %1444 = vst.msk [vmem:[#allocation2 + $0x60] sm:$0xff] %vm901, %v1412
          %1445 = vst.msk [vmem:[#allocation2 + $0x68] sm:$0xff] %vm901, %v1413
          %1446 = vst.msk [vmem:[#allocation2 + $0x70] sm:$0xff] %vm901, %v1414
          %1447 = vst.msk [vmem:[#allocation2 + $0x78] sm:$0xff] %vm901, %v1415
          %1448 = vst.msk [vmem:[#allocation2 + $0x80] sm:$0xff] %vm901, %v1416
          %1449 = vst.msk [vmem:[#allocation2 + $0x88] sm:$0xff] %vm901, %v1417
          %1450 = vst.msk [vmem:[#allocation2 + $0x90] sm:$0xff] %vm901, %v1418
          %1451 = vst.msk [vmem:[#allocation2 + $0x98] sm:$0xff] %vm901, %v1419
          %1452 = vst.msk [vmem:[#allocation2 + $0xa0] sm:$0xff] %vm901, %v1420
          %1453 = vst.msk [vmem:[#allocation2 + $0xa8] sm:$0xff] %vm901, %v1421
          %1454 = vst.msk [vmem:[#allocation2 + $0xb0] sm:$0xff] %vm901, %v1422
          %1455 = vst.msk [vmem:[#allocation2 + $0xb8] sm:$0xff] %vm901, %v1423
          %1456 = vst.msk [vmem:[#allocation2 + $0xc0] sm:$0xff] %vm901, %v1424
          %1457 = vst.msk [vmem:[#allocation2 + $0xc8] sm:$0xff] %vm901, %v1425
          %1458 = vst.msk [vmem:[#allocation2 + $0xd0] sm:$0xff] %vm901, %v1426
          %1459 = vst.msk [vmem:[#allocation2 + $0xd8] sm:$0xff] %vm901, %v1427
          %1460 = vst.msk [vmem:[#allocation2 + $0xe0] sm:$0xff] %vm901, %v1428
          %1461 = vst.msk [vmem:[#allocation2 + $0xe8] sm:$0xff] %vm901, %v1429
          %1462 = vst.msk [vmem:[#allocation2 + $0xf0] sm:$0xff] %vm901, %v1430
          %1463 = vst.msk [vmem:[#allocation2 + $0xf8] sm:$0xff] %vm901, %v1431
          %v1464 = vld [vmem:[#allocation3] sm:$0xff]
          %v1465 = vld [vmem:[#allocation3 + $0x8] sm:$0xff]
          %v1466 = vld [vmem:[#allocation3 + $0x10] sm:$0xff]
          %v1467 = vld [vmem:[#allocation3 + $0x18] sm:$0xff]
          %v1468 = vld [vmem:[#allocation3 + $0x20] sm:$0xff]
          %v1469 = vld [vmem:[#allocation3 + $0x28] sm:$0xff]
          %v1470 = vld [vmem:[#allocation3 + $0x30] sm:$0xff]
          %v1471 = vld [vmem:[#allocation3 + $0x38] sm:$0xff]
          %v1472 = vld [vmem:[#allocation3 + $0x40] sm:$0xff]
          %v1473 = vld [vmem:[#allocation3 + $0x48] sm:$0xff]
          %v1474 = vld [vmem:[#allocation3 + $0x50] sm:$0xff]
          %v1475 = vld [vmem:[#allocation3 + $0x58] sm:$0xff]
          %v1476 = vld [vmem:[#allocation3 + $0x60] sm:$0xff]
          %v1477 = vld [vmem:[#allocation3 + $0x68] sm:$0xff]
          %v1478 = vld [vmem:[#allocation3 + $0x70] sm:$0xff]
          %v1479 = vld [vmem:[#allocation3 + $0x78] sm:$0xff]
          %v1480 = vld [vmem:[#allocation3 + $0x80] sm:$0xff]
          %v1481 = vld [vmem:[#allocation3 + $0x88] sm:$0xff]
          %v1482 = vld [vmem:[#allocation3 + $0x90] sm:$0xff]
          %v1483 = vld [vmem:[#allocation3 + $0x98] sm:$0xff]
          %v1484 = vld [vmem:[#allocation3 + $0xa0] sm:$0xff]
          %v1485 = vld [vmem:[#allocation3 + $0xa8] sm:$0xff]
          %v1486 = vld [vmem:[#allocation3 + $0xb0] sm:$0xff]
          %v1487 = vld [vmem:[#allocation3 + $0xb8] sm:$0xff]
          %v1488 = vld [vmem:[#allocation3 + $0xc0] sm:$0xff]
          %v1489 = vld [vmem:[#allocation3 + $0xc8] sm:$0xff]
          %v1490 = vld [vmem:[#allocation3 + $0xd0] sm:$0xff]
          %v1491 = vld [vmem:[#allocation3 + $0xd8] sm:$0xff]
          %v1492 = vld [vmem:[#allocation3 + $0xe0] sm:$0xff]
          %v1493 = vld [vmem:[#allocation3 + $0xe8] sm:$0xff]
          %v1494 = vld [vmem:[#allocation3 + $0xf0] sm:$0xff]
          %v1495 = vld [vmem:[#allocation3 + $0xf8] sm:$0xff]
          %v1496 = vsel %vm1368, %v1273, %v1464
          %v1497 = vsel %vm1369, %v1275, %v1465
          %v1498 = vsel %vm1370, %v1277, %v1466
          %v1499 = vsel %vm1371, %v1279, %v1467
          %v1500 = vsel %vm1372, %v1281, %v1468
          %v1501 = vsel %vm1373, %v1283, %v1469
          %v1502 = vsel %vm1374, %v1285, %v1470
          %v1503 = vsel %vm1375, %v1287, %v1471
          %v1504 = vsel %vm1376, %v1289, %v1472
          %v1505 = vsel %vm1377, %v1291, %v1473
          %v1506 = vsel %vm1378, %v1293, %v1474
          %v1507 = vsel %vm1379, %v1295, %v1475
          %v1508 = vsel %vm1380, %v1297, %v1476
          %v1509 = vsel %vm1381, %v1299, %v1477
          %v1510 = vsel %vm1382, %v1301, %v1478
          %v1511 = vsel %vm1383, %v1303, %v1479
          %v1512 = vsel %vm1384, %v1305, %v1480
          %v1513 = vsel %vm1385, %v1307, %v1481
          %v1514 = vsel %vm1386, %v1309, %v1482
          %v1515 = vsel %vm1387, %v1311, %v1483
          %v1516 = vsel %vm1388, %v1313, %v1484
          %v1517 = vsel %vm1389, %v1315, %v1485
          %v1518 = vsel %vm1390, %v1317, %v1486
          %v1519 = vsel %vm1391, %v1319, %v1487
          %v1520 = vsel %vm1392, %v1321, %v1488
          %v1521 = vsel %vm1393, %v1323, %v1489
          %v1522 = vsel %vm1394, %v1325, %v1490
          %v1523 = vsel %vm1395, %v1327, %v1491
          %v1524 = vsel %vm1396, %v1329, %v1492
          %v1525 = vsel %vm1397, %v1331, %v1493
          %v1526 = vsel %vm1398, %v1333, %v1494
          %v1527 = vsel %vm1399, %v1335, %v1495
          %1528 = vst.msk [vmem:[#allocation3] sm:$0xff] %vm901, %v1496
          %1529 = vst.msk [vmem:[#allocation3 + $0x8] sm:$0xff] %vm901, %v1497
          %1530 = vst.msk [vmem:[#allocation3 + $0x10] sm:$0xff] %vm901, %v1498
          %1531 = vst.msk [vmem:[#allocation3 + $0x18] sm:$0xff] %vm901, %v1499
          %1532 = vst.msk [vmem:[#allocation3 + $0x20] sm:$0xff] %vm901, %v1500
          %1533 = vst.msk [vmem:[#allocation3 + $0x28] sm:$0xff] %vm901, %v1501
          %1534 = vst.msk [vmem:[#allocation3 + $0x30] sm:$0xff] %vm901, %v1502
          %1535 = vst.msk [vmem:[#allocation3 + $0x38] sm:$0xff] %vm901, %v1503
          %1536 = vst.msk [vmem:[#allocation3 + $0x40] sm:$0xff] %vm901, %v1504
          %1537 = vst.msk [vmem:[#allocation3 + $0x48] sm:$0xff] %vm901, %v1505
          %1538 = vst.msk [vmem:[#allocation3 + $0x50] sm:$0xff] %vm901, %v1506
          %1539 = vst.msk [vmem:[#allocation3 + $0x58] sm:$0xff] %vm901, %v1507
          %1540 = vst.msk [vmem:[#allocation3 + $0x60] sm:$0xff] %vm901, %v1508
          %1541 = vst.msk [vmem:[#allocation3 + $0x68] sm:$0xff] %vm901, %v1509
          %1542 = vst.msk [vmem:[#allocation3 + $0x70] sm:$0xff] %vm901, %v1510
          %1543 = vst.msk [vmem:[#allocation3 + $0x78] sm:$0xff] %vm901, %v1511
          %1544 = vst.msk [vmem:[#allocation3 + $0x80] sm:$0xff] %vm901, %v1512
          %1545 = vst.msk [vmem:[#allocation3 + $0x88] sm:$0xff] %vm901, %v1513
          %1546 = vst.msk [vmem:[#allocation3 + $0x90] sm:$0xff] %vm901, %v1514
          %1547 = vst.msk [vmem:[#allocation3 + $0x98] sm:$0xff] %vm901, %v1515
          %1548 = vst.msk [vmem:[#allocation3 + $0xa0] sm:$0xff] %vm901, %v1516
          %1549 = vst.msk [vmem:[#allocation3 + $0xa8] sm:$0xff] %vm901, %v1517
          %1550 = vst.msk [vmem:[#allocation3 + $0xb0] sm:$0xff] %vm901, %v1518
          %1551 = vst.msk [vmem:[#allocation3 + $0xb8] sm:$0xff] %vm901, %v1519
          %1552 = vst.msk [vmem:[#allocation3 + $0xc0] sm:$0xff] %vm901, %v1520
          %1553 = vst.msk [vmem:[#allocation3 + $0xc8] sm:$0xff] %vm901, %v1521
          %1554 = vst.msk [vmem:[#allocation3 + $0xd0] sm:$0xff] %vm901, %v1522
          %1555 = vst.msk [vmem:[#allocation3 + $0xd8] sm:$0xff] %vm901, %v1523
          %1556 = vst.msk [vmem:[#allocation3 + $0xe0] sm:$0xff] %vm901, %v1524
          %1557 = vst.msk [vmem:[#allocation3 + $0xe8] sm:$0xff] %vm901, %v1525
          %1558 = vst.msk [vmem:[#allocation3 + $0xf0] sm:$0xff] %vm901, %v1526
          %1559 = vst.msk [vmem:[#allocation3 + $0xf8] sm:$0xff] %vm901, %v1527
        $region108: #{clfm_forward.4} parent=98 // loop_footer
          %s971 = sadd.s32 1, %s967
        $region109: #{clfm_forward.4} parent=98 // loop_footer_branch
          %966 = sbr.rel target = $region105
        $region110: #{clfm_forward.4} parent=98 // loop_exit
          _
        %1560 = vst [vmem:[#allocation4] sm:$0xf] 0.0
        %1561 = vst [vmem:[#allocation5] sm:$0xff] 0.0
        %1562 = vst [vmem:[#allocation5 + $0x8] sm:$0xff] 0.0
        %1563 = vst [vmem:[#allocation5 + $0x10] sm:$0xff] 0.0
        %1564 = vst [vmem:[#allocation5 + $0x18] sm:$0xff] 0.0
        %1565 = vst [vmem:[#allocation5 + $0x20] sm:$0xff] 0.0
        %1566 = vst [vmem:[#allocation5 + $0x28] sm:$0xff] 0.0
        %1567 = vst [vmem:[#allocation5 + $0x30] sm:$0xff] 0.0
        %1568 = vst [vmem:[#allocation5 + $0x38] sm:$0xff] 0.0
        loop: start=0, step=1, limit=3
        $region111: #{clfm_forward.4} parent=98 // loop_pre_header
          _
        $region112: #{clfm_forward.4} parent=98 // loop_header
          %s1570 = sphi 0, %s1574
          %p1571 = scmp.ge.s32.totalorder %s1570, 3
        $region113: #{clfm_forward.4} parent=98 // loop_header_branch
          %1573 = sbr.rel (%p1571) target = $region117
        $region114: #{clfm_forward.4} parent=98 // loop_body
          %s1575 = smul.u32 %s1570, 128
          %v1576 = vstv %s1575
          %v1577 = vadd.s32 %v654, %v1576
          %v1578 = vcvt.s32.f32 %v1577
          %v1579 = vld [vmem:[#allocation3] sm:$0xff]
          %v1580 = vld [vmem:[#allocation3 + $0x8] sm:$0xff]
          %v1581 = vld [vmem:[#allocation3 + $0x10] sm:$0xff]
          %v1582 = vld [vmem:[#allocation3 + $0x18] sm:$0xff]
          %v1583 = vld [vmem:[#allocation3 + $0x20] sm:$0xff]
          %v1584 = vld [vmem:[#allocation3 + $0x28] sm:$0xff]
          %v1585 = vld [vmem:[#allocation3 + $0x30] sm:$0xff]
          %v1586 = vld [vmem:[#allocation3 + $0x38] sm:$0xff]
          %v1587 = vld [vmem:[#allocation3 + $0x40] sm:$0xff]
          %v1588 = vld [vmem:[#allocation3 + $0x48] sm:$0xff]
          %v1589 = vld [vmem:[#allocation3 + $0x50] sm:$0xff]
          %v1590 = vld [vmem:[#allocation3 + $0x58] sm:$0xff]
          %v1591 = vld [vmem:[#allocation3 + $0x60] sm:$0xff]
          %v1592 = vld [vmem:[#allocation3 + $0x68] sm:$0xff]
          %v1593 = vld [vmem:[#allocation3 + $0x70] sm:$0xff]
          %v1594 = vld [vmem:[#allocation3 + $0x78] sm:$0xff]
          %v1595 = vld [vmem:[#allocation3 + $0x80] sm:$0xff]
          %v1596 = vld [vmem:[#allocation3 + $0x88] sm:$0xff]
          %v1597 = vld [vmem:[#allocation3 + $0x90] sm:$0xff]
          %v1598 = vld [vmem:[#allocation3 + $0x98] sm:$0xff]
          %v1599 = vld [vmem:[#allocation3 + $0xa0] sm:$0xff]
          %v1600 = vld [vmem:[#allocation3 + $0xa8] sm:$0xff]
          %v1601 = vld [vmem:[#allocation3 + $0xb0] sm:$0xff]
          %v1602 = vld [vmem:[#allocation3 + $0xb8] sm:$0xff]
          %v1603 = vld [vmem:[#allocation3 + $0xc0] sm:$0xff]
          %v1604 = vld [vmem:[#allocation3 + $0xc8] sm:$0xff]
          %v1605 = vld [vmem:[#allocation3 + $0xd0] sm:$0xff]
          %v1606 = vld [vmem:[#allocation3 + $0xd8] sm:$0xff]
          %v1607 = vld [vmem:[#allocation3 + $0xe0] sm:$0xff]
          %v1608 = vld [vmem:[#allocation3 + $0xe8] sm:$0xff]
          %v1609 = vld [vmem:[#allocation3 + $0xf0] sm:$0xff]
          %v1610 = vld [vmem:[#allocation3 + $0xf8] sm:$0xff]
          %1612 = vset.pattern.permute.xlu0 0
          %1613 = vperm.xlu0 %1612, %v1579
          %v1614 = vpop.permute.xlu0 %1613
          %1617 = vset.pattern.permute.xlu0 0
          %1618 = vperm.xlu0 %1617, %v1580
          %v1619 = vpop.permute.xlu0 %1618
          %1622 = vset.pattern.permute.xlu0 0
          %1623 = vperm.xlu0 %1622, %v1581
          %v1624 = vpop.permute.xlu0 %1623
          %1627 = vset.pattern.permute.xlu0 0
          %1628 = vperm.xlu0 %1627, %v1582
          %v1629 = vpop.permute.xlu0 %1628
          %1632 = vset.pattern.permute.xlu0 0
          %1633 = vperm.xlu0 %1632, %v1583
          %v1634 = vpop.permute.xlu0 %1633
          %1637 = vset.pattern.permute.xlu0 0
          %1638 = vperm.xlu0 %1637, %v1584
          %v1639 = vpop.permute.xlu0 %1638
          %1642 = vset.pattern.permute.xlu0 0
          %1643 = vperm.xlu0 %1642, %v1585
          %v1644 = vpop.permute.xlu0 %1643
          %1647 = vset.pattern.permute.xlu0 0
          %1648 = vperm.xlu0 %1647, %v1586
          %v1649 = vpop.permute.xlu0 %1648
          %1652 = vset.pattern.permute.xlu0 0
          %1653 = vperm.xlu0 %1652, %v1587
          %v1654 = vpop.permute.xlu0 %1653
          %1657 = vset.pattern.permute.xlu0 0
          %1658 = vperm.xlu0 %1657, %v1588
          %v1659 = vpop.permute.xlu0 %1658
          %1662 = vset.pattern.permute.xlu0 0
          %1663 = vperm.xlu0 %1662, %v1589
          %v1664 = vpop.permute.xlu0 %1663
          %1667 = vset.pattern.permute.xlu0 0
          %1668 = vperm.xlu0 %1667, %v1590
          %v1669 = vpop.permute.xlu0 %1668
          %1672 = vset.pattern.permute.xlu0 0
          %1673 = vperm.xlu0 %1672, %v1591
          %v1674 = vpop.permute.xlu0 %1673
          %1677 = vset.pattern.permute.xlu0 0
          %1678 = vperm.xlu0 %1677, %v1592
          %v1679 = vpop.permute.xlu0 %1678
          %1682 = vset.pattern.permute.xlu0 0
          %1683 = vperm.xlu0 %1682, %v1593
          %v1684 = vpop.permute.xlu0 %1683
          %1687 = vset.pattern.permute.xlu0 0
          %1688 = vperm.xlu0 %1687, %v1594
          %v1689 = vpop.permute.xlu0 %1688
          %1692 = vset.pattern.permute.xlu0 0
          %1693 = vperm.xlu0 %1692, %v1595
          %v1694 = vpop.permute.xlu0 %1693
          %1697 = vset.pattern.permute.xlu0 0
          %1698 = vperm.xlu0 %1697, %v1596
          %v1699 = vpop.permute.xlu0 %1698
          %1702 = vset.pattern.permute.xlu0 0
          %1703 = vperm.xlu0 %1702, %v1597
          %v1704 = vpop.permute.xlu0 %1703
          %1707 = vset.pattern.permute.xlu0 0
          %1708 = vperm.xlu0 %1707, %v1598
          %v1709 = vpop.permute.xlu0 %1708
          %1712 = vset.pattern.permute.xlu0 0
          %1713 = vperm.xlu0 %1712, %v1599
          %v1714 = vpop.permute.xlu0 %1713
          %1717 = vset.pattern.permute.xlu0 0
          %1718 = vperm.xlu0 %1717, %v1600
          %v1719 = vpop.permute.xlu0 %1718
          %1722 = vset.pattern.permute.xlu0 0
          %1723 = vperm.xlu0 %1722, %v1601
          %v1724 = vpop.permute.xlu0 %1723
          %1727 = vset.pattern.permute.xlu0 0
          %1728 = vperm.xlu0 %1727, %v1602
          %v1729 = vpop.permute.xlu0 %1728
          %1732 = vset.pattern.permute.xlu0 0
          %1733 = vperm.xlu0 %1732, %v1603
          %v1734 = vpop.permute.xlu0 %1733
          %1737 = vset.pattern.permute.xlu0 0
          %1738 = vperm.xlu0 %1737, %v1604
          %v1739 = vpop.permute.xlu0 %1738
          %1742 = vset.pattern.permute.xlu0 0
          %1743 = vperm.xlu0 %1742, %v1605
          %v1744 = vpop.permute.xlu0 %1743
          %1747 = vset.pattern.permute.xlu0 0
          %1748 = vperm.xlu0 %1747, %v1606
          %v1749 = vpop.permute.xlu0 %1748
          %1752 = vset.pattern.permute.xlu0 0
          %1753 = vperm.xlu0 %1752, %v1607
          %v1754 = vpop.permute.xlu0 %1753
          %1757 = vset.pattern.permute.xlu0 0
          %1758 = vperm.xlu0 %1757, %v1608
          %v1759 = vpop.permute.xlu0 %1758
          %1762 = vset.pattern.permute.xlu0 0
          %1763 = vperm.xlu0 %1762, %v1609
          %v1764 = vpop.permute.xlu0 %1763
          %1767 = vset.pattern.permute.xlu0 0
          %1768 = vperm.xlu0 %1767, %v1610
          %v1769 = vpop.permute.xlu0 %1768
          %vm1771 = vcmp.eq.f32.partialorder %v1578, %v1614
          %vm1772 = vcmp.eq.f32.partialorder %v1578, %v1619
          %vm1773 = vcmp.eq.f32.partialorder %v1578, %v1624
          %vm1774 = vcmp.eq.f32.partialorder %v1578, %v1629
          %vm1775 = vcmp.eq.f32.partialorder %v1578, %v1634
          %vm1776 = vcmp.eq.f32.partialorder %v1578, %v1639
          %vm1777 = vcmp.eq.f32.partialorder %v1578, %v1644
          %vm1778 = vcmp.eq.f32.partialorder %v1578, %v1649
          %vm1779 = vcmp.eq.f32.partialorder %v1578, %v1654
          %vm1780 = vcmp.eq.f32.partialorder %v1578, %v1659
          %vm1781 = vcmp.eq.f32.partialorder %v1578, %v1664
          %vm1782 = vcmp.eq.f32.partialorder %v1578, %v1669
          %vm1783 = vcmp.eq.f32.partialorder %v1578, %v1674
          %vm1784 = vcmp.eq.f32.partialorder %v1578, %v1679
          %vm1785 = vcmp.eq.f32.partialorder %v1578, %v1684
          %vm1786 = vcmp.eq.f32.partialorder %v1578, %v1689
          %vm1787 = vcmp.eq.f32.partialorder %v1578, %v1694
          %vm1788 = vcmp.eq.f32.partialorder %v1578, %v1699
          %vm1789 = vcmp.eq.f32.partialorder %v1578, %v1704
          %vm1790 = vcmp.eq.f32.partialorder %v1578, %v1709
          %vm1791 = vcmp.eq.f32.partialorder %v1578, %v1714
          %vm1792 = vcmp.eq.f32.partialorder %v1578, %v1719
          %vm1793 = vcmp.eq.f32.partialorder %v1578, %v1724
          %vm1794 = vcmp.eq.f32.partialorder %v1578, %v1729
          %vm1795 = vcmp.eq.f32.partialorder %v1578, %v1734
          %vm1796 = vcmp.eq.f32.partialorder %v1578, %v1739
          %vm1797 = vcmp.eq.f32.partialorder %v1578, %v1744
          %vm1798 = vcmp.eq.f32.partialorder %v1578, %v1749
          %vm1799 = vcmp.eq.f32.partialorder %v1578, %v1754
          %vm1800 = vcmp.eq.f32.partialorder %v1578, %v1759
          %vm1801 = vcmp.eq.f32.partialorder %v1578, %v1764
          %vm1802 = vcmp.eq.f32.partialorder %v1578, %v1769
          %v1803 = vsel %vm1771, 1, 0
          %v1804 = vsel %vm1772, 1, 0
          %v1805 = vsel %vm1773, 1, 0
          %v1806 = vsel %vm1774, 1, 0
          %v1807 = vsel %vm1775, 1, 0
          %v1808 = vsel %vm1776, 1, 0
          %v1809 = vsel %vm1777, 1, 0
          %v1810 = vsel %vm1778, 1, 0
          %v1811 = vsel %vm1779, 1, 0
          %v1812 = vsel %vm1780, 1, 0
          %v1813 = vsel %vm1781, 1, 0
          %v1814 = vsel %vm1782, 1, 0
          %v1815 = vsel %vm1783, 1, 0
          %v1816 = vsel %vm1784, 1, 0
          %v1817 = vsel %vm1785, 1, 0
          %v1818 = vsel %vm1786, 1, 0
          %v1819 = vsel %vm1787, 1, 0
          %v1820 = vsel %vm1788, 1, 0
          %v1821 = vsel %vm1789, 1, 0
          %v1822 = vsel %vm1790, 1, 0
          %v1823 = vsel %vm1791, 1, 0
          %v1824 = vsel %vm1792, 1, 0
          %v1825 = vsel %vm1793, 1, 0
          %v1826 = vsel %vm1794, 1, 0
          %v1827 = vsel %vm1795, 1, 0
          %v1828 = vsel %vm1796, 1, 0
          %v1829 = vsel %vm1797, 1, 0
          %v1830 = vsel %vm1798, 1, 0
          %v1831 = vsel %vm1799, 1, 0
          %v1832 = vsel %vm1800, 1, 0
          %v1833 = vsel %vm1801, 1, 0
          %v1834 = vsel %vm1802, 1, 0
          %v1835 = vcvt.s32.f32 %v1803
          %v1836 = vcvt.s32.f32 %v1804
          %v1837 = vcvt.s32.f32 %v1805
          %v1838 = vcvt.s32.f32 %v1806
          %v1839 = vcvt.s32.f32 %v1807
          %v1840 = vcvt.s32.f32 %v1808
          %v1841 = vcvt.s32.f32 %v1809
          %v1842 = vcvt.s32.f32 %v1810
          %v1843 = vcvt.s32.f32 %v1811
          %v1844 = vcvt.s32.f32 %v1812
          %v1845 = vcvt.s32.f32 %v1813
          %v1846 = vcvt.s32.f32 %v1814
          %v1847 = vcvt.s32.f32 %v1815
          %v1848 = vcvt.s32.f32 %v1816
          %v1849 = vcvt.s32.f32 %v1817
          %v1850 = vcvt.s32.f32 %v1818
          %v1851 = vcvt.s32.f32 %v1819
          %v1852 = vcvt.s32.f32 %v1820
          %v1853 = vcvt.s32.f32 %v1821
          %v1854 = vcvt.s32.f32 %v1822
          %v1855 = vcvt.s32.f32 %v1823
          %v1856 = vcvt.s32.f32 %v1824
          %v1857 = vcvt.s32.f32 %v1825
          %v1858 = vcvt.s32.f32 %v1826
          %v1859 = vcvt.s32.f32 %v1827
          %v1860 = vcvt.s32.f32 %v1828
          %v1861 = vcvt.s32.f32 %v1829
          %v1862 = vcvt.s32.f32 %v1830
          %v1863 = vcvt.s32.f32 %v1831
          %v1864 = vcvt.s32.f32 %v1832
          %v1865 = vcvt.s32.f32 %v1833
          %v1866 = vcvt.s32.f32 %v1834
          %s1867 = sshra.s32 %s1575, 7
          %s1868 = sand.u32 %s1575, 127
          %s1869 = smul.addr %s1867, 2
          %s1870 = scalar_lea.vmem %s637, %s1869
          %v1871 = vld [vmem:[%s1870] sm:$0x3]
          %s1872 = smul.addr %s1867, 8
          %s1873 = scalar_lea.vmem %s643, %s1872
          %v1874 = vld [vmem:[%s1873] sm:$0xff]
          %v1875 = vld [vmem:[%s1873 + $0x18] sm:$0xff]
          %v1876 = vld [vmem:[%s1873 + $0x30] sm:$0xff]
          %v1877 = vld [vmem:[%s1873 + $0x48] sm:$0xff]
          %v1878 = vld [vmem:[#allocation4] sm:$0xf]
          %1879 = vmatpush.xpose.msra.mxu0 %v1850
          %1880 = vmatpush.xpose.msra.mxu0 %v1849
          %1881 = vmatpush.xpose.msra.mxu0 %v1848
          %1882 = vmatpush.xpose.msra.mxu0 %v1847
          %1883 = vmatpush.xpose.msra.mxu0 %v1846
          %1884 = vmatpush.xpose.msra.mxu0 %v1845
          %1885 = vmatpush.xpose.msra.mxu0 %v1844
          %1886 = vmatpush.xpose.msra.mxu0 %v1843
          %1887 = vmatpush.xpose.msra.mxu0 %v1842
          %1888 = vmatpush.xpose.msra.mxu0 %v1841
          %1889 = vmatpush.xpose.msra.mxu0 %v1840
          %1890 = vmatpush.xpose.msra.mxu0 %v1839
          %1891 = vmatpush.xpose.msra.mxu0 %v1838
          %1892 = vmatpush.xpose.msra.mxu0 %v1837
          %1893 = vmatpush.xpose.msra.mxu0 %v1836
          %1894 = vmatpush.xpose.msra.mxu0 %v1835
          %1895 = vmatmul.f32.gmra.mxu0 %v1871
          %v1896 = vpop.f32.mrf.mxu0
          %v1897 = vadd.f32 0.0, %v1896
          %1898 = vdwg.mxu0
          %1899 = vmatpush.xpose.msra.mxu0 %v1866
          %1900 = vmatpush.xpose.msra.mxu0 %v1865
          %1901 = vmatpush.xpose.msra.mxu0 %v1864
          %1902 = vmatpush.xpose.msra.mxu0 %v1863
          %1903 = vmatpush.xpose.msra.mxu0 %v1862
          %1904 = vmatpush.xpose.msra.mxu0 %v1861
          %1905 = vmatpush.xpose.msra.mxu0 %v1860
          %1906 = vmatpush.xpose.msra.mxu0 %v1859
          %1907 = vmatpush.xpose.msra.mxu0 %v1858
          %1908 = vmatpush.xpose.msra.mxu0 %v1857
          %1909 = vmatpush.xpose.msra.mxu0 %v1856
          %1910 = vmatpush.xpose.msra.mxu0 %v1855
          %1911 = vmatpush.xpose.msra.mxu0 %v1854
          %1912 = vmatpush.xpose.msra.mxu0 %v1853
          %1913 = vmatpush.xpose.msra.mxu0 %v1852
          %1914 = vmatpush.xpose.msra.mxu0 %v1851
          %1915 = vmatmul.f32.gmra.mxu0 %v1871
          %v1916 = vpop.f32.mrf.mxu0
          %v1917 = vadd.f32 0.0, %v1916
          %1918 = vdwg.mxu0
          %v1921 = vrot.slane %v1917, 6
          %vm1922 = vcmask 1041408
          %v1923 = vsel %vm1922, %v1897, %v1921
          %v1925 = vadd.f32 %v1878, %v1923
          %1926 = vst [vmem:[#allocation4] sm:$0xf] %v1925
          %v1927 = vld [vmem:[#allocation5] sm:$0xff]
          %v1928 = vld [vmem:[#allocation5 + $0x8] sm:$0xff]
          %v1929 = vld [vmem:[#allocation5 + $0x10] sm:$0xff]
          %v1930 = vld [vmem:[#allocation5 + $0x18] sm:$0xff]
          %v1931 = vld [vmem:[#allocation5 + $0x20] sm:$0xff]
          %v1932 = vld [vmem:[#allocation5 + $0x28] sm:$0xff]
          %v1933 = vld [vmem:[#allocation5 + $0x30] sm:$0xff]
          %v1934 = vld [vmem:[#allocation5 + $0x38] sm:$0xff]
          %1935 = vmatpush.xpose.msra.mxu0 %v1850
          %1936 = vmatpush.xpose.msra.mxu0 %v1849
          %1937 = vmatpush.xpose.msra.mxu0 %v1848
          %1938 = vmatpush.xpose.msra.mxu0 %v1847
          %1939 = vmatpush.xpose.msra.mxu0 %v1846
          %1940 = vmatpush.xpose.msra.mxu0 %v1845
          %1941 = vmatpush.xpose.msra.mxu0 %v1844
          %1942 = vmatpush.xpose.msra.mxu0 %v1843
          %1943 = vmatpush.xpose.msra.mxu0 %v1842
          %1944 = vmatpush.xpose.msra.mxu0 %v1841
          %1945 = vmatpush.xpose.msra.mxu0 %v1840
          %1946 = vmatpush.xpose.msra.mxu0 %v1839
          %1947 = vmatpush.xpose.msra.mxu0 %v1838
          %1948 = vmatpush.xpose.msra.mxu0 %v1837
          %1949 = vmatpush.xpose.msra.mxu0 %v1836
          %1950 = vmatpush.xpose.msra.mxu0 %v1835
          %1951 = vmatmul.f32.gmra.mxu0 %v1874
          %v1952 = vpop.f32.mrf.mxu0
          %v1953 = vadd.f32 0.0, %v1952
          %1954 = vmatmul.f32.gmra.mxu0 %v1875
          %v1955 = vpop.f32.mrf.mxu0
          %v1956 = vadd.f32 0.0, %v1955
          %1957 = vmatmul.f32.gmra.mxu0 %v1876
          %v1958 = vpop.f32.mrf.mxu0
          %v1959 = vadd.f32 0.0, %v1958
          %1960 = vmatmul.f32.gmra.mxu0 %v1877
          %v1961 = vpop.f32.mrf.mxu0
          %v1962 = vadd.f32 0.0, %v1961
          %1963 = vdwg.mxu0
          %1964 = vmatpush.xpose.msra.mxu0 %v1866
          %1965 = vmatpush.xpose.msra.mxu0 %v1865
          %1966 = vmatpush.xpose.msra.mxu0 %v1864
          %1967 = vmatpush.xpose.msra.mxu0 %v1863
          %1968 = vmatpush.xpose.msra.mxu0 %v1862
          %1969 = vmatpush.xpose.msra.mxu0 %v1861
          %1970 = vmatpush.xpose.msra.mxu0 %v1860
          %1971 = vmatpush.xpose.msra.mxu0 %v1859
          %1972 = vmatpush.xpose.msra.mxu0 %v1858
          %1973 = vmatpush.xpose.msra.mxu0 %v1857
          %1974 = vmatpush.xpose.msra.mxu0 %v1856
          %1975 = vmatpush.xpose.msra.mxu0 %v1855
          %1976 = vmatpush.xpose.msra.mxu0 %v1854
          %1977 = vmatpush.xpose.msra.mxu0 %v1853
          %1978 = vmatpush.xpose.msra.mxu0 %v1852
          %1979 = vmatpush.xpose.msra.mxu0 %v1851
          %1980 = vmatmul.f32.gmra.mxu0 %v1874
          %v1981 = vpop.f32.mrf.mxu0
          %v1982 = vadd.f32 0.0, %v1981
          %1983 = vmatmul.f32.gmra.mxu0 %v1875
          %v1984 = vpop.f32.mrf.mxu0
          %v1985 = vadd.f32 0.0, %v1984
          %1986 = vmatmul.f32.gmra.mxu0 %v1876
          %v1987 = vpop.f32.mrf.mxu0
          %v1988 = vadd.f32 0.0, %v1987
          %1989 = vmatmul.f32.gmra.mxu0 %v1877
          %v1990 = vpop.f32.mrf.mxu0
          %v1991 = vadd.f32 0.0, %v1990
          %1992 = vdwg.mxu0
          %v1993 = vadd.f32 %v1927, %v1953
          %v1994 = vadd.f32 %v1928, %v1982
          %v1995 = vadd.f32 %v1929, %v1956
          %v1996 = vadd.f32 %v1930, %v1985
          %v1997 = vadd.f32 %v1931, %v1959
          %v1998 = vadd.f32 %v1932, %v1988
          %v1999 = vadd.f32 %v1933, %v1962
          %v2000 = vadd.f32 %v1934, %v1991
          %2001 = vst [vmem:[#allocation5] sm:$0xff] %v1993
          %2002 = vst [vmem:[#allocation5 + $0x8] sm:$0xff] %v1994
          %2003 = vst [vmem:[#allocation5 + $0x10] sm:$0xff] %v1995
          %2004 = vst [vmem:[#allocation5 + $0x18] sm:$0xff] %v1996
          %2005 = vst [vmem:[#allocation5 + $0x20] sm:$0xff] %v1997
          %2006 = vst [vmem:[#allocation5 + $0x28] sm:$0xff] %v1998
          %2007 = vst [vmem:[#allocation5 + $0x30] sm:$0xff] %v1999
          %2008 = vst [vmem:[#allocation5 + $0x38] sm:$0xff] %v2000
        $region115: #{clfm_forward.4} parent=98 // loop_footer
          %s1574 = sadd.s32 1, %s1570
        $region116: #{clfm_forward.4} parent=98 // loop_footer_branch
          %1569 = sbr.rel target = $region112
        $region117: #{clfm_forward.4} parent=98 // loop_exit
          _
        %v2009 = vld [vmem:[#allocation4] ss:$2 sm:$0x3]
        %v2012 = vrot.slane %v675, 7
        %vm2013 = vcmask 1040384
        %v2014 = vsel %vm2013, %v674, %v2012
        %v2016 = vsub.f32 %v2009, %v2014
        %s2017 = scalar_lea.vmem [#allocation4], 1
        %v2018 = vld [vmem:[%s2017] ss:$2 sm:$0x3]
        %v2021 = vrot.slane %v671, 7
        %v2022 = vsel %vm2013, %v670, %v2021
        %v2024 = vsub.f32 %v2018, %v2022
        %v2025 = vmul.f32 %v2016, %v2016
        %v2026 = vmul.f32 %v2024, %v2024
        %v2027 = vadd.f32 %v2025, %v2026
        %v2028 = vrsqrt.pop %v2027
        %v2029 = vmul.f32 %v2028, %v2027
        %v2030 = vmul.f32 %v2029, %v2028
        %v2031 = vmul.f32 0.5, %v2030
        %v2032 = vsub.f32 1.5, %v2031
        %v2033 = vmul.f32 %v2028, %v2032
        %v2034 = vmul.f32 %v2027, %v2033
        %vm2035 = vcmp.eq.f32.partialorder %v2027, inf
        %v2036 = vsel %vm2035, %v2027, %v2034
        %vm2037 = vcmp.eq.f32.partialorder %v2027, 0.0
        %v2038 = vand.u32 %v2027, 2147483648
        %v2039 = vsel %vm2037, %v2038, %v2036
        %v2040 = vld [vmem:[%s3] sm:$0xff]
        %v2041 = vld [vmem:[%s3 + $0x8] sm:$0xff]
        %2043 = vset.pattern.permute.xlu0 0
        %2044 = vperm.xlu0 %2043, %v2040
        %v2045 = vpop.permute.xlu0 %2044
        %2048 = vset.pattern.permute.xlu0 0
        %2049 = vperm.xlu0 %2048, %v2041
        %v2050 = vpop.permute.xlu0 %2049
        %v2053 = vperm.slane %v2016, 0
        %v2054 = vperm.slane %v2016, 1
        %v2057 = vmul.f32 %v2045, %v2053
        %v2058 = vmul.f32 %v2045, %v2054
        %v2059 = vmul.f32 %v2050, %v2053
        %v2060 = vmul.f32 %v2050, %v2054
        %v2061 = vld [vmem:[%s4] sm:$0xff]
        %v2062 = vld [vmem:[%s4 + $0x8] sm:$0xff]
        %2064 = vset.pattern.permute.xlu0 0
        %2065 = vperm.xlu0 %2064, %v2061
        %v2066 = vpop.permute.xlu0 %2065
        %2069 = vset.pattern.permute.xlu0 0
        %2070 = vperm.xlu0 %2069, %v2062
        %v2071 = vpop.permute.xlu0 %2070
        %v2074 = vperm.slane %v2024, 0
        %v2075 = vperm.slane %v2024, 1
        %v2078 = vmul.f32 %v2066, %v2074
        %v2079 = vmul.f32 %v2066, %v2075
        %v2080 = vmul.f32 %v2071, %v2074
        %v2081 = vmul.f32 %v2071, %v2075
        %v2082 = vadd.f32 %v2057, %v2078
        %v2083 = vadd.f32 %v2058, %v2079
        %v2084 = vadd.f32 %v2059, %v2080
        %v2085 = vadd.f32 %v2060, %v2081
        %v2086 = vld [vmem:[%s5] sm:$0xff]
        %v2087 = vld [vmem:[%s5 + $0x8] sm:$0xff]
        %2089 = vset.pattern.permute.xlu0 0
        %2090 = vperm.xlu0 %2089, %v2086
        %v2091 = vpop.permute.xlu0 %2090
        %2094 = vset.pattern.permute.xlu0 0
        %2095 = vperm.xlu0 %2094, %v2087
        %v2096 = vpop.permute.xlu0 %2095
        %v2099 = vperm.slane %v2039, 0
        %v2100 = vperm.slane %v2039, 1
        %v2103 = vmul.f32 %v2091, %v2099
        %v2104 = vmul.f32 %v2091, %v2100
        %v2105 = vmul.f32 %v2096, %v2099
        %v2106 = vmul.f32 %v2096, %v2100
        %v2107 = vadd.f32 %v2082, %v2103
        %v2108 = vadd.f32 %v2083, %v2104
        %v2109 = vadd.f32 %v2084, %v2105
        %v2110 = vadd.f32 %v2085, %v2106
        %v2111 = vld [vmem:[%s6] sm:$0xff]
        %v2112 = vld [vmem:[%s6 + $0x8] sm:$0xff]
        %2114 = vset.pattern.permute.xlu0 0
        %2115 = vperm.xlu0 %2114, %v2111
        %v2116 = vpop.permute.xlu0 %2115
        %2119 = vset.pattern.permute.xlu0 0
        %2120 = vperm.xlu0 %2119, %v2112
        %v2121 = vpop.permute.xlu0 %2120
        %v2123 = vadd.f32 %v2107, %v2116
        %v2124 = vadd.f32 %v2108, %v2116
        %v2125 = vadd.f32 %v2109, %v2121
        %v2126 = vadd.f32 %v2110, %v2121
        %vm2127 = vcmp.ge.f32.partialorder %v2123, 0.0
        %vm2128 = vcmp.ge.f32.partialorder %v2124, 0.0
        %vm2129 = vcmp.ge.f32.partialorder %v2125, 0.0
        %vm2130 = vcmp.ge.f32.partialorder %v2126, 0.0
        %v2131 = vmul.f32 %v2123, 0.1
        %v2132 = vmul.f32 %v2124, 0.1
        %v2133 = vmul.f32 %v2125, 0.1
        %v2134 = vmul.f32 %v2126, 0.1
        %v2135 = vsel %vm2127, %v2123, %v2131
        %v2136 = vsel %vm2128, %v2124, %v2132
        %v2137 = vsel %vm2129, %v2125, %v2133
        %v2138 = vsel %vm2130, %v2126, %v2134
        %v2139 = vld [vmem:[%s7] sm:$0xff]
        %v2140 = vld [vmem:[%s7 + $0x8] sm:$0xff]
        %v2141 = vld [vmem:[%s7 + $0x10] sm:$0xff]
        %v2142 = vld [vmem:[%s7 + $0x18] sm:$0xff]
        %v2143 = vld [vmem:[%s8] sm:$0xff]
        %v2144 = vld [vmem:[%s8 + $0x8] sm:$0xff]
        %v2145 = vld [vmem:[%s8 + $0x10] sm:$0xff]
        %v2146 = vld [vmem:[%s8 + $0x18] sm:$0xff]
        %2148 = vset.pattern.permute.xlu0 0
        %2149 = vperm.xlu0 %2148, %v2143
        %v2150 = vpop.permute.xlu0 %2149
        %2153 = vset.pattern.permute.xlu0 0
        %2154 = vperm.xlu0 %2153, %v2144
        %v2155 = vpop.permute.xlu0 %2154
        %2158 = vset.pattern.permute.xlu0 0
        %2159 = vperm.xlu0 %2158, %v2145
        %v2160 = vpop.permute.xlu0 %2159
        %2163 = vset.pattern.permute.xlu0 0
        %2164 = vperm.xlu0 %2163, %v2146
        %v2165 = vpop.permute.xlu0 %2164
        %vm2167 = vcmask 130048
        %v2169 = vsel %vm2167, %v2139, 0
        %v2172 = vsel %vm2167, %v2140, 0
        %v2175 = vsel %vm2167, %v2141, 0
        %v2178 = vsel %vm2167, %v2142, 0
        %2180 = vmatpush.msra.mxu0 0.0
        %2181 = vmatpush.msra.mxu0 0.0
        %2182 = vmatpush.msra.mxu0 0.0
        %2183 = vmatpush.msra.mxu0 0.0
        %2184 = vmatpush.msra.mxu0 0.0
        %2185 = vmatpush.msra.mxu0 0.0
        %2186 = vmatpush.msra.mxu0 0.0
        %2187 = vmatpush.msra.mxu0 0.0
        %2188 = vmatpush.msra.mxu0 0.0
        %2189 = vmatpush.msra.mxu0 0.0
        %2190 = vmatpush.msra.mxu0 0.0
        %2191 = vmatpush.msra.mxu0 0.0
        %2192 = vmatpush.msra.mxu0 0.0
        %2193 = vmatpush.msra.mxu0 0.0
        %2194 = vmatpush.msra.mxu0 %v2137
        %2195 = vmatpush.msra.mxu0 %v2135
        %2196 = vmatmul.f32.gmra.mxu0 %v2169
        %v2197 = vpop.f32.mrf.mxu0
        %v2198 = vadd.f32 %v2150, %v2197
        %2199 = vmatmul.f32.gmra.mxu0 %v2172
        %v2200 = vpop.f32.mrf.mxu0
        %v2201 = vadd.f32 %v2155, %v2200
        %2202 = vmatmul.f32.gmra.mxu0 %v2175
        %v2203 = vpop.f32.mrf.mxu0
        %v2204 = vadd.f32 %v2160, %v2203
        %2205 = vmatmul.f32.gmra.mxu0 %v2178
        %v2206 = vpop.f32.mrf.mxu0
        %v2207 = vadd.f32 %v2165, %v2206
        %2208 = vdwg.mxu0
        %2209 = vmatpush.msra.mxu0 0.0
        %2210 = vmatpush.msra.mxu0 0.0
        %2211 = vmatpush.msra.mxu0 0.0
        %2212 = vmatpush.msra.mxu0 0.0
        %2213 = vmatpush.msra.mxu0 0.0
        %2214 = vmatpush.msra.mxu0 0.0
        %2215 = vmatpush.msra.mxu0 0.0
        %2216 = vmatpush.msra.mxu0 0.0
        %2217 = vmatpush.msra.mxu0 0.0
        %2218 = vmatpush.msra.mxu0 0.0
        %2219 = vmatpush.msra.mxu0 0.0
        %2220 = vmatpush.msra.mxu0 0.0
        %2221 = vmatpush.msra.mxu0 0.0
        %2222 = vmatpush.msra.mxu0 0.0
        %2223 = vmatpush.msra.mxu0 %v2138
        %2224 = vmatpush.msra.mxu0 %v2136
        %2225 = vmatmul.f32.gmra.mxu0 %v2169
        %v2226 = vpop.f32.mrf.mxu0
        %v2227 = vadd.f32 %v2150, %v2226
        %2228 = vmatmul.f32.gmra.mxu0 %v2172
        %v2229 = vpop.f32.mrf.mxu0
        %v2230 = vadd.f32 %v2155, %v2229
        %2231 = vmatmul.f32.gmra.mxu0 %v2175
        %v2232 = vpop.f32.mrf.mxu0
        %v2233 = vadd.f32 %v2160, %v2232
        %2234 = vmatmul.f32.gmra.mxu0 %v2178
        %v2235 = vpop.f32.mrf.mxu0
        %v2236 = vadd.f32 %v2165, %v2235
        %2237 = vdwg.mxu0
        %v2238 = vxor.u32 %v2198, 2147483648
        %v2239 = vxor.u32 %v2227, 2147483648
        %v2240 = vxor.u32 %v2201, 2147483648
        %v2241 = vxor.u32 %v2230, 2147483648
        %v2242 = vxor.u32 %v2204, 2147483648
        %v2243 = vxor.u32 %v2233, 2147483648
        %v2244 = vxor.u32 %v2207, 2147483648
        %v2245 = vxor.u32 %v2236, 2147483648
        %v2246 = vmul.f32 %v2238, 1.442695
        %v2247 = vpow.pop %v2246
        %v2248 = vmul.f32 %v2239, 1.442695
        %v2249 = vpow.pop %v2248
        %v2250 = vmul.f32 %v2240, 1.442695
        %v2251 = vpow.pop %v2250
        %v2252 = vmul.f32 %v2241, 1.442695
        %v2253 = vpow.pop %v2252
        %v2254 = vmul.f32 %v2242, 1.442695
        %v2255 = vpow.pop %v2254
        %v2256 = vmul.f32 %v2243, 1.442695
        %v2257 = vpow.pop %v2256
        %v2258 = vmul.f32 %v2244, 1.442695
        %v2259 = vpow.pop %v2258
        %v2260 = vmul.f32 %v2245, 1.442695
        %v2261 = vpow.pop %v2260
        %v2262 = vadd.f32 %v2247, 1.0
        %v2263 = vadd.f32 %v2249, 1.0
        %v2264 = vadd.f32 %v2251, 1.0
        %v2265 = vadd.f32 %v2253, 1.0
        %v2266 = vadd.f32 %v2255, 1.0
        %v2267 = vadd.f32 %v2257, 1.0
        %v2268 = vadd.f32 %v2259, 1.0
        %v2269 = vadd.f32 %v2261, 1.0
        %v2270 = vrcp.pop %v2262
        %v2271 = vmul.f32 %v2262, %v2270
        %v2272 = vsub.f32 1.0, %v2271
        %v2273 = vmul.f32 %v2270, %v2272
        %v2274 = vadd.f32 %v2270, %v2273
        %vm2275 = vweird.f32 %v2262
        %vm2276 = vweird.f32 %v2270
        %vm2277 = vmor %vm2275, %vm2276
        %v2278 = vsel %vm2277, %v2270, %v2274
        %v2279 = vand.u32 2147483647, %v2262
        %vm2280 = vcmp.eq.f32.partialorder %v2279, 8.507059e+37
        %v2281 = vand.u32 %v2262, 2147483648
        %v2282 = vor.u32 1.1754944e-38, %v2281
        %v2283 = vsel %vm2280, %v2282, %v2278
        %v2284 = vmul.f32 1.0, %v2283
        %v2285 = vrcp.pop %v2263
        %v2286 = vmul.f32 %v2263, %v2285
        %v2287 = vsub.f32 1.0, %v2286
        %v2288 = vmul.f32 %v2285, %v2287
        %v2289 = vadd.f32 %v2285, %v2288
        %vm2290 = vweird.f32 %v2263
        %vm2291 = vweird.f32 %v2285
        %vm2292 = vmor %vm2290, %vm2291
        %v2293 = vsel %vm2292, %v2285, %v2289
        %v2294 = vand.u32 2147483647, %v2263
        %vm2295 = vcmp.eq.f32.partialorder %v2294, 8.507059e+37
        %v2296 = vand.u32 %v2263, 2147483648
        %v2297 = vor.u32 1.1754944e-38, %v2296
        %v2298 = vsel %vm2295, %v2297, %v2293
        %v2299 = vmul.f32 1.0, %v2298
        %v2300 = vrcp.pop %v2264
        %v2301 = vmul.f32 %v2264, %v2300
        %v2302 = vsub.f32 1.0, %v2301
        %v2303 = vmul.f32 %v2300, %v2302
        %v2304 = vadd.f32 %v2300, %v2303
        %vm2305 = vweird.f32 %v2264
        %vm2306 = vweird.f32 %v2300
        %vm2307 = vmor %vm2305, %vm2306
        %v2308 = vsel %vm2307, %v2300, %v2304
        %v2309 = vand.u32 2147483647, %v2264
        %vm2310 = vcmp.eq.f32.partialorder %v2309, 8.507059e+37
        %v2311 = vand.u32 %v2264, 2147483648
        %v2312 = vor.u32 1.1754944e-38, %v2311
        %v2313 = vsel %vm2310, %v2312, %v2308
        %v2314 = vmul.f32 1.0, %v2313
        %v2315 = vrcp.pop %v2265
        %v2316 = vmul.f32 %v2265, %v2315
        %v2317 = vsub.f32 1.0, %v2316
        %v2318 = vmul.f32 %v2315, %v2317
        %v2319 = vadd.f32 %v2315, %v2318
        %vm2320 = vweird.f32 %v2265
        %vm2321 = vweird.f32 %v2315
        %vm2322 = vmor %vm2320, %vm2321
        %v2323 = vsel %vm2322, %v2315, %v2319
        %v2324 = vand.u32 2147483647, %v2265
        %vm2325 = vcmp.eq.f32.partialorder %v2324, 8.507059e+37
        %v2326 = vand.u32 %v2265, 2147483648
        %v2327 = vor.u32 1.1754944e-38, %v2326
        %v2328 = vsel %vm2325, %v2327, %v2323
        %v2329 = vmul.f32 1.0, %v2328
        %v2330 = vrcp.pop %v2266
        %v2331 = vmul.f32 %v2266, %v2330
        %v2332 = vsub.f32 1.0, %v2331
        %v2333 = vmul.f32 %v2330, %v2332
        %v2334 = vadd.f32 %v2330, %v2333
        %vm2335 = vweird.f32 %v2266
        %vm2336 = vweird.f32 %v2330
        %vm2337 = vmor %vm2335, %vm2336
        %v2338 = vsel %vm2337, %v2330, %v2334
        %v2339 = vand.u32 2147483647, %v2266
        %vm2340 = vcmp.eq.f32.partialorder %v2339, 8.507059e+37
        %v2341 = vand.u32 %v2266, 2147483648
        %v2342 = vor.u32 1.1754944e-38, %v2341
        %v2343 = vsel %vm2340, %v2342, %v2338
        %v2344 = vmul.f32 1.0, %v2343
        %v2345 = vrcp.pop %v2267
        %v2346 = vmul.f32 %v2267, %v2345
        %v2347 = vsub.f32 1.0, %v2346
        %v2348 = vmul.f32 %v2345, %v2347
        %v2349 = vadd.f32 %v2345, %v2348
        %vm2350 = vweird.f32 %v2267
        %vm2351 = vweird.f32 %v2345
        %vm2352 = vmor %vm2350, %vm2351
        %v2353 = vsel %vm2352, %v2345, %v2349
        %v2354 = vand.u32 2147483647, %v2267
        %vm2355 = vcmp.eq.f32.partialorder %v2354, 8.507059e+37
        %v2356 = vand.u32 %v2267, 2147483648
        %v2357 = vor.u32 1.1754944e-38, %v2356
        %v2358 = vsel %vm2355, %v2357, %v2353
        %v2359 = vmul.f32 1.0, %v2358
        %v2360 = vrcp.pop %v2268
        %v2361 = vmul.f32 %v2268, %v2360
        %v2362 = vsub.f32 1.0, %v2361
        %v2363 = vmul.f32 %v2360, %v2362
        %v2364 = vadd.f32 %v2360, %v2363
        %vm2365 = vweird.f32 %v2268
        %vm2366 = vweird.f32 %v2360
        %vm2367 = vmor %vm2365, %vm2366
        %v2368 = vsel %vm2367, %v2360, %v2364
        %v2369 = vand.u32 2147483647, %v2268
        %vm2370 = vcmp.eq.f32.partialorder %v2369, 8.507059e+37
        %v2371 = vand.u32 %v2268, 2147483648
        %v2372 = vor.u32 1.1754944e-38, %v2371
        %v2373 = vsel %vm2370, %v2372, %v2368
        %v2374 = vmul.f32 1.0, %v2373
        %v2375 = vrcp.pop %v2269
        %v2376 = vmul.f32 %v2269, %v2375
        %v2377 = vsub.f32 1.0, %v2376
        %v2378 = vmul.f32 %v2375, %v2377
        %v2379 = vadd.f32 %v2375, %v2378
        %vm2380 = vweird.f32 %v2269
        %vm2381 = vweird.f32 %v2375
        %vm2382 = vmor %vm2380, %vm2381
        %v2383 = vsel %vm2382, %v2375, %v2379
        %v2384 = vand.u32 2147483647, %v2269
        %vm2385 = vcmp.eq.f32.partialorder %v2384, 8.507059e+37
        %v2386 = vand.u32 %v2269, 2147483648
        %v2387 = vor.u32 1.1754944e-38, %v2386
        %v2388 = vsel %vm2385, %v2387, %v2383
        %v2389 = vmul.f32 1.0, %v2388
        %v2390 = vld [vmem:[#allocation5] sm:$0xff]
        %v2391 = vld [vmem:[#allocation5 + $0x8] sm:$0xff]
        %v2392 = vld [vmem:[#allocation5 + $0x10] sm:$0xff]
        %v2393 = vld [vmem:[#allocation5 + $0x18] sm:$0xff]
        %v2394 = vld [vmem:[#allocation5 + $0x20] sm:$0xff]
        %v2395 = vld [vmem:[#allocation5 + $0x28] sm:$0xff]
        %v2396 = vld [vmem:[#allocation5 + $0x30] sm:$0xff]
        %v2397 = vld [vmem:[#allocation5 + $0x38] sm:$0xff]
        %v2398 = vmul.f32 %v2284, %v2390
        %v2399 = vmul.f32 %v2299, %v2391
        %v2400 = vmul.f32 %v2314, %v2392
        %v2401 = vmul.f32 %v2329, %v2393
        %v2402 = vmul.f32 %v2344, %v2394
        %v2403 = vmul.f32 %v2359, %v2395
        %v2404 = vmul.f32 %v2374, %v2396
        %v2405 = vmul.f32 %v2389, %v2397
        %v2406 = vld [vmem:[%s9] sm:$0xff]
        %v2407 = vld [vmem:[%s9 + $0x8] sm:$0xff]
        %v2408 = vld [vmem:[%s9 + $0x10] sm:$0xff]
        %v2409 = vld [vmem:[%s9 + $0x18] sm:$0xff]
        %v2410 = vld [vmem:[%s10] sm:$0xff]
        %v2411 = vld [vmem:[%s10 + $0x8] sm:$0xff]
        %v2412 = vld [vmem:[%s10 + $0x10] sm:$0xff]
        %v2413 = vld [vmem:[%s10 + $0x18] sm:$0xff]
        %2415 = vset.pattern.permute.xlu0 0
        %2416 = vperm.xlu0 %2415, %v2410
        %v2417 = vpop.permute.xlu0 %2416
        %2420 = vset.pattern.permute.xlu0 0
        %2421 = vperm.xlu0 %2420, %v2411
        %v2422 = vpop.permute.xlu0 %2421
        %2425 = vset.pattern.permute.xlu0 0
        %2426 = vperm.xlu0 %2425, %v2412
        %v2427 = vpop.permute.xlu0 %2426
        %2430 = vset.pattern.permute.xlu0 0
        %2431 = vperm.xlu0 %2430, %v2413
        %v2432 = vpop.permute.xlu0 %2431
        %vm2434 = vcmask 261120
        %v2436 = vsel %vm2434, %v2406, 0
        %v2439 = vsel %vm2434, %v2407, 0
        %v2442 = vsel %vm2434, %v2408, 0
        %v2445 = vsel %vm2434, %v2409, 0
        %2447 = vmatpush.msra.mxu0 0.0
        %2448 = vmatpush.msra.mxu0 0.0
        %2449 = vmatpush.msra.mxu0 0.0
        %2450 = vmatpush.msra.mxu0 0.0
        %2451 = vmatpush.msra.mxu0 0.0
        %2452 = vmatpush.msra.mxu0 0.0
        %2453 = vmatpush.msra.mxu0 0.0
        %2454 = vmatpush.msra.mxu0 0.0
        %2455 = vmatpush.msra.mxu0 0.0
        %2456 = vmatpush.msra.mxu0 0.0
        %2457 = vmatpush.msra.mxu0 0.0
        %2458 = vmatpush.msra.mxu0 0.0
        %2459 = vmatpush.msra.mxu0 %v2404
        %2460 = vmatpush.msra.mxu0 %v2402
        %2461 = vmatpush.msra.mxu0 %v2400
        %2462 = vmatpush.msra.mxu0 %v2398
        %2463 = vmatmul.f32.gmra.mxu0 %v2436
        %v2464 = vpop.f32.mrf.mxu0
        %v2465 = vadd.f32 %v2417, %v2464
        %2466 = vmatmul.f32.gmra.mxu0 %v2439
        %v2467 = vpop.f32.mrf.mxu0
        %v2468 = vadd.f32 %v2422, %v2467
        %2469 = vmatmul.f32.gmra.mxu0 %v2442
        %v2470 = vpop.f32.mrf.mxu0
        %v2471 = vadd.f32 %v2427, %v2470
        %2472 = vmatmul.f32.gmra.mxu0 %v2445
        %v2473 = vpop.f32.mrf.mxu0
        %v2474 = vadd.f32 %v2432, %v2473
        %2475 = vdwg.mxu0
        %2476 = vmatpush.msra.mxu0 0.0
        %2477 = vmatpush.msra.mxu0 0.0
        %2478 = vmatpush.msra.mxu0 0.0
        %2479 = vmatpush.msra.mxu0 0.0
        %2480 = vmatpush.msra.mxu0 0.0
        %2481 = vmatpush.msra.mxu0 0.0
        %2482 = vmatpush.msra.mxu0 0.0
        %2483 = vmatpush.msra.mxu0 0.0
        %2484 = vmatpush.msra.mxu0 0.0
        %2485 = vmatpush.msra.mxu0 0.0
        %2486 = vmatpush.msra.mxu0 0.0
        %2487 = vmatpush.msra.mxu0 0.0
        %2488 = vmatpush.msra.mxu0 %v2405
        %2489 = vmatpush.msra.mxu0 %v2403
        %2490 = vmatpush.msra.mxu0 %v2401
        %2491 = vmatpush.msra.mxu0 %v2399
        %2492 = vmatmul.f32.gmra.mxu0 %v2436
        %v2493 = vpop.f32.mrf.mxu0
        %v2494 = vadd.f32 %v2417, %v2493
        %2495 = vmatmul.f32.gmra.mxu0 %v2439
        %v2496 = vpop.f32.mrf.mxu0
        %v2497 = vadd.f32 %v2422, %v2496
        %2498 = vmatmul.f32.gmra.mxu0 %v2442
        %v2499 = vpop.f32.mrf.mxu0
        %v2500 = vadd.f32 %v2427, %v2499
        %2501 = vmatmul.f32.gmra.mxu0 %v2445
        %v2502 = vpop.f32.mrf.mxu0
        %v2503 = vadd.f32 %v2432, %v2502
        %2504 = vdwg.mxu0
        %vm2505 = vcmp.ge.f32.partialorder %v2465, 0.0
        %vm2506 = vcmp.ge.f32.partialorder %v2494, 0.0
        %vm2507 = vcmp.ge.f32.partialorder %v2468, 0.0
        %vm2508 = vcmp.ge.f32.partialorder %v2497, 0.0
        %vm2509 = vcmp.ge.f32.partialorder %v2471, 0.0
        %vm2510 = vcmp.ge.f32.partialorder %v2500, 0.0
        %vm2511 = vcmp.ge.f32.partialorder %v2474, 0.0
        %vm2512 = vcmp.ge.f32.partialorder %v2503, 0.0
        %v2513 = vmul.f32 %v2465, 0.1
        %v2514 = vmul.f32 %v2494, 0.1
        %v2515 = vmul.f32 %v2468, 0.1
        %v2516 = vmul.f32 %v2497, 0.1
        %v2517 = vmul.f32 %v2471, 0.1
        %v2518 = vmul.f32 %v2500, 0.1
        %v2519 = vmul.f32 %v2474, 0.1
        %v2520 = vmul.f32 %v2503, 0.1
        %v2521 = vsel %vm2505, %v2465, %v2513
        %v2522 = vsel %vm2506, %v2494, %v2514
        %v2523 = vsel %vm2507, %v2468, %v2515
        %v2524 = vsel %vm2508, %v2497, %v2516
        %v2525 = vsel %vm2509, %v2471, %v2517
        %v2526 = vsel %vm2510, %v2500, %v2518
        %v2527 = vsel %vm2511, %v2474, %v2519
        %v2528 = vsel %vm2512, %v2503, %v2520
        %v2529 = vld [vmem:[%s566] sm:$0xff]
        %v2530 = vld [vmem:[%s566 + $0x8] sm:$0xff]
        %v2531 = vld [vmem:[%s566 + $0x10] sm:$0xff]
        %v2532 = vld [vmem:[%s566 + $0x18] sm:$0xff]
        %v2533 = vld [vmem:[%s11] sm:$0xff]
        %v2534 = vld [vmem:[%s11 + $0x8] sm:$0xff]
        %v2535 = vld [vmem:[%s12] sm:$0xff]
        %v2536 = vld [vmem:[%s12 + $0x8] sm:$0xff]
        %2538 = vset.pattern.permute.xlu0 0
        %2539 = vperm.xlu0 %2538, %v2535
        %v2540 = vpop.permute.xlu0 %2539
        %2543 = vset.pattern.permute.xlu0 0
        %2544 = vperm.xlu0 %2543, %v2536
        %v2545 = vpop.permute.xlu0 %2544
        %v2548 = vsel %vm2167, %v2533, 0
        %v2551 = vsel %vm2167, %v2534, 0
        %2553 = vmatpush.msra.mxu0 0.0
        %2554 = vmatpush.msra.mxu0 0.0
        %2555 = vmatpush.msra.mxu0 0.0
        %2556 = vmatpush.msra.mxu0 0.0
        %2557 = vmatpush.msra.mxu0 0.0
        %2558 = vmatpush.msra.mxu0 0.0
        %2559 = vmatpush.msra.mxu0 0.0
        %2560 = vmatpush.msra.mxu0 0.0
        %2561 = vmatpush.msra.mxu0 0.0
        %2562 = vmatpush.msra.mxu0 0.0
        %2563 = vmatpush.msra.mxu0 0.0
        %2564 = vmatpush.msra.mxu0 0.0
        %2565 = vmatpush.msra.mxu0 0.0
        %2566 = vmatpush.msra.mxu0 0.0
        %2567 = vmatpush.msra.mxu0 %v2531
        %2568 = vmatpush.msra.mxu0 %v2529
        %2569 = vmatmul.f32.gmra.mxu0 %v2548
        %v2570 = vpop.f32.mrf.mxu0
        %v2571 = vadd.f32 %v2540, %v2570
        %2572 = vmatmul.f32.gmra.mxu0 %v2551
        %v2573 = vpop.f32.mrf.mxu0
        %v2574 = vadd.f32 %v2545, %v2573
        %2575 = vdwg.mxu0
        %2576 = vmatpush.msra.mxu0 0.0
        %2577 = vmatpush.msra.mxu0 0.0
        %2578 = vmatpush.msra.mxu0 0.0
        %2579 = vmatpush.msra.mxu0 0.0
        %2580 = vmatpush.msra.mxu0 0.0
        %2581 = vmatpush.msra.mxu0 0.0
        %2582 = vmatpush.msra.mxu0 0.0
        %2583 = vmatpush.msra.mxu0 0.0
        %2584 = vmatpush.msra.mxu0 0.0
        %2585 = vmatpush.msra.mxu0 0.0
        %2586 = vmatpush.msra.mxu0 0.0
        %2587 = vmatpush.msra.mxu0 0.0
        %2588 = vmatpush.msra.mxu0 0.0
        %2589 = vmatpush.msra.mxu0 0.0
        %2590 = vmatpush.msra.mxu0 %v2532
        %2591 = vmatpush.msra.mxu0 %v2530
        %2592 = vmatmul.f32.gmra.mxu0 %v2548
        %v2593 = vpop.f32.mrf.mxu0
        %v2594 = vadd.f32 %v2540, %v2593
        %2595 = vmatmul.f32.gmra.mxu0 %v2551
        %v2596 = vpop.f32.mrf.mxu0
        %v2597 = vadd.f32 %v2545, %v2596
        %2598 = vdwg.mxu0
        %vm2599 = vcmp.ge.f32.partialorder %v2571, 0.0
        %vm2600 = vcmp.ge.f32.partialorder %v2594, 0.0
        %vm2601 = vcmp.ge.f32.partialorder %v2574, 0.0
        %vm2602 = vcmp.ge.f32.partialorder %v2597, 0.0
        %v2603 = vmul.f32 %v2571, 0.1
        %v2604 = vmul.f32 %v2594, 0.1
        %v2605 = vmul.f32 %v2574, 0.1
        %v2606 = vmul.f32 %v2597, 0.1
        %v2607 = vsel %vm2599, %v2571, %v2603
        %v2608 = vsel %vm2600, %v2594, %v2604
        %v2609 = vsel %vm2601, %v2574, %v2605
        %v2610 = vsel %vm2602, %v2597, %v2606
        %v2611 = vld [vmem:[%s13] sm:$0xff]
        %v2612 = vld [vmem:[%s13 + $0x8] sm:$0xff]
        %v2613 = vld [vmem:[%s14] sm:$0xff]
        %v2614 = vld [vmem:[%s14 + $0x8] sm:$0xff]
        %2616 = vset.pattern.permute.xlu0 0
        %2617 = vperm.xlu0 %2616, %v2613
        %v2618 = vpop.permute.xlu0 %2617
        %2621 = vset.pattern.permute.xlu0 0
        %2622 = vperm.xlu0 %2621, %v2614
        %v2623 = vpop.permute.xlu0 %2622
        %v2626 = vsel %vm2434, %v2611, 0
        %v2629 = vsel %vm2434, %v2612, 0
        %2631 = vmatpush.msra.mxu0 0.0
        %2632 = vmatpush.msra.mxu0 0.0
        %2633 = vmatpush.msra.mxu0 0.0
        %2634 = vmatpush.msra.mxu0 0.0
        %2635 = vmatpush.msra.mxu0 0.0
        %2636 = vmatpush.msra.mxu0 0.0
        %2637 = vmatpush.msra.mxu0 0.0
        %2638 = vmatpush.msra.mxu0 0.0
        %2639 = vmatpush.msra.mxu0 0.0
        %2640 = vmatpush.msra.mxu0 0.0
        %2641 = vmatpush.msra.mxu0 0.0
        %2642 = vmatpush.msra.mxu0 0.0
        %2643 = vmatpush.msra.mxu0 %v2527
        %2644 = vmatpush.msra.mxu0 %v2525
        %2645 = vmatpush.msra.mxu0 %v2523
        %2646 = vmatpush.msra.mxu0 %v2521
        %2647 = vmatmul.f32.gmra.mxu0 %v2626
        %v2648 = vpop.f32.mrf.mxu0
        %v2649 = vadd.f32 %v2618, %v2648
        %2650 = vmatmul.f32.gmra.mxu0 %v2629
        %v2651 = vpop.f32.mrf.mxu0
        %v2652 = vadd.f32 %v2623, %v2651
        %2653 = vdwg.mxu0
        %2654 = vmatpush.msra.mxu0 0.0
        %2655 = vmatpush.msra.mxu0 0.0
        %2656 = vmatpush.msra.mxu0 0.0
        %2657 = vmatpush.msra.mxu0 0.0
        %2658 = vmatpush.msra.mxu0 0.0
        %2659 = vmatpush.msra.mxu0 0.0
        %2660 = vmatpush.msra.mxu0 0.0
        %2661 = vmatpush.msra.mxu0 0.0
        %2662 = vmatpush.msra.mxu0 0.0
        %2663 = vmatpush.msra.mxu0 0.0
        %2664 = vmatpush.msra.mxu0 0.0
        %2665 = vmatpush.msra.mxu0 0.0
        %2666 = vmatpush.msra.mxu0 %v2528
        %2667 = vmatpush.msra.mxu0 %v2526
        %2668 = vmatpush.msra.mxu0 %v2524
        %2669 = vmatpush.msra.mxu0 %v2522
        %2670 = vmatmul.f32.gmra.mxu0 %v2626
        %v2671 = vpop.f32.mrf.mxu0
        %v2672 = vadd.f32 %v2618, %v2671
        %2673 = vmatmul.f32.gmra.mxu0 %v2629
        %v2674 = vpop.f32.mrf.mxu0
        %v2675 = vadd.f32 %v2623, %v2674
        %2676 = vdwg.mxu0
        %vm2677 = vcmp.ge.f32.partialorder %v2649, 0.0
        %vm2678 = vcmp.ge.f32.partialorder %v2672, 0.0
        %vm2679 = vcmp.ge.f32.partialorder %v2652, 0.0
        %vm2680 = vcmp.ge.f32.partialorder %v2675, 0.0
        %v2681 = vmul.f32 %v2649, 0.1
        %v2682 = vmul.f32 %v2672, 0.1
        %v2683 = vmul.f32 %v2652, 0.1
        %v2684 = vmul.f32 %v2675, 0.1
        %v2685 = vsel %vm2677, %v2649, %v2681
        %v2686 = vsel %vm2678, %v2672, %v2682
        %v2687 = vsel %vm2679, %v2652, %v2683
        %v2688 = vsel %vm2680, %v2675, %v2684
        %2689 = vst [vmem:[%s619] sm:$0xff] %v2607
        %2690 = vst [vmem:[%s619 + $0x8] sm:$0xff] %v2608
        %2691 = vst [vmem:[%s619 + $0x10] sm:$0xff] %v2609
        %2692 = vst [vmem:[%s619 + $0x18] sm:$0xff] %v2610
        %2693 = vst [vmem:[%s625] sm:$0xff] %v2685
        %2694 = vst [vmem:[%s625 + $0x8] sm:$0xff] %v2686
        %2695 = vst [vmem:[%s625 + $0x10] sm:$0xff] %v2687
        %2696 = vst [vmem:[%s625 + $0x18] sm:$0xff] %v2688
        %p2697 = scmp.eq.s32.totalorder %s34, 0
        // Predicated region
        $region118: #{clfm_forward.4} parent=98 // pred_check
          %p2698 = pneg %p2697
        $region119: #{clfm_forward.4} parent=98 // pred_check_branch
          %2700 = sbr.rel (%p2698) target = $region121
        $region120: #{clfm_forward.4} parent=98 // pred_region
          %2701 = vst.msk [vmem:[%s650] sm:$0xff] %vm901, 0.0
          %2702 = vst.msk [vmem:[%s650 + $0x8] sm:$0xff] %vm901, 0.0
        $region121: #{clfm_forward.4} parent=98 // pred_fallthru
          _
        %v2703 = vld [vmem:[%s650] sm:$0xff]
        %v2704 = vld [vmem:[%s650 + $0x8] sm:$0xff]
        %v2705 = vadd.f32 %v2607, %v2685
        %v2706 = vadd.f32 %v2608, %v2686
        %v2707 = vadd.f32 %v2609, %v2687
        %v2708 = vadd.f32 %v2610, %v2688
        %v2709 = vadd.f32 %v2705, %v2706
        %2710 = vadd.xlane.f32.xlu0 %v2709
        %v2711 = vpop.xlane.xlu0 %2710
        %v2712 = vadd.f32 %v2707, %v2708
        %2713 = vadd.xlane.f32.xlu0 %v2712
        %v2714 = vpop.xlane.xlu0 %2713
        %v2715 = vadd.f32 %v2703, %v2711
        %v2716 = vadd.f32 %v2704, %v2714
        %2717 = vst.msk [vmem:[%s650] sm:$0xff] %vm901, %v2715
        %2718 = vst.msk [vmem:[%s650 + $0x8] sm:$0xff] %vm901, %v2716
        %s2719 = sand.u32 %s383, 1
        %s2720 = sand.u32 %s383, 1
        %s2721 = smul.addr %s2720, 32
        %s2722 = scalar_lea.vmem [#allocation7], %s2721
        %s2723 = sand.u32 %s411, 1
        %s2724 = sand.u32 %s411, 1
        %s2725 = smul.addr %s2724, 32
        %s2726 = scalar_lea.vmem [#allocation8], %s2725
        %p2727 = scmp.lt.s32.totalorder %s33, 1
        %s2728 = scalar_select %p2727, %s33, 1
        %s2729 = smul.addr %s2728, 2
        %s2730 = smul.addr %s2729, 8
        %s2731 = scalar_lea.vmem %s17, %s2730
        // Predicated region
        $region122: #{clfm_forward.4} parent=98 // pred_check
          %p2732 = pneg %p393
        $region123: #{clfm_forward.4} parent=98 // pred_check_branch
          %2734 = sbr.rel (%p2732) target = $region125
        $region124: #{clfm_forward.4} parent=98 // pred_region
          %s2735 = smul.u32 2, %s34
          %s2736 = smul.addr %s33, 8
          %s2737 = sadd.s32 %s2735, %s2736
          %s2738 = smul.addr %s2737, 8
          %s2739 = scalar_lea.vmem %s15, %s2738
          // Predicated region
          $region126: #{clfm_forward.4} parent=124 // pred_check
            _
          $region127: #{clfm_forward.4} parent=124 // pred_check_branch
            %2741 = sbr.rel (0) target = $region129
          $region128: #{clfm_forward.4} parent=124 // pred_region
            // Predicated region
            $region130: #{clfm_forward.4} parent=128 // pred_check
              _
            $region131: #{clfm_forward.4} parent=128 // pred_check_branch
              %2743 = sbr.rel (0) target = $region133
            $region132: #{clfm_forward.4} parent=128 // pred_region
              loop: start=0, step=1, limit=1
              $region134: #{clfm_forward.4} parent=132 // loop_pre_header
                _
              $region135: #{clfm_forward.4} parent=132 // loop_header
                %s2745 = sphi 0, %s2749
                %p2746 = scmp.ge.s32.totalorder %s2745, 1
                %s2750 = sphi %s2722, %s2722
                %s2751 = sphi %s2739, %s2739
              $region136: #{clfm_forward.4} parent=132 // loop_header_branch
                %2748 = sbr.rel (%p2746) target = $region140
              $region137: #{clfm_forward.4} parent=132 // loop_body
                %v2752 = vld [vmem:[%s2750] sm:$0xff]
                %2753 = vst [vmem:[%s2751] sm:$0xff] %v2752
                %v2754 = vld [vmem:[%s2750 + $0x8] sm:$0xff]
                %2755 = vst [vmem:[%s2751 + $0x8] sm:$0xff] %v2754
                %v2756 = vld [vmem:[%s2750 + $0x10] sm:$0xff]
                %2757 = vst [vmem:[%s2751 + $0x20] sm:$0xff] %v2756
                %v2758 = vld [vmem:[%s2750 + $0x18] sm:$0xff]
                %2759 = vst [vmem:[%s2751 + $0x28] sm:$0xff] %v2758
              $region138: #{clfm_forward.4} parent=132 // loop_footer
                %s2749 = sadd.s32 1, %s2745
              $region139: #{clfm_forward.4} parent=132 // loop_footer_branch
                %2744 = sbr.rel target = $region135
              $region140: #{clfm_forward.4} parent=132 // loop_exit
                _
            $region133: #{clfm_forward.4} parent=128 // pred_fallthru
              _
            // Predicated region
            $region141: #{clfm_forward.4} parent=128 // pred_check
              _
            $region142: #{clfm_forward.4} parent=128 // pred_check_branch
              %2761 = sbr.rel target = $region144
            $region143: #{clfm_forward.4} parent=128 // pred_region
              _
            $region144: #{clfm_forward.4} parent=128 // pred_fallthru
              _
          $region129: #{clfm_forward.4} parent=124 // pred_fallthru
            _
          %2762 = vnop
        $region125: #{clfm_forward.4} parent=98 // pred_fallthru
          _
        // Predicated region
        $region145: #{clfm_forward.4} parent=98 // pred_check
          %p2763 = pneg %p421
        $region146: #{clfm_forward.4} parent=98 // pred_check_branch
          %2765 = sbr.rel (%p2763) target = $region148
        $region147: #{clfm_forward.4} parent=98 // pred_region
          %s2766 = smul.u32 2, %s34
          %s2767 = smul.addr %s33, 8
          %s2768 = sadd.s32 %s2766, %s2767
          %s2769 = smul.addr %s2768, 8
          %s2770 = scalar_lea.vmem %s16, %s2769
          // Predicated region
          $region149: #{clfm_forward.4} parent=147 // pred_check
            _
          $region150: #{clfm_forward.4} parent=147 // pred_check_branch
            %2772 = sbr.rel (0) target = $region152
          $region151: #{clfm_forward.4} parent=147 // pred_region
            // Predicated region
            $region153: #{clfm_forward.4} parent=151 // pred_check
              _
            $region154: #{clfm_forward.4} parent=151 // pred_check_branch
              %2774 = sbr.rel (0) target = $region156
            $region155: #{clfm_forward.4} parent=151 // pred_region
              loop: start=0, step=1, limit=1
              $region157: #{clfm_forward.4} parent=155 // loop_pre_header
                _
              $region158: #{clfm_forward.4} parent=155 // loop_header
                %s2776 = sphi 0, %s2780
                %p2777 = scmp.ge.s32.totalorder %s2776, 1
                %s2781 = sphi %s2726, %s2726
                %s2782 = sphi %s2770, %s2770
              $region159: #{clfm_forward.4} parent=155 // loop_header_branch
                %2779 = sbr.rel (%p2777) target = $region163
              $region160: #{clfm_forward.4} parent=155 // loop_body
                %v2783 = vld [vmem:[%s2781] sm:$0xff]
                %2784 = vst [vmem:[%s2782] sm:$0xff] %v2783
                %v2785 = vld [vmem:[%s2781 + $0x8] sm:$0xff]
                %2786 = vst [vmem:[%s2782 + $0x8] sm:$0xff] %v2785
                %v2787 = vld [vmem:[%s2781 + $0x10] sm:$0xff]
                %2788 = vst [vmem:[%s2782 + $0x20] sm:$0xff] %v2787
                %v2789 = vld [vmem:[%s2781 + $0x18] sm:$0xff]
                %2790 = vst [vmem:[%s2782 + $0x28] sm:$0xff] %v2789
              $region161: #{clfm_forward.4} parent=155 // loop_footer
                %s2780 = sadd.s32 1, %s2776
              $region162: #{clfm_forward.4} parent=155 // loop_footer_branch
                %2775 = sbr.rel target = $region158
              $region163: #{clfm_forward.4} parent=155 // loop_exit
                _
            $region156: #{clfm_forward.4} parent=151 // pred_fallthru
              _
            // Predicated region
            $region164: #{clfm_forward.4} parent=151 // pred_check
              _
            $region165: #{clfm_forward.4} parent=151 // pred_check_branch
              %2792 = sbr.rel target = $region167
            $region166: #{clfm_forward.4} parent=151 // pred_region
              _
            $region167: #{clfm_forward.4} parent=151 // pred_fallthru
              _
          $region152: #{clfm_forward.4} parent=147 // pred_fallthru
            _
          %2793 = vnop
        $region148: #{clfm_forward.4} parent=98 // pred_fallthru
          _
        // Predicated region
        $region168: #{clfm_forward.4} parent=98 // pred_check
          %p2794 = pneg %p447
        $region169: #{clfm_forward.4} parent=98 // pred_check_branch
          %2796 = sbr.rel (%p2794) target = $region171
        $region170: #{clfm_forward.4} parent=98 // pred_region
          _
        $region171: #{clfm_forward.4} parent=98 // pred_fallthru
          _
      $region99: #{clfm_forward.4} parent=5 // pred_fallthru
        _
      %p2797 = scmp.le.s32.totalorder 2, %s24
      // Predicated region
      $region172: #{clfm_forward.4} parent=5 // pred_check
        %p2798 = pneg %p2797
      $region173: #{clfm_forward.4} parent=5 // pred_check_branch
        %2800 = sbr.rel (%p2798) target = $region175
      $region174: #{clfm_forward.4} parent=5 // pred_region
        %s2801 = ssub.s32 %s24, 2
        // Predicated region
        $region176: #{clfm_forward.4} parent=174 // pred_check
          %p2802 = pneg %p399
        $region177: #{clfm_forward.4} parent=174 // pred_check_branch
          %2804 = sbr.rel (%p2802) target = $region179
        $region178: #{clfm_forward.4} parent=174 // pred_region
          %s2805 = sand.u32 %s384, 1
          %s2806 = sand.u32 %s384, 1
          %s2807 = smul.addr %s2806, 32
          %s2808 = scalar_lea.vmem [#allocation7], %s2807
        $region179: #{clfm_forward.4} parent=174 // pred_fallthru
          _
        // Predicated region
        $region180: #{clfm_forward.4} parent=174 // pred_check
          %p2809 = pneg %p427
        $region181: #{clfm_forward.4} parent=174 // pred_check_branch
          %2811 = sbr.rel (%p2809) target = $region183
        $region182: #{clfm_forward.4} parent=174 // pred_region
          %s2812 = sand.u32 %s412, 1
          %s2813 = sand.u32 %s412, 1
          %s2814 = smul.addr %s2813, 32
          %s2815 = scalar_lea.vmem [#allocation8], %s2814
        $region183: #{clfm_forward.4} parent=174 // pred_fallthru
          _
        // Predicated region
        $region184: #{clfm_forward.4} parent=174 // pred_check
          %p2816 = pneg %p453
        $region185: #{clfm_forward.4} parent=174 // pred_check_branch
          %2818 = sbr.rel (%p2816) target = $region187
        $region186: #{clfm_forward.4} parent=174 // pred_region
          %p2819 = scmp.lt.s32.totalorder %s35, 1
          %s2820 = scalar_select %p2819, %s35, 1
          %s2821 = smul.addr %s2820, 2
          %s2822 = smul.addr %s2821, 8
          %s2823 = scalar_lea.vmem %s17, %s2822
        $region187: #{clfm_forward.4} parent=174 // pred_fallthru
          _
      $region175: #{clfm_forward.4} parent=5 // pred_fallthru
        _
    $region6: #{clfm_forward.4} parent=1 // loop_footer
      %s28 = sadd.s32 1, %s24
    $region7: #{clfm_forward.4} parent=1 // loop_footer_branch
      %23 = sbr.rel target = $region3
    $region8: #{clfm_forward.4} parent=1 // loop_exit
      _

</llo_original>
